<compile_context>
chip_gen: v7x
topology: tpu7x:2x2x1
jax: 0.10.0
libtpu: 0.0.40
codegen_flags: <defaults>
</compile_context>

<pallas_src>
import jax
import jax.numpy as jnp
from jax.experimental import pallas as pl
from jax.experimental.pallas import tpu as pltpu

LANE = 128


# ----------------------------- in-kernel math ------------------------------


def _leaky_relu(x, slope=0.1):
    return jnp.maximum(x, slope * x)


def _sigmoid(x):
    # Numerically stable logistic; exp goes to the EUP.
    e = jnp.exp(-jnp.abs(x))
    return jnp.where(x >= 0.0, 1.0, e) / (1.0 + e)


def _bmm(w, x):
    """w (Cout, K) applied per h to x (Hc, K, B) -> (Hc, Cout, B).
    bf16 operands (native MXU mode), f32 accumulation."""
    hc = x.shape[0]
    wb = jnp.broadcast_to(w[None], (hc,) + w.shape)          # (Hc, Cout, K)
    return jax.lax.dot_general(
        wb, x.astype(jnp.bfloat16),
        dimension_numbers=(((2,), (1,)), ((0,), (0,))),
        preferred_element_type=jnp.float32)                   # (Hc, Cout, B)


def _conv_c1(x2d, w_ref, b_ref):
    """Conv2d(1, Cout, (3,1), stride 1, pad (1,0)) on (H, B) -> (H, Cout, B).
    Per-tap K == 1 -> pure VPU broadcast multiply-add."""
    w = w_ref[...]                                            # (Cout, 3)
    b = b_ref[...]                                            # (Cout, 1)
    hh, bt = x2d.shape
    x = x2d.reshape(hh, 1, bt)
    zero = jnp.zeros((1, 1, bt), x.dtype)
    xp = jnp.concatenate([zero, x, zero], axis=0)             # (H+2, 1, B)
    y = (xp[0:hh] * w[None, :, 0:1]                           # x[h-1]
         + xp[1:hh + 1] * w[None, :, 1:2]                     # x[h]
         + xp[2:hh + 2] * w[None, :, 2:3])                    # x[h+1]
    return y + b[None]


def _conv_cN(a, w_ref, b_ref):
    """Conv2d(Cin, Cout, (3,1), stride 1, pad (1,0)) on (Hc, Cin, B).
    Cout > 1  -> (Hc, Cout, B) via one fused K=3*Cin matmul per h.
    Cout == 1 -> (Hc, B) via a sublane reduction (sublane-dense result)."""
    w = w_ref[...]                                            # (Cout, 3*Cin)
    b = b_ref[...]                                            # (Cout, 1)
    hc, cin, bt = a.shape
    cout = b.shape[0]
    zero = jnp.zeros((1, cin, bt), a.dtype)
    apad = jnp.concatenate([zero, a, zero], axis=0)           # one padded copy
    xcat = jnp.concatenate(
        [apad[0:hc], apad[1:hc + 1], apad[2:hc + 2]], axis=1)  # (Hc, 3Cin, B)
    if cout == 1:
        y = jnp.sum(xcat * w[:, :, None], axis=1, keepdims=True)
        return y.reshape(hc, bt) + b[0, 0]
    return _bmm(w, xcat) + b[None]


def _maxpool_h2(a):
    """MaxPool2d((2,1),(2,1)) along H: out[t] = max(a[2t], a[2t+1])."""
    hc, c, bt = a.shape
    ar = a.reshape(hc // 2, 2, c, bt)                         # leading-dim split
    return jnp.maximum(ar[:, 0], ar[:, 1])


def _convT_s2(a, we_ref, wo_ref, b_ref):
    """ConvTranspose2d((3,1), stride (2,1), pad (1,0), out_pad (1,0)):
        out[2t]   = x[t]   @ W[:, :, 1]
        out[2t+1] = x[t+1] @ W[:, :, 0] + x[t] @ W[:, :, 2]    (x[Hc] := 0)"""
    we = we_ref[...]                                          # (Cout, Cin)
    wo = wo_ref[...]                                          # (Cout, 2*Cin)
    b = b_ref[...]                                            # (Cout, 1)
    hc, cin, bt = a.shape
    cout = we.shape[0]
    zero = jnp.zeros((1, cin, bt), a.dtype)
    an = jnp.concatenate([a[1:], zero], axis=0)               # x[t+1]
    y_even = _bmm(we, a) + b[None]
    y_odd = _bmm(wo, jnp.concatenate([an, a], axis=1)) + b[None]
    y = jnp.stack([y_even, y_odd], axis=1)                    # (Hc, 2, Cout, B)
    return y.reshape(2 * hc, cout, bt)                        # interleave on H


# ------------------------------- the kernel --------------------------------


def cae_kernel(x_ref,
               w1_ref, b1_ref, w2_ref, b2_ref, w3_ref, b3_ref,
               u1e_ref, u1o_ref, ub1_ref, u2e_ref, u2o_ref, ub2_ref,
               wl_ref, bl_ref, out_ref):
    hh, bt = x_ref.shape[-2], x_ref.shape[-1]

    def pipeline(x2d):                                        # (H, B) -> (H, B)
        h = _leaky_relu(_conv_c1(x2d, w1_ref, b1_ref))        # conv1 + leaky_relu1
        h = _maxpool_h2(h)                                    # pool1
        h = _leaky_relu(_conv_cN(h, w2_ref, b2_ref))          # conv2 + leaky_relu2
        h = _maxpool_h2(h)                                    # encoding
        h = _leaky_relu(_conv_cN(h, w3_ref, b3_ref))          # conv3 + leaky_relu3
        h = _convT_s2(h, u1e_ref, u1o_ref, ub1_ref)           # upsample1
        h = _convT_s2(h, u2e_ref, u2o_ref, ub2_ref)           # upsample2
        return _sigmoid(_conv_cN(h, wl_ref, bl_ref))          # logits + recon

    x = x_ref[...].reshape(hh, bt).astype(jnp.float32)
    # encoder and decoder alias the same 12-layer stack -> apply it twice.
    y = pipeline(pipeline(x))
    out_ref[...] = y.reshape(out_ref.shape).astype(out_ref.dtype)


# --------------------------- parameters / weights ---------------------------


def init_params(key):
    """PyTorch-default-style uniform(-1/sqrt(fan_in), 1/sqrt(fan_in)) init."""
    def conv_init(k, cout, cin, kh):
        k1, k2 = jax.random.split(k)
        bound = 1.0 / float(cin * kh) ** 0.5
        w = jax.random.uniform(k1, (cout, cin, kh, 1), jnp.float32, -bound, bound)
        b = jax.random.uniform(k2, (cout,), jnp.float32, -bound, bound)
        return w, b

    def convT_init(k, cin, cout, kh):
        k1, k2 = jax.random.split(k)
        bound = 1.0 / float(cout * kh) ** 0.5
        w = jax.random.uniform(k1, (cin, cout, kh, 1), jnp.float32, -bound, bound)
        b = jax.random.uniform(k2, (cout,), jnp.float32, -bound, bound)
        return w, b

    ks = jax.random.split(key, 6)
    return {
        "conv1": conv_init(ks[0], 32, 1, 3),
        "conv2": conv_init(ks[1], 32, 32, 3),
        "conv3": conv_init(ks[2], 32, 32, 3),
        "up1": convT_init(ks[3], 32, 32, 3),
        "up2": convT_init(ks[4], 32, 32, 3),
        "logits": conv_init(ks[5], 1, 32, 3),
    }


def _conv_w(w):
    """Conv2d weight (Cout, Cin, 3, 1) -> (Cout, 3*Cin), columns [h-1 | h | h+1]."""
    cout, cin = w.shape[0], w.shape[1]
    return jnp.transpose(w[:, :, :, 0], (0, 2, 1)).reshape(cout, 3 * cin)


def _convT_w(w):
    """ConvTranspose2d weight (Cin, Cout, 3, 1) ->
       even (Cout, Cin) [tap 1], odd (Cout, 2*Cin) [tap0 (x[t+1]) | tap2 (x[t])]."""
    w = w[:, :, :, 0]
    w_even = jnp.transpose(w[:, :, 1])
    w_odd = jnp.concatenate(
        [jnp.transpose(w[:, :, 0]), jnp.transpose(w[:, :, 2])], axis=1)
    return w_even, w_odd


def _flatten_params(params):
    w1, b1 = params["conv1"]
    w2, b2 = params["conv2"]
    w3, b3 = params["conv3"]
    u1, ub1 = params["up1"]
    u2, ub2 = params["up2"]
    wl, bl = params["logits"]
    u1e, u1o = _convT_w(u1)
    u2e, u2o = _convT_w(u2)
    bf = jnp.bfloat16   # MXU operands; accumulation stays f32 in-kernel
    return [
        _conv_w(w1), b1.reshape(-1, 1),                       # VPU path: keep f32
        _conv_w(w2).astype(bf), b2.reshape(-1, 1),
        _conv_w(w3).astype(bf), b3.reshape(-1, 1),
        u1e.astype(bf), u1o.astype(bf), ub1.reshape(-1, 1),
        u2e.astype(bf), u2o.astype(bf), ub2.reshape(-1, 1),
        _conv_w(wl), bl.reshape(-1, 1),                       # sublane-reduce: f32
    ]


# ------------------------------ tiling / wrapper -----------------------------


def _vmem_capacity_bytes():
    try:
        info = pltpu.get_tpu_info()
        for name in ("vmem_capacity_bytes", "vmem_bytes", "vmem_size_bytes"):
            v = getattr(info, name, None)
            if v:
                return int(v)
    except Exception:
        pass
    return 64 * 1024 * 1024        # conservative default (v7x per-core VMEM)


# ~ act(32) + padded copy(32) + xcat(96) + bf16 xcat(48) + temps, per (h, lane).
_LIVE_F32_PER_ELEM = 256


def _pick_lane_tile(total_lanes, height, budget_bytes, min_blocks):
    """Largest 128-multiple divisor of total_lanes whose per-block live set fits
    budget_bytes, additionally capped so >= min_blocks grid blocks remain."""
    groups = total_lanes // LANE
    per_group = _LIVE_F32_PER_ELEM * height * LANE * 4
    cap = max(1, min(groups, budget_bytes // max(per_group, 1)))
    if groups >= min_blocks:
        cap = max(1, min(cap, groups // min_blocks))
    bt_groups = next(d for d in range(cap, 0, -1) if groups % d == 0)
    return bt_groups * LANE


def _const_spec(p):
    nd = p.ndim
    return pl.BlockSpec(p.shape, lambda *_, _nd=nd: (0,) * _nd)


def cae_forward(x_nchw, params):
    """x_nchw: (N, 1, H, W) float32 -> (N, 1, H, W) float32."""
    N, C, H, W = x_nchw.shape
    assert C == 1 and H % 4 == 0
    x_nchw = x_nchw.astype(jnp.float32)

    flat = _flatten_params(params)
    w_specs = [_const_spec(p) for p in flat]

    vmem_limit = max(32 * 1024 * 1024,
                     min(_vmem_capacity_bytes() * 3 // 4, 100 * 1024 * 1024))
    tile_budget = vmem_limit // 2

    def cparams(sem):
        return pltpu.CompilerParams(dimension_semantics=sem,
                                    vmem_limit_bytes=vmem_limit)

    if W % LANE == 0:
        # Direct NCHW path: W already lane-aligned -> no wrapper transposes.
        wt = _pick_lane_tile(W, H, tile_budget, min_blocks=2 if N == 1 else 1)
        io_spec = pl.BlockSpec((1, 1, H, wt), lambda n, j: (n, 0, 0, j))
        return pl.pallas_call(
            cae_kernel,
            out_shape=jax.ShapeDtypeStruct((N, 1, H, W), jnp.float32),
            grid=(N, W // wt),
            in_specs=[io_spec] + w_specs,
            out_specs=io_spec,
            compiler_params=cparams(("parallel", "parallel")),
        )(x_nchw, *flat)

    # General path: flatten (n, w) sequences onto the lane axis, pad to 128.
    B = N * W
    Bp = ((B + LANE - 1) // LANE) * LANE
    x_hb = jnp.transpose(x_nchw, (2, 1, 0, 3)).reshape(H, B)
    if Bp != B:
        x_hb = jnp.pad(x_hb, ((0, 0), (0, Bp - B)))
    bt = _pick_lane_tile(Bp, H, tile_budget, min_blocks=2)
    io_spec = pl.BlockSpec((H, bt), lambda i: (0, i))
    out = pl.pallas_call(
        cae_kernel,
        out_shape=jax.ShapeDtypeStruct((H, Bp), jnp.float32),
        grid=(Bp // bt,),
        in_specs=[io_spec] + w_specs,
        out_specs=io_spec,
        compiler_params=cparams(("parallel",)),
    )(x_hb, *flat)
    out = out[:, :B]                                          # drop lane padding
    return jnp.transpose(out.reshape(H, 1, N, W), (2, 1, 0, 3))


# ---------------------------------- main ------------------------------------


if __name__ == "__main__":
    key = jax.random.PRNGKey(0)
    pkey, xkey, x2key = jax.random.split(key, 3)
    params = init_params(pkey)

    # Small-W input -> flattened lane path.
    x = jax.random.uniform(xkey, (2, 1, 16, 16), dtype=jnp.float32)
    y = jax.block_until_ready(cae_forward(x, params))
    assert y.shape == x.shape, (y.shape, x.shape)
    assert bool(jnp.all(jnp.isfinite(y)))
    assert bool(jnp.all((y >= 0.0) & (y <= 1.0)))             # sigmoid range

    # Lane-aligned W -> direct NCHW path (no wrapper transposes).
    x2 = jax.random.uniform(x2key, (1, 1, 8, 128), dtype=jnp.float32)
    y2 = jax.block_until_ready(cae_forward(x2, params))
    assert y2.shape == x2.shape, (y2.shape, x2.shape)
    assert bool(jnp.all(jnp.isfinite(y2)))
    assert bool(jnp.all((y2 >= 0.0) & (y2 <= 1.0)))

    print("KERNEL_OK")
</pallas_src>

<mosaic_0001>
module attributes {stable_mosaic.version = 11 : i64} {
  func.func @cae_kernel(%arg0: i32, %arg1: memref<16x128xf32, #tpu.memory_space<vmem>>, %arg2: memref<32x3xf32, #tpu.memory_space<vmem>>, %arg3: memref<32x1xf32, #tpu.memory_space<vmem>>, %arg4: memref<32x96xbf16, #tpu.memory_space<vmem>>, %arg5: memref<32x1xf32, #tpu.memory_space<vmem>>, %arg6: memref<32x96xbf16, #tpu.memory_space<vmem>>, %arg7: memref<32x1xf32, #tpu.memory_space<vmem>>, %arg8: memref<32x32xbf16, #tpu.memory_space<vmem>>, %arg9: memref<32x64xbf16, #tpu.memory_space<vmem>>, %arg10: memref<32x1xf32, #tpu.memory_space<vmem>>, %arg11: memref<32x32xbf16, #tpu.memory_space<vmem>>, %arg12: memref<32x64xbf16, #tpu.memory_space<vmem>>, %arg13: memref<32x1xf32, #tpu.memory_space<vmem>>, %arg14: memref<1x96xf32, #tpu.memory_space<vmem>>, %arg15: memref<1x1xf32, #tpu.memory_space<vmem>>, %arg16: memref<16x128xf32, #tpu.memory_space<vmem>>) attributes {dimension_semantics = [#tpu.dimension_semantics<parallel>], iteration_bounds = array<i64: 1>, scalar_prefetch = 0 : i64, scratch_operands = 0 : i64, tpu.core_type = #tpu.core_type<tc>, window_params = [{transform_indices = @transform_0, window_bounds = array<i64: 16, 128>}, {pipeline_mode = #tpu.pipeline_mode<synchronous>, transform_indices = @transform_1, window_bounds = array<i64: 32, 3>}, {pipeline_mode = #tpu.pipeline_mode<synchronous>, transform_indices = @transform_2, window_bounds = array<i64: 32, 1>}, {pipeline_mode = #tpu.pipeline_mode<synchronous>, transform_indices = @transform_3, window_bounds = array<i64: 32, 96>}, {pipeline_mode = #tpu.pipeline_mode<synchronous>, transform_indices = @transform_4, window_bounds = array<i64: 32, 1>}, {pipeline_mode = #tpu.pipeline_mode<synchronous>, transform_indices = @transform_5, window_bounds = array<i64: 32, 96>}, {pipeline_mode = #tpu.pipeline_mode<synchronous>, transform_indices = @transform_6, window_bounds = array<i64: 32, 1>}, {pipeline_mode = #tpu.pipeline_mode<synchronous>, transform_indices = @transform_7, window_bounds = array<i64: 32, 32>}, {pipeline_mode = #tpu.pipeline_mode<synchronous>, transform_indices = @transform_8, window_bounds = array<i64: 32, 64>}, {pipeline_mode = #tpu.pipeline_mode<synchronous>, transform_indices = @transform_9, window_bounds = array<i64: 32, 1>}, {pipeline_mode = #tpu.pipeline_mode<synchronous>, transform_indices = @transform_10, window_bounds = array<i64: 32, 32>}, {pipeline_mode = #tpu.pipeline_mode<synchronous>, transform_indices = @transform_11, window_bounds = array<i64: 32, 64>}, {pipeline_mode = #tpu.pipeline_mode<synchronous>, transform_indices = @transform_12, window_bounds = array<i64: 32, 1>}, {pipeline_mode = #tpu.pipeline_mode<synchronous>, transform_indices = @transform_13, window_bounds = array<i64: 1, 96>}, {pipeline_mode = #tpu.pipeline_mode<synchronous>, transform_indices = @transform_14, window_bounds = array<i64: 1, 1>}, {transform_indices = @transform_15, window_bounds = array<i64: 16, 128>}]} {
    %c0 = arith.constant 0 : index
    %c0_0 = arith.constant 0 : index
    %0 = vector.load %arg1[%c0, %c0_0] : memref<16x128xf32, #tpu.memory_space<vmem>>, vector<16x128xf32>
    %c0_1 = arith.constant 0 : index
    %c0_2 = arith.constant 0 : index
    %1 = vector.load %arg2[%c0_1, %c0_2] : memref<32x3xf32, #tpu.memory_space<vmem>>, vector<32x3xf32>
    %c0_3 = arith.constant 0 : index
    %c0_4 = arith.constant 0 : index
    %2 = vector.load %arg3[%c0_3, %c0_4] : memref<32x1xf32, #tpu.memory_space<vmem>>, vector<32x1xf32>
    %3 = vector.shape_cast %0 : vector<16x128xf32> to vector<16x1x128xf32>
    %cst = arith.constant 0.000000e+00 : f32
    %4 = vector.broadcast %cst : f32 to vector<1x1x128xf32>
    %5 = tpu.concatenate %4, %3, %4 in 0 : vector<1x1x128xf32>, vector<16x1x128xf32>, vector<1x1x128xf32> -> vector<18x1x128xf32>
    %6 = vector.extract_strided_slice %5 {offsets = [0, 0, 0], sizes = [16, 1, 128], strides = [1, 1, 1]} : vector<18x1x128xf32> to vector<16x1x128xf32>
    %7 = vector.extract_strided_slice %1 {offsets = [0, 0], sizes = [32, 1], strides = [1, 1]} : vector<32x3xf32> to vector<32x1xf32>
    %8 = vector.shape_cast %7 : vector<32x1xf32> to vector<1x32x1xf32>
    %9 = vector.broadcast %6 : vector<16x1x128xf32> to vector<16x32x128xf32>
    %10 = vector.broadcast %8 : vector<1x32x1xf32> to vector<16x32x128xf32>
    %11 = arith.mulf %9, %10 : vector<16x32x128xf32>
    %12 = vector.extract_strided_slice %5 {offsets = [1, 0, 0], sizes = [16, 1, 128], strides = [1, 1, 1]} : vector<18x1x128xf32> to vector<16x1x128xf32>
    %13 = vector.extract_strided_slice %1 {offsets = [0, 1], sizes = [32, 1], strides = [1, 1]} : vector<32x3xf32> to vector<32x1xf32>
    %14 = vector.shape_cast %13 : vector<32x1xf32> to vector<1x32x1xf32>
    %15 = vector.broadcast %12 : vector<16x1x128xf32> to vector<16x32x128xf32>
    %16 = vector.broadcast %14 : vector<1x32x1xf32> to vector<16x32x128xf32>
    %17 = arith.mulf %15, %16 : vector<16x32x128xf32>
    %18 = arith.addf %11, %17 : vector<16x32x128xf32>
    %19 = vector.extract_strided_slice %5 {offsets = [2, 0, 0], sizes = [16, 1, 128], strides = [1, 1, 1]} : vector<18x1x128xf32> to vector<16x1x128xf32>
    %20 = vector.extract_strided_slice %1 {offsets = [0, 2], sizes = [32, 1], strides = [1, 1]} : vector<32x3xf32> to vector<32x1xf32>
    %21 = vector.shape_cast %20 : vector<32x1xf32> to vector<1x32x1xf32>
    %22 = vector.broadcast %19 : vector<16x1x128xf32> to vector<16x32x128xf32>
    %23 = vector.broadcast %21 : vector<1x32x1xf32> to vector<16x32x128xf32>
    %24 = arith.mulf %22, %23 : vector<16x32x128xf32>
    %25 = arith.addf %18, %24 : vector<16x32x128xf32>
    %26 = vector.shape_cast %2 : vector<32x1xf32> to vector<1x32x1xf32>
    %27 = vector.broadcast %26 : vector<1x32x1xf32> to vector<16x32x128xf32>
    %28 = arith.addf %25, %27 : vector<16x32x128xf32>
    %cst_5 = arith.constant 1.000000e-01 : f32
    %29 = vector.broadcast %cst_5 : f32 to vector<16x32x128xf32>
    %30 = arith.mulf %29, %28 : vector<16x32x128xf32>
    %31 = arith.maximumf %28, %30 : vector<16x32x128xf32>
    %32 = vector.shape_cast %31 : vector<16x32x128xf32> to vector<8x2x32x128xf32>
    %33 = vector.extract_strided_slice %32 {offsets = [0, 0, 0, 0], sizes = [8, 1, 32, 128], strides = [1, 1, 1, 1]} : vector<8x2x32x128xf32> to vector<8x1x32x128xf32>
    %34 = vector.shape_cast %33 : vector<8x1x32x128xf32> to vector<8x32x128xf32>
    %35 = vector.extract_strided_slice %32 {offsets = [0, 1, 0, 0], sizes = [8, 1, 32, 128], strides = [1, 1, 1, 1]} : vector<8x2x32x128xf32> to vector<8x1x32x128xf32>
    %36 = vector.shape_cast %35 : vector<8x1x32x128xf32> to vector<8x32x128xf32>
    %37 = arith.maximumf %34, %36 : vector<8x32x128xf32>
    %c0_6 = arith.constant 0 : index
    %c0_7 = arith.constant 0 : index
    %38 = vector.load %arg4[%c0_6, %c0_7] : memref<32x96xbf16, #tpu.memory_space<vmem>>, vector<32x96xbf16>
    %c0_8 = arith.constant 0 : index
    %c0_9 = arith.constant 0 : index
    %39 = vector.load %arg5[%c0_8, %c0_9] : memref<32x1xf32, #tpu.memory_space<vmem>>, vector<32x1xf32>
    %cst_10 = arith.constant 0.000000e+00 : f32
    %40 = vector.broadcast %cst_10 : f32 to vector<1x32x128xf32>
    %41 = tpu.concatenate %40, %37, %40 in 0 : vector<1x32x128xf32>, vector<8x32x128xf32>, vector<1x32x128xf32> -> vector<10x32x128xf32>
    %42 = vector.extract_strided_slice %41 {offsets = [0, 0, 0], sizes = [8, 32, 128], strides = [1, 1, 1]} : vector<10x32x128xf32> to vector<8x32x128xf32>
    %43 = vector.extract_strided_slice %41 {offsets = [1, 0, 0], sizes = [8, 32, 128], strides = [1, 1, 1]} : vector<10x32x128xf32> to vector<8x32x128xf32>
    %44 = vector.extract_strided_slice %41 {offsets = [2, 0, 0], sizes = [8, 32, 128], strides = [1, 1, 1]} : vector<10x32x128xf32> to vector<8x32x128xf32>
    %45 = tpu.concatenate %42, %43, %44 in 1 : vector<8x32x128xf32>, vector<8x32x128xf32>, vector<8x32x128xf32> -> vector<8x96x128xf32>
    %46 = vector.shape_cast %38 : vector<32x96xbf16> to vector<1x32x96xbf16>
    %47 = vector.shape_cast %46 : vector<1x32x96xbf16> to vector<1x32x96xbf16>
    %48 = vector.broadcast %47 : vector<1x32x96xbf16> to vector<8x32x96xbf16>
    %49 = arith.truncf %45 : vector<8x96x128xf32> to vector<8x96x128xbf16>
    %cst_11 = arith.constant dense<0.000000e+00> : vector<8x32x128xf32>
    %50 = tpu.matmul %48, %49, %cst_11 {dimension_numbers = #tpu.dot_dimension_numbers<[2], [1], [1], [2], [0, 0, 0, 1, 1, 2], [0], [0]>} : vector<8x32x96xbf16>, vector<8x96x128xbf16>, vector<8x32x128xf32> -> vector<8x32x128xf32>
    %51 = vector.shape_cast %39 : vector<32x1xf32> to vector<1x32x1xf32>
    %52 = vector.broadcast %51 : vector<1x32x1xf32> to vector<8x32x128xf32>
    %53 = arith.addf %50, %52 : vector<8x32x128xf32>
    %cst_12 = arith.constant 1.000000e-01 : f32
    %54 = vector.broadcast %cst_12 : f32 to vector<8x32x128xf32>
    %55 = arith.mulf %54, %53 : vector<8x32x128xf32>
    %56 = arith.maximumf %53, %55 : vector<8x32x128xf32>
    %57 = vector.shape_cast %56 : vector<8x32x128xf32> to vector<4x2x32x128xf32>
    %58 = vector.extract_strided_slice %57 {offsets = [0, 0, 0, 0], sizes = [4, 1, 32, 128], strides = [1, 1, 1, 1]} : vector<4x2x32x128xf32> to vector<4x1x32x128xf32>
    %59 = vector.shape_cast %58 : vector<4x1x32x128xf32> to vector<4x32x128xf32>
    %60 = vector.extract_strided_slice %57 {offsets = [0, 1, 0, 0], sizes = [4, 1, 32, 128], strides = [1, 1, 1, 1]} : vector<4x2x32x128xf32> to vector<4x1x32x128xf32>
    %61 = vector.shape_cast %60 : vector<4x1x32x128xf32> to vector<4x32x128xf32>
    %62 = arith.maximumf %59, %61 : vector<4x32x128xf32>
    %c0_13 = arith.constant 0 : index
    %c0_14 = arith.constant 0 : index
    %63 = vector.load %arg6[%c0_13, %c0_14] : memref<32x96xbf16, #tpu.memory_space<vmem>>, vector<32x96xbf16>
    %c0_15 = arith.constant 0 : index
    %c0_16 = arith.constant 0 : index
    %64 = vector.load %arg7[%c0_15, %c0_16] : memref<32x1xf32, #tpu.memory_space<vmem>>, vector<32x1xf32>
    %cst_17 = arith.constant 0.000000e+00 : f32
    %65 = vector.broadcast %cst_17 : f32 to vector<1x32x128xf32>
    %66 = tpu.concatenate %65, %62, %65 in 0 : vector<1x32x128xf32>, vector<4x32x128xf32>, vector<1x32x128xf32> -> vector<6x32x128xf32>
    %67 = vector.extract_strided_slice %66 {offsets = [0, 0, 0], sizes = [4, 32, 128], strides = [1, 1, 1]} : vector<6x32x128xf32> to vector<4x32x128xf32>
    %68 = vector.extract_strided_slice %66 {offsets = [1, 0, 0], sizes = [4, 32, 128], strides = [1, 1, 1]} : vector<6x32x128xf32> to vector<4x32x128xf32>
    %69 = vector.extract_strided_slice %66 {offsets = [2, 0, 0], sizes = [4, 32, 128], strides = [1, 1, 1]} : vector<6x32x128xf32> to vector<4x32x128xf32>
    %70 = tpu.concatenate %67, %68, %69 in 1 : vector<4x32x128xf32>, vector<4x32x128xf32>, vector<4x32x128xf32> -> vector<4x96x128xf32>
    %71 = vector.shape_cast %63 : vector<32x96xbf16> to vector<1x32x96xbf16>
    %72 = vector.shape_cast %71 : vector<1x32x96xbf16> to vector<1x32x96xbf16>
    %73 = vector.broadcast %72 : vector<1x32x96xbf16> to vector<4x32x96xbf16>
    %74 = arith.truncf %70 : vector<4x96x128xf32> to vector<4x96x128xbf16>
    %cst_18 = arith.constant dense<0.000000e+00> : vector<4x32x128xf32>
    %75 = tpu.matmul %73, %74, %cst_18 {dimension_numbers = #tpu.dot_dimension_numbers<[2], [1], [1], [2], [0, 0, 0, 1, 1, 2], [0], [0]>} : vector<4x32x96xbf16>, vector<4x96x128xbf16>, vector<4x32x128xf32> -> vector<4x32x128xf32>
    %76 = vector.shape_cast %64 : vector<32x1xf32> to vector<1x32x1xf32>
    %77 = vector.broadcast %76 : vector<1x32x1xf32> to vector<4x32x128xf32>
    %78 = arith.addf %75, %77 : vector<4x32x128xf32>
    %cst_19 = arith.constant 1.000000e-01 : f32
    %79 = vector.broadcast %cst_19 : f32 to vector<4x32x128xf32>
    %80 = arith.mulf %79, %78 : vector<4x32x128xf32>
    %81 = arith.maximumf %78, %80 : vector<4x32x128xf32>
    %c0_20 = arith.constant 0 : index
    %c0_21 = arith.constant 0 : index
    %82 = vector.load %arg8[%c0_20, %c0_21] : memref<32x32xbf16, #tpu.memory_space<vmem>>, vector<32x32xbf16>
    %c0_22 = arith.constant 0 : index
    %c0_23 = arith.constant 0 : index
    %83 = vector.load %arg9[%c0_22, %c0_23] : memref<32x64xbf16, #tpu.memory_space<vmem>>, vector<32x64xbf16>
    %c0_24 = arith.constant 0 : index
    %c0_25 = arith.constant 0 : index
    %84 = vector.load %arg10[%c0_24, %c0_25] : memref<32x1xf32, #tpu.memory_space<vmem>>, vector<32x1xf32>
    %cst_26 = arith.constant 0.000000e+00 : f32
    %85 = vector.broadcast %cst_26 : f32 to vector<1x32x128xf32>
    %86 = vector.extract_strided_slice %81 {offsets = [1, 0, 0], sizes = [3, 32, 128], strides = [1, 1, 1]} : vector<4x32x128xf32> to vector<3x32x128xf32>
    %87 = tpu.concatenate %86, %85 in 0 : vector<3x32x128xf32>, vector<1x32x128xf32> -> vector<4x32x128xf32>
    %88 = vector.shape_cast %82 : vector<32x32xbf16> to vector<1x32x32xbf16>
    %89 = vector.shape_cast %88 : vector<1x32x32xbf16> to vector<1x32x32xbf16>
    %90 = vector.broadcast %89 : vector<1x32x32xbf16> to vector<4x32x32xbf16>
    %91 = arith.truncf %81 : vector<4x32x128xf32> to vector<4x32x128xbf16>
    %cst_27 = arith.constant dense<0.000000e+00> : vector<4x32x128xf32>
    %92 = tpu.matmul %90, %91, %cst_27 {dimension_numbers = #tpu.dot_dimension_numbers<[2], [1], [1], [2], [0, 0, 0, 1, 1, 2], [0], [0]>} : vector<4x32x32xbf16>, vector<4x32x128xbf16>, vector<4x32x128xf32> -> vector<4x32x128xf32>
    %93 = vector.shape_cast %84 : vector<32x1xf32> to vector<1x32x1xf32>
    %94 = vector.broadcast %93 : vector<1x32x1xf32> to vector<4x32x128xf32>
    %95 = arith.addf %92, %94 : vector<4x32x128xf32>
    %96 = tpu.concatenate %87, %81 in 1 : vector<4x32x128xf32>, vector<4x32x128xf32> -> vector<4x64x128xf32>
    %97 = vector.shape_cast %83 : vector<32x64xbf16> to vector<1x32x64xbf16>
    %98 = vector.shape_cast %97 : vector<1x32x64xbf16> to vector<1x32x64xbf16>
    %99 = vector.broadcast %98 : vector<1x32x64xbf16> to vector<4x32x64xbf16>
    %100 = arith.truncf %96 : vector<4x64x128xf32> to vector<4x64x128xbf16>
    %cst_28 = arith.constant dense<0.000000e+00> : vector<4x32x128xf32>
    %101 = tpu.matmul %99, %100, %cst_28 {dimension_numbers = #tpu.dot_dimension_numbers<[2], [1], [1], [2], [0, 0, 0, 1, 1, 2], [0], [0]>} : vector<4x32x64xbf16>, vector<4x64x128xbf16>, vector<4x32x128xf32> -> vector<4x32x128xf32>
    %102 = vector.shape_cast %84 : vector<32x1xf32> to vector<1x32x1xf32>
    %103 = vector.broadcast %102 : vector<1x32x1xf32> to vector<4x32x128xf32>
    %104 = arith.addf %101, %103 : vector<4x32x128xf32>
    %105 = vector.shape_cast %95 : vector<4x32x128xf32> to vector<4x1x32x128xf32>
    %106 = vector.shape_cast %104 : vector<4x32x128xf32> to vector<4x1x32x128xf32>
    %107 = tpu.concatenate %105, %106 in 1 : vector<4x1x32x128xf32>, vector<4x1x32x128xf32> -> vector<4x2x32x128xf32>
    %108 = vector.shape_cast %107 : vector<4x2x32x128xf32> to vector<8x32x128xf32>
    %c0_29 = arith.constant 0 : index
    %c0_30 = arith.constant 0 : index
    %109 = vector.load %arg11[%c0_29, %c0_30] : memref<32x32xbf16, #tpu.memory_space<vmem>>, vector<32x32xbf16>
    %c0_31 = arith.constant 0 : index
    %c0_32 = arith.constant 0 : index
    %110 = vector.load %arg12[%c0_31, %c0_32] : memref<32x64xbf16, #tpu.memory_space<vmem>>, vector<32x64xbf16>
    %c0_33 = arith.constant 0 : index
    %c0_34 = arith.constant 0 : index
    %111 = vector.load %arg13[%c0_33, %c0_34] : memref<32x1xf32, #tpu.memory_space<vmem>>, vector<32x1xf32>
    %cst_35 = arith.constant 0.000000e+00 : f32
    %112 = vector.broadcast %cst_35 : f32 to vector<1x32x128xf32>
    %113 = vector.extract_strided_slice %108 {offsets = [1, 0, 0], sizes = [7, 32, 128], strides = [1, 1, 1]} : vector<8x32x128xf32> to vector<7x32x128xf32>
    %114 = tpu.concatenate %113, %112 in 0 : vector<7x32x128xf32>, vector<1x32x128xf32> -> vector<8x32x128xf32>
    %115 = vector.shape_cast %109 : vector<32x32xbf16> to vector<1x32x32xbf16>
    %116 = vector.shape_cast %115 : vector<1x32x32xbf16> to vector<1x32x32xbf16>
    %117 = vector.broadcast %116 : vector<1x32x32xbf16> to vector<8x32x32xbf16>
    %118 = arith.truncf %108 : vector<8x32x128xf32> to vector<8x32x128xbf16>
    %cst_36 = arith.constant dense<0.000000e+00> : vector<8x32x128xf32>
    %119 = tpu.matmul %117, %118, %cst_36 {dimension_numbers = #tpu.dot_dimension_numbers<[2], [1], [1], [2], [0, 0, 0, 1, 1, 2], [0], [0]>} : vector<8x32x32xbf16>, vector<8x32x128xbf16>, vector<8x32x128xf32> -> vector<8x32x128xf32>
    %120 = vector.shape_cast %111 : vector<32x1xf32> to vector<1x32x1xf32>
    %121 = vector.broadcast %120 : vector<1x32x1xf32> to vector<8x32x128xf32>
    %122 = arith.addf %119, %121 : vector<8x32x128xf32>
    %123 = tpu.concatenate %114, %108 in 1 : vector<8x32x128xf32>, vector<8x32x128xf32> -> vector<8x64x128xf32>
    %124 = vector.shape_cast %110 : vector<32x64xbf16> to vector<1x32x64xbf16>
    %125 = vector.shape_cast %124 : vector<1x32x64xbf16> to vector<1x32x64xbf16>
    %126 = vector.broadcast %125 : vector<1x32x64xbf16> to vector<8x32x64xbf16>
    %127 = arith.truncf %123 : vector<8x64x128xf32> to vector<8x64x128xbf16>
    %cst_37 = arith.constant dense<0.000000e+00> : vector<8x32x128xf32>
    %128 = tpu.matmul %126, %127, %cst_37 {dimension_numbers = #tpu.dot_dimension_numbers<[2], [1], [1], [2], [0, 0, 0, 1, 1, 2], [0], [0]>} : vector<8x32x64xbf16>, vector<8x64x128xbf16>, vector<8x32x128xf32> -> vector<8x32x128xf32>
    %129 = vector.shape_cast %111 : vector<32x1xf32> to vector<1x32x1xf32>
    %130 = vector.broadcast %129 : vector<1x32x1xf32> to vector<8x32x128xf32>
    %131 = arith.addf %128, %130 : vector<8x32x128xf32>
    %132 = vector.shape_cast %122 : vector<8x32x128xf32> to vector<8x1x32x128xf32>
    %133 = vector.shape_cast %131 : vector<8x32x128xf32> to vector<8x1x32x128xf32>
    %134 = tpu.concatenate %132, %133 in 1 : vector<8x1x32x128xf32>, vector<8x1x32x128xf32> -> vector<8x2x32x128xf32>
    %135 = vector.shape_cast %134 : vector<8x2x32x128xf32> to vector<16x32x128xf32>
    %c0_38 = arith.constant 0 : index
    %c0_39 = arith.constant 0 : index
    %136 = vector.load %arg14[%c0_38, %c0_39] : memref<1x96xf32, #tpu.memory_space<vmem>>, vector<1x96xf32>
    %c0_40 = arith.constant 0 : index
    %c0_41 = arith.constant 0 : index
    %137 = vector.load %arg15[%c0_40, %c0_41] : memref<1x1xf32, #tpu.memory_space<vmem>>, vector<1x1xf32>
    %cst_42 = arith.constant 0.000000e+00 : f32
    %138 = vector.broadcast %cst_42 : f32 to vector<1x32x128xf32>
    %139 = tpu.concatenate %138, %135, %138 in 0 : vector<1x32x128xf32>, vector<16x32x128xf32>, vector<1x32x128xf32> -> vector<18x32x128xf32>
    %140 = vector.extract_strided_slice %139 {offsets = [0, 0, 0], sizes = [16, 32, 128], strides = [1, 1, 1]} : vector<18x32x128xf32> to vector<16x32x128xf32>
    %141 = vector.extract_strided_slice %139 {offsets = [1, 0, 0], sizes = [16, 32, 128], strides = [1, 1, 1]} : vector<18x32x128xf32> to vector<16x32x128xf32>
    %142 = vector.extract_strided_slice %139 {offsets = [2, 0, 0], sizes = [16, 32, 128], strides = [1, 1, 1]} : vector<18x32x128xf32> to vector<16x32x128xf32>
    %143 = tpu.concatenate %140, %141, %142 in 1 : vector<16x32x128xf32>, vector<16x32x128xf32>, vector<16x32x128xf32> -> vector<16x96x128xf32>
    %144 = vector.shape_cast %136 : vector<1x96xf32> to vector<1x96x1xf32>
    %145 = vector.broadcast %144 : vector<1x96x1xf32> to vector<16x96x128xf32>
    %146 = arith.mulf %143, %145 : vector<16x96x128xf32>
    %cst_43 = arith.constant dense<0.000000e+00> : vector<16x128xf32>
    %147 = vector.multi_reduction <add>, %146, %cst_43 [1] : vector<16x96x128xf32> to vector<16x128xf32>
    %148 = vector.shape_cast %147 : vector<16x128xf32> to vector<16x1x128xf32>
    %149 = vector.shape_cast %148 : vector<16x1x128xf32> to vector<16x128xf32>
    %150 = vector.extract %137[0, 0] : f32 from vector<1x1xf32>
    %151 = vector.broadcast %150 : f32 to vector<16x128xf32>
    %152 = arith.addf %149, %151 : vector<16x128xf32>
    %153 = math.absf %152 : vector<16x128xf32>
    %cst_44 = arith.constant 0.000000e+00 : f32
    %154 = vector.broadcast %cst_44 : f32 to vector<16x128xf32>
    %155 = arith.subf %154, %153 : vector<16x128xf32>
    %156 = math.exp %155 : vector<16x128xf32>
    %cst_45 = arith.constant 0.000000e+00 : f32
    %157 = vector.broadcast %cst_45 : f32 to vector<16x128xf32>
    %158 = arith.cmpf oge, %152, %157 : vector<16x128xf32>
    %cst_46 = arith.constant 1.000000e+00 : f32
    %159 = vector.broadcast %cst_46 : f32 to vector<16x128xf32>
    %160 = arith.select %158, %159, %156 : vector<16x128xi1>, vector<16x128xf32>
    %cst_47 = arith.constant 1.000000e+00 : f32
    %161 = vector.broadcast %cst_47 : f32 to vector<16x128xf32>
    %162 = arith.addf %161, %156 : vector<16x128xf32>
    %163 = arith.divf %160, %162 : vector<16x128xf32>
    %c0_48 = arith.constant 0 : index
    %c0_49 = arith.constant 0 : index
    %164 = vector.load %arg2[%c0_48, %c0_49] : memref<32x3xf32, #tpu.memory_space<vmem>>, vector<32x3xf32>
    %c0_50 = arith.constant 0 : index
    %c0_51 = arith.constant 0 : index
    %165 = vector.load %arg3[%c0_50, %c0_51] : memref<32x1xf32, #tpu.memory_space<vmem>>, vector<32x1xf32>
    %166 = vector.shape_cast %163 : vector<16x128xf32> to vector<16x1x128xf32>
    %cst_52 = arith.constant 0.000000e+00 : f32
    %167 = vector.broadcast %cst_52 : f32 to vector<1x1x128xf32>
    %168 = tpu.concatenate %167, %166, %167 in 0 : vector<1x1x128xf32>, vector<16x1x128xf32>, vector<1x1x128xf32> -> vector<18x1x128xf32>
    %169 = vector.extract_strided_slice %168 {offsets = [0, 0, 0], sizes = [16, 1, 128], strides = [1, 1, 1]} : vector<18x1x128xf32> to vector<16x1x128xf32>
    %170 = vector.extract_strided_slice %164 {offsets = [0, 0], sizes = [32, 1], strides = [1, 1]} : vector<32x3xf32> to vector<32x1xf32>
    %171 = vector.shape_cast %170 : vector<32x1xf32> to vector<1x32x1xf32>
    %172 = vector.broadcast %169 : vector<16x1x128xf32> to vector<16x32x128xf32>
    %173 = vector.broadcast %171 : vector<1x32x1xf32> to vector<16x32x128xf32>
    %174 = arith.mulf %172, %173 : vector<16x32x128xf32>
    %175 = vector.extract_strided_slice %168 {offsets = [1, 0, 0], sizes = [16, 1, 128], strides = [1, 1, 1]} : vector<18x1x128xf32> to vector<16x1x128xf32>
    %176 = vector.extract_strided_slice %164 {offsets = [0, 1], sizes = [32, 1], strides = [1, 1]} : vector<32x3xf32> to vector<32x1xf32>
    %177 = vector.shape_cast %176 : vector<32x1xf32> to vector<1x32x1xf32>
    %178 = vector.broadcast %175 : vector<16x1x128xf32> to vector<16x32x128xf32>
    %179 = vector.broadcast %177 : vector<1x32x1xf32> to vector<16x32x128xf32>
    %180 = arith.mulf %178, %179 : vector<16x32x128xf32>
    %181 = arith.addf %174, %180 : vector<16x32x128xf32>
    %182 = vector.extract_strided_slice %168 {offsets = [2, 0, 0], sizes = [16, 1, 128], strides = [1, 1, 1]} : vector<18x1x128xf32> to vector<16x1x128xf32>
    %183 = vector.extract_strided_slice %164 {offsets = [0, 2], sizes = [32, 1], strides = [1, 1]} : vector<32x3xf32> to vector<32x1xf32>
    %184 = vector.shape_cast %183 : vector<32x1xf32> to vector<1x32x1xf32>
    %185 = vector.broadcast %182 : vector<16x1x128xf32> to vector<16x32x128xf32>
    %186 = vector.broadcast %184 : vector<1x32x1xf32> to vector<16x32x128xf32>
    %187 = arith.mulf %185, %186 : vector<16x32x128xf32>
    %188 = arith.addf %181, %187 : vector<16x32x128xf32>
    %189 = vector.shape_cast %165 : vector<32x1xf32> to vector<1x32x1xf32>
    %190 = vector.broadcast %189 : vector<1x32x1xf32> to vector<16x32x128xf32>
    %191 = arith.addf %188, %190 : vector<16x32x128xf32>
    %cst_53 = arith.constant 1.000000e-01 : f32
    %192 = vector.broadcast %cst_53 : f32 to vector<16x32x128xf32>
    %193 = arith.mulf %192, %191 : vector<16x32x128xf32>
    %194 = arith.maximumf %191, %193 : vector<16x32x128xf32>
    %195 = vector.shape_cast %194 : vector<16x32x128xf32> to vector<8x2x32x128xf32>
    %196 = vector.extract_strided_slice %195 {offsets = [0, 0, 0, 0], sizes = [8, 1, 32, 128], strides = [1, 1, 1, 1]} : vector<8x2x32x128xf32> to vector<8x1x32x128xf32>
    %197 = vector.shape_cast %196 : vector<8x1x32x128xf32> to vector<8x32x128xf32>
    %198 = vector.extract_strided_slice %195 {offsets = [0, 1, 0, 0], sizes = [8, 1, 32, 128], strides = [1, 1, 1, 1]} : vector<8x2x32x128xf32> to vector<8x1x32x128xf32>
    %199 = vector.shape_cast %198 : vector<8x1x32x128xf32> to vector<8x32x128xf32>
    %200 = arith.maximumf %197, %199 : vector<8x32x128xf32>
    %c0_54 = arith.constant 0 : index
    %c0_55 = arith.constant 0 : index
    %201 = vector.load %arg4[%c0_54, %c0_55] : memref<32x96xbf16, #tpu.memory_space<vmem>>, vector<32x96xbf16>
    %c0_56 = arith.constant 0 : index
    %c0_57 = arith.constant 0 : index
    %202 = vector.load %arg5[%c0_56, %c0_57] : memref<32x1xf32, #tpu.memory_space<vmem>>, vector<32x1xf32>
    %cst_58 = arith.constant 0.000000e+00 : f32
    %203 = vector.broadcast %cst_58 : f32 to vector<1x32x128xf32>
    %204 = tpu.concatenate %203, %200, %203 in 0 : vector<1x32x128xf32>, vector<8x32x128xf32>, vector<1x32x128xf32> -> vector<10x32x128xf32>
    %205 = vector.extract_strided_slice %204 {offsets = [0, 0, 0], sizes = [8, 32, 128], strides = [1, 1, 1]} : vector<10x32x128xf32> to vector<8x32x128xf32>
    %206 = vector.extract_strided_slice %204 {offsets = [1, 0, 0], sizes = [8, 32, 128], strides = [1, 1, 1]} : vector<10x32x128xf32> to vector<8x32x128xf32>
    %207 = vector.extract_strided_slice %204 {offsets = [2, 0, 0], sizes = [8, 32, 128], strides = [1, 1, 1]} : vector<10x32x128xf32> to vector<8x32x128xf32>
    %208 = tpu.concatenate %205, %206, %207 in 1 : vector<8x32x128xf32>, vector<8x32x128xf32>, vector<8x32x128xf32> -> vector<8x96x128xf32>
    %209 = vector.shape_cast %201 : vector<32x96xbf16> to vector<1x32x96xbf16>
    %210 = vector.shape_cast %209 : vector<1x32x96xbf16> to vector<1x32x96xbf16>
    %211 = vector.broadcast %210 : vector<1x32x96xbf16> to vector<8x32x96xbf16>
    %212 = arith.truncf %208 : vector<8x96x128xf32> to vector<8x96x128xbf16>
    %cst_59 = arith.constant dense<0.000000e+00> : vector<8x32x128xf32>
    %213 = tpu.matmul %211, %212, %cst_59 {dimension_numbers = #tpu.dot_dimension_numbers<[2], [1], [1], [2], [0, 0, 0, 1, 1, 2], [0], [0]>} : vector<8x32x96xbf16>, vector<8x96x128xbf16>, vector<8x32x128xf32> -> vector<8x32x128xf32>
    %214 = vector.shape_cast %202 : vector<32x1xf32> to vector<1x32x1xf32>
    %215 = vector.broadcast %214 : vector<1x32x1xf32> to vector<8x32x128xf32>
    %216 = arith.addf %213, %215 : vector<8x32x128xf32>
    %cst_60 = arith.constant 1.000000e-01 : f32
    %217 = vector.broadcast %cst_60 : f32 to vector<8x32x128xf32>
    %218 = arith.mulf %217, %216 : vector<8x32x128xf32>
    %219 = arith.maximumf %216, %218 : vector<8x32x128xf32>
    %220 = vector.shape_cast %219 : vector<8x32x128xf32> to vector<4x2x32x128xf32>
    %221 = vector.extract_strided_slice %220 {offsets = [0, 0, 0, 0], sizes = [4, 1, 32, 128], strides = [1, 1, 1, 1]} : vector<4x2x32x128xf32> to vector<4x1x32x128xf32>
    %222 = vector.shape_cast %221 : vector<4x1x32x128xf32> to vector<4x32x128xf32>
    %223 = vector.extract_strided_slice %220 {offsets = [0, 1, 0, 0], sizes = [4, 1, 32, 128], strides = [1, 1, 1, 1]} : vector<4x2x32x128xf32> to vector<4x1x32x128xf32>
    %224 = vector.shape_cast %223 : vector<4x1x32x128xf32> to vector<4x32x128xf32>
    %225 = arith.maximumf %222, %224 : vector<4x32x128xf32>
    %c0_61 = arith.constant 0 : index
    %c0_62 = arith.constant 0 : index
    %226 = vector.load %arg6[%c0_61, %c0_62] : memref<32x96xbf16, #tpu.memory_space<vmem>>, vector<32x96xbf16>
    %c0_63 = arith.constant 0 : index
    %c0_64 = arith.constant 0 : index
    %227 = vector.load %arg7[%c0_63, %c0_64] : memref<32x1xf32, #tpu.memory_space<vmem>>, vector<32x1xf32>
    %cst_65 = arith.constant 0.000000e+00 : f32
    %228 = vector.broadcast %cst_65 : f32 to vector<1x32x128xf32>
    %229 = tpu.concatenate %228, %225, %228 in 0 : vector<1x32x128xf32>, vector<4x32x128xf32>, vector<1x32x128xf32> -> vector<6x32x128xf32>
    %230 = vector.extract_strided_slice %229 {offsets = [0, 0, 0], sizes = [4, 32, 128], strides = [1, 1, 1]} : vector<6x32x128xf32> to vector<4x32x128xf32>
    %231 = vector.extract_strided_slice %229 {offsets = [1, 0, 0], sizes = [4, 32, 128], strides = [1, 1, 1]} : vector<6x32x128xf32> to vector<4x32x128xf32>
    %232 = vector.extract_strided_slice %229 {offsets = [2, 0, 0], sizes = [4, 32, 128], strides = [1, 1, 1]} : vector<6x32x128xf32> to vector<4x32x128xf32>
    %233 = tpu.concatenate %230, %231, %232 in 1 : vector<4x32x128xf32>, vector<4x32x128xf32>, vector<4x32x128xf32> -> vector<4x96x128xf32>
    %234 = vector.shape_cast %226 : vector<32x96xbf16> to vector<1x32x96xbf16>
    %235 = vector.shape_cast %234 : vector<1x32x96xbf16> to vector<1x32x96xbf16>
    %236 = vector.broadcast %235 : vector<1x32x96xbf16> to vector<4x32x96xbf16>
    %237 = arith.truncf %233 : vector<4x96x128xf32> to vector<4x96x128xbf16>
    %cst_66 = arith.constant dense<0.000000e+00> : vector<4x32x128xf32>
    %238 = tpu.matmul %236, %237, %cst_66 {dimension_numbers = #tpu.dot_dimension_numbers<[2], [1], [1], [2], [0, 0, 0, 1, 1, 2], [0], [0]>} : vector<4x32x96xbf16>, vector<4x96x128xbf16>, vector<4x32x128xf32> -> vector<4x32x128xf32>
    %239 = vector.shape_cast %227 : vector<32x1xf32> to vector<1x32x1xf32>
    %240 = vector.broadcast %239 : vector<1x32x1xf32> to vector<4x32x128xf32>
    %241 = arith.addf %238, %240 : vector<4x32x128xf32>
    %cst_67 = arith.constant 1.000000e-01 : f32
    %242 = vector.broadcast %cst_67 : f32 to vector<4x32x128xf32>
    %243 = arith.mulf %242, %241 : vector<4x32x128xf32>
    %244 = arith.maximumf %241, %243 : vector<4x32x128xf32>
    %c0_68 = arith.constant 0 : index
    %c0_69 = arith.constant 0 : index
    %245 = vector.load %arg8[%c0_68, %c0_69] : memref<32x32xbf16, #tpu.memory_space<vmem>>, vector<32x32xbf16>
    %c0_70 = arith.constant 0 : index
    %c0_71 = arith.constant 0 : index
    %246 = vector.load %arg9[%c0_70, %c0_71] : memref<32x64xbf16, #tpu.memory_space<vmem>>, vector<32x64xbf16>
    %c0_72 = arith.constant 0 : index
    %c0_73 = arith.constant 0 : index
    %247 = vector.load %arg10[%c0_72, %c0_73] : memref<32x1xf32, #tpu.memory_space<vmem>>, vector<32x1xf32>
    %cst_74 = arith.constant 0.000000e+00 : f32
    %248 = vector.broadcast %cst_74 : f32 to vector<1x32x128xf32>
    %249 = vector.extract_strided_slice %244 {offsets = [1, 0, 0], sizes = [3, 32, 128], strides = [1, 1, 1]} : vector<4x32x128xf32> to vector<3x32x128xf32>
    %250 = tpu.concatenate %249, %248 in 0 : vector<3x32x128xf32>, vector<1x32x128xf32> -> vector<4x32x128xf32>
    %251 = vector.shape_cast %245 : vector<32x32xbf16> to vector<1x32x32xbf16>
    %252 = vector.shape_cast %251 : vector<1x32x32xbf16> to vector<1x32x32xbf16>
    %253 = vector.broadcast %252 : vector<1x32x32xbf16> to vector<4x32x32xbf16>
    %254 = arith.truncf %244 : vector<4x32x128xf32> to vector<4x32x128xbf16>
    %cst_75 = arith.constant dense<0.000000e+00> : vector<4x32x128xf32>
    %255 = tpu.matmul %253, %254, %cst_75 {dimension_numbers = #tpu.dot_dimension_numbers<[2], [1], [1], [2], [0, 0, 0, 1, 1, 2], [0], [0]>} : vector<4x32x32xbf16>, vector<4x32x128xbf16>, vector<4x32x128xf32> -> vector<4x32x128xf32>
    %256 = vector.shape_cast %247 : vector<32x1xf32> to vector<1x32x1xf32>
    %257 = vector.broadcast %256 : vector<1x32x1xf32> to vector<4x32x128xf32>
    %258 = arith.addf %255, %257 : vector<4x32x128xf32>
    %259 = tpu.concatenate %250, %244 in 1 : vector<4x32x128xf32>, vector<4x32x128xf32> -> vector<4x64x128xf32>
    %260 = vector.shape_cast %246 : vector<32x64xbf16> to vector<1x32x64xbf16>
    %261 = vector.shape_cast %260 : vector<1x32x64xbf16> to vector<1x32x64xbf16>
    %262 = vector.broadcast %261 : vector<1x32x64xbf16> to vector<4x32x64xbf16>
    %263 = arith.truncf %259 : vector<4x64x128xf32> to vector<4x64x128xbf16>
    %cst_76 = arith.constant dense<0.000000e+00> : vector<4x32x128xf32>
    %264 = tpu.matmul %262, %263, %cst_76 {dimension_numbers = #tpu.dot_dimension_numbers<[2], [1], [1], [2], [0, 0, 0, 1, 1, 2], [0], [0]>} : vector<4x32x64xbf16>, vector<4x64x128xbf16>, vector<4x32x128xf32> -> vector<4x32x128xf32>
    %265 = vector.shape_cast %247 : vector<32x1xf32> to vector<1x32x1xf32>
    %266 = vector.broadcast %265 : vector<1x32x1xf32> to vector<4x32x128xf32>
    %267 = arith.addf %264, %266 : vector<4x32x128xf32>
    %268 = vector.shape_cast %258 : vector<4x32x128xf32> to vector<4x1x32x128xf32>
    %269 = vector.shape_cast %267 : vector<4x32x128xf32> to vector<4x1x32x128xf32>
    %270 = tpu.concatenate %268, %269 in 1 : vector<4x1x32x128xf32>, vector<4x1x32x128xf32> -> vector<4x2x32x128xf32>
    %271 = vector.shape_cast %270 : vector<4x2x32x128xf32> to vector<8x32x128xf32>
    %c0_77 = arith.constant 0 : index
    %c0_78 = arith.constant 0 : index
    %272 = vector.load %arg11[%c0_77, %c0_78] : memref<32x32xbf16, #tpu.memory_space<vmem>>, vector<32x32xbf16>
    %c0_79 = arith.constant 0 : index
    %c0_80 = arith.constant 0 : index
    %273 = vector.load %arg12[%c0_79, %c0_80] : memref<32x64xbf16, #tpu.memory_space<vmem>>, vector<32x64xbf16>
    %c0_81 = arith.constant 0 : index
    %c0_82 = arith.constant 0 : index
    %274 = vector.load %arg13[%c0_81, %c0_82] : memref<32x1xf32, #tpu.memory_space<vmem>>, vector<32x1xf32>
    %cst_83 = arith.constant 0.000000e+00 : f32
    %275 = vector.broadcast %cst_83 : f32 to vector<1x32x128xf32>
    %276 = vector.extract_strided_slice %271 {offsets = [1, 0, 0], sizes = [7, 32, 128], strides = [1, 1, 1]} : vector<8x32x128xf32> to vector<7x32x128xf32>
    %277 = tpu.concatenate %276, %275 in 0 : vector<7x32x128xf32>, vector<1x32x128xf32> -> vector<8x32x128xf32>
    %278 = vector.shape_cast %272 : vector<32x32xbf16> to vector<1x32x32xbf16>
    %279 = vector.shape_cast %278 : vector<1x32x32xbf16> to vector<1x32x32xbf16>
    %280 = vector.broadcast %279 : vector<1x32x32xbf16> to vector<8x32x32xbf16>
    %281 = arith.truncf %271 : vector<8x32x128xf32> to vector<8x32x128xbf16>
    %cst_84 = arith.constant dense<0.000000e+00> : vector<8x32x128xf32>
    %282 = tpu.matmul %280, %281, %cst_84 {dimension_numbers = #tpu.dot_dimension_numbers<[2], [1], [1], [2], [0, 0, 0, 1, 1, 2], [0], [0]>} : vector<8x32x32xbf16>, vector<8x32x128xbf16>, vector<8x32x128xf32> -> vector<8x32x128xf32>
    %283 = vector.shape_cast %274 : vector<32x1xf32> to vector<1x32x1xf32>
    %284 = vector.broadcast %283 : vector<1x32x1xf32> to vector<8x32x128xf32>
    %285 = arith.addf %282, %284 : vector<8x32x128xf32>
    %286 = tpu.concatenate %277, %271 in 1 : vector<8x32x128xf32>, vector<8x32x128xf32> -> vector<8x64x128xf32>
    %287 = vector.shape_cast %273 : vector<32x64xbf16> to vector<1x32x64xbf16>
    %288 = vector.shape_cast %287 : vector<1x32x64xbf16> to vector<1x32x64xbf16>
    %289 = vector.broadcast %288 : vector<1x32x64xbf16> to vector<8x32x64xbf16>
    %290 = arith.truncf %286 : vector<8x64x128xf32> to vector<8x64x128xbf16>
    %cst_85 = arith.constant dense<0.000000e+00> : vector<8x32x128xf32>
    %291 = tpu.matmul %289, %290, %cst_85 {dimension_numbers = #tpu.dot_dimension_numbers<[2], [1], [1], [2], [0, 0, 0, 1, 1, 2], [0], [0]>} : vector<8x32x64xbf16>, vector<8x64x128xbf16>, vector<8x32x128xf32> -> vector<8x32x128xf32>
    %292 = vector.shape_cast %274 : vector<32x1xf32> to vector<1x32x1xf32>
    %293 = vector.broadcast %292 : vector<1x32x1xf32> to vector<8x32x128xf32>
    %294 = arith.addf %291, %293 : vector<8x32x128xf32>
    %295 = vector.shape_cast %285 : vector<8x32x128xf32> to vector<8x1x32x128xf32>
    %296 = vector.shape_cast %294 : vector<8x32x128xf32> to vector<8x1x32x128xf32>
    %297 = tpu.concatenate %295, %296 in 1 : vector<8x1x32x128xf32>, vector<8x1x32x128xf32> -> vector<8x2x32x128xf32>
    %298 = vector.shape_cast %297 : vector<8x2x32x128xf32> to vector<16x32x128xf32>
    %c0_86 = arith.constant 0 : index
    %c0_87 = arith.constant 0 : index
    %299 = vector.load %arg14[%c0_86, %c0_87] : memref<1x96xf32, #tpu.memory_space<vmem>>, vector<1x96xf32>
    %c0_88 = arith.constant 0 : index
    %c0_89 = arith.constant 0 : index
    %300 = vector.load %arg15[%c0_88, %c0_89] : memref<1x1xf32, #tpu.memory_space<vmem>>, vector<1x1xf32>
    %cst_90 = arith.constant 0.000000e+00 : f32
    %301 = vector.broadcast %cst_90 : f32 to vector<1x32x128xf32>
    %302 = tpu.concatenate %301, %298, %301 in 0 : vector<1x32x128xf32>, vector<16x32x128xf32>, vector<1x32x128xf32> -> vector<18x32x128xf32>
    %303 = vector.extract_strided_slice %302 {offsets = [0, 0, 0], sizes = [16, 32, 128], strides = [1, 1, 1]} : vector<18x32x128xf32> to vector<16x32x128xf32>
    %304 = vector.extract_strided_slice %302 {offsets = [1, 0, 0], sizes = [16, 32, 128], strides = [1, 1, 1]} : vector<18x32x128xf32> to vector<16x32x128xf32>
    %305 = vector.extract_strided_slice %302 {offsets = [2, 0, 0], sizes = [16, 32, 128], strides = [1, 1, 1]} : vector<18x32x128xf32> to vector<16x32x128xf32>
    %306 = tpu.concatenate %303, %304, %305 in 1 : vector<16x32x128xf32>, vector<16x32x128xf32>, vector<16x32x128xf32> -> vector<16x96x128xf32>
    %307 = vector.shape_cast %299 : vector<1x96xf32> to vector<1x96x1xf32>
    %308 = vector.broadcast %307 : vector<1x96x1xf32> to vector<16x96x128xf32>
    %309 = arith.mulf %306, %308 : vector<16x96x128xf32>
    %cst_91 = arith.constant dense<0.000000e+00> : vector<16x128xf32>
    %310 = vector.multi_reduction <add>, %309, %cst_91 [1] : vector<16x96x128xf32> to vector<16x128xf32>
    %311 = vector.shape_cast %310 : vector<16x128xf32> to vector<16x1x128xf32>
    %312 = vector.shape_cast %311 : vector<16x1x128xf32> to vector<16x128xf32>
    %313 = vector.extract %300[0, 0] : f32 from vector<1x1xf32>
    %314 = vector.broadcast %313 : f32 to vector<16x128xf32>
    %315 = arith.addf %312, %314 : vector<16x128xf32>
    %316 = math.absf %315 : vector<16x128xf32>
    %cst_92 = arith.constant 0.000000e+00 : f32
    %317 = vector.broadcast %cst_92 : f32 to vector<16x128xf32>
    %318 = arith.subf %317, %316 : vector<16x128xf32>
    %319 = math.exp %318 : vector<16x128xf32>
    %cst_93 = arith.constant 0.000000e+00 : f32
    %320 = vector.broadcast %cst_93 : f32 to vector<16x128xf32>
    %321 = arith.cmpf oge, %315, %320 : vector<16x128xf32>
    %cst_94 = arith.constant 1.000000e+00 : f32
    %322 = vector.broadcast %cst_94 : f32 to vector<16x128xf32>
    %323 = arith.select %321, %322, %319 : vector<16x128xi1>, vector<16x128xf32>
    %cst_95 = arith.constant 1.000000e+00 : f32
    %324 = vector.broadcast %cst_95 : f32 to vector<16x128xf32>
    %325 = arith.addf %324, %319 : vector<16x128xf32>
    %326 = arith.divf %323, %325 : vector<16x128xf32>
    %c0_96 = arith.constant 0 : index
    %c0_97 = arith.constant 0 : index
    %327 = vector.load %arg16[%c0_96, %c0_97] : memref<16x128xf32, #tpu.memory_space<vmem>>, vector<16x128xf32>
    tpu.vector_store %arg16[%c0_96, %c0_97], %326 {strides = array<i32>} : memref<16x128xf32, #tpu.memory_space<vmem>>, vector<16x128xf32>,
    return
  }
  func.func @transform_0(%arg0: i32) -> (i32, i32) {
    %c0_i32 = arith.constant 0 : i32
    %c0_i32_0 = arith.constant 0 : i32
    return %c0_i32, %arg0 : i32, i32
  }
  func.func @transform_1(%arg0: i32) -> (i32, i32) {
    %c0_i32 = arith.constant 0 : i32
    %c0_i32_0 = arith.constant 0 : i32
    %c0_i32_1 = arith.constant 0 : i32
    return %c0_i32, %c0_i32_0 : i32, i32
  }
  func.func @transform_2(%arg0: i32) -> (i32, i32) {
    %c0_i32 = arith.constant 0 : i32
    %c0_i32_0 = arith.constant 0 : i32
    %c0_i32_1 = arith.constant 0 : i32
    return %c0_i32, %c0_i32_0 : i32, i32
  }
  func.func @transform_3(%arg0: i32) -> (i32, i32) {
    %c0_i32 = arith.constant 0 : i32
    %c0_i32_0 = arith.constant 0 : i32
    %c0_i32_1 = arith.constant 0 : i32
    return %c0_i32, %c0_i32_0 : i32, i32
  }
  func.func @transform_4(%arg0: i32) -> (i32, i32) {
    %c0_i32 = arith.constant 0 : i32
    %c0_i32_0 = arith.constant 0 : i32
    %c0_i32_1 = arith.constant 0 : i32
    return %c0_i32, %c0_i32_0 : i32, i32
  }
  func.func @transform_5(%arg0: i32) -> (i32, i32) {
    %c0_i32 = arith.constant 0 : i32
    %c0_i32_0 = arith.constant 0 : i32
    %c0_i32_1 = arith.constant 0 : i32
    return %c0_i32, %c0_i32_0 : i32, i32
  }
  func.func @transform_6(%arg0: i32) -> (i32, i32) {
    %c0_i32 = arith.constant 0 : i32
    %c0_i32_0 = arith.constant 0 : i32
    %c0_i32_1 = arith.constant 0 : i32
    return %c0_i32, %c0_i32_0 : i32, i32
  }
  func.func @transform_7(%arg0: i32) -> (i32, i32) {
    %c0_i32 = arith.constant 0 : i32
    %c0_i32_0 = arith.constant 0 : i32
    %c0_i32_1 = arith.constant 0 : i32
    return %c0_i32, %c0_i32_0 : i32, i32
  }
  func.func @transform_8(%arg0: i32) -> (i32, i32) {
    %c0_i32 = arith.constant 0 : i32
    %c0_i32_0 = arith.constant 0 : i32
    %c0_i32_1 = arith.constant 0 : i32
    return %c0_i32, %c0_i32_0 : i32, i32
  }
  func.func @transform_9(%arg0: i32) -> (i32, i32) {
    %c0_i32 = arith.constant 0 : i32
    %c0_i32_0 = arith.constant 0 : i32
    %c0_i32_1 = arith.constant 0 : i32
    return %c0_i32, %c0_i32_0 : i32, i32
  }
  func.func @transform_10(%arg0: i32) -> (i32, i32) {
    %c0_i32 = arith.constant 0 : i32
    %c0_i32_0 = arith.constant 0 : i32
    %c0_i32_1 = arith.constant 0 : i32
    return %c0_i32, %c0_i32_0 : i32, i32
  }
  func.func @transform_11(%arg0: i32) -> (i32, i32) {
    %c0_i32 = arith.constant 0 : i32
    %c0_i32_0 = arith.constant 0 : i32
    %c0_i32_1 = arith.constant 0 : i32
    return %c0_i32, %c0_i32_0 : i32, i32
  }
  func.func @transform_12(%arg0: i32) -> (i32, i32) {
    %c0_i32 = arith.constant 0 : i32
    %c0_i32_0 = arith.constant 0 : i32
    %c0_i32_1 = arith.constant 0 : i32
    return %c0_i32, %c0_i32_0 : i32, i32
  }
  func.func @transform_13(%arg0: i32) -> (i32, i32) {
    %c0_i32 = arith.constant 0 : i32
    %c0_i32_0 = arith.constant 0 : i32
    %c0_i32_1 = arith.constant 0 : i32
    return %c0_i32, %c0_i32_0 : i32, i32
  }
  func.func @transform_14(%arg0: i32) -> (i32, i32) {
    %c0_i32 = arith.constant 0 : i32
    %c0_i32_0 = arith.constant 0 : i32
    %c0_i32_1 = arith.constant 0 : i32
    return %c0_i32, %c0_i32_0 : i32, i32
  }
  func.func @transform_15(%arg0: i32) -> (i32, i32) {
    %c0_i32 = arith.constant 0 : i32
    %c0_i32_0 = arith.constant 0 : i32
    return %c0_i32, %arg0 : i32, i32
  }
}

</mosaic_0001>

<llo_original>
// kernel: tpu_custom_call.1
$region0: #{tpu_custom_call.1}
  #allocation0 [shape = 'u32[]', space=smem, size = 0x4, offset = 0x4, fixed_abs, tag = 'smem constant byte address 0x4 - core index']
  #allocation1 [shape = 'u32[144,128]{1,0:T(1,128)}', space=vmem, size = 0x12000, scoped, tag = 'internal scratch']
  #allocation2 [shape = 'f32[1,1]{1,0:T(1,128)S(1)}', space=vmem, size = 0x200, scoped, tag = 'scoped memory for tpu_custom_call.1']
  %s0 = inlined_call_operand.vmem [shape: f32[16,128], index: 0, kind: input, shape index: {}]
  %s1 = inlined_call_operand.vmem [shape: f32[32,3], index: 1, kind: input, shape index: {}]
  %s2 = inlined_call_operand.vmem [shape: f32[32,1], index: 2, kind: input, shape index: {}]
  %s3 = inlined_call_operand.vmem [shape: bf16[32,96], index: 3, kind: input, shape index: {}]
  %s4 = inlined_call_operand.vmem [shape: f32[32,1], index: 4, kind: input, shape index: {}]
  %s5 = inlined_call_operand.vmem [shape: bf16[32,96], index: 5, kind: input, shape index: {}]
  %s6 = inlined_call_operand.vmem [shape: f32[32,1], index: 6, kind: input, shape index: {}]
  %s7 = inlined_call_operand.vmem [shape: bf16[32,32], index: 7, kind: input, shape index: {}]
  %s8 = inlined_call_operand.vmem [shape: bf16[32,64], index: 8, kind: input, shape index: {}]
  %s9 = inlined_call_operand.vmem [shape: f32[32,1], index: 9, kind: input, shape index: {}]
  %s10 = inlined_call_operand.vmem [shape: bf16[32,32], index: 10, kind: input, shape index: {}]
  %s11 = inlined_call_operand.vmem [shape: bf16[32,64], index: 11, kind: input, shape index: {}]
  %s12 = inlined_call_operand.vmem [shape: f32[32,1], index: 12, kind: input, shape index: {}]
  %s13 = inlined_call_operand.vmem [shape: f32[1,96], index: 13, kind: input, shape index: {}]
  %s14 = inlined_call_operand.<no memory space> [shape: f32[1,1], index: 14, kind: input, shape index: {}]
  %s15 = inlined_call_operand.hbm [shape: f32[16,128], index: 15, kind: output, shape index: {}]
  %s16 = sld [smem:[#allocation0]]
  $region70: #{tpu_custom_call.1} parent=0
    _
  %s18 = ssub.s32 1, %s16
  %s19 = scalar_select 0, %s18, %s16
  %v20 = vstv %s14
  %21 = vst [vmem:[#allocation2] sm:$0x1] %v20
  $region1: #{tpu_custom_call.1} parent=0
    #allocation3 [shape = 'u8[8192]{0}', space=vmem, size = 0x2000, scoped, tag = 'output window, operand 0, single buffered']
    #allocation4 [shape = 's32[1]{0}', space=sflag, size = 0x4, scoped, tag = 'scoped memory for tpu_custom_call.1']
    %22 = vsyncpa [#allocation4], 0
    // Predicated region
    $region2: #{tpu_custom_call.1} parent=1 // pred_check
      _
    $region3: #{tpu_custom_call.1} parent=1 // pred_check_branch
      %24 = sbr.rel (0) target = $region5
    $region4: #{tpu_custom_call.1} parent=1 // pred_region
      _
    $region5: #{tpu_custom_call.1} parent=1 // pred_fallthru
      _
    // Predicated region
    $region6: #{tpu_custom_call.1} parent=1 // pred_check
      _
    $region7: #{tpu_custom_call.1} parent=1 // pred_check_branch
      %26 = sbr.rel (0) target = $region9
    $region8: #{tpu_custom_call.1} parent=1 // pred_region
      _
    $region9: #{tpu_custom_call.1} parent=1 // pred_fallthru
      _
    // Predicated region
    $region10: #{tpu_custom_call.1} parent=1 // pred_check
      _
    $region11: #{tpu_custom_call.1} parent=1 // pred_check_branch
      %28 = sbr.rel (0) target = $region13
    $region12: #{tpu_custom_call.1} parent=1 // pred_region
      _
    $region13: #{tpu_custom_call.1} parent=1 // pred_fallthru
      _
    // Predicated region
    $region14: #{tpu_custom_call.1} parent=1 // pred_check
      _
    $region15: #{tpu_custom_call.1} parent=1 // pred_check_branch
      %30 = sbr.rel (0) target = $region17
    $region16: #{tpu_custom_call.1} parent=1 // pred_region
      _
    $region17: #{tpu_custom_call.1} parent=1 // pred_fallthru
      _
    // Predicated region
    $region18: #{tpu_custom_call.1} parent=1 // pred_check
      _
    $region19: #{tpu_custom_call.1} parent=1 // pred_check_branch
      %32 = sbr.rel (0) target = $region21
    $region20: #{tpu_custom_call.1} parent=1 // pred_region
      _
    $region21: #{tpu_custom_call.1} parent=1 // pred_fallthru
      _
    // Predicated region
    $region22: #{tpu_custom_call.1} parent=1 // pred_check
      _
    $region23: #{tpu_custom_call.1} parent=1 // pred_check_branch
      %34 = sbr.rel (0) target = $region25
    $region24: #{tpu_custom_call.1} parent=1 // pred_region
      _
    $region25: #{tpu_custom_call.1} parent=1 // pred_fallthru
      _
    // Predicated region
    $region26: #{tpu_custom_call.1} parent=1 // pred_check
      _
    $region27: #{tpu_custom_call.1} parent=1 // pred_check_branch
      %36 = sbr.rel (0) target = $region29
    $region28: #{tpu_custom_call.1} parent=1 // pred_region
      _
    $region29: #{tpu_custom_call.1} parent=1 // pred_fallthru
      _
    // Predicated region
    $region30: #{tpu_custom_call.1} parent=1 // pred_check
      _
    $region31: #{tpu_custom_call.1} parent=1 // pred_check_branch
      %38 = sbr.rel (0) target = $region33
    $region32: #{tpu_custom_call.1} parent=1 // pred_region
      _
    $region33: #{tpu_custom_call.1} parent=1 // pred_fallthru
      _
    // Predicated region
    $region34: #{tpu_custom_call.1} parent=1 // pred_check
      _
    $region35: #{tpu_custom_call.1} parent=1 // pred_check_branch
      %40 = sbr.rel (0) target = $region37
    $region36: #{tpu_custom_call.1} parent=1 // pred_region
      _
    $region37: #{tpu_custom_call.1} parent=1 // pred_fallthru
      _
    // Predicated region
    $region38: #{tpu_custom_call.1} parent=1 // pred_check
      _
    $region39: #{tpu_custom_call.1} parent=1 // pred_check_branch
      %42 = sbr.rel (0) target = $region41
    $region40: #{tpu_custom_call.1} parent=1 // pred_region
      _
    $region41: #{tpu_custom_call.1} parent=1 // pred_fallthru
      _
    // Predicated region
    $region42: #{tpu_custom_call.1} parent=1 // pred_check
      _
    $region43: #{tpu_custom_call.1} parent=1 // pred_check_branch
      %44 = sbr.rel (0) target = $region45
    $region44: #{tpu_custom_call.1} parent=1 // pred_region
      _
    $region45: #{tpu_custom_call.1} parent=1 // pred_fallthru
      _
    // Predicated region
    $region46: #{tpu_custom_call.1} parent=1 // pred_check
      _
    $region47: #{tpu_custom_call.1} parent=1 // pred_check_branch
      %46 = sbr.rel (0) target = $region49
    $region48: #{tpu_custom_call.1} parent=1 // pred_region
      _
    $region49: #{tpu_custom_call.1} parent=1 // pred_fallthru
      _
    // Predicated region
    $region50: #{tpu_custom_call.1} parent=1 // pred_check
      _
    $region51: #{tpu_custom_call.1} parent=1 // pred_check_branch
      %48 = sbr.rel (0) target = $region53
    $region52: #{tpu_custom_call.1} parent=1 // pred_region
      _
    $region53: #{tpu_custom_call.1} parent=1 // pred_fallthru
      _
    // Predicated region
    $region54: #{tpu_custom_call.1} parent=1 // pred_check
      _
    $region55: #{tpu_custom_call.1} parent=1 // pred_check_branch
      %50 = sbr.rel (0) target = $region57
    $region56: #{tpu_custom_call.1} parent=1 // pred_region
      _
    $region57: #{tpu_custom_call.1} parent=1 // pred_fallthru
      _
    // Predicated region
    $region58: #{tpu_custom_call.1} parent=1 // pred_check
      _
    $region59: #{tpu_custom_call.1} parent=1 // pred_check_branch
      %52 = sbr.rel (0) target = $region61
    $region60: #{tpu_custom_call.1} parent=1 // pred_region
      _
    $region61: #{tpu_custom_call.1} parent=1 // pred_fallthru
      _
    %v54 = vld [vmem:[%s0] sm:$0xff]
    %v55 = vld [vmem:[%s0 + $0x8] sm:$0xff]
    %v56 = vld [vmem:[%s1] sm:$0xff]
    %v57 = vld [vmem:[%s1 + $0x8] sm:$0xff]
    %v58 = vld [vmem:[%s1 + $0x10] sm:$0xff]
    %v59 = vld [vmem:[%s1 + $0x18] sm:$0xff]
    %v60 = vld [vmem:[%s2] sm:$0xff]
    %v61 = vld [vmem:[%s2 + $0x8] sm:$0xff]
    %v62 = vld [vmem:[%s2 + $0x10] sm:$0xff]
    %v63 = vld [vmem:[%s2 + $0x18] sm:$0xff]
    %v66 = vcombine.high %v54, %v54
    %v68 = vunpack.c.l.s4 1966171168
    %v69 = vunpack.c.0.s8 %v68
    %v70 = vlaneseq
    %v71 = vshrl.u32 %v70, 7
    %v72 = vsub.s32 %v69, %v71
    %v73 = vrot.slane %v54, %v72
    %v75 = vunpack.c.l.s4 1966171168
    %v76 = vunpack.c.0.s8 %v75
    %v77 = vlaneseq
    %v78 = vshrl.u32 %v77, 7
    %v79 = vsub.s32 %v76, %v78
    %v80 = vrot.slane %v66, %v79
    %v81 = vcombine.high %v73, %v73
    %v82 = vcombine.high %v80, %v80
    %v84 = vunpack.c.l.s4 1966171168
    %v85 = vunpack.c.0.s8 %v84
    %v86 = vlaneseq
    %v87 = vshrl.u32 %v86, 7
    %v88 = vsub.s32 %v85, %v87
    %v89 = vrot.slane %v73, %v88
    %v91 = vunpack.c.l.s4 1966171168
    %v92 = vunpack.c.0.s8 %v91
    %v93 = vlaneseq
    %v94 = vshrl.u32 %v93, 7
    %v95 = vsub.s32 %v92, %v94
    %v96 = vrot.slane %v80, %v95
    %v98 = vunpack.c.l.s4 1966171168
    %v99 = vunpack.c.0.s8 %v98
    %v100 = vlaneseq
    %v101 = vshrl.u32 %v100, 7
    %v102 = vsub.s32 %v99, %v101
    %v103 = vrot.slane %v81, %v102
    %v105 = vunpack.c.l.s4 1966171168
    %v106 = vunpack.c.0.s8 %v105
    %v107 = vlaneseq
    %v108 = vshrl.u32 %v107, 7
    %v109 = vsub.s32 %v106, %v108
    %v110 = vrot.slane %v82, %v109
    %v111 = vcombine.high %v89, %v89
    %v112 = vcombine.high %v96, %v96
    %v113 = vcombine.high %v103, %v103
    %v114 = vcombine.high %v110, %v110
    %v115 = vcombine.high %v55, %v55
    %v117 = vunpack.c.l.s4 1966171168
    %v118 = vunpack.c.0.s8 %v117
    %v119 = vlaneseq
    %v120 = vshrl.u32 %v119, 7
    %v121 = vsub.s32 %v118, %v120
    %v122 = vrot.slane %v55, %v121
    %v124 = vunpack.c.l.s4 1966171168
    %v125 = vunpack.c.0.s8 %v124
    %v126 = vlaneseq
    %v127 = vshrl.u32 %v126, 7
    %v128 = vsub.s32 %v125, %v127
    %v129 = vrot.slane %v115, %v128
    %v130 = vcombine.high %v122, %v122
    %v131 = vcombine.high %v129, %v129
    %v133 = vunpack.c.l.s4 1966171168
    %v134 = vunpack.c.0.s8 %v133
    %v135 = vlaneseq
    %v136 = vshrl.u32 %v135, 7
    %v137 = vsub.s32 %v134, %v136
    %v138 = vrot.slane %v122, %v137
    %v140 = vunpack.c.l.s4 1966171168
    %v141 = vunpack.c.0.s8 %v140
    %v142 = vlaneseq
    %v143 = vshrl.u32 %v142, 7
    %v144 = vsub.s32 %v141, %v143
    %v145 = vrot.slane %v129, %v144
    %v147 = vunpack.c.l.s4 1966171168
    %v148 = vunpack.c.0.s8 %v147
    %v149 = vlaneseq
    %v150 = vshrl.u32 %v149, 7
    %v151 = vsub.s32 %v148, %v150
    %v152 = vrot.slane %v130, %v151
    %v154 = vunpack.c.l.s4 1966171168
    %v155 = vunpack.c.0.s8 %v154
    %v156 = vlaneseq
    %v157 = vshrl.u32 %v156, 7
    %v158 = vsub.s32 %v155, %v157
    %v159 = vrot.slane %v131, %v158
    %v160 = vcombine.high %v138, %v138
    %v161 = vcombine.high %v145, %v145
    %v162 = vcombine.high %v152, %v152
    %v163 = vcombine.high %v159, %v159
    %v180 = vlaneseq
    %v181 = vshrl.u32 %v180, 7
    %v182 = vsub.s32 0, %v181
    %v183 = vlaneseq
    %v184 = vshrl.u32 %v183, 7
    %v185 = vsub.s32 0, %v184
    %v186 = vrot.slane %v89, %v185
    %v187 = vlaneseq
    %v188 = vshrl.u32 %v187, 7
    %v189 = vsub.s32 0, %v188
    %v190 = vrot.slane %v103, %v189
    %v191 = vlaneseq
    %v192 = vshrl.u32 %v191, 7
    %v193 = vsub.s32 0, %v192
    %v194 = vrot.slane %v111, %v193
    %v195 = vlaneseq
    %v196 = vshrl.u32 %v195, 7
    %v197 = vsub.s32 0, %v196
    %v198 = vrot.slane %v113, %v197
    %v199 = vlaneseq
    %v200 = vshrl.u32 %v199, 7
    %v201 = vsub.s32 0, %v200
    %v202 = vrot.slane %v96, %v201
    %v203 = vlaneseq
    %v204 = vshrl.u32 %v203, 7
    %v205 = vsub.s32 0, %v204
    %v206 = vrot.slane %v110, %v205
    %v207 = vlaneseq
    %v208 = vshrl.u32 %v207, 7
    %v209 = vsub.s32 0, %v208
    %v210 = vrot.slane %v112, %v209
    %v211 = vlaneseq
    %v212 = vshrl.u32 %v211, 7
    %v213 = vsub.s32 0, %v212
    %v214 = vrot.slane %v114, %v213
    %v215 = vlaneseq
    %v216 = vshrl.u32 %v215, 7
    %v217 = vsub.s32 0, %v216
    %v218 = vrot.slane %v138, %v217
    %v219 = vlaneseq
    %v220 = vshrl.u32 %v219, 7
    %v221 = vsub.s32 0, %v220
    %v222 = vrot.slane %v152, %v221
    %v223 = vlaneseq
    %v224 = vshrl.u32 %v223, 7
    %v225 = vsub.s32 0, %v224
    %v226 = vrot.slane %v160, %v225
    %v227 = vlaneseq
    %v228 = vshrl.u32 %v227, 7
    %v229 = vsub.s32 0, %v228
    %v230 = vrot.slane %v162, %v229
    %v231 = vlaneseq
    %v232 = vshrl.u32 %v231, 7
    %v233 = vsub.s32 0, %v232
    %v234 = vrot.slane %v145, %v233
    %v235 = vlaneseq
    %v236 = vshrl.u32 %v235, 7
    %v237 = vsub.s32 0, %v236
    %v238 = vrot.slane %v159, %v237
    %v239 = vlaneseq
    %v240 = vshrl.u32 %v239, 7
    %v241 = vsub.s32 0, %v240
    %v242 = vrot.slane %v161, %v241
    %244 = vset.pattern.permute.xlu0 0
    %245 = vperm.xlu0 %244, %v56
    %v246 = vpop.permute.xlu0 %245
    %249 = vset.pattern.permute.xlu0 0
    %250 = vperm.xlu0 %249, %v57
    %v251 = vpop.permute.xlu0 %250
    %254 = vset.pattern.permute.xlu0 0
    %255 = vperm.xlu0 %254, %v58
    %v256 = vpop.permute.xlu0 %255
    %259 = vset.pattern.permute.xlu0 0
    %260 = vperm.xlu0 %259, %v59
    %v261 = vpop.permute.xlu0 %260
    %v263 = vmul.f32 0.0, %v246
    %v264 = vmul.f32 0.0, %v251
    %v265 = vmul.f32 0.0, %v256
    %v266 = vmul.f32 0.0, %v261
    %v267 = vmul.f32 %v186, %v246
    %v268 = vmul.f32 %v186, %v251
    %v269 = vmul.f32 %v186, %v256
    %v270 = vmul.f32 %v186, %v261
    %v271 = vmul.f32 %v190, %v246
    %v272 = vmul.f32 %v190, %v251
    %v273 = vmul.f32 %v190, %v256
    %v274 = vmul.f32 %v190, %v261
    %v275 = vmul.f32 %v194, %v246
    %v276 = vmul.f32 %v194, %v251
    %v277 = vmul.f32 %v194, %v256
    %v278 = vmul.f32 %v194, %v261
    %v279 = vmul.f32 %v198, %v246
    %v280 = vmul.f32 %v198, %v251
    %v281 = vmul.f32 %v198, %v256
    %v282 = vmul.f32 %v198, %v261
    %v283 = vmul.f32 %v202, %v246
    %v284 = vmul.f32 %v202, %v251
    %v285 = vmul.f32 %v202, %v256
    %v286 = vmul.f32 %v202, %v261
    %v287 = vmul.f32 %v206, %v246
    %v288 = vmul.f32 %v206, %v251
    %v289 = vmul.f32 %v206, %v256
    %v290 = vmul.f32 %v206, %v261
    %v291 = vmul.f32 %v210, %v246
    %v292 = vmul.f32 %v210, %v251
    %v293 = vmul.f32 %v210, %v256
    %v294 = vmul.f32 %v210, %v261
    %v295 = vmul.f32 %v214, %v246
    %v296 = vmul.f32 %v214, %v251
    %v297 = vmul.f32 %v214, %v256
    %v298 = vmul.f32 %v214, %v261
    %v299 = vmul.f32 %v218, %v246
    %v300 = vmul.f32 %v218, %v251
    %v301 = vmul.f32 %v218, %v256
    %v302 = vmul.f32 %v218, %v261
    %v303 = vmul.f32 %v222, %v246
    %v304 = vmul.f32 %v222, %v251
    %v305 = vmul.f32 %v222, %v256
    %v306 = vmul.f32 %v222, %v261
    %v307 = vmul.f32 %v226, %v246
    %v308 = vmul.f32 %v226, %v251
    %v309 = vmul.f32 %v226, %v256
    %v310 = vmul.f32 %v226, %v261
    %v311 = vmul.f32 %v230, %v246
    %v312 = vmul.f32 %v230, %v251
    %v313 = vmul.f32 %v230, %v256
    %v314 = vmul.f32 %v230, %v261
    %v315 = vmul.f32 %v234, %v246
    %v316 = vmul.f32 %v234, %v251
    %v317 = vmul.f32 %v234, %v256
    %v318 = vmul.f32 %v234, %v261
    %v319 = vmul.f32 %v238, %v246
    %v320 = vmul.f32 %v238, %v251
    %v321 = vmul.f32 %v238, %v256
    %v322 = vmul.f32 %v238, %v261
    %v323 = vmul.f32 %v242, %v246
    %v324 = vmul.f32 %v242, %v251
    %v325 = vmul.f32 %v242, %v256
    %v326 = vmul.f32 %v242, %v261
    %v327 = vlaneseq
    %v328 = vshrl.u32 %v327, 7
    %v329 = vsub.s32 0, %v328
    %v330 = vrot.slane %v163, %v329
    %331 = vset.pattern.permute.xlu0 1
    %332 = vperm.xlu0 %331, %v56
    %v333 = vpop.permute.xlu0 %332
    %335 = vset.pattern.permute.xlu0 1
    %336 = vperm.xlu0 %335, %v57
    %v337 = vpop.permute.xlu0 %336
    %339 = vset.pattern.permute.xlu0 1
    %340 = vperm.xlu0 %339, %v58
    %v341 = vpop.permute.xlu0 %340
    %343 = vset.pattern.permute.xlu0 1
    %344 = vperm.xlu0 %343, %v59
    %v345 = vpop.permute.xlu0 %344
    %v347 = vmul.f32 %v186, %v333
    %v348 = vmul.f32 %v186, %v337
    %v349 = vmul.f32 %v186, %v341
    %v350 = vmul.f32 %v186, %v345
    %v351 = vmul.f32 %v190, %v333
    %v352 = vmul.f32 %v190, %v337
    %v353 = vmul.f32 %v190, %v341
    %v354 = vmul.f32 %v190, %v345
    %v355 = vmul.f32 %v194, %v333
    %v356 = vmul.f32 %v194, %v337
    %v357 = vmul.f32 %v194, %v341
    %v358 = vmul.f32 %v194, %v345
    %v359 = vmul.f32 %v198, %v333
    %v360 = vmul.f32 %v198, %v337
    %v361 = vmul.f32 %v198, %v341
    %v362 = vmul.f32 %v198, %v345
    %v363 = vmul.f32 %v202, %v333
    %v364 = vmul.f32 %v202, %v337
    %v365 = vmul.f32 %v202, %v341
    %v366 = vmul.f32 %v202, %v345
    %v367 = vmul.f32 %v206, %v333
    %v368 = vmul.f32 %v206, %v337
    %v369 = vmul.f32 %v206, %v341
    %v370 = vmul.f32 %v206, %v345
    %v371 = vmul.f32 %v210, %v333
    %v372 = vmul.f32 %v210, %v337
    %v373 = vmul.f32 %v210, %v341
    %v374 = vmul.f32 %v210, %v345
    %v375 = vmul.f32 %v214, %v333
    %v376 = vmul.f32 %v214, %v337
    %v377 = vmul.f32 %v214, %v341
    %v378 = vmul.f32 %v214, %v345
    %v379 = vmul.f32 %v218, %v333
    %v380 = vmul.f32 %v218, %v337
    %v381 = vmul.f32 %v218, %v341
    %v382 = vmul.f32 %v218, %v345
    %v383 = vmul.f32 %v222, %v333
    %v384 = vmul.f32 %v222, %v337
    %v385 = vmul.f32 %v222, %v341
    %v386 = vmul.f32 %v222, %v345
    %v387 = vmul.f32 %v226, %v333
    %v388 = vmul.f32 %v226, %v337
    %v389 = vmul.f32 %v226, %v341
    %v390 = vmul.f32 %v226, %v345
    %v391 = vmul.f32 %v230, %v333
    %v392 = vmul.f32 %v230, %v337
    %v393 = vmul.f32 %v230, %v341
    %v394 = vmul.f32 %v230, %v345
    %v395 = vmul.f32 %v234, %v333
    %v396 = vmul.f32 %v234, %v337
    %v397 = vmul.f32 %v234, %v341
    %v398 = vmul.f32 %v234, %v345
    %v399 = vmul.f32 %v238, %v333
    %v400 = vmul.f32 %v238, %v337
    %v401 = vmul.f32 %v238, %v341
    %v402 = vmul.f32 %v238, %v345
    %v403 = vmul.f32 %v242, %v333
    %v404 = vmul.f32 %v242, %v337
    %v405 = vmul.f32 %v242, %v341
    %v406 = vmul.f32 %v242, %v345
    %v407 = vmul.f32 %v330, %v333
    %v408 = vmul.f32 %v330, %v337
    %v409 = vmul.f32 %v330, %v341
    %v410 = vmul.f32 %v330, %v345
    %v411 = vadd.f32 %v263, %v347
    %v412 = vadd.f32 %v264, %v348
    %v413 = vadd.f32 %v265, %v349
    %v414 = vadd.f32 %v266, %v350
    %v415 = vadd.f32 %v267, %v351
    %v416 = vadd.f32 %v268, %v352
    %v417 = vadd.f32 %v269, %v353
    %v418 = vadd.f32 %v270, %v354
    %v419 = vadd.f32 %v271, %v355
    %v420 = vadd.f32 %v272, %v356
    %v421 = vadd.f32 %v273, %v357
    %v422 = vadd.f32 %v274, %v358
    %v423 = vadd.f32 %v275, %v359
    %v424 = vadd.f32 %v276, %v360
    %v425 = vadd.f32 %v277, %v361
    %v426 = vadd.f32 %v278, %v362
    %v427 = vadd.f32 %v279, %v363
    %v428 = vadd.f32 %v280, %v364
    %v429 = vadd.f32 %v281, %v365
    %v430 = vadd.f32 %v282, %v366
    %v431 = vadd.f32 %v283, %v367
    %v432 = vadd.f32 %v284, %v368
    %v433 = vadd.f32 %v285, %v369
    %v434 = vadd.f32 %v286, %v370
    %v435 = vadd.f32 %v287, %v371
    %v436 = vadd.f32 %v288, %v372
    %v437 = vadd.f32 %v289, %v373
    %v438 = vadd.f32 %v290, %v374
    %v439 = vadd.f32 %v291, %v375
    %v440 = vadd.f32 %v292, %v376
    %v441 = vadd.f32 %v293, %v377
    %v442 = vadd.f32 %v294, %v378
    %v443 = vadd.f32 %v295, %v379
    %v444 = vadd.f32 %v296, %v380
    %v445 = vadd.f32 %v297, %v381
    %v446 = vadd.f32 %v298, %v382
    %v447 = vadd.f32 %v299, %v383
    %v448 = vadd.f32 %v300, %v384
    %v449 = vadd.f32 %v301, %v385
    %v450 = vadd.f32 %v302, %v386
    %v451 = vadd.f32 %v303, %v387
    %v452 = vadd.f32 %v304, %v388
    %v453 = vadd.f32 %v305, %v389
    %v454 = vadd.f32 %v306, %v390
    %v455 = vadd.f32 %v307, %v391
    %v456 = vadd.f32 %v308, %v392
    %v457 = vadd.f32 %v309, %v393
    %v458 = vadd.f32 %v310, %v394
    %v459 = vadd.f32 %v311, %v395
    %v460 = vadd.f32 %v312, %v396
    %v461 = vadd.f32 %v313, %v397
    %v462 = vadd.f32 %v314, %v398
    %v463 = vadd.f32 %v315, %v399
    %v464 = vadd.f32 %v316, %v400
    %v465 = vadd.f32 %v317, %v401
    %v466 = vadd.f32 %v318, %v402
    %v467 = vadd.f32 %v319, %v403
    %v468 = vadd.f32 %v320, %v404
    %v469 = vadd.f32 %v321, %v405
    %v470 = vadd.f32 %v322, %v406
    %v471 = vadd.f32 %v323, %v407
    %v472 = vadd.f32 %v324, %v408
    %v473 = vadd.f32 %v325, %v409
    %v474 = vadd.f32 %v326, %v410
    %475 = vset.pattern.permute.xlu0 2
    %476 = vperm.xlu0 %475, %v56
    %v477 = vpop.permute.xlu0 %476
    %479 = vset.pattern.permute.xlu0 2
    %480 = vperm.xlu0 %479, %v57
    %v481 = vpop.permute.xlu0 %480
    %483 = vset.pattern.permute.xlu0 2
    %484 = vperm.xlu0 %483, %v58
    %v485 = vpop.permute.xlu0 %484
    %487 = vset.pattern.permute.xlu0 2
    %488 = vperm.xlu0 %487, %v59
    %v489 = vpop.permute.xlu0 %488
    %v491 = vmul.f32 %v190, %v477
    %v492 = vmul.f32 %v190, %v481
    %v493 = vmul.f32 %v190, %v485
    %v494 = vmul.f32 %v190, %v489
    %v495 = vmul.f32 %v194, %v477
    %v496 = vmul.f32 %v194, %v481
    %v497 = vmul.f32 %v194, %v485
    %v498 = vmul.f32 %v194, %v489
    %v499 = vmul.f32 %v198, %v477
    %v500 = vmul.f32 %v198, %v481
    %v501 = vmul.f32 %v198, %v485
    %v502 = vmul.f32 %v198, %v489
    %v503 = vmul.f32 %v202, %v477
    %v504 = vmul.f32 %v202, %v481
    %v505 = vmul.f32 %v202, %v485
    %v506 = vmul.f32 %v202, %v489
    %v507 = vmul.f32 %v206, %v477
    %v508 = vmul.f32 %v206, %v481
    %v509 = vmul.f32 %v206, %v485
    %v510 = vmul.f32 %v206, %v489
    %v511 = vmul.f32 %v210, %v477
    %v512 = vmul.f32 %v210, %v481
    %v513 = vmul.f32 %v210, %v485
    %v514 = vmul.f32 %v210, %v489
    %v515 = vmul.f32 %v214, %v477
    %v516 = vmul.f32 %v214, %v481
    %v517 = vmul.f32 %v214, %v485
    %v518 = vmul.f32 %v214, %v489
    %v519 = vmul.f32 %v218, %v477
    %v520 = vmul.f32 %v218, %v481
    %v521 = vmul.f32 %v218, %v485
    %v522 = vmul.f32 %v218, %v489
    %v523 = vmul.f32 %v222, %v477
    %v524 = vmul.f32 %v222, %v481
    %v525 = vmul.f32 %v222, %v485
    %v526 = vmul.f32 %v222, %v489
    %v527 = vmul.f32 %v226, %v477
    %v528 = vmul.f32 %v226, %v481
    %v529 = vmul.f32 %v226, %v485
    %v530 = vmul.f32 %v226, %v489
    %v531 = vmul.f32 %v230, %v477
    %v532 = vmul.f32 %v230, %v481
    %v533 = vmul.f32 %v230, %v485
    %v534 = vmul.f32 %v230, %v489
    %v535 = vmul.f32 %v234, %v477
    %v536 = vmul.f32 %v234, %v481
    %v537 = vmul.f32 %v234, %v485
    %v538 = vmul.f32 %v234, %v489
    %v539 = vmul.f32 %v238, %v477
    %v540 = vmul.f32 %v238, %v481
    %v541 = vmul.f32 %v238, %v485
    %v542 = vmul.f32 %v238, %v489
    %v543 = vmul.f32 %v242, %v477
    %v544 = vmul.f32 %v242, %v481
    %v545 = vmul.f32 %v242, %v485
    %v546 = vmul.f32 %v242, %v489
    %v547 = vmul.f32 %v330, %v477
    %v548 = vmul.f32 %v330, %v481
    %v549 = vmul.f32 %v330, %v485
    %v550 = vmul.f32 %v330, %v489
    %v551 = vmul.f32 0.0, %v477
    %v552 = vmul.f32 0.0, %v481
    %v553 = vmul.f32 0.0, %v485
    %v554 = vmul.f32 0.0, %v489
    %v555 = vadd.f32 %v411, %v491
    %v556 = vadd.f32 %v412, %v492
    %v557 = vadd.f32 %v413, %v493
    %v558 = vadd.f32 %v414, %v494
    %v559 = vadd.f32 %v415, %v495
    %v560 = vadd.f32 %v416, %v496
    %v561 = vadd.f32 %v417, %v497
    %v562 = vadd.f32 %v418, %v498
    %v563 = vadd.f32 %v419, %v499
    %v564 = vadd.f32 %v420, %v500
    %v565 = vadd.f32 %v421, %v501
    %v566 = vadd.f32 %v422, %v502
    %v567 = vadd.f32 %v423, %v503
    %v568 = vadd.f32 %v424, %v504
    %v569 = vadd.f32 %v425, %v505
    %v570 = vadd.f32 %v426, %v506
    %v571 = vadd.f32 %v427, %v507
    %v572 = vadd.f32 %v428, %v508
    %v573 = vadd.f32 %v429, %v509
    %v574 = vadd.f32 %v430, %v510
    %v575 = vadd.f32 %v431, %v511
    %v576 = vadd.f32 %v432, %v512
    %v577 = vadd.f32 %v433, %v513
    %v578 = vadd.f32 %v434, %v514
    %v579 = vadd.f32 %v435, %v515
    %v580 = vadd.f32 %v436, %v516
    %v581 = vadd.f32 %v437, %v517
    %v582 = vadd.f32 %v438, %v518
    %v583 = vadd.f32 %v439, %v519
    %v584 = vadd.f32 %v440, %v520
    %v585 = vadd.f32 %v441, %v521
    %v586 = vadd.f32 %v442, %v522
    %v587 = vadd.f32 %v443, %v523
    %v588 = vadd.f32 %v444, %v524
    %v589 = vadd.f32 %v445, %v525
    %v590 = vadd.f32 %v446, %v526
    %v591 = vadd.f32 %v447, %v527
    %v592 = vadd.f32 %v448, %v528
    %v593 = vadd.f32 %v449, %v529
    %v594 = vadd.f32 %v450, %v530
    %v595 = vadd.f32 %v451, %v531
    %v596 = vadd.f32 %v452, %v532
    %v597 = vadd.f32 %v453, %v533
    %v598 = vadd.f32 %v454, %v534
    %v599 = vadd.f32 %v455, %v535
    %v600 = vadd.f32 %v456, %v536
    %v601 = vadd.f32 %v457, %v537
    %v602 = vadd.f32 %v458, %v538
    %v603 = vadd.f32 %v459, %v539
    %v604 = vadd.f32 %v460, %v540
    %v605 = vadd.f32 %v461, %v541
    %v606 = vadd.f32 %v462, %v542
    %v607 = vadd.f32 %v463, %v543
    %v608 = vadd.f32 %v464, %v544
    %v609 = vadd.f32 %v465, %v545
    %v610 = vadd.f32 %v466, %v546
    %v611 = vadd.f32 %v467, %v547
    %v612 = vadd.f32 %v468, %v548
    %v613 = vadd.f32 %v469, %v549
    %v614 = vadd.f32 %v470, %v550
    %v615 = vadd.f32 %v471, %v551
    %v616 = vadd.f32 %v472, %v552
    %v617 = vadd.f32 %v473, %v553
    %v618 = vadd.f32 %v474, %v554
    %620 = vset.pattern.permute.xlu0 0
    %621 = vperm.xlu0 %620, %v60
    %v622 = vpop.permute.xlu0 %621
    %625 = vset.pattern.permute.xlu0 0
    %626 = vperm.xlu0 %625, %v61
    %v627 = vpop.permute.xlu0 %626
    %630 = vset.pattern.permute.xlu0 0
    %631 = vperm.xlu0 %630, %v62
    %v632 = vpop.permute.xlu0 %631
    %635 = vset.pattern.permute.xlu0 0
    %636 = vperm.xlu0 %635, %v63
    %v637 = vpop.permute.xlu0 %636
    %v639 = vadd.f32 %v555, %v622
    %v640 = vadd.f32 %v556, %v627
    %v641 = vadd.f32 %v557, %v632
    %v642 = vadd.f32 %v558, %v637
    %v643 = vadd.f32 %v559, %v622
    %v644 = vadd.f32 %v560, %v627
    %v645 = vadd.f32 %v561, %v632
    %v646 = vadd.f32 %v562, %v637
    %v647 = vadd.f32 %v563, %v622
    %v648 = vadd.f32 %v564, %v627
    %v649 = vadd.f32 %v565, %v632
    %v650 = vadd.f32 %v566, %v637
    %v651 = vadd.f32 %v567, %v622
    %v652 = vadd.f32 %v568, %v627
    %v653 = vadd.f32 %v569, %v632
    %v654 = vadd.f32 %v570, %v637
    %v655 = vadd.f32 %v571, %v622
    %v656 = vadd.f32 %v572, %v627
    %v657 = vadd.f32 %v573, %v632
    %v658 = vadd.f32 %v574, %v637
    %v659 = vadd.f32 %v575, %v622
    %v660 = vadd.f32 %v576, %v627
    %v661 = vadd.f32 %v577, %v632
    %v662 = vadd.f32 %v578, %v637
    %v663 = vadd.f32 %v579, %v622
    %v664 = vadd.f32 %v580, %v627
    %v665 = vadd.f32 %v581, %v632
    %v666 = vadd.f32 %v582, %v637
    %v667 = vadd.f32 %v583, %v622
    %v668 = vadd.f32 %v584, %v627
    %v669 = vadd.f32 %v585, %v632
    %v670 = vadd.f32 %v586, %v637
    %v671 = vadd.f32 %v587, %v622
    %v672 = vadd.f32 %v588, %v627
    %v673 = vadd.f32 %v589, %v632
    %v674 = vadd.f32 %v590, %v637
    %v675 = vadd.f32 %v591, %v622
    %v676 = vadd.f32 %v592, %v627
    %v677 = vadd.f32 %v593, %v632
    %v678 = vadd.f32 %v594, %v637
    %v679 = vadd.f32 %v595, %v622
    %v680 = vadd.f32 %v596, %v627
    %v681 = vadd.f32 %v597, %v632
    %v682 = vadd.f32 %v598, %v637
    %v683 = vadd.f32 %v599, %v622
    %v684 = vadd.f32 %v600, %v627
    %v685 = vadd.f32 %v601, %v632
    %v686 = vadd.f32 %v602, %v637
    %v687 = vadd.f32 %v603, %v622
    %v688 = vadd.f32 %v604, %v627
    %v689 = vadd.f32 %v605, %v632
    %v690 = vadd.f32 %v606, %v637
    %v691 = vadd.f32 %v607, %v622
    %v692 = vadd.f32 %v608, %v627
    %v693 = vadd.f32 %v609, %v632
    %v694 = vadd.f32 %v610, %v637
    %v695 = vadd.f32 %v611, %v622
    %v696 = vadd.f32 %v612, %v627
    %v697 = vadd.f32 %v613, %v632
    %v698 = vadd.f32 %v614, %v637
    %v699 = vadd.f32 %v615, %v622
    %v700 = vadd.f32 %v616, %v627
    %v701 = vadd.f32 %v617, %v632
    %v702 = vadd.f32 %v618, %v637
    %v703 = vmul.f32 %v639, 0.1
    %v704 = vmul.f32 %v640, 0.1
    %v705 = vmul.f32 %v641, 0.1
    %v706 = vmul.f32 %v642, 0.1
    %v707 = vmul.f32 %v643, 0.1
    %v708 = vmul.f32 %v644, 0.1
    %v709 = vmul.f32 %v645, 0.1
    %v710 = vmul.f32 %v646, 0.1
    %v711 = vmul.f32 %v647, 0.1
    %v712 = vmul.f32 %v648, 0.1
    %v713 = vmul.f32 %v649, 0.1
    %v714 = vmul.f32 %v650, 0.1
    %v715 = vmul.f32 %v651, 0.1
    %v716 = vmul.f32 %v652, 0.1
    %v717 = vmul.f32 %v653, 0.1
    %v718 = vmul.f32 %v654, 0.1
    %v719 = vmul.f32 %v655, 0.1
    %v720 = vmul.f32 %v656, 0.1
    %v721 = vmul.f32 %v657, 0.1
    %v722 = vmul.f32 %v658, 0.1
    %v723 = vmul.f32 %v659, 0.1
    %v724 = vmul.f32 %v660, 0.1
    %v725 = vmul.f32 %v661, 0.1
    %v726 = vmul.f32 %v662, 0.1
    %v727 = vmul.f32 %v663, 0.1
    %v728 = vmul.f32 %v664, 0.1
    %v729 = vmul.f32 %v665, 0.1
    %v730 = vmul.f32 %v666, 0.1
    %v731 = vmul.f32 %v667, 0.1
    %v732 = vmul.f32 %v668, 0.1
    %v733 = vmul.f32 %v669, 0.1
    %v734 = vmul.f32 %v670, 0.1
    %v735 = vmul.f32 %v671, 0.1
    %v736 = vmul.f32 %v672, 0.1
    %v737 = vmul.f32 %v673, 0.1
    %v738 = vmul.f32 %v674, 0.1
    %v739 = vmul.f32 %v675, 0.1
    %v740 = vmul.f32 %v676, 0.1
    %v741 = vmul.f32 %v677, 0.1
    %v742 = vmul.f32 %v678, 0.1
    %v743 = vmul.f32 %v679, 0.1
    %v744 = vmul.f32 %v680, 0.1
    %v745 = vmul.f32 %v681, 0.1
    %v746 = vmul.f32 %v682, 0.1
    %v747 = vmul.f32 %v683, 0.1
    %v748 = vmul.f32 %v684, 0.1
    %v749 = vmul.f32 %v685, 0.1
    %v750 = vmul.f32 %v686, 0.1
    %v751 = vmul.f32 %v687, 0.1
    %v752 = vmul.f32 %v688, 0.1
    %v753 = vmul.f32 %v689, 0.1
    %v754 = vmul.f32 %v690, 0.1
    %v755 = vmul.f32 %v691, 0.1
    %v756 = vmul.f32 %v692, 0.1
    %v757 = vmul.f32 %v693, 0.1
    %v758 = vmul.f32 %v694, 0.1
    %v759 = vmul.f32 %v695, 0.1
    %v760 = vmul.f32 %v696, 0.1
    %v761 = vmul.f32 %v697, 0.1
    %v762 = vmul.f32 %v698, 0.1
    %v763 = vmul.f32 %v699, 0.1
    %v764 = vmul.f32 %v700, 0.1
    %v765 = vmul.f32 %v701, 0.1
    %v766 = vmul.f32 %v702, 0.1
    %v767 = vmax.f32 %v639, %v703
    %v768 = vmax.f32 %v640, %v704
    %v769 = vmax.f32 %v641, %v705
    %v770 = vmax.f32 %v642, %v706
    %v771 = vmax.f32 %v643, %v707
    %v772 = vmax.f32 %v644, %v708
    %v773 = vmax.f32 %v645, %v709
    %v774 = vmax.f32 %v646, %v710
    %v775 = vmax.f32 %v647, %v711
    %v776 = vmax.f32 %v648, %v712
    %v777 = vmax.f32 %v649, %v713
    %v778 = vmax.f32 %v650, %v714
    %v779 = vmax.f32 %v651, %v715
    %v780 = vmax.f32 %v652, %v716
    %v781 = vmax.f32 %v653, %v717
    %v782 = vmax.f32 %v654, %v718
    %v783 = vmax.f32 %v655, %v719
    %v784 = vmax.f32 %v656, %v720
    %v785 = vmax.f32 %v657, %v721
    %v786 = vmax.f32 %v658, %v722
    %v787 = vmax.f32 %v659, %v723
    %v788 = vmax.f32 %v660, %v724
    %v789 = vmax.f32 %v661, %v725
    %v790 = vmax.f32 %v662, %v726
    %v791 = vmax.f32 %v663, %v727
    %v792 = vmax.f32 %v664, %v728
    %v793 = vmax.f32 %v665, %v729
    %v794 = vmax.f32 %v666, %v730
    %v795 = vmax.f32 %v667, %v731
    %v796 = vmax.f32 %v668, %v732
    %v797 = vmax.f32 %v669, %v733
    %v798 = vmax.f32 %v670, %v734
    %v799 = vmax.f32 %v671, %v735
    %v800 = vmax.f32 %v672, %v736
    %v801 = vmax.f32 %v673, %v737
    %v802 = vmax.f32 %v674, %v738
    %v803 = vmax.f32 %v675, %v739
    %v804 = vmax.f32 %v676, %v740
    %v805 = vmax.f32 %v677, %v741
    %v806 = vmax.f32 %v678, %v742
    %v807 = vmax.f32 %v679, %v743
    %v808 = vmax.f32 %v680, %v744
    %v809 = vmax.f32 %v681, %v745
    %v810 = vmax.f32 %v682, %v746
    %v811 = vmax.f32 %v683, %v747
    %v812 = vmax.f32 %v684, %v748
    %v813 = vmax.f32 %v685, %v749
    %v814 = vmax.f32 %v686, %v750
    %v815 = vmax.f32 %v687, %v751
    %v816 = vmax.f32 %v688, %v752
    %v817 = vmax.f32 %v689, %v753
    %v818 = vmax.f32 %v690, %v754
    %v819 = vmax.f32 %v691, %v755
    %v820 = vmax.f32 %v692, %v756
    %v821 = vmax.f32 %v693, %v757
    %v822 = vmax.f32 %v694, %v758
    %v823 = vmax.f32 %v695, %v759
    %v824 = vmax.f32 %v696, %v760
    %v825 = vmax.f32 %v697, %v761
    %v826 = vmax.f32 %v698, %v762
    %v827 = vmax.f32 %v699, %v763
    %v828 = vmax.f32 %v700, %v764
    %v829 = vmax.f32 %v701, %v765
    %v830 = vmax.f32 %v702, %v766
    %v831 = vmax.f32 %v767, %v771
    %v832 = vmax.f32 %v768, %v772
    %v833 = vmax.f32 %v769, %v773
    %v834 = vmax.f32 %v770, %v774
    %v835 = vmax.f32 %v775, %v779
    %v836 = vmax.f32 %v776, %v780
    %v837 = vmax.f32 %v777, %v781
    %v838 = vmax.f32 %v778, %v782
    %v839 = vmax.f32 %v783, %v787
    %v840 = vmax.f32 %v784, %v788
    %v841 = vmax.f32 %v785, %v789
    %v842 = vmax.f32 %v786, %v790
    %v843 = vmax.f32 %v791, %v795
    %v844 = vmax.f32 %v792, %v796
    %v845 = vmax.f32 %v793, %v797
    %v846 = vmax.f32 %v794, %v798
    %v847 = vmax.f32 %v799, %v803
    %v848 = vmax.f32 %v800, %v804
    %v849 = vmax.f32 %v801, %v805
    %v850 = vmax.f32 %v802, %v806
    %v851 = vmax.f32 %v807, %v811
    %v852 = vmax.f32 %v808, %v812
    %v853 = vmax.f32 %v809, %v813
    %v854 = vmax.f32 %v810, %v814
    %v855 = vmax.f32 %v815, %v819
    %v856 = vmax.f32 %v816, %v820
    %v857 = vmax.f32 %v817, %v821
    %v858 = vmax.f32 %v818, %v822
    %v859 = vmax.f32 %v823, %v827
    %v860 = vmax.f32 %v824, %v828
    %v861 = vmax.f32 %v825, %v829
    %v862 = vmax.f32 %v826, %v830
    %v863 = vld [vmem:[%s3] sm:$0xf]
    %v864 = vld [vmem:[%s3 + $0x4] sm:$0xf]
    %v865 = vld [vmem:[%s3 + $0x8] sm:$0xf]
    %v866 = vld [vmem:[%s3 + $0xc] sm:$0xf]
    %v867 = vld [vmem:[%s4] sm:$0xff]
    %v868 = vld [vmem:[%s4 + $0x8] sm:$0xff]
    %v869 = vld [vmem:[%s4 + $0x10] sm:$0xff]
    %v870 = vld [vmem:[%s4 + $0x18] sm:$0xff]
    %v871 = vpack.c.bf16 0.0, 0.0
    %v872 = vpack.c.bf16 %v832, %v831
    %v873 = vpack.c.bf16 %v834, %v833
    %v874 = vpack.c.bf16 %v836, %v835
    %v875 = vpack.c.bf16 %v838, %v837
    %v876 = vpack.c.bf16 %v840, %v839
    %v877 = vpack.c.bf16 %v842, %v841
    %v878 = vpack.c.bf16 %v844, %v843
    %v879 = vpack.c.bf16 %v846, %v845
    %v880 = vpack.c.bf16 %v848, %v847
    %v881 = vpack.c.bf16 %v850, %v849
    %v882 = vpack.c.bf16 %v852, %v851
    %v883 = vpack.c.bf16 %v854, %v853
    %v884 = vpack.c.bf16 %v856, %v855
    %v885 = vpack.c.bf16 %v858, %v857
    %v886 = vpack.c.bf16 %v860, %v859
    %v887 = vpack.c.bf16 %v862, %v861
    %889 = vset.pattern.permute.xlu0 0
    %890 = vperm.xlu0 %889, %v867
    %v891 = vpop.permute.xlu0 %890
    %894 = vset.pattern.permute.xlu0 0
    %895 = vperm.xlu0 %894, %v868
    %v896 = vpop.permute.xlu0 %895
    %899 = vset.pattern.permute.xlu0 0
    %900 = vperm.xlu0 %899, %v869
    %v901 = vpop.permute.xlu0 %900
    %904 = vset.pattern.permute.xlu0 0
    %905 = vperm.xlu0 %904, %v870
    %v906 = vpop.permute.xlu0 %905
    %v912 = vunpack.c.l.b16 %v863
    %v913 = vunpack.c.l.b16 %v864
    %v914 = vunpack.c.l.b16 %v865
    %v915 = vunpack.c.l.b16 %v866
    %v916 = vpack.c.b16 %v913, %v912
    %v917 = vpack.c.b16 %v915, %v914
    %vm918 = vcmask 785408
    %v920 = vsel %vm918, %v916, 0
    %v923 = vsel %vm918, %v917, 0
    %925 = vmatprep.subr.bf16.mxu0 0
    %926 = vmatpush1.bf16.msra.mxu0 %v871
    %927 = vmatprep.subr.bf16.mxu0 0
    %928 = vmatpush1.bf16.msra.mxu0 %v871
    %929 = vmatprep.subr.bf16.mxu0 0
    %930 = vmatpush1.bf16.msra.mxu0 %v872
    %931 = vmatprep.subr.bf16.mxu0 0
    %932 = vmatpush1.bf16.msra.mxu0 %v873
    %933 = vmatprep.subr.bf16.mxu0 0
    %934 = vmatpush1.bf16.msra.mxu0 %v874
    %935 = vmatprep.subr.bf16.mxu0 0
    %936 = vmatpush1.bf16.msra.mxu0 %v875
    %937 = vmatprep.subr.bf16.mxu0 0
    %938 = vmatpush1.bf16.msra.mxu0 0
    %939 = vmatprep.subr.bf16.mxu0 0
    %940 = vmatpush1.bf16.msra.mxu0 0
    %941 = vmatprep.subr.bf16.mxu0 0
    %942 = vmatpush1.bf16.msra.mxu0 0
    %943 = vmatprep.subr.bf16.mxu0 0
    %944 = vmatpush1.bf16.msra.mxu0 0
    %945 = vmatprep.subr.bf16.mxu0 0
    %946 = vmatpush1.bf16.msra.mxu0 0
    %947 = vmatprep.subr.bf16.mxu0 0
    %948 = vmatpush1.bf16.msra.mxu0 0
    %949 = vmatprep.subr.bf16.mxu0 0
    %950 = vmatpush1.bf16.msra.mxu0 0
    %951 = vmatprep.subr.bf16.mxu0 0
    %952 = vmatpush1.bf16.msra.mxu0 0
    %953 = vmatprep.subr.bf16.mxu0 0
    %954 = vmatpush1.bf16.msra.mxu0 0
    %955 = vmatprep.subr.bf16.mxu0 0
    %956 = vmatpush1.bf16.msra.mxu0 0
    %957 = vmatprep.mubr.bf16.mxu0 0
    %958 = vmatmul.mubr.bf16.gmra.mrb[0].mxu0 %v920
    %v959 = vpop.f32.mrb[0].mxu0
    %v960 = vadd.f32 %v891, %v959
    %v961 = vpop.f32.mrb[0].mxu0
    %v962 = vpop.f32.mrb[0].mxu0
    %v963 = vadd.f32 %v896, %v962
    %v964 = vpop.f32.mrb[0].mxu0
    %965 = vmatprep.mubr.bf16.mxu0 0
    %966 = vmatmul.mubr.bf16.gmra.mrb[0].mxu0 %v923
    %v967 = vpop.f32.mrb[0].mxu0
    %v968 = vadd.f32 %v901, %v967
    %v969 = vpop.f32.mrb[0].mxu0
    %v970 = vpop.f32.mrb[0].mxu0
    %v971 = vadd.f32 %v906, %v970
    %v972 = vpop.f32.mrb[0].mxu0
    %973 = vdwg.mxu0
    %974 = vmatprep.subr.bf16.mxu0 0
    %975 = vmatpush1.bf16.msra.mxu0 %v872
    %976 = vmatprep.subr.bf16.mxu0 0
    %977 = vmatpush1.bf16.msra.mxu0 %v873
    %978 = vmatprep.subr.bf16.mxu0 0
    %979 = vmatpush1.bf16.msra.mxu0 %v874
    %980 = vmatprep.subr.bf16.mxu0 0
    %981 = vmatpush1.bf16.msra.mxu0 %v875
    %982 = vmatprep.subr.bf16.mxu0 0
    %983 = vmatpush1.bf16.msra.mxu0 %v876
    %984 = vmatprep.subr.bf16.mxu0 0
    %985 = vmatpush1.bf16.msra.mxu0 %v877
    %986 = vmatprep.subr.bf16.mxu0 0
    %987 = vmatpush1.bf16.msra.mxu0 0
    %988 = vmatprep.subr.bf16.mxu0 0
    %989 = vmatpush1.bf16.msra.mxu0 0
    %990 = vmatprep.subr.bf16.mxu0 0
    %991 = vmatpush1.bf16.msra.mxu0 0
    %992 = vmatprep.subr.bf16.mxu0 0
    %993 = vmatpush1.bf16.msra.mxu0 0
    %994 = vmatprep.subr.bf16.mxu0 0
    %995 = vmatpush1.bf16.msra.mxu0 0
    %996 = vmatprep.subr.bf16.mxu0 0
    %997 = vmatpush1.bf16.msra.mxu0 0
    %998 = vmatprep.subr.bf16.mxu0 0
    %999 = vmatpush1.bf16.msra.mxu0 0
    %1000 = vmatprep.subr.bf16.mxu0 0
    %1001 = vmatpush1.bf16.msra.mxu0 0
    %1002 = vmatprep.subr.bf16.mxu0 0
    %1003 = vmatpush1.bf16.msra.mxu0 0
    %1004 = vmatprep.subr.bf16.mxu0 0
    %1005 = vmatpush1.bf16.msra.mxu0 0
    %1006 = vmatprep.mubr.bf16.mxu0 0
    %1007 = vmatmul.mubr.bf16.gmra.mrb[0].mxu0 %v920
    %v1008 = vpop.f32.mrb[0].mxu0
    %v1009 = vadd.f32 %v891, %v1008
    %v1010 = vpop.f32.mrb[0].mxu0
    %v1011 = vpop.f32.mrb[0].mxu0
    %v1012 = vadd.f32 %v896, %v1011
    %v1013 = vpop.f32.mrb[0].mxu0
    %1014 = vmatprep.mubr.bf16.mxu0 0
    %1015 = vmatmul.mubr.bf16.gmra.mrb[0].mxu0 %v923
    %v1016 = vpop.f32.mrb[0].mxu0
    %v1017 = vadd.f32 %v901, %v1016
    %v1018 = vpop.f32.mrb[0].mxu0
    %v1019 = vpop.f32.mrb[0].mxu0
    %v1020 = vadd.f32 %v906, %v1019
    %v1021 = vpop.f32.mrb[0].mxu0
    %1022 = vdwg.mxu0
    %1023 = vmatprep.subr.bf16.mxu0 0
    %1024 = vmatpush1.bf16.msra.mxu0 %v874
    %1025 = vmatprep.subr.bf16.mxu0 0
    %1026 = vmatpush1.bf16.msra.mxu0 %v875
    %1027 = vmatprep.subr.bf16.mxu0 0
    %1028 = vmatpush1.bf16.msra.mxu0 %v876
    %1029 = vmatprep.subr.bf16.mxu0 0
    %1030 = vmatpush1.bf16.msra.mxu0 %v877
    %1031 = vmatprep.subr.bf16.mxu0 0
    %1032 = vmatpush1.bf16.msra.mxu0 %v878
    %1033 = vmatprep.subr.bf16.mxu0 0
    %1034 = vmatpush1.bf16.msra.mxu0 %v879
    %1035 = vmatprep.subr.bf16.mxu0 0
    %1036 = vmatpush1.bf16.msra.mxu0 0
    %1037 = vmatprep.subr.bf16.mxu0 0
    %1038 = vmatpush1.bf16.msra.mxu0 0
    %1039 = vmatprep.subr.bf16.mxu0 0
    %1040 = vmatpush1.bf16.msra.mxu0 0
    %1041 = vmatprep.subr.bf16.mxu0 0
    %1042 = vmatpush1.bf16.msra.mxu0 0
    %1043 = vmatprep.subr.bf16.mxu0 0
    %1044 = vmatpush1.bf16.msra.mxu0 0
    %1045 = vmatprep.subr.bf16.mxu0 0
    %1046 = vmatpush1.bf16.msra.mxu0 0
    %1047 = vmatprep.subr.bf16.mxu0 0
    %1048 = vmatpush1.bf16.msra.mxu0 0
    %1049 = vmatprep.subr.bf16.mxu0 0
    %1050 = vmatpush1.bf16.msra.mxu0 0
    %1051 = vmatprep.subr.bf16.mxu0 0
    %1052 = vmatpush1.bf16.msra.mxu0 0
    %1053 = vmatprep.subr.bf16.mxu0 0
    %1054 = vmatpush1.bf16.msra.mxu0 0
    %1055 = vmatprep.mubr.bf16.mxu0 0
    %1056 = vmatmul.mubr.bf16.gmra.mrb[0].mxu0 %v920
    %v1057 = vpop.f32.mrb[0].mxu0
    %v1058 = vadd.f32 %v891, %v1057
    %v1059 = vpop.f32.mrb[0].mxu0
    %v1060 = vpop.f32.mrb[0].mxu0
    %v1061 = vadd.f32 %v896, %v1060
    %v1062 = vpop.f32.mrb[0].mxu0
    %1063 = vmatprep.mubr.bf16.mxu0 0
    %1064 = vmatmul.mubr.bf16.gmra.mrb[0].mxu0 %v923
    %v1065 = vpop.f32.mrb[0].mxu0
    %v1066 = vadd.f32 %v901, %v1065
    %v1067 = vpop.f32.mrb[0].mxu0
    %v1068 = vpop.f32.mrb[0].mxu0
    %v1069 = vadd.f32 %v906, %v1068
    %v1070 = vpop.f32.mrb[0].mxu0
    %1071 = vdwg.mxu0
    %1072 = vmatprep.subr.bf16.mxu0 0
    %1073 = vmatpush1.bf16.msra.mxu0 %v876
    %1074 = vmatprep.subr.bf16.mxu0 0
    %1075 = vmatpush1.bf16.msra.mxu0 %v877
    %1076 = vmatprep.subr.bf16.mxu0 0
    %1077 = vmatpush1.bf16.msra.mxu0 %v878
    %1078 = vmatprep.subr.bf16.mxu0 0
    %1079 = vmatpush1.bf16.msra.mxu0 %v879
    %1080 = vmatprep.subr.bf16.mxu0 0
    %1081 = vmatpush1.bf16.msra.mxu0 %v880
    %1082 = vmatprep.subr.bf16.mxu0 0
    %1083 = vmatpush1.bf16.msra.mxu0 %v881
    %1084 = vmatprep.subr.bf16.mxu0 0
    %1085 = vmatpush1.bf16.msra.mxu0 0
    %1086 = vmatprep.subr.bf16.mxu0 0
    %1087 = vmatpush1.bf16.msra.mxu0 0
    %1088 = vmatprep.subr.bf16.mxu0 0
    %1089 = vmatpush1.bf16.msra.mxu0 0
    %1090 = vmatprep.subr.bf16.mxu0 0
    %1091 = vmatpush1.bf16.msra.mxu0 0
    %1092 = vmatprep.subr.bf16.mxu0 0
    %1093 = vmatpush1.bf16.msra.mxu0 0
    %1094 = vmatprep.subr.bf16.mxu0 0
    %1095 = vmatpush1.bf16.msra.mxu0 0
    %1096 = vmatprep.subr.bf16.mxu0 0
    %1097 = vmatpush1.bf16.msra.mxu0 0
    %1098 = vmatprep.subr.bf16.mxu0 0
    %1099 = vmatpush1.bf16.msra.mxu0 0
    %1100 = vmatprep.subr.bf16.mxu0 0
    %1101 = vmatpush1.bf16.msra.mxu0 0
    %1102 = vmatprep.subr.bf16.mxu0 0
    %1103 = vmatpush1.bf16.msra.mxu0 0
    %1104 = vmatprep.mubr.bf16.mxu0 0
    %1105 = vmatmul.mubr.bf16.gmra.mrb[0].mxu0 %v920
    %v1106 = vpop.f32.mrb[0].mxu0
    %v1107 = vadd.f32 %v891, %v1106
    %v1108 = vpop.f32.mrb[0].mxu0
    %v1109 = vpop.f32.mrb[0].mxu0
    %v1110 = vadd.f32 %v896, %v1109
    %v1111 = vpop.f32.mrb[0].mxu0
    %1112 = vmatprep.mubr.bf16.mxu0 0
    %1113 = vmatmul.mubr.bf16.gmra.mrb[0].mxu0 %v923
    %v1114 = vpop.f32.mrb[0].mxu0
    %v1115 = vadd.f32 %v901, %v1114
    %v1116 = vpop.f32.mrb[0].mxu0
    %v1117 = vpop.f32.mrb[0].mxu0
    %v1118 = vadd.f32 %v906, %v1117
    %v1119 = vpop.f32.mrb[0].mxu0
    %1120 = vdwg.mxu0
    %1121 = vmatprep.subr.bf16.mxu0 0
    %1122 = vmatpush1.bf16.msra.mxu0 %v878
    %1123 = vmatprep.subr.bf16.mxu0 0
    %1124 = vmatpush1.bf16.msra.mxu0 %v879
    %1125 = vmatprep.subr.bf16.mxu0 0
    %1126 = vmatpush1.bf16.msra.mxu0 %v880
    %1127 = vmatprep.subr.bf16.mxu0 0
    %1128 = vmatpush1.bf16.msra.mxu0 %v881
    %1129 = vmatprep.subr.bf16.mxu0 0
    %1130 = vmatpush1.bf16.msra.mxu0 %v882
    %1131 = vmatprep.subr.bf16.mxu0 0
    %1132 = vmatpush1.bf16.msra.mxu0 %v883
    %1133 = vmatprep.subr.bf16.mxu0 0
    %1134 = vmatpush1.bf16.msra.mxu0 0
    %1135 = vmatprep.subr.bf16.mxu0 0
    %1136 = vmatpush1.bf16.msra.mxu0 0
    %1137 = vmatprep.subr.bf16.mxu0 0
    %1138 = vmatpush1.bf16.msra.mxu0 0
    %1139 = vmatprep.subr.bf16.mxu0 0
    %1140 = vmatpush1.bf16.msra.mxu0 0
    %1141 = vmatprep.subr.bf16.mxu0 0
    %1142 = vmatpush1.bf16.msra.mxu0 0
    %1143 = vmatprep.subr.bf16.mxu0 0
    %1144 = vmatpush1.bf16.msra.mxu0 0
    %1145 = vmatprep.subr.bf16.mxu0 0
    %1146 = vmatpush1.bf16.msra.mxu0 0
    %1147 = vmatprep.subr.bf16.mxu0 0
    %1148 = vmatpush1.bf16.msra.mxu0 0
    %1149 = vmatprep.subr.bf16.mxu0 0
    %1150 = vmatpush1.bf16.msra.mxu0 0
    %1151 = vmatprep.subr.bf16.mxu0 0
    %1152 = vmatpush1.bf16.msra.mxu0 0
    %1153 = vmatprep.mubr.bf16.mxu0 0
    %1154 = vmatmul.mubr.bf16.gmra.mrb[0].mxu0 %v920
    %v1155 = vpop.f32.mrb[0].mxu0
    %v1156 = vadd.f32 %v891, %v1155
    %v1157 = vpop.f32.mrb[0].mxu0
    %v1158 = vpop.f32.mrb[0].mxu0
    %v1159 = vadd.f32 %v896, %v1158
    %v1160 = vpop.f32.mrb[0].mxu0
    %1161 = vmatprep.mubr.bf16.mxu0 0
    %1162 = vmatmul.mubr.bf16.gmra.mrb[0].mxu0 %v923
    %v1163 = vpop.f32.mrb[0].mxu0
    %v1164 = vadd.f32 %v901, %v1163
    %v1165 = vpop.f32.mrb[0].mxu0
    %v1166 = vpop.f32.mrb[0].mxu0
    %v1167 = vadd.f32 %v906, %v1166
    %v1168 = vpop.f32.mrb[0].mxu0
    %1169 = vdwg.mxu0
    %1170 = vmatprep.subr.bf16.mxu0 0
    %1171 = vmatpush1.bf16.msra.mxu0 %v880
    %1172 = vmatprep.subr.bf16.mxu0 0
    %1173 = vmatpush1.bf16.msra.mxu0 %v881
    %1174 = vmatprep.subr.bf16.mxu0 0
    %1175 = vmatpush1.bf16.msra.mxu0 %v882
    %1176 = vmatprep.subr.bf16.mxu0 0
    %1177 = vmatpush1.bf16.msra.mxu0 %v883
    %1178 = vmatprep.subr.bf16.mxu0 0
    %1179 = vmatpush1.bf16.msra.mxu0 %v884
    %1180 = vmatprep.subr.bf16.mxu0 0
    %1181 = vmatpush1.bf16.msra.mxu0 %v885
    %1182 = vmatprep.subr.bf16.mxu0 0
    %1183 = vmatpush1.bf16.msra.mxu0 0
    %1184 = vmatprep.subr.bf16.mxu0 0
    %1185 = vmatpush1.bf16.msra.mxu0 0
    %1186 = vmatprep.subr.bf16.mxu0 0
    %1187 = vmatpush1.bf16.msra.mxu0 0
    %1188 = vmatprep.subr.bf16.mxu0 0
    %1189 = vmatpush1.bf16.msra.mxu0 0
    %1190 = vmatprep.subr.bf16.mxu0 0
    %1191 = vmatpush1.bf16.msra.mxu0 0
    %1192 = vmatprep.subr.bf16.mxu0 0
    %1193 = vmatpush1.bf16.msra.mxu0 0
    %1194 = vmatprep.subr.bf16.mxu0 0
    %1195 = vmatpush1.bf16.msra.mxu0 0
    %1196 = vmatprep.subr.bf16.mxu0 0
    %1197 = vmatpush1.bf16.msra.mxu0 0
    %1198 = vmatprep.subr.bf16.mxu0 0
    %1199 = vmatpush1.bf16.msra.mxu0 0
    %1200 = vmatprep.subr.bf16.mxu0 0
    %1201 = vmatpush1.bf16.msra.mxu0 0
    %1202 = vmatprep.mubr.bf16.mxu0 0
    %1203 = vmatmul.mubr.bf16.gmra.mrb[0].mxu0 %v920
    %v1204 = vpop.f32.mrb[0].mxu0
    %v1205 = vadd.f32 %v891, %v1204
    %v1206 = vpop.f32.mrb[0].mxu0
    %v1207 = vpop.f32.mrb[0].mxu0
    %v1208 = vadd.f32 %v896, %v1207
    %v1209 = vpop.f32.mrb[0].mxu0
    %1210 = vmatprep.mubr.bf16.mxu0 0
    %1211 = vmatmul.mubr.bf16.gmra.mrb[0].mxu0 %v923
    %v1212 = vpop.f32.mrb[0].mxu0
    %v1213 = vadd.f32 %v901, %v1212
    %v1214 = vpop.f32.mrb[0].mxu0
    %v1215 = vpop.f32.mrb[0].mxu0
    %v1216 = vadd.f32 %v906, %v1215
    %v1217 = vpop.f32.mrb[0].mxu0
    %1218 = vdwg.mxu0
    %1219 = vmatprep.subr.bf16.mxu0 0
    %1220 = vmatpush1.bf16.msra.mxu0 %v882
    %1221 = vmatprep.subr.bf16.mxu0 0
    %1222 = vmatpush1.bf16.msra.mxu0 %v883
    %1223 = vmatprep.subr.bf16.mxu0 0
    %1224 = vmatpush1.bf16.msra.mxu0 %v884
    %1225 = vmatprep.subr.bf16.mxu0 0
    %1226 = vmatpush1.bf16.msra.mxu0 %v885
    %1227 = vmatprep.subr.bf16.mxu0 0
    %1228 = vmatpush1.bf16.msra.mxu0 %v886
    %1229 = vmatprep.subr.bf16.mxu0 0
    %1230 = vmatpush1.bf16.msra.mxu0 %v887
    %1231 = vmatprep.subr.bf16.mxu0 0
    %1232 = vmatpush1.bf16.msra.mxu0 0
    %1233 = vmatprep.subr.bf16.mxu0 0
    %1234 = vmatpush1.bf16.msra.mxu0 0
    %1235 = vmatprep.subr.bf16.mxu0 0
    %1236 = vmatpush1.bf16.msra.mxu0 0
    %1237 = vmatprep.subr.bf16.mxu0 0
    %1238 = vmatpush1.bf16.msra.mxu0 0
    %1239 = vmatprep.subr.bf16.mxu0 0
    %1240 = vmatpush1.bf16.msra.mxu0 0
    %1241 = vmatprep.subr.bf16.mxu0 0
    %1242 = vmatpush1.bf16.msra.mxu0 0
    %1243 = vmatprep.subr.bf16.mxu0 0
    %1244 = vmatpush1.bf16.msra.mxu0 0
    %1245 = vmatprep.subr.bf16.mxu0 0
    %1246 = vmatpush1.bf16.msra.mxu0 0
    %1247 = vmatprep.subr.bf16.mxu0 0
    %1248 = vmatpush1.bf16.msra.mxu0 0
    %1249 = vmatprep.subr.bf16.mxu0 0
    %1250 = vmatpush1.bf16.msra.mxu0 0
    %1251 = vmatprep.mubr.bf16.mxu0 0
    %1252 = vmatmul.mubr.bf16.gmra.mrb[0].mxu0 %v920
    %v1253 = vpop.f32.mrb[0].mxu0
    %v1254 = vadd.f32 %v891, %v1253
    %v1255 = vpop.f32.mrb[0].mxu0
    %v1256 = vpop.f32.mrb[0].mxu0
    %v1257 = vadd.f32 %v896, %v1256
    %v1258 = vpop.f32.mrb[0].mxu0
    %1259 = vmatprep.mubr.bf16.mxu0 0
    %1260 = vmatmul.mubr.bf16.gmra.mrb[0].mxu0 %v923
    %v1261 = vpop.f32.mrb[0].mxu0
    %v1262 = vadd.f32 %v901, %v1261
    %v1263 = vpop.f32.mrb[0].mxu0
    %v1264 = vpop.f32.mrb[0].mxu0
    %v1265 = vadd.f32 %v906, %v1264
    %v1266 = vpop.f32.mrb[0].mxu0
    %1267 = vdwg.mxu0
    %1268 = vmatprep.subr.bf16.mxu0 0
    %1269 = vmatpush1.bf16.msra.mxu0 %v884
    %1270 = vmatprep.subr.bf16.mxu0 0
    %1271 = vmatpush1.bf16.msra.mxu0 %v885
    %1272 = vmatprep.subr.bf16.mxu0 0
    %1273 = vmatpush1.bf16.msra.mxu0 %v886
    %1274 = vmatprep.subr.bf16.mxu0 0
    %1275 = vmatpush1.bf16.msra.mxu0 %v887
    %1276 = vmatprep.subr.bf16.mxu0 0
    %1277 = vmatpush1.bf16.msra.mxu0 %v871
    %1278 = vmatprep.subr.bf16.mxu0 0
    %1279 = vmatpush1.bf16.msra.mxu0 %v871
    %1280 = vmatprep.subr.bf16.mxu0 0
    %1281 = vmatpush1.bf16.msra.mxu0 0
    %1282 = vmatprep.subr.bf16.mxu0 0
    %1283 = vmatpush1.bf16.msra.mxu0 0
    %1284 = vmatprep.subr.bf16.mxu0 0
    %1285 = vmatpush1.bf16.msra.mxu0 0
    %1286 = vmatprep.subr.bf16.mxu0 0
    %1287 = vmatpush1.bf16.msra.mxu0 0
    %1288 = vmatprep.subr.bf16.mxu0 0
    %1289 = vmatpush1.bf16.msra.mxu0 0
    %1290 = vmatprep.subr.bf16.mxu0 0
    %1291 = vmatpush1.bf16.msra.mxu0 0
    %1292 = vmatprep.subr.bf16.mxu0 0
    %1293 = vmatpush1.bf16.msra.mxu0 0
    %1294 = vmatprep.subr.bf16.mxu0 0
    %1295 = vmatpush1.bf16.msra.mxu0 0
    %1296 = vmatprep.subr.bf16.mxu0 0
    %1297 = vmatpush1.bf16.msra.mxu0 0
    %1298 = vmatprep.subr.bf16.mxu0 0
    %1299 = vmatpush1.bf16.msra.mxu0 0
    %1300 = vmatprep.mubr.bf16.mxu0 0
    %1301 = vmatmul.mubr.bf16.gmra.mrb[0].mxu0 %v920
    %v1302 = vpop.f32.mrb[0].mxu0
    %v1303 = vadd.f32 %v891, %v1302
    %v1304 = vpop.f32.mrb[0].mxu0
    %v1305 = vpop.f32.mrb[0].mxu0
    %v1306 = vadd.f32 %v896, %v1305
    %v1307 = vpop.f32.mrb[0].mxu0
    %1308 = vmatprep.mubr.bf16.mxu0 0
    %1309 = vmatmul.mubr.bf16.gmra.mrb[0].mxu0 %v923
    %v1310 = vpop.f32.mrb[0].mxu0
    %v1311 = vadd.f32 %v901, %v1310
    %v1312 = vpop.f32.mrb[0].mxu0
    %v1313 = vpop.f32.mrb[0].mxu0
    %v1314 = vadd.f32 %v906, %v1313
    %v1315 = vpop.f32.mrb[0].mxu0
    %1316 = vdwg.mxu0
    %v1317 = vmul.f32 %v960, 0.1
    %v1318 = vmul.f32 %v963, 0.1
    %v1319 = vmul.f32 %v968, 0.1
    %v1320 = vmul.f32 %v971, 0.1
    %v1321 = vmul.f32 %v1009, 0.1
    %v1322 = vmul.f32 %v1012, 0.1
    %v1323 = vmul.f32 %v1017, 0.1
    %v1324 = vmul.f32 %v1020, 0.1
    %v1325 = vmul.f32 %v1058, 0.1
    %v1326 = vmul.f32 %v1061, 0.1
    %v1327 = vmul.f32 %v1066, 0.1
    %v1328 = vmul.f32 %v1069, 0.1
    %v1329 = vmul.f32 %v1107, 0.1
    %v1330 = vmul.f32 %v1110, 0.1
    %v1331 = vmul.f32 %v1115, 0.1
    %v1332 = vmul.f32 %v1118, 0.1
    %v1333 = vmul.f32 %v1156, 0.1
    %v1334 = vmul.f32 %v1159, 0.1
    %v1335 = vmul.f32 %v1164, 0.1
    %v1336 = vmul.f32 %v1167, 0.1
    %v1337 = vmul.f32 %v1205, 0.1
    %v1338 = vmul.f32 %v1208, 0.1
    %v1339 = vmul.f32 %v1213, 0.1
    %v1340 = vmul.f32 %v1216, 0.1
    %v1341 = vmul.f32 %v1254, 0.1
    %v1342 = vmul.f32 %v1257, 0.1
    %v1343 = vmul.f32 %v1262, 0.1
    %v1344 = vmul.f32 %v1265, 0.1
    %v1345 = vmul.f32 %v1303, 0.1
    %v1346 = vmul.f32 %v1306, 0.1
    %v1347 = vmul.f32 %v1311, 0.1
    %v1348 = vmul.f32 %v1314, 0.1
    %v1349 = vmax.f32 %v960, %v1317
    %v1350 = vmax.f32 %v963, %v1318
    %v1351 = vmax.f32 %v968, %v1319
    %v1352 = vmax.f32 %v971, %v1320
    %v1353 = vmax.f32 %v1009, %v1321
    %v1354 = vmax.f32 %v1012, %v1322
    %v1355 = vmax.f32 %v1017, %v1323
    %v1356 = vmax.f32 %v1020, %v1324
    %v1357 = vmax.f32 %v1058, %v1325
    %v1358 = vmax.f32 %v1061, %v1326
    %v1359 = vmax.f32 %v1066, %v1327
    %v1360 = vmax.f32 %v1069, %v1328
    %v1361 = vmax.f32 %v1107, %v1329
    %v1362 = vmax.f32 %v1110, %v1330
    %v1363 = vmax.f32 %v1115, %v1331
    %v1364 = vmax.f32 %v1118, %v1332
    %v1365 = vmax.f32 %v1156, %v1333
    %v1366 = vmax.f32 %v1159, %v1334
    %v1367 = vmax.f32 %v1164, %v1335
    %v1368 = vmax.f32 %v1167, %v1336
    %v1369 = vmax.f32 %v1205, %v1337
    %v1370 = vmax.f32 %v1208, %v1338
    %v1371 = vmax.f32 %v1213, %v1339
    %v1372 = vmax.f32 %v1216, %v1340
    %v1373 = vmax.f32 %v1254, %v1341
    %v1374 = vmax.f32 %v1257, %v1342
    %v1375 = vmax.f32 %v1262, %v1343
    %v1376 = vmax.f32 %v1265, %v1344
    %v1377 = vmax.f32 %v1303, %v1345
    %v1378 = vmax.f32 %v1306, %v1346
    %v1379 = vmax.f32 %v1311, %v1347
    %v1380 = vmax.f32 %v1314, %v1348
    %v1381 = vmax.f32 %v1349, %v1353
    %v1382 = vmax.f32 %v1350, %v1354
    %v1383 = vmax.f32 %v1351, %v1355
    %v1384 = vmax.f32 %v1352, %v1356
    %v1385 = vmax.f32 %v1357, %v1361
    %v1386 = vmax.f32 %v1358, %v1362
    %v1387 = vmax.f32 %v1359, %v1363
    %v1388 = vmax.f32 %v1360, %v1364
    %v1389 = vmax.f32 %v1365, %v1369
    %v1390 = vmax.f32 %v1366, %v1370
    %v1391 = vmax.f32 %v1367, %v1371
    %v1392 = vmax.f32 %v1368, %v1372
    %v1393 = vmax.f32 %v1373, %v1377
    %v1394 = vmax.f32 %v1374, %v1378
    %v1395 = vmax.f32 %v1375, %v1379
    %v1396 = vmax.f32 %v1376, %v1380
    %v1397 = vld [vmem:[%s5] sm:$0xf]
    %v1398 = vld [vmem:[%s5 + $0x4] sm:$0xf]
    %v1399 = vld [vmem:[%s5 + $0x8] sm:$0xf]
    %v1400 = vld [vmem:[%s5 + $0xc] sm:$0xf]
    %v1401 = vld [vmem:[%s6] sm:$0xff]
    %v1402 = vld [vmem:[%s6 + $0x8] sm:$0xff]
    %v1403 = vld [vmem:[%s6 + $0x10] sm:$0xff]
    %v1404 = vld [vmem:[%s6 + $0x18] sm:$0xff]
    %v1405 = vpack.c.bf16 %v1382, %v1381
    %v1406 = vpack.c.bf16 %v1384, %v1383
    %v1407 = vpack.c.bf16 %v1386, %v1385
    %v1408 = vpack.c.bf16 %v1388, %v1387
    %v1409 = vpack.c.bf16 %v1390, %v1389
    %v1410 = vpack.c.bf16 %v1392, %v1391
    %v1411 = vpack.c.bf16 %v1394, %v1393
    %v1412 = vpack.c.bf16 %v1396, %v1395
    %1414 = vset.pattern.permute.xlu0 0
    %1415 = vperm.xlu0 %1414, %v1401
    %v1416 = vpop.permute.xlu0 %1415
    %1419 = vset.pattern.permute.xlu0 0
    %1420 = vperm.xlu0 %1419, %v1402
    %v1421 = vpop.permute.xlu0 %1420
    %1424 = vset.pattern.permute.xlu0 0
    %1425 = vperm.xlu0 %1424, %v1403
    %v1426 = vpop.permute.xlu0 %1425
    %1429 = vset.pattern.permute.xlu0 0
    %1430 = vperm.xlu0 %1429, %v1404
    %v1431 = vpop.permute.xlu0 %1430
    %v1437 = vunpack.c.l.b16 %v1397
    %v1438 = vunpack.c.l.b16 %v1398
    %v1439 = vunpack.c.l.b16 %v1399
    %v1440 = vunpack.c.l.b16 %v1400
    %v1441 = vpack.c.b16 %v1438, %v1437
    %v1442 = vpack.c.b16 %v1440, %v1439
    %v1444 = vsel %vm918, %v1441, 0
    %v1447 = vsel %vm918, %v1442, 0
    %1449 = vmatprep.subr.bf16.mxu0 0
    %1450 = vmatpush1.bf16.msra.mxu0 %v871
    %1451 = vmatprep.subr.bf16.mxu0 0
    %1452 = vmatpush1.bf16.msra.mxu0 %v871
    %1453 = vmatprep.subr.bf16.mxu0 0
    %1454 = vmatpush1.bf16.msra.mxu0 %v1405
    %1455 = vmatprep.subr.bf16.mxu0 0
    %1456 = vmatpush1.bf16.msra.mxu0 %v1406
    %1457 = vmatprep.subr.bf16.mxu0 0
    %1458 = vmatpush1.bf16.msra.mxu0 %v1407
    %1459 = vmatprep.subr.bf16.mxu0 0
    %1460 = vmatpush1.bf16.msra.mxu0 %v1408
    %1461 = vmatprep.subr.bf16.mxu0 0
    %1462 = vmatpush1.bf16.msra.mxu0 0
    %1463 = vmatprep.subr.bf16.mxu0 0
    %1464 = vmatpush1.bf16.msra.mxu0 0
    %1465 = vmatprep.subr.bf16.mxu0 0
    %1466 = vmatpush1.bf16.msra.mxu0 0
    %1467 = vmatprep.subr.bf16.mxu0 0
    %1468 = vmatpush1.bf16.msra.mxu0 0
    %1469 = vmatprep.subr.bf16.mxu0 0
    %1470 = vmatpush1.bf16.msra.mxu0 0
    %1471 = vmatprep.subr.bf16.mxu0 0
    %1472 = vmatpush1.bf16.msra.mxu0 0
    %1473 = vmatprep.subr.bf16.mxu0 0
    %1474 = vmatpush1.bf16.msra.mxu0 0
    %1475 = vmatprep.subr.bf16.mxu0 0
    %1476 = vmatpush1.bf16.msra.mxu0 0
    %1477 = vmatprep.subr.bf16.mxu0 0
    %1478 = vmatpush1.bf16.msra.mxu0 0
    %1479 = vmatprep.subr.bf16.mxu0 0
    %1480 = vmatpush1.bf16.msra.mxu0 0
    %1481 = vmatprep.mubr.bf16.mxu0 0
    %1482 = vmatmul.mubr.bf16.gmra.mrb[0].mxu0 %v1444
    %v1483 = vpop.f32.mrb[0].mxu0
    %v1484 = vadd.f32 %v1416, %v1483
    %v1485 = vpop.f32.mrb[0].mxu0
    %v1486 = vpop.f32.mrb[0].mxu0
    %v1487 = vadd.f32 %v1421, %v1486
    %v1488 = vpop.f32.mrb[0].mxu0
    %1489 = vmatprep.mubr.bf16.mxu0 0
    %1490 = vmatmul.mubr.bf16.gmra.mrb[0].mxu0 %v1447
    %v1491 = vpop.f32.mrb[0].mxu0
    %v1492 = vadd.f32 %v1426, %v1491
    %v1493 = vpop.f32.mrb[0].mxu0
    %v1494 = vpop.f32.mrb[0].mxu0
    %v1495 = vadd.f32 %v1431, %v1494
    %v1496 = vpop.f32.mrb[0].mxu0
    %1497 = vdwg.mxu0
    %1498 = vmatprep.subr.bf16.mxu0 0
    %1499 = vmatpush1.bf16.msra.mxu0 %v1405
    %1500 = vmatprep.subr.bf16.mxu0 0
    %1501 = vmatpush1.bf16.msra.mxu0 %v1406
    %1502 = vmatprep.subr.bf16.mxu0 0
    %1503 = vmatpush1.bf16.msra.mxu0 %v1407
    %1504 = vmatprep.subr.bf16.mxu0 0
    %1505 = vmatpush1.bf16.msra.mxu0 %v1408
    %1506 = vmatprep.subr.bf16.mxu0 0
    %1507 = vmatpush1.bf16.msra.mxu0 %v1409
    %1508 = vmatprep.subr.bf16.mxu0 0
    %1509 = vmatpush1.bf16.msra.mxu0 %v1410
    %1510 = vmatprep.subr.bf16.mxu0 0
    %1511 = vmatpush1.bf16.msra.mxu0 0
    %1512 = vmatprep.subr.bf16.mxu0 0
    %1513 = vmatpush1.bf16.msra.mxu0 0
    %1514 = vmatprep.subr.bf16.mxu0 0
    %1515 = vmatpush1.bf16.msra.mxu0 0
    %1516 = vmatprep.subr.bf16.mxu0 0
    %1517 = vmatpush1.bf16.msra.mxu0 0
    %1518 = vmatprep.subr.bf16.mxu0 0
    %1519 = vmatpush1.bf16.msra.mxu0 0
    %1520 = vmatprep.subr.bf16.mxu0 0
    %1521 = vmatpush1.bf16.msra.mxu0 0
    %1522 = vmatprep.subr.bf16.mxu0 0
    %1523 = vmatpush1.bf16.msra.mxu0 0
    %1524 = vmatprep.subr.bf16.mxu0 0
    %1525 = vmatpush1.bf16.msra.mxu0 0
    %1526 = vmatprep.subr.bf16.mxu0 0
    %1527 = vmatpush1.bf16.msra.mxu0 0
    %1528 = vmatprep.subr.bf16.mxu0 0
    %1529 = vmatpush1.bf16.msra.mxu0 0
    %1530 = vmatprep.mubr.bf16.mxu0 0
    %1531 = vmatmul.mubr.bf16.gmra.mrb[0].mxu0 %v1444
    %v1532 = vpop.f32.mrb[0].mxu0
    %v1533 = vadd.f32 %v1416, %v1532
    %v1534 = vpop.f32.mrb[0].mxu0
    %v1535 = vpop.f32.mrb[0].mxu0
    %v1536 = vadd.f32 %v1421, %v1535
    %v1537 = vpop.f32.mrb[0].mxu0
    %1538 = vmatprep.mubr.bf16.mxu0 0
    %1539 = vmatmul.mubr.bf16.gmra.mrb[0].mxu0 %v1447
    %v1540 = vpop.f32.mrb[0].mxu0
    %v1541 = vadd.f32 %v1426, %v1540
    %v1542 = vpop.f32.mrb[0].mxu0
    %v1543 = vpop.f32.mrb[0].mxu0
    %v1544 = vadd.f32 %v1431, %v1543
    %v1545 = vpop.f32.mrb[0].mxu0
    %1546 = vdwg.mxu0
    %1547 = vmatprep.subr.bf16.mxu0 0
    %1548 = vmatpush1.bf16.msra.mxu0 %v1407
    %1549 = vmatprep.subr.bf16.mxu0 0
    %1550 = vmatpush1.bf16.msra.mxu0 %v1408
    %1551 = vmatprep.subr.bf16.mxu0 0
    %1552 = vmatpush1.bf16.msra.mxu0 %v1409
    %1553 = vmatprep.subr.bf16.mxu0 0
    %1554 = vmatpush1.bf16.msra.mxu0 %v1410
    %1555 = vmatprep.subr.bf16.mxu0 0
    %1556 = vmatpush1.bf16.msra.mxu0 %v1411
    %1557 = vmatprep.subr.bf16.mxu0 0
    %1558 = vmatpush1.bf16.msra.mxu0 %v1412
    %1559 = vmatprep.subr.bf16.mxu0 0
    %1560 = vmatpush1.bf16.msra.mxu0 0
    %1561 = vmatprep.subr.bf16.mxu0 0
    %1562 = vmatpush1.bf16.msra.mxu0 0
    %1563 = vmatprep.subr.bf16.mxu0 0
    %1564 = vmatpush1.bf16.msra.mxu0 0
    %1565 = vmatprep.subr.bf16.mxu0 0
    %1566 = vmatpush1.bf16.msra.mxu0 0
    %1567 = vmatprep.subr.bf16.mxu0 0
    %1568 = vmatpush1.bf16.msra.mxu0 0
    %1569 = vmatprep.subr.bf16.mxu0 0
    %1570 = vmatpush1.bf16.msra.mxu0 0
    %1571 = vmatprep.subr.bf16.mxu0 0
    %1572 = vmatpush1.bf16.msra.mxu0 0
    %1573 = vmatprep.subr.bf16.mxu0 0
    %1574 = vmatpush1.bf16.msra.mxu0 0
    %1575 = vmatprep.subr.bf16.mxu0 0
    %1576 = vmatpush1.bf16.msra.mxu0 0
    %1577 = vmatprep.subr.bf16.mxu0 0
    %1578 = vmatpush1.bf16.msra.mxu0 0
    %1579 = vmatprep.mubr.bf16.mxu0 0
    %1580 = vmatmul.mubr.bf16.gmra.mrb[0].mxu0 %v1444
    %v1581 = vpop.f32.mrb[0].mxu0
    %v1582 = vadd.f32 %v1416, %v1581
    %v1583 = vpop.f32.mrb[0].mxu0
    %v1584 = vpop.f32.mrb[0].mxu0
    %v1585 = vadd.f32 %v1421, %v1584
    %v1586 = vpop.f32.mrb[0].mxu0
    %1587 = vmatprep.mubr.bf16.mxu0 0
    %1588 = vmatmul.mubr.bf16.gmra.mrb[0].mxu0 %v1447
    %v1589 = vpop.f32.mrb[0].mxu0
    %v1590 = vadd.f32 %v1426, %v1589
    %v1591 = vpop.f32.mrb[0].mxu0
    %v1592 = vpop.f32.mrb[0].mxu0
    %v1593 = vadd.f32 %v1431, %v1592
    %v1594 = vpop.f32.mrb[0].mxu0
    %1595 = vdwg.mxu0
    %1596 = vmatprep.subr.bf16.mxu0 0
    %1597 = vmatpush1.bf16.msra.mxu0 %v1409
    %1598 = vmatprep.subr.bf16.mxu0 0
    %1599 = vmatpush1.bf16.msra.mxu0 %v1410
    %1600 = vmatprep.subr.bf16.mxu0 0
    %1601 = vmatpush1.bf16.msra.mxu0 %v1411
    %1602 = vmatprep.subr.bf16.mxu0 0
    %1603 = vmatpush1.bf16.msra.mxu0 %v1412
    %1604 = vmatprep.subr.bf16.mxu0 0
    %1605 = vmatpush1.bf16.msra.mxu0 %v871
    %1606 = vmatprep.subr.bf16.mxu0 0
    %1607 = vmatpush1.bf16.msra.mxu0 %v871
    %1608 = vmatprep.subr.bf16.mxu0 0
    %1609 = vmatpush1.bf16.msra.mxu0 0
    %1610 = vmatprep.subr.bf16.mxu0 0
    %1611 = vmatpush1.bf16.msra.mxu0 0
    %1612 = vmatprep.subr.bf16.mxu0 0
    %1613 = vmatpush1.bf16.msra.mxu0 0
    %1614 = vmatprep.subr.bf16.mxu0 0
    %1615 = vmatpush1.bf16.msra.mxu0 0
    %1616 = vmatprep.subr.bf16.mxu0 0
    %1617 = vmatpush1.bf16.msra.mxu0 0
    %1618 = vmatprep.subr.bf16.mxu0 0
    %1619 = vmatpush1.bf16.msra.mxu0 0
    %1620 = vmatprep.subr.bf16.mxu0 0
    %1621 = vmatpush1.bf16.msra.mxu0 0
    %1622 = vmatprep.subr.bf16.mxu0 0
    %1623 = vmatpush1.bf16.msra.mxu0 0
    %1624 = vmatprep.subr.bf16.mxu0 0
    %1625 = vmatpush1.bf16.msra.mxu0 0
    %1626 = vmatprep.subr.bf16.mxu0 0
    %1627 = vmatpush1.bf16.msra.mxu0 0
    %1628 = vmatprep.mubr.bf16.mxu0 0
    %1629 = vmatmul.mubr.bf16.gmra.mrb[0].mxu0 %v1444
    %v1630 = vpop.f32.mrb[0].mxu0
    %v1631 = vadd.f32 %v1416, %v1630
    %v1632 = vpop.f32.mrb[0].mxu0
    %v1633 = vpop.f32.mrb[0].mxu0
    %v1634 = vadd.f32 %v1421, %v1633
    %v1635 = vpop.f32.mrb[0].mxu0
    %1636 = vmatprep.mubr.bf16.mxu0 0
    %1637 = vmatmul.mubr.bf16.gmra.mrb[0].mxu0 %v1447
    %v1638 = vpop.f32.mrb[0].mxu0
    %v1639 = vadd.f32 %v1426, %v1638
    %v1640 = vpop.f32.mrb[0].mxu0
    %v1641 = vpop.f32.mrb[0].mxu0
    %v1642 = vadd.f32 %v1431, %v1641
    %v1643 = vpop.f32.mrb[0].mxu0
    %1644 = vdwg.mxu0
    %v1645 = vmul.f32 %v1484, 0.1
    %v1646 = vmul.f32 %v1487, 0.1
    %v1647 = vmul.f32 %v1492, 0.1
    %v1648 = vmul.f32 %v1495, 0.1
    %v1649 = vmul.f32 %v1533, 0.1
    %v1650 = vmul.f32 %v1536, 0.1
    %v1651 = vmul.f32 %v1541, 0.1
    %v1652 = vmul.f32 %v1544, 0.1
    %v1653 = vmul.f32 %v1582, 0.1
    %v1654 = vmul.f32 %v1585, 0.1
    %v1655 = vmul.f32 %v1590, 0.1
    %v1656 = vmul.f32 %v1593, 0.1
    %v1657 = vmul.f32 %v1631, 0.1
    %v1658 = vmul.f32 %v1634, 0.1
    %v1659 = vmul.f32 %v1639, 0.1
    %v1660 = vmul.f32 %v1642, 0.1
    %v1661 = vmax.f32 %v1484, %v1645
    %v1662 = vmax.f32 %v1487, %v1646
    %v1663 = vmax.f32 %v1492, %v1647
    %v1664 = vmax.f32 %v1495, %v1648
    %v1665 = vmax.f32 %v1533, %v1649
    %v1666 = vmax.f32 %v1536, %v1650
    %v1667 = vmax.f32 %v1541, %v1651
    %v1668 = vmax.f32 %v1544, %v1652
    %v1669 = vmax.f32 %v1582, %v1653
    %v1670 = vmax.f32 %v1585, %v1654
    %v1671 = vmax.f32 %v1590, %v1655
    %v1672 = vmax.f32 %v1593, %v1656
    %v1673 = vmax.f32 %v1631, %v1657
    %v1674 = vmax.f32 %v1634, %v1658
    %v1675 = vmax.f32 %v1639, %v1659
    %v1676 = vmax.f32 %v1642, %v1660
    %v1677 = vld [vmem:[%s7] sm:$0xf]
    %v1678 = vld [vmem:[%s7 + $0x4] sm:$0xf]
    %v1679 = vld [vmem:[%s7 + $0x8] sm:$0xf]
    %v1680 = vld [vmem:[%s7 + $0xc] sm:$0xf]
    %v1681 = vld [vmem:[%s8] sm:$0xf]
    %v1682 = vld [vmem:[%s8 + $0x4] sm:$0xf]
    %v1683 = vld [vmem:[%s8 + $0x8] sm:$0xf]
    %v1684 = vld [vmem:[%s8 + $0xc] sm:$0xf]
    %v1685 = vld [vmem:[%s9] sm:$0xff]
    %v1686 = vld [vmem:[%s9 + $0x8] sm:$0xff]
    %v1687 = vld [vmem:[%s9 + $0x10] sm:$0xff]
    %v1688 = vld [vmem:[%s9 + $0x18] sm:$0xff]
    %v1689 = vpack.c.bf16 %v1662, %v1661
    %v1690 = vpack.c.bf16 %v1664, %v1663
    %v1691 = vpack.c.bf16 %v1666, %v1665
    %v1692 = vpack.c.bf16 %v1668, %v1667
    %v1693 = vpack.c.bf16 %v1670, %v1669
    %v1694 = vpack.c.bf16 %v1672, %v1671
    %v1695 = vpack.c.bf16 %v1674, %v1673
    %v1696 = vpack.c.bf16 %v1676, %v1675
    %1698 = vset.pattern.permute.xlu0 0
    %1699 = vperm.xlu0 %1698, %v1685
    %v1700 = vpop.permute.xlu0 %1699
    %1703 = vset.pattern.permute.xlu0 0
    %1704 = vperm.xlu0 %1703, %v1686
    %v1705 = vpop.permute.xlu0 %1704
    %1708 = vset.pattern.permute.xlu0 0
    %1709 = vperm.xlu0 %1708, %v1687
    %v1710 = vpop.permute.xlu0 %1709
    %1713 = vset.pattern.permute.xlu0 0
    %1714 = vperm.xlu0 %1713, %v1688
    %v1715 = vpop.permute.xlu0 %1714
    %v1721 = vunpack.c.l.b16 %v1677
    %v1722 = vunpack.c.l.b16 %v1678
    %v1723 = vunpack.c.l.b16 %v1679
    %v1724 = vunpack.c.l.b16 %v1680
    %v1725 = vpack.c.b16 %v1722, %v1721
    %v1726 = vpack.c.b16 %v1724, %v1723
    %vm1727 = vcmask 261120
    %v1729 = vsel %vm1727, %v1725, 0
    %v1732 = vsel %vm1727, %v1726, 0
    %1734 = vmatprep.subr.bf16.mxu0 0
    %1735 = vmatpush1.bf16.msra.mxu0 %v1689
    %1736 = vmatprep.subr.bf16.mxu0 0
    %1737 = vmatpush1.bf16.msra.mxu0 %v1690
    %1738 = vmatprep.subr.bf16.mxu0 0
    %1739 = vmatpush1.bf16.msra.mxu0 0
    %1740 = vmatprep.subr.bf16.mxu0 0
    %1741 = vmatpush1.bf16.msra.mxu0 0
    %1742 = vmatprep.subr.bf16.mxu0 0
    %1743 = vmatpush1.bf16.msra.mxu0 0
    %1744 = vmatprep.subr.bf16.mxu0 0
    %1745 = vmatpush1.bf16.msra.mxu0 0
    %1746 = vmatprep.subr.bf16.mxu0 0
    %1747 = vmatpush1.bf16.msra.mxu0 0
    %1748 = vmatprep.subr.bf16.mxu0 0
    %1749 = vmatpush1.bf16.msra.mxu0 0
    %1750 = vmatprep.subr.bf16.mxu0 0
    %1751 = vmatpush1.bf16.msra.mxu0 0
    %1752 = vmatprep.subr.bf16.mxu0 0
    %1753 = vmatpush1.bf16.msra.mxu0 0
    %1754 = vmatprep.subr.bf16.mxu0 0
    %1755 = vmatpush1.bf16.msra.mxu0 0
    %1756 = vmatprep.subr.bf16.mxu0 0
    %1757 = vmatpush1.bf16.msra.mxu0 0
    %1758 = vmatprep.subr.bf16.mxu0 0
    %1759 = vmatpush1.bf16.msra.mxu0 0
    %1760 = vmatprep.subr.bf16.mxu0 0
    %1761 = vmatpush1.bf16.msra.mxu0 0
    %1762 = vmatprep.subr.bf16.mxu0 0
    %1763 = vmatpush1.bf16.msra.mxu0 0
    %1764 = vmatprep.subr.bf16.mxu0 0
    %1765 = vmatpush1.bf16.msra.mxu0 0
    %1766 = vmatprep.mubr.bf16.mxu0 0
    %1767 = vmatmul.mubr.bf16.gmra.mrb[0].mxu0 %v1729
    %v1768 = vpop.f32.mrb[0].mxu0
    %v1769 = vadd.f32 %v1700, %v1768
    %v1770 = vpop.f32.mrb[0].mxu0
    %v1771 = vpop.f32.mrb[0].mxu0
    %v1772 = vadd.f32 %v1705, %v1771
    %v1773 = vpop.f32.mrb[0].mxu0
    %1774 = vmatprep.mubr.bf16.mxu0 0
    %1775 = vmatmul.mubr.bf16.gmra.mrb[0].mxu0 %v1732
    %v1776 = vpop.f32.mrb[0].mxu0
    %v1777 = vadd.f32 %v1710, %v1776
    %v1778 = vpop.f32.mrb[0].mxu0
    %v1779 = vpop.f32.mrb[0].mxu0
    %v1780 = vadd.f32 %v1715, %v1779
    %v1781 = vpop.f32.mrb[0].mxu0
    %1782 = vdwg.mxu0
    %1783 = vmatprep.subr.bf16.mxu0 0
    %1784 = vmatpush1.bf16.msra.mxu0 %v1691
    %1785 = vmatprep.subr.bf16.mxu0 0
    %1786 = vmatpush1.bf16.msra.mxu0 %v1692
    %1787 = vmatprep.subr.bf16.mxu0 0
    %1788 = vmatpush1.bf16.msra.mxu0 0
    %1789 = vmatprep.subr.bf16.mxu0 0
    %1790 = vmatpush1.bf16.msra.mxu0 0
    %1791 = vmatprep.subr.bf16.mxu0 0
    %1792 = vmatpush1.bf16.msra.mxu0 0
    %1793 = vmatprep.subr.bf16.mxu0 0
    %1794 = vmatpush1.bf16.msra.mxu0 0
    %1795 = vmatprep.subr.bf16.mxu0 0
    %1796 = vmatpush1.bf16.msra.mxu0 0
    %1797 = vmatprep.subr.bf16.mxu0 0
    %1798 = vmatpush1.bf16.msra.mxu0 0
    %1799 = vmatprep.subr.bf16.mxu0 0
    %1800 = vmatpush1.bf16.msra.mxu0 0
    %1801 = vmatprep.subr.bf16.mxu0 0
    %1802 = vmatpush1.bf16.msra.mxu0 0
    %1803 = vmatprep.subr.bf16.mxu0 0
    %1804 = vmatpush1.bf16.msra.mxu0 0
    %1805 = vmatprep.subr.bf16.mxu0 0
    %1806 = vmatpush1.bf16.msra.mxu0 0
    %1807 = vmatprep.subr.bf16.mxu0 0
    %1808 = vmatpush1.bf16.msra.mxu0 0
    %1809 = vmatprep.subr.bf16.mxu0 0
    %1810 = vmatpush1.bf16.msra.mxu0 0
    %1811 = vmatprep.subr.bf16.mxu0 0
    %1812 = vmatpush1.bf16.msra.mxu0 0
    %1813 = vmatprep.subr.bf16.mxu0 0
    %1814 = vmatpush1.bf16.msra.mxu0 0
    %1815 = vmatprep.mubr.bf16.mxu0 0
    %1816 = vmatmul.mubr.bf16.gmra.mrb[0].mxu0 %v1729
    %v1817 = vpop.f32.mrb[0].mxu0
    %v1818 = vadd.f32 %v1700, %v1817
    %v1819 = vpop.f32.mrb[0].mxu0
    %v1820 = vpop.f32.mrb[0].mxu0
    %v1821 = vadd.f32 %v1705, %v1820
    %v1822 = vpop.f32.mrb[0].mxu0
    %1823 = vmatprep.mubr.bf16.mxu0 0
    %1824 = vmatmul.mubr.bf16.gmra.mrb[0].mxu0 %v1732
    %v1825 = vpop.f32.mrb[0].mxu0
    %v1826 = vadd.f32 %v1710, %v1825
    %v1827 = vpop.f32.mrb[0].mxu0
    %v1828 = vpop.f32.mrb[0].mxu0
    %v1829 = vadd.f32 %v1715, %v1828
    %v1830 = vpop.f32.mrb[0].mxu0
    %1831 = vdwg.mxu0
    %1832 = vmatprep.subr.bf16.mxu0 0
    %1833 = vmatpush1.bf16.msra.mxu0 %v1693
    %1834 = vmatprep.subr.bf16.mxu0 0
    %1835 = vmatpush1.bf16.msra.mxu0 %v1694
    %1836 = vmatprep.subr.bf16.mxu0 0
    %1837 = vmatpush1.bf16.msra.mxu0 0
    %1838 = vmatprep.subr.bf16.mxu0 0
    %1839 = vmatpush1.bf16.msra.mxu0 0
    %1840 = vmatprep.subr.bf16.mxu0 0
    %1841 = vmatpush1.bf16.msra.mxu0 0
    %1842 = vmatprep.subr.bf16.mxu0 0
    %1843 = vmatpush1.bf16.msra.mxu0 0
    %1844 = vmatprep.subr.bf16.mxu0 0
    %1845 = vmatpush1.bf16.msra.mxu0 0
    %1846 = vmatprep.subr.bf16.mxu0 0
    %1847 = vmatpush1.bf16.msra.mxu0 0
    %1848 = vmatprep.subr.bf16.mxu0 0
    %1849 = vmatpush1.bf16.msra.mxu0 0
    %1850 = vmatprep.subr.bf16.mxu0 0
    %1851 = vmatpush1.bf16.msra.mxu0 0
    %1852 = vmatprep.subr.bf16.mxu0 0
    %1853 = vmatpush1.bf16.msra.mxu0 0
    %1854 = vmatprep.subr.bf16.mxu0 0
    %1855 = vmatpush1.bf16.msra.mxu0 0
    %1856 = vmatprep.subr.bf16.mxu0 0
    %1857 = vmatpush1.bf16.msra.mxu0 0
    %1858 = vmatprep.subr.bf16.mxu0 0
    %1859 = vmatpush1.bf16.msra.mxu0 0
    %1860 = vmatprep.subr.bf16.mxu0 0
    %1861 = vmatpush1.bf16.msra.mxu0 0
    %1862 = vmatprep.subr.bf16.mxu0 0
    %1863 = vmatpush1.bf16.msra.mxu0 0
    %1864 = vmatprep.mubr.bf16.mxu0 0
    %1865 = vmatmul.mubr.bf16.gmra.mrb[0].mxu0 %v1729
    %v1866 = vpop.f32.mrb[0].mxu0
    %v1867 = vadd.f32 %v1700, %v1866
    %v1868 = vpop.f32.mrb[0].mxu0
    %v1869 = vpop.f32.mrb[0].mxu0
    %v1870 = vadd.f32 %v1705, %v1869
    %v1871 = vpop.f32.mrb[0].mxu0
    %1872 = vmatprep.mubr.bf16.mxu0 0
    %1873 = vmatmul.mubr.bf16.gmra.mrb[0].mxu0 %v1732
    %v1874 = vpop.f32.mrb[0].mxu0
    %v1875 = vadd.f32 %v1710, %v1874
    %v1876 = vpop.f32.mrb[0].mxu0
    %v1877 = vpop.f32.mrb[0].mxu0
    %v1878 = vadd.f32 %v1715, %v1877
    %v1879 = vpop.f32.mrb[0].mxu0
    %1880 = vdwg.mxu0
    %1881 = vmatprep.subr.bf16.mxu0 0
    %1882 = vmatpush1.bf16.msra.mxu0 %v1695
    %1883 = vmatprep.subr.bf16.mxu0 0
    %1884 = vmatpush1.bf16.msra.mxu0 %v1696
    %1885 = vmatprep.subr.bf16.mxu0 0
    %1886 = vmatpush1.bf16.msra.mxu0 0
    %1887 = vmatprep.subr.bf16.mxu0 0
    %1888 = vmatpush1.bf16.msra.mxu0 0
    %1889 = vmatprep.subr.bf16.mxu0 0
    %1890 = vmatpush1.bf16.msra.mxu0 0
    %1891 = vmatprep.subr.bf16.mxu0 0
    %1892 = vmatpush1.bf16.msra.mxu0 0
    %1893 = vmatprep.subr.bf16.mxu0 0
    %1894 = vmatpush1.bf16.msra.mxu0 0
    %1895 = vmatprep.subr.bf16.mxu0 0
    %1896 = vmatpush1.bf16.msra.mxu0 0
    %1897 = vmatprep.subr.bf16.mxu0 0
    %1898 = vmatpush1.bf16.msra.mxu0 0
    %1899 = vmatprep.subr.bf16.mxu0 0
    %1900 = vmatpush1.bf16.msra.mxu0 0
    %1901 = vmatprep.subr.bf16.mxu0 0
    %1902 = vmatpush1.bf16.msra.mxu0 0
    %1903 = vmatprep.subr.bf16.mxu0 0
    %1904 = vmatpush1.bf16.msra.mxu0 0
    %1905 = vmatprep.subr.bf16.mxu0 0
    %1906 = vmatpush1.bf16.msra.mxu0 0
    %1907 = vmatprep.subr.bf16.mxu0 0
    %1908 = vmatpush1.bf16.msra.mxu0 0
    %1909 = vmatprep.subr.bf16.mxu0 0
    %1910 = vmatpush1.bf16.msra.mxu0 0
    %1911 = vmatprep.subr.bf16.mxu0 0
    %1912 = vmatpush1.bf16.msra.mxu0 0
    %1913 = vmatprep.mubr.bf16.mxu0 0
    %1914 = vmatmul.mubr.bf16.gmra.mrb[0].mxu0 %v1729
    %v1915 = vpop.f32.mrb[0].mxu0
    %v1916 = vadd.f32 %v1700, %v1915
    %v1917 = vpop.f32.mrb[0].mxu0
    %v1918 = vpop.f32.mrb[0].mxu0
    %v1919 = vadd.f32 %v1705, %v1918
    %v1920 = vpop.f32.mrb[0].mxu0
    %1921 = vmatprep.mubr.bf16.mxu0 0
    %1922 = vmatmul.mubr.bf16.gmra.mrb[0].mxu0 %v1732
    %v1923 = vpop.f32.mrb[0].mxu0
    %v1924 = vadd.f32 %v1710, %v1923
    %v1925 = vpop.f32.mrb[0].mxu0
    %v1926 = vpop.f32.mrb[0].mxu0
    %v1927 = vadd.f32 %v1715, %v1926
    %v1928 = vpop.f32.mrb[0].mxu0
    %1929 = vdwg.mxu0
    %v1934 = vunpack.c.l.b16 %v1681
    %v1935 = vunpack.c.l.b16 %v1682
    %v1936 = vunpack.c.l.b16 %v1683
    %v1937 = vunpack.c.l.b16 %v1684
    %v1938 = vpack.c.b16 %v1935, %v1934
    %v1939 = vpack.c.b16 %v1937, %v1936
    %vm1940 = vcmask 523264
    %v1942 = vsel %vm1940, %v1938, 0
    %v1945 = vsel %vm1940, %v1939, 0
    %1947 = vmatprep.subr.bf16.mxu0 0
    %1948 = vmatpush1.bf16.msra.mxu0 %v1691
    %1949 = vmatprep.subr.bf16.mxu0 0
    %1950 = vmatpush1.bf16.msra.mxu0 %v1692
    %1951 = vmatprep.subr.bf16.mxu0 0
    %1952 = vmatpush1.bf16.msra.mxu0 %v1689
    %1953 = vmatprep.subr.bf16.mxu0 0
    %1954 = vmatpush1.bf16.msra.mxu0 %v1690
    %1955 = vmatprep.subr.bf16.mxu0 0
    %1956 = vmatpush1.bf16.msra.mxu0 0
    %1957 = vmatprep.subr.bf16.mxu0 0
    %1958 = vmatpush1.bf16.msra.mxu0 0
    %1959 = vmatprep.subr.bf16.mxu0 0
    %1960 = vmatpush1.bf16.msra.mxu0 0
    %1961 = vmatprep.subr.bf16.mxu0 0
    %1962 = vmatpush1.bf16.msra.mxu0 0
    %1963 = vmatprep.subr.bf16.mxu0 0
    %1964 = vmatpush1.bf16.msra.mxu0 0
    %1965 = vmatprep.subr.bf16.mxu0 0
    %1966 = vmatpush1.bf16.msra.mxu0 0
    %1967 = vmatprep.subr.bf16.mxu0 0
    %1968 = vmatpush1.bf16.msra.mxu0 0
    %1969 = vmatprep.subr.bf16.mxu0 0
    %1970 = vmatpush1.bf16.msra.mxu0 0
    %1971 = vmatprep.subr.bf16.mxu0 0
    %1972 = vmatpush1.bf16.msra.mxu0 0
    %1973 = vmatprep.subr.bf16.mxu0 0
    %1974 = vmatpush1.bf16.msra.mxu0 0
    %1975 = vmatprep.subr.bf16.mxu0 0
    %1976 = vmatpush1.bf16.msra.mxu0 0
    %1977 = vmatprep.subr.bf16.mxu0 0
    %1978 = vmatpush1.bf16.msra.mxu0 0
    %1979 = vmatprep.mubr.bf16.mxu0 0
    %1980 = vmatmul.mubr.bf16.gmra.mrb[0].mxu0 %v1942
    %v1981 = vpop.f32.mrb[0].mxu0
    %v1982 = vadd.f32 %v1700, %v1981
    %v1983 = vpop.f32.mrb[0].mxu0
    %v1984 = vpop.f32.mrb[0].mxu0
    %v1985 = vadd.f32 %v1705, %v1984
    %v1986 = vpop.f32.mrb[0].mxu0
    %1987 = vmatprep.mubr.bf16.mxu0 0
    %1988 = vmatmul.mubr.bf16.gmra.mrb[0].mxu0 %v1945
    %v1989 = vpop.f32.mrb[0].mxu0
    %v1990 = vadd.f32 %v1710, %v1989
    %v1991 = vpop.f32.mrb[0].mxu0
    %v1992 = vpop.f32.mrb[0].mxu0
    %v1993 = vadd.f32 %v1715, %v1992
    %v1994 = vpop.f32.mrb[0].mxu0
    %1995 = vdwg.mxu0
    %1996 = vmatprep.subr.bf16.mxu0 0
    %1997 = vmatpush1.bf16.msra.mxu0 %v1693
    %1998 = vmatprep.subr.bf16.mxu0 0
    %1999 = vmatpush1.bf16.msra.mxu0 %v1694
    %2000 = vmatprep.subr.bf16.mxu0 0
    %2001 = vmatpush1.bf16.msra.mxu0 %v1691
    %2002 = vmatprep.subr.bf16.mxu0 0
    %2003 = vmatpush1.bf16.msra.mxu0 %v1692
    %2004 = vmatprep.subr.bf16.mxu0 0
    %2005 = vmatpush1.bf16.msra.mxu0 0
    %2006 = vmatprep.subr.bf16.mxu0 0
    %2007 = vmatpush1.bf16.msra.mxu0 0
    %2008 = vmatprep.subr.bf16.mxu0 0
    %2009 = vmatpush1.bf16.msra.mxu0 0
    %2010 = vmatprep.subr.bf16.mxu0 0
    %2011 = vmatpush1.bf16.msra.mxu0 0
    %2012 = vmatprep.subr.bf16.mxu0 0
    %2013 = vmatpush1.bf16.msra.mxu0 0
    %2014 = vmatprep.subr.bf16.mxu0 0
    %2015 = vmatpush1.bf16.msra.mxu0 0
    %2016 = vmatprep.subr.bf16.mxu0 0
    %2017 = vmatpush1.bf16.msra.mxu0 0
    %2018 = vmatprep.subr.bf16.mxu0 0
    %2019 = vmatpush1.bf16.msra.mxu0 0
    %2020 = vmatprep.subr.bf16.mxu0 0
    %2021 = vmatpush1.bf16.msra.mxu0 0
    %2022 = vmatprep.subr.bf16.mxu0 0
    %2023 = vmatpush1.bf16.msra.mxu0 0
    %2024 = vmatprep.subr.bf16.mxu0 0
    %2025 = vmatpush1.bf16.msra.mxu0 0
    %2026 = vmatprep.subr.bf16.mxu0 0
    %2027 = vmatpush1.bf16.msra.mxu0 0
    %2028 = vmatprep.mubr.bf16.mxu0 0
    %2029 = vmatmul.mubr.bf16.gmra.mrb[0].mxu0 %v1942
    %v2030 = vpop.f32.mrb[0].mxu0
    %v2031 = vadd.f32 %v1700, %v2030
    %v2032 = vpop.f32.mrb[0].mxu0
    %v2033 = vpop.f32.mrb[0].mxu0
    %v2034 = vadd.f32 %v1705, %v2033
    %v2035 = vpop.f32.mrb[0].mxu0
    %2036 = vmatprep.mubr.bf16.mxu0 0
    %2037 = vmatmul.mubr.bf16.gmra.mrb[0].mxu0 %v1945
    %v2038 = vpop.f32.mrb[0].mxu0
    %v2039 = vadd.f32 %v1710, %v2038
    %v2040 = vpop.f32.mrb[0].mxu0
    %v2041 = vpop.f32.mrb[0].mxu0
    %v2042 = vadd.f32 %v1715, %v2041
    %v2043 = vpop.f32.mrb[0].mxu0
    %2044 = vdwg.mxu0
    %2045 = vmatprep.subr.bf16.mxu0 0
    %2046 = vmatpush1.bf16.msra.mxu0 %v1695
    %2047 = vmatprep.subr.bf16.mxu0 0
    %2048 = vmatpush1.bf16.msra.mxu0 %v1696
    %2049 = vmatprep.subr.bf16.mxu0 0
    %2050 = vmatpush1.bf16.msra.mxu0 %v1693
    %2051 = vmatprep.subr.bf16.mxu0 0
    %2052 = vmatpush1.bf16.msra.mxu0 %v1694
    %2053 = vmatprep.subr.bf16.mxu0 0
    %2054 = vmatpush1.bf16.msra.mxu0 0
    %2055 = vmatprep.subr.bf16.mxu0 0
    %2056 = vmatpush1.bf16.msra.mxu0 0
    %2057 = vmatprep.subr.bf16.mxu0 0
    %2058 = vmatpush1.bf16.msra.mxu0 0
    %2059 = vmatprep.subr.bf16.mxu0 0
    %2060 = vmatpush1.bf16.msra.mxu0 0
    %2061 = vmatprep.subr.bf16.mxu0 0
    %2062 = vmatpush1.bf16.msra.mxu0 0
    %2063 = vmatprep.subr.bf16.mxu0 0
    %2064 = vmatpush1.bf16.msra.mxu0 0
    %2065 = vmatprep.subr.bf16.mxu0 0
    %2066 = vmatpush1.bf16.msra.mxu0 0
    %2067 = vmatprep.subr.bf16.mxu0 0
    %2068 = vmatpush1.bf16.msra.mxu0 0
    %2069 = vmatprep.subr.bf16.mxu0 0
    %2070 = vmatpush1.bf16.msra.mxu0 0
    %2071 = vmatprep.subr.bf16.mxu0 0
    %2072 = vmatpush1.bf16.msra.mxu0 0
    %2073 = vmatprep.subr.bf16.mxu0 0
    %2074 = vmatpush1.bf16.msra.mxu0 0
    %2075 = vmatprep.subr.bf16.mxu0 0
    %2076 = vmatpush1.bf16.msra.mxu0 0
    %2077 = vmatprep.mubr.bf16.mxu0 0
    %2078 = vmatmul.mubr.bf16.gmra.mrb[0].mxu0 %v1942
    %v2079 = vpop.f32.mrb[0].mxu0
    %v2080 = vadd.f32 %v1700, %v2079
    %v2081 = vpop.f32.mrb[0].mxu0
    %v2082 = vpop.f32.mrb[0].mxu0
    %v2083 = vadd.f32 %v1705, %v2082
    %v2084 = vpop.f32.mrb[0].mxu0
    %2085 = vmatprep.mubr.bf16.mxu0 0
    %2086 = vmatmul.mubr.bf16.gmra.mrb[0].mxu0 %v1945
    %v2087 = vpop.f32.mrb[0].mxu0
    %v2088 = vadd.f32 %v1710, %v2087
    %v2089 = vpop.f32.mrb[0].mxu0
    %v2090 = vpop.f32.mrb[0].mxu0
    %v2091 = vadd.f32 %v1715, %v2090
    %v2092 = vpop.f32.mrb[0].mxu0
    %2093 = vdwg.mxu0
    %2094 = vmatprep.subr.bf16.mxu0 0
    %2095 = vmatpush1.bf16.msra.mxu0 %v871
    %2096 = vmatprep.subr.bf16.mxu0 0
    %2097 = vmatpush1.bf16.msra.mxu0 %v871
    %2098 = vmatprep.subr.bf16.mxu0 0
    %2099 = vmatpush1.bf16.msra.mxu0 %v1695
    %2100 = vmatprep.subr.bf16.mxu0 0
    %2101 = vmatpush1.bf16.msra.mxu0 %v1696
    %2102 = vmatprep.subr.bf16.mxu0 0
    %2103 = vmatpush1.bf16.msra.mxu0 0
    %2104 = vmatprep.subr.bf16.mxu0 0
    %2105 = vmatpush1.bf16.msra.mxu0 0
    %2106 = vmatprep.subr.bf16.mxu0 0
    %2107 = vmatpush1.bf16.msra.mxu0 0
    %2108 = vmatprep.subr.bf16.mxu0 0
    %2109 = vmatpush1.bf16.msra.mxu0 0
    %2110 = vmatprep.subr.bf16.mxu0 0
    %2111 = vmatpush1.bf16.msra.mxu0 0
    %2112 = vmatprep.subr.bf16.mxu0 0
    %2113 = vmatpush1.bf16.msra.mxu0 0
    %2114 = vmatprep.subr.bf16.mxu0 0
    %2115 = vmatpush1.bf16.msra.mxu0 0
    %2116 = vmatprep.subr.bf16.mxu0 0
    %2117 = vmatpush1.bf16.msra.mxu0 0
    %2118 = vmatprep.subr.bf16.mxu0 0
    %2119 = vmatpush1.bf16.msra.mxu0 0
    %2120 = vmatprep.subr.bf16.mxu0 0
    %2121 = vmatpush1.bf16.msra.mxu0 0
    %2122 = vmatprep.subr.bf16.mxu0 0
    %2123 = vmatpush1.bf16.msra.mxu0 0
    %2124 = vmatprep.subr.bf16.mxu0 0
    %2125 = vmatpush1.bf16.msra.mxu0 0
    %2126 = vmatprep.mubr.bf16.mxu0 0
    %2127 = vmatmul.mubr.bf16.gmra.mrb[0].mxu0 %v1942
    %v2128 = vpop.f32.mrb[0].mxu0
    %v2129 = vadd.f32 %v1700, %v2128
    %v2130 = vpop.f32.mrb[0].mxu0
    %v2131 = vpop.f32.mrb[0].mxu0
    %v2132 = vadd.f32 %v1705, %v2131
    %v2133 = vpop.f32.mrb[0].mxu0
    %2134 = vmatprep.mubr.bf16.mxu0 0
    %2135 = vmatmul.mubr.bf16.gmra.mrb[0].mxu0 %v1945
    %v2136 = vpop.f32.mrb[0].mxu0
    %v2137 = vadd.f32 %v1710, %v2136
    %v2138 = vpop.f32.mrb[0].mxu0
    %v2139 = vpop.f32.mrb[0].mxu0
    %v2140 = vadd.f32 %v1715, %v2139
    %v2141 = vpop.f32.mrb[0].mxu0
    %2142 = vdwg.mxu0
    %v2143 = vld [vmem:[%s10] sm:$0xf]
    %v2144 = vld [vmem:[%s10 + $0x4] sm:$0xf]
    %v2145 = vld [vmem:[%s10 + $0x8] sm:$0xf]
    %v2146 = vld [vmem:[%s10 + $0xc] sm:$0xf]
    %v2147 = vld [vmem:[%s11] sm:$0xf]
    %v2148 = vld [vmem:[%s11 + $0x4] sm:$0xf]
    %v2149 = vld [vmem:[%s11 + $0x8] sm:$0xf]
    %v2150 = vld [vmem:[%s11 + $0xc] sm:$0xf]
    %v2151 = vld [vmem:[%s12] sm:$0xff]
    %v2152 = vld [vmem:[%s12 + $0x8] sm:$0xff]
    %v2153 = vld [vmem:[%s12 + $0x10] sm:$0xff]
    %v2154 = vld [vmem:[%s12 + $0x18] sm:$0xff]
    %v2155 = vpack.c.bf16 %v1772, %v1769
    %v2156 = vpack.c.bf16 %v1780, %v1777
    %v2157 = vpack.c.bf16 %v1985, %v1982
    %v2158 = vpack.c.bf16 %v1993, %v1990
    %v2159 = vpack.c.bf16 %v1821, %v1818
    %v2160 = vpack.c.bf16 %v1829, %v1826
    %v2161 = vpack.c.bf16 %v2034, %v2031
    %v2162 = vpack.c.bf16 %v2042, %v2039
    %v2163 = vpack.c.bf16 %v1870, %v1867
    %v2164 = vpack.c.bf16 %v1878, %v1875
    %v2165 = vpack.c.bf16 %v2083, %v2080
    %v2166 = vpack.c.bf16 %v2091, %v2088
    %v2167 = vpack.c.bf16 %v1919, %v1916
    %v2168 = vpack.c.bf16 %v1927, %v1924
    %v2169 = vpack.c.bf16 %v2132, %v2129
    %v2170 = vpack.c.bf16 %v2140, %v2137
    %2172 = vset.pattern.permute.xlu0 0
    %2173 = vperm.xlu0 %2172, %v2151
    %v2174 = vpop.permute.xlu0 %2173
    %2177 = vset.pattern.permute.xlu0 0
    %2178 = vperm.xlu0 %2177, %v2152
    %v2179 = vpop.permute.xlu0 %2178
    %2182 = vset.pattern.permute.xlu0 0
    %2183 = vperm.xlu0 %2182, %v2153
    %v2184 = vpop.permute.xlu0 %2183
    %2187 = vset.pattern.permute.xlu0 0
    %2188 = vperm.xlu0 %2187, %v2154
    %v2189 = vpop.permute.xlu0 %2188
    %v2195 = vunpack.c.l.b16 %v2143
    %v2196 = vunpack.c.l.b16 %v2144
    %v2197 = vunpack.c.l.b16 %v2145
    %v2198 = vunpack.c.l.b16 %v2146
    %v2199 = vpack.c.b16 %v2196, %v2195
    %v2200 = vpack.c.b16 %v2198, %v2197
    %v2202 = vsel %vm1727, %v2199, 0
    %v2205 = vsel %vm1727, %v2200, 0
    %2207 = vmatprep.subr.bf16.mxu0 0
    %2208 = vmatpush1.bf16.msra.mxu0 %v2155
    %2209 = vmatprep.subr.bf16.mxu0 0
    %2210 = vmatpush1.bf16.msra.mxu0 %v2156
    %2211 = vmatprep.subr.bf16.mxu0 0
    %2212 = vmatpush1.bf16.msra.mxu0 0
    %2213 = vmatprep.subr.bf16.mxu0 0
    %2214 = vmatpush1.bf16.msra.mxu0 0
    %2215 = vmatprep.subr.bf16.mxu0 0
    %2216 = vmatpush1.bf16.msra.mxu0 0
    %2217 = vmatprep.subr.bf16.mxu0 0
    %2218 = vmatpush1.bf16.msra.mxu0 0
    %2219 = vmatprep.subr.bf16.mxu0 0
    %2220 = vmatpush1.bf16.msra.mxu0 0
    %2221 = vmatprep.subr.bf16.mxu0 0
    %2222 = vmatpush1.bf16.msra.mxu0 0
    %2223 = vmatprep.subr.bf16.mxu0 0
    %2224 = vmatpush1.bf16.msra.mxu0 0
    %2225 = vmatprep.subr.bf16.mxu0 0
    %2226 = vmatpush1.bf16.msra.mxu0 0
    %2227 = vmatprep.subr.bf16.mxu0 0
    %2228 = vmatpush1.bf16.msra.mxu0 0
    %2229 = vmatprep.subr.bf16.mxu0 0
    %2230 = vmatpush1.bf16.msra.mxu0 0
    %2231 = vmatprep.subr.bf16.mxu0 0
    %2232 = vmatpush1.bf16.msra.mxu0 0
    %2233 = vmatprep.subr.bf16.mxu0 0
    %2234 = vmatpush1.bf16.msra.mxu0 0
    %2235 = vmatprep.subr.bf16.mxu0 0
    %2236 = vmatpush1.bf16.msra.mxu0 0
    %2237 = vmatprep.subr.bf16.mxu0 0
    %2238 = vmatpush1.bf16.msra.mxu0 0
    %2239 = vmatprep.mubr.bf16.mxu0 0
    %2240 = vmatmul.mubr.bf16.gmra.mrb[0].mxu0 %v2202
    %v2241 = vpop.f32.mrb[0].mxu0
    %v2242 = vadd.f32 %v2174, %v2241
    %v2243 = vpop.f32.mrb[0].mxu0
    %v2244 = vpop.f32.mrb[0].mxu0
    %v2245 = vadd.f32 %v2179, %v2244
    %v2246 = vpop.f32.mrb[0].mxu0
    %2247 = vmatprep.mubr.bf16.mxu0 0
    %2248 = vmatmul.mubr.bf16.gmra.mrb[0].mxu0 %v2205
    %v2249 = vpop.f32.mrb[0].mxu0
    %v2250 = vadd.f32 %v2184, %v2249
    %v2251 = vpop.f32.mrb[0].mxu0
    %v2252 = vpop.f32.mrb[0].mxu0
    %v2253 = vadd.f32 %v2189, %v2252
    %v2254 = vpop.f32.mrb[0].mxu0
    %2255 = vdwg.mxu0
    %2256 = vmatprep.subr.bf16.mxu0 0
    %2257 = vmatpush1.bf16.msra.mxu0 %v2157
    %2258 = vmatprep.subr.bf16.mxu0 0
    %2259 = vmatpush1.bf16.msra.mxu0 %v2158
    %2260 = vmatprep.subr.bf16.mxu0 0
    %2261 = vmatpush1.bf16.msra.mxu0 0
    %2262 = vmatprep.subr.bf16.mxu0 0
    %2263 = vmatpush1.bf16.msra.mxu0 0
    %2264 = vmatprep.subr.bf16.mxu0 0
    %2265 = vmatpush1.bf16.msra.mxu0 0
    %2266 = vmatprep.subr.bf16.mxu0 0
    %2267 = vmatpush1.bf16.msra.mxu0 0
    %2268 = vmatprep.subr.bf16.mxu0 0
    %2269 = vmatpush1.bf16.msra.mxu0 0
    %2270 = vmatprep.subr.bf16.mxu0 0
    %2271 = vmatpush1.bf16.msra.mxu0 0
    %2272 = vmatprep.subr.bf16.mxu0 0
    %2273 = vmatpush1.bf16.msra.mxu0 0
    %2274 = vmatprep.subr.bf16.mxu0 0
    %2275 = vmatpush1.bf16.msra.mxu0 0
    %2276 = vmatprep.subr.bf16.mxu0 0
    %2277 = vmatpush1.bf16.msra.mxu0 0
    %2278 = vmatprep.subr.bf16.mxu0 0
    %2279 = vmatpush1.bf16.msra.mxu0 0
    %2280 = vmatprep.subr.bf16.mxu0 0
    %2281 = vmatpush1.bf16.msra.mxu0 0
    %2282 = vmatprep.subr.bf16.mxu0 0
    %2283 = vmatpush1.bf16.msra.mxu0 0
    %2284 = vmatprep.subr.bf16.mxu0 0
    %2285 = vmatpush1.bf16.msra.mxu0 0
    %2286 = vmatprep.subr.bf16.mxu0 0
    %2287 = vmatpush1.bf16.msra.mxu0 0
    %2288 = vmatprep.mubr.bf16.mxu0 0
    %2289 = vmatmul.mubr.bf16.gmra.mrb[0].mxu0 %v2202
    %v2290 = vpop.f32.mrb[0].mxu0
    %v2291 = vadd.f32 %v2174, %v2290
    %v2292 = vpop.f32.mrb[0].mxu0
    %v2293 = vpop.f32.mrb[0].mxu0
    %v2294 = vadd.f32 %v2179, %v2293
    %v2295 = vpop.f32.mrb[0].mxu0
    %2296 = vmatprep.mubr.bf16.mxu0 0
    %2297 = vmatmul.mubr.bf16.gmra.mrb[0].mxu0 %v2205
    %v2298 = vpop.f32.mrb[0].mxu0
    %v2299 = vadd.f32 %v2184, %v2298
    %v2300 = vpop.f32.mrb[0].mxu0
    %v2301 = vpop.f32.mrb[0].mxu0
    %v2302 = vadd.f32 %v2189, %v2301
    %v2303 = vpop.f32.mrb[0].mxu0
    %2304 = vdwg.mxu0
    %2305 = vmatprep.subr.bf16.mxu0 0
    %2306 = vmatpush1.bf16.msra.mxu0 %v2159
    %2307 = vmatprep.subr.bf16.mxu0 0
    %2308 = vmatpush1.bf16.msra.mxu0 %v2160
    %2309 = vmatprep.subr.bf16.mxu0 0
    %2310 = vmatpush1.bf16.msra.mxu0 0
    %2311 = vmatprep.subr.bf16.mxu0 0
    %2312 = vmatpush1.bf16.msra.mxu0 0
    %2313 = vmatprep.subr.bf16.mxu0 0
    %2314 = vmatpush1.bf16.msra.mxu0 0
    %2315 = vmatprep.subr.bf16.mxu0 0
    %2316 = vmatpush1.bf16.msra.mxu0 0
    %2317 = vmatprep.subr.bf16.mxu0 0
    %2318 = vmatpush1.bf16.msra.mxu0 0
    %2319 = vmatprep.subr.bf16.mxu0 0
    %2320 = vmatpush1.bf16.msra.mxu0 0
    %2321 = vmatprep.subr.bf16.mxu0 0
    %2322 = vmatpush1.bf16.msra.mxu0 0
    %2323 = vmatprep.subr.bf16.mxu0 0
    %2324 = vmatpush1.bf16.msra.mxu0 0
    %2325 = vmatprep.subr.bf16.mxu0 0
    %2326 = vmatpush1.bf16.msra.mxu0 0
    %2327 = vmatprep.subr.bf16.mxu0 0
    %2328 = vmatpush1.bf16.msra.mxu0 0
    %2329 = vmatprep.subr.bf16.mxu0 0
    %2330 = vmatpush1.bf16.msra.mxu0 0
    %2331 = vmatprep.subr.bf16.mxu0 0
    %2332 = vmatpush1.bf16.msra.mxu0 0
    %2333 = vmatprep.subr.bf16.mxu0 0
    %2334 = vmatpush1.bf16.msra.mxu0 0
    %2335 = vmatprep.subr.bf16.mxu0 0
    %2336 = vmatpush1.bf16.msra.mxu0 0
    %2337 = vmatprep.mubr.bf16.mxu0 0
    %2338 = vmatmul.mubr.bf16.gmra.mrb[0].mxu0 %v2202
    %v2339 = vpop.f32.mrb[0].mxu0
    %v2340 = vadd.f32 %v2174, %v2339
    %v2341 = vpop.f32.mrb[0].mxu0
    %v2342 = vpop.f32.mrb[0].mxu0
    %v2343 = vadd.f32 %v2179, %v2342
    %v2344 = vpop.f32.mrb[0].mxu0
    %2345 = vmatprep.mubr.bf16.mxu0 0
    %2346 = vmatmul.mubr.bf16.gmra.mrb[0].mxu0 %v2205
    %v2347 = vpop.f32.mrb[0].mxu0
    %v2348 = vadd.f32 %v2184, %v2347
    %v2349 = vpop.f32.mrb[0].mxu0
    %v2350 = vpop.f32.mrb[0].mxu0
    %v2351 = vadd.f32 %v2189, %v2350
    %v2352 = vpop.f32.mrb[0].mxu0
    %2353 = vdwg.mxu0
    %2354 = vmatprep.subr.bf16.mxu0 0
    %2355 = vmatpush1.bf16.msra.mxu0 %v2161
    %2356 = vmatprep.subr.bf16.mxu0 0
    %2357 = vmatpush1.bf16.msra.mxu0 %v2162
    %2358 = vmatprep.subr.bf16.mxu0 0
    %2359 = vmatpush1.bf16.msra.mxu0 0
    %2360 = vmatprep.subr.bf16.mxu0 0
    %2361 = vmatpush1.bf16.msra.mxu0 0
    %2362 = vmatprep.subr.bf16.mxu0 0
    %2363 = vmatpush1.bf16.msra.mxu0 0
    %2364 = vmatprep.subr.bf16.mxu0 0
    %2365 = vmatpush1.bf16.msra.mxu0 0
    %2366 = vmatprep.subr.bf16.mxu0 0
    %2367 = vmatpush1.bf16.msra.mxu0 0
    %2368 = vmatprep.subr.bf16.mxu0 0
    %2369 = vmatpush1.bf16.msra.mxu0 0
    %2370 = vmatprep.subr.bf16.mxu0 0
    %2371 = vmatpush1.bf16.msra.mxu0 0
    %2372 = vmatprep.subr.bf16.mxu0 0
    %2373 = vmatpush1.bf16.msra.mxu0 0
    %2374 = vmatprep.subr.bf16.mxu0 0
    %2375 = vmatpush1.bf16.msra.mxu0 0
    %2376 = vmatprep.subr.bf16.mxu0 0
    %2377 = vmatpush1.bf16.msra.mxu0 0
    %2378 = vmatprep.subr.bf16.mxu0 0
    %2379 = vmatpush1.bf16.msra.mxu0 0
    %2380 = vmatprep.subr.bf16.mxu0 0
    %2381 = vmatpush1.bf16.msra.mxu0 0
    %2382 = vmatprep.subr.bf16.mxu0 0
    %2383 = vmatpush1.bf16.msra.mxu0 0
    %2384 = vmatprep.subr.bf16.mxu0 0
    %2385 = vmatpush1.bf16.msra.mxu0 0
    %2386 = vmatprep.mubr.bf16.mxu0 0
    %2387 = vmatmul.mubr.bf16.gmra.mrb[0].mxu0 %v2202
    %v2388 = vpop.f32.mrb[0].mxu0
    %v2389 = vadd.f32 %v2174, %v2388
    %v2390 = vpop.f32.mrb[0].mxu0
    %v2391 = vpop.f32.mrb[0].mxu0
    %v2392 = vadd.f32 %v2179, %v2391
    %v2393 = vpop.f32.mrb[0].mxu0
    %2394 = vmatprep.mubr.bf16.mxu0 0
    %2395 = vmatmul.mubr.bf16.gmra.mrb[0].mxu0 %v2205
    %v2396 = vpop.f32.mrb[0].mxu0
    %v2397 = vadd.f32 %v2184, %v2396
    %v2398 = vpop.f32.mrb[0].mxu0
    %v2399 = vpop.f32.mrb[0].mxu0
    %v2400 = vadd.f32 %v2189, %v2399
    %v2401 = vpop.f32.mrb[0].mxu0
    %2402 = vdwg.mxu0
    %2403 = vmatprep.subr.bf16.mxu0 0
    %2404 = vmatpush1.bf16.msra.mxu0 %v2163
    %2405 = vmatprep.subr.bf16.mxu0 0
    %2406 = vmatpush1.bf16.msra.mxu0 %v2164
    %2407 = vmatprep.subr.bf16.mxu0 0
    %2408 = vmatpush1.bf16.msra.mxu0 0
    %2409 = vmatprep.subr.bf16.mxu0 0
    %2410 = vmatpush1.bf16.msra.mxu0 0
    %2411 = vmatprep.subr.bf16.mxu0 0
    %2412 = vmatpush1.bf16.msra.mxu0 0
    %2413 = vmatprep.subr.bf16.mxu0 0
    %2414 = vmatpush1.bf16.msra.mxu0 0
    %2415 = vmatprep.subr.bf16.mxu0 0
    %2416 = vmatpush1.bf16.msra.mxu0 0
    %2417 = vmatprep.subr.bf16.mxu0 0
    %2418 = vmatpush1.bf16.msra.mxu0 0
    %2419 = vmatprep.subr.bf16.mxu0 0
    %2420 = vmatpush1.bf16.msra.mxu0 0
    %2421 = vmatprep.subr.bf16.mxu0 0
    %2422 = vmatpush1.bf16.msra.mxu0 0
    %2423 = vmatprep.subr.bf16.mxu0 0
    %2424 = vmatpush1.bf16.msra.mxu0 0
    %2425 = vmatprep.subr.bf16.mxu0 0
    %2426 = vmatpush1.bf16.msra.mxu0 0
    %2427 = vmatprep.subr.bf16.mxu0 0
    %2428 = vmatpush1.bf16.msra.mxu0 0
    %2429 = vmatprep.subr.bf16.mxu0 0
    %2430 = vmatpush1.bf16.msra.mxu0 0
    %2431 = vmatprep.subr.bf16.mxu0 0
    %2432 = vmatpush1.bf16.msra.mxu0 0
    %2433 = vmatprep.subr.bf16.mxu0 0
    %2434 = vmatpush1.bf16.msra.mxu0 0
    %2435 = vmatprep.mubr.bf16.mxu0 0
    %2436 = vmatmul.mubr.bf16.gmra.mrb[0].mxu0 %v2202
    %v2437 = vpop.f32.mrb[0].mxu0
    %v2438 = vadd.f32 %v2174, %v2437
    %v2439 = vpop.f32.mrb[0].mxu0
    %v2440 = vpop.f32.mrb[0].mxu0
    %v2441 = vadd.f32 %v2179, %v2440
    %v2442 = vpop.f32.mrb[0].mxu0
    %2443 = vmatprep.mubr.bf16.mxu0 0
    %2444 = vmatmul.mubr.bf16.gmra.mrb[0].mxu0 %v2205
    %v2445 = vpop.f32.mrb[0].mxu0
    %v2446 = vadd.f32 %v2184, %v2445
    %v2447 = vpop.f32.mrb[0].mxu0
    %v2448 = vpop.f32.mrb[0].mxu0
    %v2449 = vadd.f32 %v2189, %v2448
    %v2450 = vpop.f32.mrb[0].mxu0
    %2451 = vdwg.mxu0
    %2452 = vmatprep.subr.bf16.mxu0 0
    %2453 = vmatpush1.bf16.msra.mxu0 %v2165
    %2454 = vmatprep.subr.bf16.mxu0 0
    %2455 = vmatpush1.bf16.msra.mxu0 %v2166
    %2456 = vmatprep.subr.bf16.mxu0 0
    %2457 = vmatpush1.bf16.msra.mxu0 0
    %2458 = vmatprep.subr.bf16.mxu0 0
    %2459 = vmatpush1.bf16.msra.mxu0 0
    %2460 = vmatprep.subr.bf16.mxu0 0
    %2461 = vmatpush1.bf16.msra.mxu0 0
    %2462 = vmatprep.subr.bf16.mxu0 0
    %2463 = vmatpush1.bf16.msra.mxu0 0
    %2464 = vmatprep.subr.bf16.mxu0 0
    %2465 = vmatpush1.bf16.msra.mxu0 0
    %2466 = vmatprep.subr.bf16.mxu0 0
    %2467 = vmatpush1.bf16.msra.mxu0 0
    %2468 = vmatprep.subr.bf16.mxu0 0
    %2469 = vmatpush1.bf16.msra.mxu0 0
    %2470 = vmatprep.subr.bf16.mxu0 0
    %2471 = vmatpush1.bf16.msra.mxu0 0
    %2472 = vmatprep.subr.bf16.mxu0 0
    %2473 = vmatpush1.bf16.msra.mxu0 0
    %2474 = vmatprep.subr.bf16.mxu0 0
    %2475 = vmatpush1.bf16.msra.mxu0 0
    %2476 = vmatprep.subr.bf16.mxu0 0
    %2477 = vmatpush1.bf16.msra.mxu0 0
    %2478 = vmatprep.subr.bf16.mxu0 0
    %2479 = vmatpush1.bf16.msra.mxu0 0
    %2480 = vmatprep.subr.bf16.mxu0 0
    %2481 = vmatpush1.bf16.msra.mxu0 0
    %2482 = vmatprep.subr.bf16.mxu0 0
    %2483 = vmatpush1.bf16.msra.mxu0 0
    %2484 = vmatprep.mubr.bf16.mxu0 0
    %2485 = vmatmul.mubr.bf16.gmra.mrb[0].mxu0 %v2202
    %v2486 = vpop.f32.mrb[0].mxu0
    %v2487 = vadd.f32 %v2174, %v2486
    %v2488 = vpop.f32.mrb[0].mxu0
    %v2489 = vpop.f32.mrb[0].mxu0
    %v2490 = vadd.f32 %v2179, %v2489
    %v2491 = vpop.f32.mrb[0].mxu0
    %2492 = vmatprep.mubr.bf16.mxu0 0
    %2493 = vmatmul.mubr.bf16.gmra.mrb[0].mxu0 %v2205
    %v2494 = vpop.f32.mrb[0].mxu0
    %v2495 = vadd.f32 %v2184, %v2494
    %v2496 = vpop.f32.mrb[0].mxu0
    %v2497 = vpop.f32.mrb[0].mxu0
    %v2498 = vadd.f32 %v2189, %v2497
    %v2499 = vpop.f32.mrb[0].mxu0
    %2500 = vdwg.mxu0
    %2501 = vmatprep.subr.bf16.mxu0 0
    %2502 = vmatpush1.bf16.msra.mxu0 %v2167
    %2503 = vmatprep.subr.bf16.mxu0 0
    %2504 = vmatpush1.bf16.msra.mxu0 %v2168
    %2505 = vmatprep.subr.bf16.mxu0 0
    %2506 = vmatpush1.bf16.msra.mxu0 0
    %2507 = vmatprep.subr.bf16.mxu0 0
    %2508 = vmatpush1.bf16.msra.mxu0 0
    %2509 = vmatprep.subr.bf16.mxu0 0
    %2510 = vmatpush1.bf16.msra.mxu0 0
    %2511 = vmatprep.subr.bf16.mxu0 0
    %2512 = vmatpush1.bf16.msra.mxu0 0
    %2513 = vmatprep.subr.bf16.mxu0 0
    %2514 = vmatpush1.bf16.msra.mxu0 0
    %2515 = vmatprep.subr.bf16.mxu0 0
    %2516 = vmatpush1.bf16.msra.mxu0 0
    %2517 = vmatprep.subr.bf16.mxu0 0
    %2518 = vmatpush1.bf16.msra.mxu0 0
    %2519 = vmatprep.subr.bf16.mxu0 0
    %2520 = vmatpush1.bf16.msra.mxu0 0
    %2521 = vmatprep.subr.bf16.mxu0 0
    %2522 = vmatpush1.bf16.msra.mxu0 0
    %2523 = vmatprep.subr.bf16.mxu0 0
    %2524 = vmatpush1.bf16.msra.mxu0 0
    %2525 = vmatprep.subr.bf16.mxu0 0
    %2526 = vmatpush1.bf16.msra.mxu0 0
    %2527 = vmatprep.subr.bf16.mxu0 0
    %2528 = vmatpush1.bf16.msra.mxu0 0
    %2529 = vmatprep.subr.bf16.mxu0 0
    %2530 = vmatpush1.bf16.msra.mxu0 0
    %2531 = vmatprep.subr.bf16.mxu0 0
    %2532 = vmatpush1.bf16.msra.mxu0 0
    %2533 = vmatprep.mubr.bf16.mxu0 0
    %2534 = vmatmul.mubr.bf16.gmra.mrb[0].mxu0 %v2202
    %v2535 = vpop.f32.mrb[0].mxu0
    %v2536 = vadd.f32 %v2174, %v2535
    %v2537 = vpop.f32.mrb[0].mxu0
    %v2538 = vpop.f32.mrb[0].mxu0
    %v2539 = vadd.f32 %v2179, %v2538
    %v2540 = vpop.f32.mrb[0].mxu0
    %2541 = vmatprep.mubr.bf16.mxu0 0
    %2542 = vmatmul.mubr.bf16.gmra.mrb[0].mxu0 %v2205
    %v2543 = vpop.f32.mrb[0].mxu0
    %v2544 = vadd.f32 %v2184, %v2543
    %v2545 = vpop.f32.mrb[0].mxu0
    %v2546 = vpop.f32.mrb[0].mxu0
    %v2547 = vadd.f32 %v2189, %v2546
    %v2548 = vpop.f32.mrb[0].mxu0
    %2549 = vdwg.mxu0
    %2550 = vmatprep.subr.bf16.mxu0 0
    %2551 = vmatpush1.bf16.msra.mxu0 %v2169
    %2552 = vmatprep.subr.bf16.mxu0 0
    %2553 = vmatpush1.bf16.msra.mxu0 %v2170
    %2554 = vmatprep.subr.bf16.mxu0 0
    %2555 = vmatpush1.bf16.msra.mxu0 0
    %2556 = vmatprep.subr.bf16.mxu0 0
    %2557 = vmatpush1.bf16.msra.mxu0 0
    %2558 = vmatprep.subr.bf16.mxu0 0
    %2559 = vmatpush1.bf16.msra.mxu0 0
    %2560 = vmatprep.subr.bf16.mxu0 0
    %2561 = vmatpush1.bf16.msra.mxu0 0
    %2562 = vmatprep.subr.bf16.mxu0 0
    %2563 = vmatpush1.bf16.msra.mxu0 0
    %2564 = vmatprep.subr.bf16.mxu0 0
    %2565 = vmatpush1.bf16.msra.mxu0 0
    %2566 = vmatprep.subr.bf16.mxu0 0
    %2567 = vmatpush1.bf16.msra.mxu0 0
    %2568 = vmatprep.subr.bf16.mxu0 0
    %2569 = vmatpush1.bf16.msra.mxu0 0
    %2570 = vmatprep.subr.bf16.mxu0 0
    %2571 = vmatpush1.bf16.msra.mxu0 0
    %2572 = vmatprep.subr.bf16.mxu0 0
    %2573 = vmatpush1.bf16.msra.mxu0 0
    %2574 = vmatprep.subr.bf16.mxu0 0
    %2575 = vmatpush1.bf16.msra.mxu0 0
    %2576 = vmatprep.subr.bf16.mxu0 0
    %2577 = vmatpush1.bf16.msra.mxu0 0
    %2578 = vmatprep.subr.bf16.mxu0 0
    %2579 = vmatpush1.bf16.msra.mxu0 0
    %2580 = vmatprep.subr.bf16.mxu0 0
    %2581 = vmatpush1.bf16.msra.mxu0 0
    %2582 = vmatprep.mubr.bf16.mxu0 0
    %2583 = vmatmul.mubr.bf16.gmra.mrb[0].mxu0 %v2202
    %v2584 = vpop.f32.mrb[0].mxu0
    %v2585 = vadd.f32 %v2174, %v2584
    %v2586 = vpop.f32.mrb[0].mxu0
    %v2587 = vpop.f32.mrb[0].mxu0
    %v2588 = vadd.f32 %v2179, %v2587
    %v2589 = vpop.f32.mrb[0].mxu0
    %2590 = vmatprep.mubr.bf16.mxu0 0
    %2591 = vmatmul.mubr.bf16.gmra.mrb[0].mxu0 %v2205
    %v2592 = vpop.f32.mrb[0].mxu0
    %v2593 = vadd.f32 %v2184, %v2592
    %v2594 = vpop.f32.mrb[0].mxu0
    %v2595 = vpop.f32.mrb[0].mxu0
    %v2596 = vadd.f32 %v2189, %v2595
    %v2597 = vpop.f32.mrb[0].mxu0
    %2598 = vdwg.mxu0
    %v2603 = vunpack.c.l.b16 %v2147
    %v2604 = vunpack.c.l.b16 %v2148
    %v2605 = vunpack.c.l.b16 %v2149
    %v2606 = vunpack.c.l.b16 %v2150
    %v2607 = vpack.c.b16 %v2604, %v2603
    %v2608 = vpack.c.b16 %v2606, %v2605
    %v2610 = vsel %vm1940, %v2607, 0
    %v2613 = vsel %vm1940, %v2608, 0
    %2615 = vmatprep.subr.bf16.mxu0 0
    %2616 = vmatpush1.bf16.msra.mxu0 %v2157
    %2617 = vmatprep.subr.bf16.mxu0 0
    %2618 = vmatpush1.bf16.msra.mxu0 %v2158
    %2619 = vmatprep.subr.bf16.mxu0 0
    %2620 = vmatpush1.bf16.msra.mxu0 %v2155
    %2621 = vmatprep.subr.bf16.mxu0 0
    %2622 = vmatpush1.bf16.msra.mxu0 %v2156
    %2623 = vmatprep.subr.bf16.mxu0 0
    %2624 = vmatpush1.bf16.msra.mxu0 0
    %2625 = vmatprep.subr.bf16.mxu0 0
    %2626 = vmatpush1.bf16.msra.mxu0 0
    %2627 = vmatprep.subr.bf16.mxu0 0
    %2628 = vmatpush1.bf16.msra.mxu0 0
    %2629 = vmatprep.subr.bf16.mxu0 0
    %2630 = vmatpush1.bf16.msra.mxu0 0
    %2631 = vmatprep.subr.bf16.mxu0 0
    %2632 = vmatpush1.bf16.msra.mxu0 0
    %2633 = vmatprep.subr.bf16.mxu0 0
    %2634 = vmatpush1.bf16.msra.mxu0 0
    %2635 = vmatprep.subr.bf16.mxu0 0
    %2636 = vmatpush1.bf16.msra.mxu0 0
    %2637 = vmatprep.subr.bf16.mxu0 0
    %2638 = vmatpush1.bf16.msra.mxu0 0
    %2639 = vmatprep.subr.bf16.mxu0 0
    %2640 = vmatpush1.bf16.msra.mxu0 0
    %2641 = vmatprep.subr.bf16.mxu0 0
    %2642 = vmatpush1.bf16.msra.mxu0 0
    %2643 = vmatprep.subr.bf16.mxu0 0
    %2644 = vmatpush1.bf16.msra.mxu0 0
    %2645 = vmatprep.subr.bf16.mxu0 0
    %2646 = vmatpush1.bf16.msra.mxu0 0
    %2647 = vmatprep.mubr.bf16.mxu0 0
    %2648 = vmatmul.mubr.bf16.gmra.mrb[0].mxu0 %v2610
    %v2649 = vpop.f32.mrb[0].mxu0
    %v2650 = vadd.f32 %v2174, %v2649
    %v2651 = vpop.f32.mrb[0].mxu0
    %v2652 = vpop.f32.mrb[0].mxu0
    %v2653 = vadd.f32 %v2179, %v2652
    %v2654 = vpop.f32.mrb[0].mxu0
    %2655 = vmatprep.mubr.bf16.mxu0 0
    %2656 = vmatmul.mubr.bf16.gmra.mrb[0].mxu0 %v2613
    %v2657 = vpop.f32.mrb[0].mxu0
    %v2658 = vadd.f32 %v2184, %v2657
    %v2659 = vpop.f32.mrb[0].mxu0
    %v2660 = vpop.f32.mrb[0].mxu0
    %v2661 = vadd.f32 %v2189, %v2660
    %v2662 = vpop.f32.mrb[0].mxu0
    %2663 = vdwg.mxu0
    %2664 = vmatprep.subr.bf16.mxu0 0
    %2665 = vmatpush1.bf16.msra.mxu0 %v2159
    %2666 = vmatprep.subr.bf16.mxu0 0
    %2667 = vmatpush1.bf16.msra.mxu0 %v2160
    %2668 = vmatprep.subr.bf16.mxu0 0
    %2669 = vmatpush1.bf16.msra.mxu0 %v2157
    %2670 = vmatprep.subr.bf16.mxu0 0
    %2671 = vmatpush1.bf16.msra.mxu0 %v2158
    %2672 = vmatprep.subr.bf16.mxu0 0
    %2673 = vmatpush1.bf16.msra.mxu0 0
    %2674 = vmatprep.subr.bf16.mxu0 0
    %2675 = vmatpush1.bf16.msra.mxu0 0
    %2676 = vmatprep.subr.bf16.mxu0 0
    %2677 = vmatpush1.bf16.msra.mxu0 0
    %2678 = vmatprep.subr.bf16.mxu0 0
    %2679 = vmatpush1.bf16.msra.mxu0 0
    %2680 = vmatprep.subr.bf16.mxu0 0
    %2681 = vmatpush1.bf16.msra.mxu0 0
    %2682 = vmatprep.subr.bf16.mxu0 0
    %2683 = vmatpush1.bf16.msra.mxu0 0
    %2684 = vmatprep.subr.bf16.mxu0 0
    %2685 = vmatpush1.bf16.msra.mxu0 0
    %2686 = vmatprep.subr.bf16.mxu0 0
    %2687 = vmatpush1.bf16.msra.mxu0 0
    %2688 = vmatprep.subr.bf16.mxu0 0
    %2689 = vmatpush1.bf16.msra.mxu0 0
    %2690 = vmatprep.subr.bf16.mxu0 0
    %2691 = vmatpush1.bf16.msra.mxu0 0
    %2692 = vmatprep.subr.bf16.mxu0 0
    %2693 = vmatpush1.bf16.msra.mxu0 0
    %2694 = vmatprep.subr.bf16.mxu0 0
    %2695 = vmatpush1.bf16.msra.mxu0 0
    %2696 = vmatprep.mubr.bf16.mxu0 0
    %2697 = vmatmul.mubr.bf16.gmra.mrb[0].mxu0 %v2610
    %v2698 = vpop.f32.mrb[0].mxu0
    %v2699 = vadd.f32 %v2174, %v2698
    %v2700 = vpop.f32.mrb[0].mxu0
    %v2701 = vpop.f32.mrb[0].mxu0
    %v2702 = vadd.f32 %v2179, %v2701
    %v2703 = vpop.f32.mrb[0].mxu0
    %2704 = vmatprep.mubr.bf16.mxu0 0
    %2705 = vmatmul.mubr.bf16.gmra.mrb[0].mxu0 %v2613
    %v2706 = vpop.f32.mrb[0].mxu0
    %v2707 = vadd.f32 %v2184, %v2706
    %v2708 = vpop.f32.mrb[0].mxu0
    %v2709 = vpop.f32.mrb[0].mxu0
    %v2710 = vadd.f32 %v2189, %v2709
    %v2711 = vpop.f32.mrb[0].mxu0
    %2712 = vdwg.mxu0
    %2713 = vmatprep.subr.bf16.mxu0 0
    %2714 = vmatpush1.bf16.msra.mxu0 %v2161
    %2715 = vmatprep.subr.bf16.mxu0 0
    %2716 = vmatpush1.bf16.msra.mxu0 %v2162
    %2717 = vmatprep.subr.bf16.mxu0 0
    %2718 = vmatpush1.bf16.msra.mxu0 %v2159
    %2719 = vmatprep.subr.bf16.mxu0 0
    %2720 = vmatpush1.bf16.msra.mxu0 %v2160
    %2721 = vmatprep.subr.bf16.mxu0 0
    %2722 = vmatpush1.bf16.msra.mxu0 0
    %2723 = vmatprep.subr.bf16.mxu0 0
    %2724 = vmatpush1.bf16.msra.mxu0 0
    %2725 = vmatprep.subr.bf16.mxu0 0
    %2726 = vmatpush1.bf16.msra.mxu0 0
    %2727 = vmatprep.subr.bf16.mxu0 0
    %2728 = vmatpush1.bf16.msra.mxu0 0
    %2729 = vmatprep.subr.bf16.mxu0 0
    %2730 = vmatpush1.bf16.msra.mxu0 0
    %2731 = vmatprep.subr.bf16.mxu0 0
    %2732 = vmatpush1.bf16.msra.mxu0 0
    %2733 = vmatprep.subr.bf16.mxu0 0
    %2734 = vmatpush1.bf16.msra.mxu0 0
    %2735 = vmatprep.subr.bf16.mxu0 0
    %2736 = vmatpush1.bf16.msra.mxu0 0
    %2737 = vmatprep.subr.bf16.mxu0 0
    %2738 = vmatpush1.bf16.msra.mxu0 0
    %2739 = vmatprep.subr.bf16.mxu0 0
    %2740 = vmatpush1.bf16.msra.mxu0 0
    %2741 = vmatprep.subr.bf16.mxu0 0
    %2742 = vmatpush1.bf16.msra.mxu0 0
    %2743 = vmatprep.subr.bf16.mxu0 0
    %2744 = vmatpush1.bf16.msra.mxu0 0
    %2745 = vmatprep.mubr.bf16.mxu0 0
    %2746 = vmatmul.mubr.bf16.gmra.mrb[0].mxu0 %v2610
    %v2747 = vpop.f32.mrb[0].mxu0
    %v2748 = vadd.f32 %v2174, %v2747
    %v2749 = vpop.f32.mrb[0].mxu0
    %v2750 = vpop.f32.mrb[0].mxu0
    %v2751 = vadd.f32 %v2179, %v2750
    %v2752 = vpop.f32.mrb[0].mxu0
    %2753 = vmatprep.mubr.bf16.mxu0 0
    %2754 = vmatmul.mubr.bf16.gmra.mrb[0].mxu0 %v2613
    %v2755 = vpop.f32.mrb[0].mxu0
    %v2756 = vadd.f32 %v2184, %v2755
    %v2757 = vpop.f32.mrb[0].mxu0
    %v2758 = vpop.f32.mrb[0].mxu0
    %v2759 = vadd.f32 %v2189, %v2758
    %v2760 = vpop.f32.mrb[0].mxu0
    %2761 = vdwg.mxu0
    %2762 = vmatprep.subr.bf16.mxu0 0
    %2763 = vmatpush1.bf16.msra.mxu0 %v2163
    %2764 = vmatprep.subr.bf16.mxu0 0
    %2765 = vmatpush1.bf16.msra.mxu0 %v2164
    %2766 = vmatprep.subr.bf16.mxu0 0
    %2767 = vmatpush1.bf16.msra.mxu0 %v2161
    %2768 = vmatprep.subr.bf16.mxu0 0
    %2769 = vmatpush1.bf16.msra.mxu0 %v2162
    %2770 = vmatprep.subr.bf16.mxu0 0
    %2771 = vmatpush1.bf16.msra.mxu0 0
    %2772 = vmatprep.subr.bf16.mxu0 0
    %2773 = vmatpush1.bf16.msra.mxu0 0
    %2774 = vmatprep.subr.bf16.mxu0 0
    %2775 = vmatpush1.bf16.msra.mxu0 0
    %2776 = vmatprep.subr.bf16.mxu0 0
    %2777 = vmatpush1.bf16.msra.mxu0 0
    %2778 = vmatprep.subr.bf16.mxu0 0
    %2779 = vmatpush1.bf16.msra.mxu0 0
    %2780 = vmatprep.subr.bf16.mxu0 0
    %2781 = vmatpush1.bf16.msra.mxu0 0
    %2782 = vmatprep.subr.bf16.mxu0 0
    %2783 = vmatpush1.bf16.msra.mxu0 0
    %2784 = vmatprep.subr.bf16.mxu0 0
    %2785 = vmatpush1.bf16.msra.mxu0 0
    %2786 = vmatprep.subr.bf16.mxu0 0
    %2787 = vmatpush1.bf16.msra.mxu0 0
    %2788 = vmatprep.subr.bf16.mxu0 0
    %2789 = vmatpush1.bf16.msra.mxu0 0
    %2790 = vmatprep.subr.bf16.mxu0 0
    %2791 = vmatpush1.bf16.msra.mxu0 0
    %2792 = vmatprep.subr.bf16.mxu0 0
    %2793 = vmatpush1.bf16.msra.mxu0 0
    %2794 = vmatprep.mubr.bf16.mxu0 0
    %2795 = vmatmul.mubr.bf16.gmra.mrb[0].mxu0 %v2610
    %v2796 = vpop.f32.mrb[0].mxu0
    %v2797 = vadd.f32 %v2174, %v2796
    %v2798 = vpop.f32.mrb[0].mxu0
    %v2799 = vpop.f32.mrb[0].mxu0
    %v2800 = vadd.f32 %v2179, %v2799
    %v2801 = vpop.f32.mrb[0].mxu0
    %2802 = vmatprep.mubr.bf16.mxu0 0
    %2803 = vmatmul.mubr.bf16.gmra.mrb[0].mxu0 %v2613
    %v2804 = vpop.f32.mrb[0].mxu0
    %v2805 = vadd.f32 %v2184, %v2804
    %v2806 = vpop.f32.mrb[0].mxu0
    %v2807 = vpop.f32.mrb[0].mxu0
    %v2808 = vadd.f32 %v2189, %v2807
    %v2809 = vpop.f32.mrb[0].mxu0
    %2810 = vdwg.mxu0
    %2811 = vmatprep.subr.bf16.mxu0 0
    %2812 = vmatpush1.bf16.msra.mxu0 %v2165
    %2813 = vmatprep.subr.bf16.mxu0 0
    %2814 = vmatpush1.bf16.msra.mxu0 %v2166
    %2815 = vmatprep.subr.bf16.mxu0 0
    %2816 = vmatpush1.bf16.msra.mxu0 %v2163
    %2817 = vmatprep.subr.bf16.mxu0 0
    %2818 = vmatpush1.bf16.msra.mxu0 %v2164
    %2819 = vmatprep.subr.bf16.mxu0 0
    %2820 = vmatpush1.bf16.msra.mxu0 0
    %2821 = vmatprep.subr.bf16.mxu0 0
    %2822 = vmatpush1.bf16.msra.mxu0 0
    %2823 = vmatprep.subr.bf16.mxu0 0
    %2824 = vmatpush1.bf16.msra.mxu0 0
    %2825 = vmatprep.subr.bf16.mxu0 0
    %2826 = vmatpush1.bf16.msra.mxu0 0
    %2827 = vmatprep.subr.bf16.mxu0 0
    %2828 = vmatpush1.bf16.msra.mxu0 0
    %2829 = vmatprep.subr.bf16.mxu0 0
    %2830 = vmatpush1.bf16.msra.mxu0 0
    %2831 = vmatprep.subr.bf16.mxu0 0
    %2832 = vmatpush1.bf16.msra.mxu0 0
    %2833 = vmatprep.subr.bf16.mxu0 0
    %2834 = vmatpush1.bf16.msra.mxu0 0
    %2835 = vmatprep.subr.bf16.mxu0 0
    %2836 = vmatpush1.bf16.msra.mxu0 0
    %2837 = vmatprep.subr.bf16.mxu0 0
    %2838 = vmatpush1.bf16.msra.mxu0 0
    %2839 = vmatprep.subr.bf16.mxu0 0
    %2840 = vmatpush1.bf16.msra.mxu0 0
    %2841 = vmatprep.subr.bf16.mxu0 0
    %2842 = vmatpush1.bf16.msra.mxu0 0
    %2843 = vmatprep.mubr.bf16.mxu0 0
    %2844 = vmatmul.mubr.bf16.gmra.mrb[0].mxu0 %v2610
    %v2845 = vpop.f32.mrb[0].mxu0
    %v2846 = vadd.f32 %v2174, %v2845
    %v2847 = vpop.f32.mrb[0].mxu0
    %v2848 = vpop.f32.mrb[0].mxu0
    %v2849 = vadd.f32 %v2179, %v2848
    %v2850 = vpop.f32.mrb[0].mxu0
    %2851 = vmatprep.mubr.bf16.mxu0 0
    %2852 = vmatmul.mubr.bf16.gmra.mrb[0].mxu0 %v2613
    %v2853 = vpop.f32.mrb[0].mxu0
    %v2854 = vadd.f32 %v2184, %v2853
    %v2855 = vpop.f32.mrb[0].mxu0
    %v2856 = vpop.f32.mrb[0].mxu0
    %v2857 = vadd.f32 %v2189, %v2856
    %v2858 = vpop.f32.mrb[0].mxu0
    %2859 = vdwg.mxu0
    %2860 = vmatprep.subr.bf16.mxu0 0
    %2861 = vmatpush1.bf16.msra.mxu0 %v2167
    %2862 = vmatprep.subr.bf16.mxu0 0
    %2863 = vmatpush1.bf16.msra.mxu0 %v2168
    %2864 = vmatprep.subr.bf16.mxu0 0
    %2865 = vmatpush1.bf16.msra.mxu0 %v2165
    %2866 = vmatprep.subr.bf16.mxu0 0
    %2867 = vmatpush1.bf16.msra.mxu0 %v2166
    %2868 = vmatprep.subr.bf16.mxu0 0
    %2869 = vmatpush1.bf16.msra.mxu0 0
    %2870 = vmatprep.subr.bf16.mxu0 0
    %2871 = vmatpush1.bf16.msra.mxu0 0
    %2872 = vmatprep.subr.bf16.mxu0 0
    %2873 = vmatpush1.bf16.msra.mxu0 0
    %2874 = vmatprep.subr.bf16.mxu0 0
    %2875 = vmatpush1.bf16.msra.mxu0 0
    %2876 = vmatprep.subr.bf16.mxu0 0
    %2877 = vmatpush1.bf16.msra.mxu0 0
    %2878 = vmatprep.subr.bf16.mxu0 0
    %2879 = vmatpush1.bf16.msra.mxu0 0
    %2880 = vmatprep.subr.bf16.mxu0 0
    %2881 = vmatpush1.bf16.msra.mxu0 0
    %2882 = vmatprep.subr.bf16.mxu0 0
    %2883 = vmatpush1.bf16.msra.mxu0 0
    %2884 = vmatprep.subr.bf16.mxu0 0
    %2885 = vmatpush1.bf16.msra.mxu0 0
    %2886 = vmatprep.subr.bf16.mxu0 0
    %2887 = vmatpush1.bf16.msra.mxu0 0
    %2888 = vmatprep.subr.bf16.mxu0 0
    %2889 = vmatpush1.bf16.msra.mxu0 0
    %2890 = vmatprep.subr.bf16.mxu0 0
    %2891 = vmatpush1.bf16.msra.mxu0 0
    %2892 = vmatprep.mubr.bf16.mxu0 0
    %2893 = vmatmul.mubr.bf16.gmra.mrb[0].mxu0 %v2610
    %v2894 = vpop.f32.mrb[0].mxu0
    %v2895 = vadd.f32 %v2174, %v2894
    %v2896 = vpop.f32.mrb[0].mxu0
    %v2897 = vpop.f32.mrb[0].mxu0
    %v2898 = vadd.f32 %v2179, %v2897
    %v2899 = vpop.f32.mrb[0].mxu0
    %2900 = vmatprep.mubr.bf16.mxu0 0
    %2901 = vmatmul.mubr.bf16.gmra.mrb[0].mxu0 %v2613
    %v2902 = vpop.f32.mrb[0].mxu0
    %v2903 = vadd.f32 %v2184, %v2902
    %v2904 = vpop.f32.mrb[0].mxu0
    %v2905 = vpop.f32.mrb[0].mxu0
    %v2906 = vadd.f32 %v2189, %v2905
    %v2907 = vpop.f32.mrb[0].mxu0
    %2908 = vdwg.mxu0
    %2909 = vmatprep.subr.bf16.mxu0 0
    %2910 = vmatpush1.bf16.msra.mxu0 %v2169
    %2911 = vmatprep.subr.bf16.mxu0 0
    %2912 = vmatpush1.bf16.msra.mxu0 %v2170
    %2913 = vmatprep.subr.bf16.mxu0 0
    %2914 = vmatpush1.bf16.msra.mxu0 %v2167
    %2915 = vmatprep.subr.bf16.mxu0 0
    %2916 = vmatpush1.bf16.msra.mxu0 %v2168
    %2917 = vmatprep.subr.bf16.mxu0 0
    %2918 = vmatpush1.bf16.msra.mxu0 0
    %2919 = vmatprep.subr.bf16.mxu0 0
    %2920 = vmatpush1.bf16.msra.mxu0 0
    %2921 = vmatprep.subr.bf16.mxu0 0
    %2922 = vmatpush1.bf16.msra.mxu0 0
    %2923 = vmatprep.subr.bf16.mxu0 0
    %2924 = vmatpush1.bf16.msra.mxu0 0
    %2925 = vmatprep.subr.bf16.mxu0 0
    %2926 = vmatpush1.bf16.msra.mxu0 0
    %2927 = vmatprep.subr.bf16.mxu0 0
    %2928 = vmatpush1.bf16.msra.mxu0 0
    %2929 = vmatprep.subr.bf16.mxu0 0
    %2930 = vmatpush1.bf16.msra.mxu0 0
    %2931 = vmatprep.subr.bf16.mxu0 0
    %2932 = vmatpush1.bf16.msra.mxu0 0
    %2933 = vmatprep.subr.bf16.mxu0 0
    %2934 = vmatpush1.bf16.msra.mxu0 0
    %2935 = vmatprep.subr.bf16.mxu0 0
    %2936 = vmatpush1.bf16.msra.mxu0 0
    %2937 = vmatprep.subr.bf16.mxu0 0
    %2938 = vmatpush1.bf16.msra.mxu0 0
    %2939 = vmatprep.subr.bf16.mxu0 0
    %2940 = vmatpush1.bf16.msra.mxu0 0
    %2941 = vmatprep.mubr.bf16.mxu0 0
    %2942 = vmatmul.mubr.bf16.gmra.mrb[0].mxu0 %v2610
    %v2943 = vpop.f32.mrb[0].mxu0
    %v2944 = vadd.f32 %v2174, %v2943
    %v2945 = vpop.f32.mrb[0].mxu0
    %v2946 = vpop.f32.mrb[0].mxu0
    %v2947 = vadd.f32 %v2179, %v2946
    %v2948 = vpop.f32.mrb[0].mxu0
    %2949 = vmatprep.mubr.bf16.mxu0 0
    %2950 = vmatmul.mubr.bf16.gmra.mrb[0].mxu0 %v2613
    %v2951 = vpop.f32.mrb[0].mxu0
    %v2952 = vadd.f32 %v2184, %v2951
    %v2953 = vpop.f32.mrb[0].mxu0
    %v2954 = vpop.f32.mrb[0].mxu0
    %v2955 = vadd.f32 %v2189, %v2954
    %v2956 = vpop.f32.mrb[0].mxu0
    %2957 = vdwg.mxu0
    %2958 = vmatprep.subr.bf16.mxu0 0
    %2959 = vmatpush1.bf16.msra.mxu0 %v871
    %2960 = vmatprep.subr.bf16.mxu0 0
    %2961 = vmatpush1.bf16.msra.mxu0 %v871
    %2962 = vmatprep.subr.bf16.mxu0 0
    %2963 = vmatpush1.bf16.msra.mxu0 %v2169
    %2964 = vmatprep.subr.bf16.mxu0 0
    %2965 = vmatpush1.bf16.msra.mxu0 %v2170
    %2966 = vmatprep.subr.bf16.mxu0 0
    %2967 = vmatpush1.bf16.msra.mxu0 0
    %2968 = vmatprep.subr.bf16.mxu0 0
    %2969 = vmatpush1.bf16.msra.mxu0 0
    %2970 = vmatprep.subr.bf16.mxu0 0
    %2971 = vmatpush1.bf16.msra.mxu0 0
    %2972 = vmatprep.subr.bf16.mxu0 0
    %2973 = vmatpush1.bf16.msra.mxu0 0
    %2974 = vmatprep.subr.bf16.mxu0 0
    %2975 = vmatpush1.bf16.msra.mxu0 0
    %2976 = vmatprep.subr.bf16.mxu0 0
    %2977 = vmatpush1.bf16.msra.mxu0 0
    %2978 = vmatprep.subr.bf16.mxu0 0
    %2979 = vmatpush1.bf16.msra.mxu0 0
    %2980 = vmatprep.subr.bf16.mxu0 0
    %2981 = vmatpush1.bf16.msra.mxu0 0
    %2982 = vmatprep.subr.bf16.mxu0 0
    %2983 = vmatpush1.bf16.msra.mxu0 0
    %2984 = vmatprep.subr.bf16.mxu0 0
    %2985 = vmatpush1.bf16.msra.mxu0 0
    %2986 = vmatprep.subr.bf16.mxu0 0
    %2987 = vmatpush1.bf16.msra.mxu0 0
    %2988 = vmatprep.subr.bf16.mxu0 0
    %2989 = vmatpush1.bf16.msra.mxu0 0
    %2990 = vmatprep.mubr.bf16.mxu0 0
    %2991 = vmatmul.mubr.bf16.gmra.mrb[0].mxu0 %v2610
    %v2992 = vpop.f32.mrb[0].mxu0
    %v2993 = vadd.f32 %v2174, %v2992
    %v2994 = vpop.f32.mrb[0].mxu0
    %v2995 = vpop.f32.mrb[0].mxu0
    %v2996 = vadd.f32 %v2179, %v2995
    %v2997 = vpop.f32.mrb[0].mxu0
    %2998 = vmatprep.mubr.bf16.mxu0 0
    %2999 = vmatmul.mubr.bf16.gmra.mrb[0].mxu0 %v2613
    %v3000 = vpop.f32.mrb[0].mxu0
    %v3001 = vadd.f32 %v2184, %v3000
    %v3002 = vpop.f32.mrb[0].mxu0
    %v3003 = vpop.f32.mrb[0].mxu0
    %v3004 = vadd.f32 %v2189, %v3003
    %v3005 = vpop.f32.mrb[0].mxu0
    %3006 = vdwg.mxu0
    %v3007 = vld [vmem:[%s13] sm:$0x1]
    %v3008 = vld [vmem:[#allocation2] sm:$0x1]
    %v3009 = vlaneseq
    %v3010 = vshrl.u32 %v3009, 7
    %v3011 = vsub.s32 0, %v3010
    %v3012 = vrot.slane %v3007, %v3011
    %3014 = vbcast.lane.b32.xlu0 %v3012, 256
    %v3015 = vpop.permute.xlu0 %3014
    %s3017 = sor.u32 256, 8
    %3018 = vbcast.lane.b32.xlu0 %v3012, %s3017
    %v3019 = vpop.permute.xlu0 %3018
    %s3021 = sor.u32 256, 16
    %3022 = vbcast.lane.b32.xlu0 %v3012, %s3021
    %v3023 = vpop.permute.xlu0 %3022
    %s3025 = sor.u32 256, 24
    %3026 = vbcast.lane.b32.xlu0 %v3012, %s3025
    %v3027 = vpop.permute.xlu0 %3026
    %s3029 = sor.u32 256, 32
    %3030 = vbcast.lane.b32.xlu0 %v3012, %s3029
    %v3031 = vpop.permute.xlu0 %3030
    %s3033 = sor.u32 256, 40
    %3034 = vbcast.lane.b32.xlu0 %v3012, %s3033
    %v3035 = vpop.permute.xlu0 %3034
    %s3037 = sor.u32 256, 48
    %3038 = vbcast.lane.b32.xlu0 %v3012, %s3037
    %v3039 = vpop.permute.xlu0 %3038
    %s3041 = sor.u32 256, 56
    %3042 = vbcast.lane.b32.xlu0 %v3012, %s3041
    %v3043 = vpop.permute.xlu0 %3042
    %s3045 = sor.u32 256, 64
    %3046 = vbcast.lane.b32.xlu0 %v3012, %s3045
    %v3047 = vpop.permute.xlu0 %3046
    %s3049 = sor.u32 256, 72
    %3050 = vbcast.lane.b32.xlu0 %v3012, %s3049
    %v3051 = vpop.permute.xlu0 %3050
    %s3053 = sor.u32 256, 80
    %3054 = vbcast.lane.b32.xlu0 %v3012, %s3053
    %v3055 = vpop.permute.xlu0 %3054
    %s3057 = sor.u32 256, 88
    %3058 = vbcast.lane.b32.xlu0 %v3012, %s3057
    %v3059 = vpop.permute.xlu0 %3058
    %v3060 = vmul.f32 %v3015, 0.0
    %v3061 = vmul.f32 %v3019, 0.0
    %v3062 = vmul.f32 %v3023, 0.0
    %v3063 = vmul.f32 %v3027, 0.0
    %v3064 = vmul.f32 %v2242, %v3031
    %v3065 = vmul.f32 %v2245, %v3035
    %v3066 = vmul.f32 %v2250, %v3039
    %v3067 = vmul.f32 %v2253, %v3043
    %v3068 = vmul.f32 %v2650, %v3047
    %v3069 = vmul.f32 %v2653, %v3051
    %v3070 = vmul.f32 %v2658, %v3055
    %v3071 = vmul.f32 %v2661, %v3059
    %v3072 = vmul.f32 %v2242, %v3015
    %v3073 = vmul.f32 %v2245, %v3019
    %v3074 = vmul.f32 %v2250, %v3023
    %v3075 = vmul.f32 %v2253, %v3027
    %v3076 = vmul.f32 %v2650, %v3031
    %v3077 = vmul.f32 %v2653, %v3035
    %v3078 = vmul.f32 %v2658, %v3039
    %v3079 = vmul.f32 %v2661, %v3043
    %v3080 = vmul.f32 %v2291, %v3047
    %v3081 = vmul.f32 %v2294, %v3051
    %v3082 = vmul.f32 %v2299, %v3055
    %v3083 = vmul.f32 %v2302, %v3059
    %v3084 = vmul.f32 %v2650, %v3015
    %v3085 = vmul.f32 %v2653, %v3019
    %v3086 = vmul.f32 %v2658, %v3023
    %v3087 = vmul.f32 %v2661, %v3027
    %v3088 = vmul.f32 %v2291, %v3031
    %v3089 = vmul.f32 %v2294, %v3035
    %v3090 = vmul.f32 %v2299, %v3039
    %v3091 = vmul.f32 %v2302, %v3043
    %v3092 = vmul.f32 %v2699, %v3047
    %v3093 = vmul.f32 %v2702, %v3051
    %v3094 = vmul.f32 %v2707, %v3055
    %v3095 = vmul.f32 %v2710, %v3059
    %v3096 = vmul.f32 %v2291, %v3015
    %v3097 = vmul.f32 %v2294, %v3019
    %v3098 = vmul.f32 %v2299, %v3023
    %v3099 = vmul.f32 %v2302, %v3027
    %v3100 = vmul.f32 %v2699, %v3031
    %v3101 = vmul.f32 %v2702, %v3035
    %v3102 = vmul.f32 %v2707, %v3039
    %v3103 = vmul.f32 %v2710, %v3043
    %v3104 = vmul.f32 %v2340, %v3047
    %v3105 = vmul.f32 %v2343, %v3051
    %v3106 = vmul.f32 %v2348, %v3055
    %v3107 = vmul.f32 %v2351, %v3059
    %v3108 = vmul.f32 %v2699, %v3015
    %v3109 = vmul.f32 %v2702, %v3019
    %v3110 = vmul.f32 %v2707, %v3023
    %v3111 = vmul.f32 %v2710, %v3027
    %v3112 = vmul.f32 %v2340, %v3031
    %v3113 = vmul.f32 %v2343, %v3035
    %v3114 = vmul.f32 %v2348, %v3039
    %v3115 = vmul.f32 %v2351, %v3043
    %v3116 = vmul.f32 %v2748, %v3047
    %v3117 = vmul.f32 %v2751, %v3051
    %v3118 = vmul.f32 %v2756, %v3055
    %v3119 = vmul.f32 %v2759, %v3059
    %v3120 = vmul.f32 %v2340, %v3015
    %v3121 = vmul.f32 %v2343, %v3019
    %v3122 = vmul.f32 %v2348, %v3023
    %v3123 = vmul.f32 %v2351, %v3027
    %v3124 = vmul.f32 %v2748, %v3031
    %v3125 = vmul.f32 %v2751, %v3035
    %v3126 = vmul.f32 %v2756, %v3039
    %v3127 = vmul.f32 %v2759, %v3043
    %v3128 = vmul.f32 %v2389, %v3047
    %v3129 = vmul.f32 %v2392, %v3051
    %v3130 = vmul.f32 %v2397, %v3055
    %v3131 = vmul.f32 %v2400, %v3059
    %v3132 = vmul.f32 %v2748, %v3015
    %v3133 = vmul.f32 %v2751, %v3019
    %v3134 = vmul.f32 %v2756, %v3023
    %v3135 = vmul.f32 %v2759, %v3027
    %v3136 = vmul.f32 %v2389, %v3031
    %v3137 = vmul.f32 %v2392, %v3035
    %v3138 = vmul.f32 %v2397, %v3039
    %v3139 = vmul.f32 %v2400, %v3043
    %v3140 = vmul.f32 %v2797, %v3047
    %v3141 = vmul.f32 %v2800, %v3051
    %v3142 = vmul.f32 %v2805, %v3055
    %v3143 = vmul.f32 %v2808, %v3059
    %v3144 = vmul.f32 %v2389, %v3015
    %v3145 = vmul.f32 %v2392, %v3019
    %v3146 = vmul.f32 %v2397, %v3023
    %v3147 = vmul.f32 %v2400, %v3027
    %v3148 = vmul.f32 %v2797, %v3031
    %v3149 = vmul.f32 %v2800, %v3035
    %v3150 = vmul.f32 %v2805, %v3039
    %v3151 = vmul.f32 %v2808, %v3043
    %v3152 = vmul.f32 %v2438, %v3047
    %v3153 = vmul.f32 %v2441, %v3051
    %v3154 = vmul.f32 %v2446, %v3055
    %v3155 = vmul.f32 %v2449, %v3059
    %v3156 = vmul.f32 %v2797, %v3015
    %v3157 = vmul.f32 %v2800, %v3019
    %v3158 = vmul.f32 %v2805, %v3023
    %v3159 = vmul.f32 %v2808, %v3027
    %v3160 = vmul.f32 %v2438, %v3031
    %v3161 = vmul.f32 %v2441, %v3035
    %v3162 = vmul.f32 %v2446, %v3039
    %v3163 = vmul.f32 %v2449, %v3043
    %v3164 = vmul.f32 %v2846, %v3047
    %v3165 = vmul.f32 %v2849, %v3051
    %v3166 = vmul.f32 %v2854, %v3055
    %v3167 = vmul.f32 %v2857, %v3059
    %v3168 = vmul.f32 %v2438, %v3015
    %v3169 = vmul.f32 %v2441, %v3019
    %v3170 = vmul.f32 %v2446, %v3023
    %v3171 = vmul.f32 %v2449, %v3027
    %v3172 = vmul.f32 %v2846, %v3031
    %v3173 = vmul.f32 %v2849, %v3035
    %v3174 = vmul.f32 %v2854, %v3039
    %v3175 = vmul.f32 %v2857, %v3043
    %v3176 = vmul.f32 %v2487, %v3047
    %v3177 = vmul.f32 %v2490, %v3051
    %v3178 = vmul.f32 %v2495, %v3055
    %v3179 = vmul.f32 %v2498, %v3059
    %v3180 = vmul.f32 %v2846, %v3015
    %v3181 = vmul.f32 %v2849, %v3019
    %v3182 = vmul.f32 %v2854, %v3023
    %v3183 = vmul.f32 %v2857, %v3027
    %v3184 = vmul.f32 %v2487, %v3031
    %v3185 = vmul.f32 %v2490, %v3035
    %v3186 = vmul.f32 %v2495, %v3039
    %v3187 = vmul.f32 %v2498, %v3043
    %v3188 = vmul.f32 %v2895, %v3047
    %v3189 = vmul.f32 %v2898, %v3051
    %v3190 = vmul.f32 %v2903, %v3055
    %v3191 = vmul.f32 %v2906, %v3059
    %v3192 = vmul.f32 %v2487, %v3015
    %v3193 = vmul.f32 %v2490, %v3019
    %v3194 = vmul.f32 %v2495, %v3023
    %v3195 = vmul.f32 %v2498, %v3027
    %v3196 = vmul.f32 %v2895, %v3031
    %v3197 = vmul.f32 %v2898, %v3035
    %v3198 = vmul.f32 %v2903, %v3039
    %v3199 = vmul.f32 %v2906, %v3043
    %v3200 = vmul.f32 %v2536, %v3047
    %v3201 = vmul.f32 %v2539, %v3051
    %v3202 = vmul.f32 %v2544, %v3055
    %v3203 = vmul.f32 %v2547, %v3059
    %v3204 = vmul.f32 %v2895, %v3015
    %v3205 = vmul.f32 %v2898, %v3019
    %v3206 = vmul.f32 %v2903, %v3023
    %v3207 = vmul.f32 %v2906, %v3027
    %v3208 = vmul.f32 %v2536, %v3031
    %v3209 = vmul.f32 %v2539, %v3035
    %v3210 = vmul.f32 %v2544, %v3039
    %v3211 = vmul.f32 %v2547, %v3043
    %v3212 = vmul.f32 %v2944, %v3047
    %v3213 = vmul.f32 %v2947, %v3051
    %v3214 = vmul.f32 %v2952, %v3055
    %v3215 = vmul.f32 %v2955, %v3059
    %v3216 = vmul.f32 %v2536, %v3015
    %v3217 = vmul.f32 %v2539, %v3019
    %v3218 = vmul.f32 %v2544, %v3023
    %v3219 = vmul.f32 %v2547, %v3027
    %v3220 = vmul.f32 %v2944, %v3031
    %v3221 = vmul.f32 %v2947, %v3035
    %v3222 = vmul.f32 %v2952, %v3039
    %v3223 = vmul.f32 %v2955, %v3043
    %v3224 = vmul.f32 %v2585, %v3047
    %v3225 = vmul.f32 %v2588, %v3051
    %v3226 = vmul.f32 %v2593, %v3055
    %v3227 = vmul.f32 %v2596, %v3059
    %v3228 = vmul.f32 %v2944, %v3015
    %v3229 = vmul.f32 %v2947, %v3019
    %v3230 = vmul.f32 %v2952, %v3023
    %v3231 = vmul.f32 %v2955, %v3027
    %v3232 = vmul.f32 %v2585, %v3031
    %v3233 = vmul.f32 %v2588, %v3035
    %v3234 = vmul.f32 %v2593, %v3039
    %v3235 = vmul.f32 %v2596, %v3043
    %v3236 = vmul.f32 %v2993, %v3047
    %v3237 = vmul.f32 %v2996, %v3051
    %v3238 = vmul.f32 %v3001, %v3055
    %v3239 = vmul.f32 %v3004, %v3059
    %v3240 = vmul.f32 %v2585, %v3015
    %v3241 = vmul.f32 %v2588, %v3019
    %v3242 = vmul.f32 %v2593, %v3023
    %v3243 = vmul.f32 %v2596, %v3027
    %v3244 = vmul.f32 %v2993, %v3031
    %v3245 = vmul.f32 %v2996, %v3035
    %v3246 = vmul.f32 %v3001, %v3039
    %v3247 = vmul.f32 %v3004, %v3043
    %v3248 = vmul.f32 %v3047, 0.0
    %v3249 = vmul.f32 %v3051, 0.0
    %v3250 = vmul.f32 %v3055, 0.0
    %v3251 = vmul.f32 %v3059, 0.0
    %v3252 = vadd.f32 %v3060, %v3061
    %v3253 = vadd.f32 %v3252, %v3062
    %v3254 = vadd.f32 %v3253, %v3063
    %v3255 = vadd.f32 %v3254, %v3064
    %v3256 = vadd.f32 %v3255, %v3065
    %v3257 = vadd.f32 %v3256, %v3066
    %v3258 = vadd.f32 %v3257, %v3067
    %v3259 = vadd.f32 %v3258, %v3068
    %v3260 = vadd.f32 %v3259, %v3069
    %v3261 = vadd.f32 %v3260, %v3070
    %v3262 = vadd.f32 %v3261, %v3071
    %v3263 = vrot.slane %v3262, 4
    %v3264 = vadd.f32 %v3262, %v3263
    %v3265 = vrot.slane %v3264, 2
    %v3266 = vadd.f32 %v3264, %v3265
    %v3267 = vrot.slane %v3266, 1
    %v3268 = vadd.f32 %v3266, %v3267
    %v3269 = vadd.f32 %v3072, %v3073
    %v3270 = vadd.f32 %v3269, %v3074
    %v3271 = vadd.f32 %v3270, %v3075
    %v3272 = vadd.f32 %v3271, %v3076
    %v3273 = vadd.f32 %v3272, %v3077
    %v3274 = vadd.f32 %v3273, %v3078
    %v3275 = vadd.f32 %v3274, %v3079
    %v3276 = vadd.f32 %v3275, %v3080
    %v3277 = vadd.f32 %v3276, %v3081
    %v3278 = vadd.f32 %v3277, %v3082
    %v3279 = vadd.f32 %v3278, %v3083
    %v3280 = vrot.slane %v3279, 4
    %v3281 = vadd.f32 %v3279, %v3280
    %v3282 = vrot.slane %v3281, 2
    %v3283 = vadd.f32 %v3281, %v3282
    %v3284 = vrot.slane %v3283, 1
    %v3285 = vadd.f32 %v3283, %v3284
    %v3286 = vadd.f32 %v3084, %v3085
    %v3287 = vadd.f32 %v3286, %v3086
    %v3288 = vadd.f32 %v3287, %v3087
    %v3289 = vadd.f32 %v3288, %v3088
    %v3290 = vadd.f32 %v3289, %v3089
    %v3291 = vadd.f32 %v3290, %v3090
    %v3292 = vadd.f32 %v3291, %v3091
    %v3293 = vadd.f32 %v3292, %v3092
    %v3294 = vadd.f32 %v3293, %v3093
    %v3295 = vadd.f32 %v3294, %v3094
    %v3296 = vadd.f32 %v3295, %v3095
    %v3297 = vrot.slane %v3296, 4
    %v3298 = vadd.f32 %v3296, %v3297
    %v3299 = vrot.slane %v3298, 2
    %v3300 = vadd.f32 %v3298, %v3299
    %v3301 = vrot.slane %v3300, 1
    %v3302 = vadd.f32 %v3300, %v3301
    %v3303 = vadd.f32 %v3096, %v3097
    %v3304 = vadd.f32 %v3303, %v3098
    %v3305 = vadd.f32 %v3304, %v3099
    %v3306 = vadd.f32 %v3305, %v3100
    %v3307 = vadd.f32 %v3306, %v3101
    %v3308 = vadd.f32 %v3307, %v3102
    %v3309 = vadd.f32 %v3308, %v3103
    %v3310 = vadd.f32 %v3309, %v3104
    %v3311 = vadd.f32 %v3310, %v3105
    %v3312 = vadd.f32 %v3311, %v3106
    %v3313 = vadd.f32 %v3312, %v3107
    %v3314 = vrot.slane %v3313, 4
    %v3315 = vadd.f32 %v3313, %v3314
    %v3316 = vrot.slane %v3315, 2
    %v3317 = vadd.f32 %v3315, %v3316
    %v3318 = vrot.slane %v3317, 1
    %v3319 = vadd.f32 %v3317, %v3318
    %v3320 = vadd.f32 %v3108, %v3109
    %v3321 = vadd.f32 %v3320, %v3110
    %v3322 = vadd.f32 %v3321, %v3111
    %v3323 = vadd.f32 %v3322, %v3112
    %v3324 = vadd.f32 %v3323, %v3113
    %v3325 = vadd.f32 %v3324, %v3114
    %v3326 = vadd.f32 %v3325, %v3115
    %v3327 = vadd.f32 %v3326, %v3116
    %v3328 = vadd.f32 %v3327, %v3117
    %v3329 = vadd.f32 %v3328, %v3118
    %v3330 = vadd.f32 %v3329, %v3119
    %v3331 = vrot.slane %v3330, 4
    %v3332 = vadd.f32 %v3330, %v3331
    %v3333 = vrot.slane %v3332, 2
    %v3334 = vadd.f32 %v3332, %v3333
    %v3335 = vrot.slane %v3334, 1
    %v3336 = vadd.f32 %v3334, %v3335
    %v3337 = vadd.f32 %v3120, %v3121
    %v3338 = vadd.f32 %v3337, %v3122
    %v3339 = vadd.f32 %v3338, %v3123
    %v3340 = vadd.f32 %v3339, %v3124
    %v3341 = vadd.f32 %v3340, %v3125
    %v3342 = vadd.f32 %v3341, %v3126
    %v3343 = vadd.f32 %v3342, %v3127
    %v3344 = vadd.f32 %v3343, %v3128
    %v3345 = vadd.f32 %v3344, %v3129
    %v3346 = vadd.f32 %v3345, %v3130
    %v3347 = vadd.f32 %v3346, %v3131
    %v3348 = vrot.slane %v3347, 4
    %v3349 = vadd.f32 %v3347, %v3348
    %v3350 = vrot.slane %v3349, 2
    %v3351 = vadd.f32 %v3349, %v3350
    %v3352 = vrot.slane %v3351, 1
    %v3353 = vadd.f32 %v3351, %v3352
    %v3354 = vadd.f32 %v3132, %v3133
    %v3355 = vadd.f32 %v3354, %v3134
    %v3356 = vadd.f32 %v3355, %v3135
    %v3357 = vadd.f32 %v3356, %v3136
    %v3358 = vadd.f32 %v3357, %v3137
    %v3359 = vadd.f32 %v3358, %v3138
    %v3360 = vadd.f32 %v3359, %v3139
    %v3361 = vadd.f32 %v3360, %v3140
    %v3362 = vadd.f32 %v3361, %v3141
    %v3363 = vadd.f32 %v3362, %v3142
    %v3364 = vadd.f32 %v3363, %v3143
    %v3365 = vrot.slane %v3364, 4
    %v3366 = vadd.f32 %v3364, %v3365
    %v3367 = vrot.slane %v3366, 2
    %v3368 = vadd.f32 %v3366, %v3367
    %v3369 = vrot.slane %v3368, 1
    %v3370 = vadd.f32 %v3368, %v3369
    %v3371 = vadd.f32 %v3144, %v3145
    %v3372 = vadd.f32 %v3371, %v3146
    %v3373 = vadd.f32 %v3372, %v3147
    %v3374 = vadd.f32 %v3373, %v3148
    %v3375 = vadd.f32 %v3374, %v3149
    %v3376 = vadd.f32 %v3375, %v3150
    %v3377 = vadd.f32 %v3376, %v3151
    %v3378 = vadd.f32 %v3377, %v3152
    %v3379 = vadd.f32 %v3378, %v3153
    %v3380 = vadd.f32 %v3379, %v3154
    %v3381 = vadd.f32 %v3380, %v3155
    %v3382 = vrot.slane %v3381, 4
    %v3383 = vadd.f32 %v3381, %v3382
    %v3384 = vrot.slane %v3383, 2
    %v3385 = vadd.f32 %v3383, %v3384
    %v3386 = vrot.slane %v3385, 1
    %v3387 = vadd.f32 %v3385, %v3386
    %v3388 = vadd.f32 %v3156, %v3157
    %v3389 = vadd.f32 %v3388, %v3158
    %v3390 = vadd.f32 %v3389, %v3159
    %v3391 = vadd.f32 %v3390, %v3160
    %v3392 = vadd.f32 %v3391, %v3161
    %v3393 = vadd.f32 %v3392, %v3162
    %v3394 = vadd.f32 %v3393, %v3163
    %v3395 = vadd.f32 %v3394, %v3164
    %v3396 = vadd.f32 %v3395, %v3165
    %v3397 = vadd.f32 %v3396, %v3166
    %v3398 = vadd.f32 %v3397, %v3167
    %v3399 = vrot.slane %v3398, 4
    %v3400 = vadd.f32 %v3398, %v3399
    %v3401 = vrot.slane %v3400, 2
    %v3402 = vadd.f32 %v3400, %v3401
    %v3403 = vrot.slane %v3402, 1
    %v3404 = vadd.f32 %v3402, %v3403
    %v3405 = vadd.f32 %v3168, %v3169
    %v3406 = vadd.f32 %v3405, %v3170
    %v3407 = vadd.f32 %v3406, %v3171
    %v3408 = vadd.f32 %v3407, %v3172
    %v3409 = vadd.f32 %v3408, %v3173
    %v3410 = vadd.f32 %v3409, %v3174
    %v3411 = vadd.f32 %v3410, %v3175
    %v3412 = vadd.f32 %v3411, %v3176
    %v3413 = vadd.f32 %v3412, %v3177
    %v3414 = vadd.f32 %v3413, %v3178
    %v3415 = vadd.f32 %v3414, %v3179
    %v3416 = vrot.slane %v3415, 4
    %v3417 = vadd.f32 %v3415, %v3416
    %v3418 = vrot.slane %v3417, 2
    %v3419 = vadd.f32 %v3417, %v3418
    %v3420 = vrot.slane %v3419, 1
    %v3421 = vadd.f32 %v3419, %v3420
    %v3422 = vadd.f32 %v3180, %v3181
    %v3423 = vadd.f32 %v3422, %v3182
    %v3424 = vadd.f32 %v3423, %v3183
    %v3425 = vadd.f32 %v3424, %v3184
    %v3426 = vadd.f32 %v3425, %v3185
    %v3427 = vadd.f32 %v3426, %v3186
    %v3428 = vadd.f32 %v3427, %v3187
    %v3429 = vadd.f32 %v3428, %v3188
    %v3430 = vadd.f32 %v3429, %v3189
    %v3431 = vadd.f32 %v3430, %v3190
    %v3432 = vadd.f32 %v3431, %v3191
    %v3433 = vrot.slane %v3432, 4
    %v3434 = vadd.f32 %v3432, %v3433
    %v3435 = vrot.slane %v3434, 2
    %v3436 = vadd.f32 %v3434, %v3435
    %v3437 = vrot.slane %v3436, 1
    %v3438 = vadd.f32 %v3436, %v3437
    %v3439 = vadd.f32 %v3192, %v3193
    %v3440 = vadd.f32 %v3439, %v3194
    %v3441 = vadd.f32 %v3440, %v3195
    %v3442 = vadd.f32 %v3441, %v3196
    %v3443 = vadd.f32 %v3442, %v3197
    %v3444 = vadd.f32 %v3443, %v3198
    %v3445 = vadd.f32 %v3444, %v3199
    %v3446 = vadd.f32 %v3445, %v3200
    %v3447 = vadd.f32 %v3446, %v3201
    %v3448 = vadd.f32 %v3447, %v3202
    %v3449 = vadd.f32 %v3448, %v3203
    %v3450 = vrot.slane %v3449, 4
    %v3451 = vadd.f32 %v3449, %v3450
    %v3452 = vrot.slane %v3451, 2
    %v3453 = vadd.f32 %v3451, %v3452
    %v3454 = vrot.slane %v3453, 1
    %v3455 = vadd.f32 %v3453, %v3454
    %v3456 = vadd.f32 %v3204, %v3205
    %v3457 = vadd.f32 %v3456, %v3206
    %v3458 = vadd.f32 %v3457, %v3207
    %v3459 = vadd.f32 %v3458, %v3208
    %v3460 = vadd.f32 %v3459, %v3209
    %v3461 = vadd.f32 %v3460, %v3210
    %v3462 = vadd.f32 %v3461, %v3211
    %v3463 = vadd.f32 %v3462, %v3212
    %v3464 = vadd.f32 %v3463, %v3213
    %v3465 = vadd.f32 %v3464, %v3214
    %v3466 = vadd.f32 %v3465, %v3215
    %v3467 = vrot.slane %v3466, 4
    %v3468 = vadd.f32 %v3466, %v3467
    %v3469 = vrot.slane %v3468, 2
    %v3470 = vadd.f32 %v3468, %v3469
    %v3471 = vrot.slane %v3470, 1
    %v3472 = vadd.f32 %v3470, %v3471
    %v3473 = vadd.f32 %v3216, %v3217
    %v3474 = vadd.f32 %v3473, %v3218
    %v3475 = vadd.f32 %v3474, %v3219
    %v3476 = vadd.f32 %v3475, %v3220
    %v3477 = vadd.f32 %v3476, %v3221
    %v3478 = vadd.f32 %v3477, %v3222
    %v3479 = vadd.f32 %v3478, %v3223
    %v3480 = vadd.f32 %v3479, %v3224
    %v3481 = vadd.f32 %v3480, %v3225
    %v3482 = vadd.f32 %v3481, %v3226
    %v3483 = vadd.f32 %v3482, %v3227
    %v3484 = vrot.slane %v3483, 4
    %v3485 = vadd.f32 %v3483, %v3484
    %v3486 = vrot.slane %v3485, 2
    %v3487 = vadd.f32 %v3485, %v3486
    %v3488 = vrot.slane %v3487, 1
    %v3489 = vadd.f32 %v3487, %v3488
    %v3490 = vadd.f32 %v3228, %v3229
    %v3491 = vadd.f32 %v3490, %v3230
    %v3492 = vadd.f32 %v3491, %v3231
    %v3493 = vadd.f32 %v3492, %v3232
    %v3494 = vadd.f32 %v3493, %v3233
    %v3495 = vadd.f32 %v3494, %v3234
    %v3496 = vadd.f32 %v3495, %v3235
    %v3497 = vadd.f32 %v3496, %v3236
    %v3498 = vadd.f32 %v3497, %v3237
    %v3499 = vadd.f32 %v3498, %v3238
    %v3500 = vadd.f32 %v3499, %v3239
    %v3501 = vrot.slane %v3500, 4
    %v3502 = vadd.f32 %v3500, %v3501
    %v3503 = vrot.slane %v3502, 2
    %v3504 = vadd.f32 %v3502, %v3503
    %v3505 = vrot.slane %v3504, 1
    %v3506 = vadd.f32 %v3504, %v3505
    %v3507 = vadd.f32 %v3240, %v3241
    %v3508 = vadd.f32 %v3507, %v3242
    %v3509 = vadd.f32 %v3508, %v3243
    %v3510 = vadd.f32 %v3509, %v3244
    %v3511 = vadd.f32 %v3510, %v3245
    %v3512 = vadd.f32 %v3511, %v3246
    %v3513 = vadd.f32 %v3512, %v3247
    %v3514 = vadd.f32 %v3513, %v3248
    %v3515 = vadd.f32 %v3514, %v3249
    %v3516 = vadd.f32 %v3515, %v3250
    %v3517 = vadd.f32 %v3516, %v3251
    %v3518 = vrot.slane %v3517, 4
    %v3519 = vadd.f32 %v3517, %v3518
    %v3520 = vrot.slane %v3519, 2
    %v3521 = vadd.f32 %v3519, %v3520
    %v3522 = vrot.slane %v3521, 1
    %v3523 = vadd.f32 %v3521, %v3522
    %s3524 = vtos %v3008
    %v3525 = vstv %s3524
    %v3526 = vadd.f32 %v3268, %v3525
    %v3527 = vadd.f32 %v3285, %v3525
    %v3528 = vadd.f32 %v3302, %v3525
    %v3529 = vadd.f32 %v3319, %v3525
    %v3530 = vadd.f32 %v3336, %v3525
    %v3531 = vadd.f32 %v3353, %v3525
    %v3532 = vadd.f32 %v3370, %v3525
    %v3533 = vadd.f32 %v3387, %v3525
    %v3534 = vadd.f32 %v3404, %v3525
    %v3535 = vadd.f32 %v3421, %v3525
    %v3536 = vadd.f32 %v3438, %v3525
    %v3537 = vadd.f32 %v3455, %v3525
    %v3538 = vadd.f32 %v3472, %v3525
    %v3539 = vadd.f32 %v3489, %v3525
    %v3540 = vadd.f32 %v3506, %v3525
    %v3541 = vadd.f32 %v3523, %v3525
    %v3542 = vand.u32 2147483647, %v3526
    %v3543 = vand.u32 2147483647, %v3527
    %v3544 = vand.u32 2147483647, %v3528
    %v3545 = vand.u32 2147483647, %v3529
    %v3546 = vand.u32 2147483647, %v3530
    %v3547 = vand.u32 2147483647, %v3531
    %v3548 = vand.u32 2147483647, %v3532
    %v3549 = vand.u32 2147483647, %v3533
    %v3550 = vand.u32 2147483647, %v3534
    %v3551 = vand.u32 2147483647, %v3535
    %v3552 = vand.u32 2147483647, %v3536
    %v3553 = vand.u32 2147483647, %v3537
    %v3554 = vand.u32 2147483647, %v3538
    %v3555 = vand.u32 2147483647, %v3539
    %v3556 = vand.u32 2147483647, %v3540
    %v3557 = vand.u32 2147483647, %v3541
    %v3558 = vsub.f32 0.0, %v3542
    %v3559 = vsub.f32 0.0, %v3543
    %v3560 = vsub.f32 0.0, %v3544
    %v3561 = vsub.f32 0.0, %v3545
    %v3562 = vsub.f32 0.0, %v3546
    %v3563 = vsub.f32 0.0, %v3547
    %v3564 = vsub.f32 0.0, %v3548
    %v3565 = vsub.f32 0.0, %v3549
    %v3566 = vsub.f32 0.0, %v3550
    %v3567 = vsub.f32 0.0, %v3551
    %v3568 = vsub.f32 0.0, %v3552
    %v3569 = vsub.f32 0.0, %v3553
    %v3570 = vsub.f32 0.0, %v3554
    %v3571 = vsub.f32 0.0, %v3555
    %v3572 = vsub.f32 0.0, %v3556
    %v3573 = vsub.f32 0.0, %v3557
    %v3574 = vmul.f32 %v3558, 1.442695
    %v3575 = vpow.pop %v3574
    %v3576 = vmul.f32 %v3559, 1.442695
    %v3577 = vpow.pop %v3576
    %v3578 = vmul.f32 %v3560, 1.442695
    %v3579 = vpow.pop %v3578
    %v3580 = vmul.f32 %v3561, 1.442695
    %v3581 = vpow.pop %v3580
    %v3582 = vmul.f32 %v3562, 1.442695
    %v3583 = vpow.pop %v3582
    %v3584 = vmul.f32 %v3563, 1.442695
    %v3585 = vpow.pop %v3584
    %v3586 = vmul.f32 %v3564, 1.442695
    %v3587 = vpow.pop %v3586
    %v3588 = vmul.f32 %v3565, 1.442695
    %v3589 = vpow.pop %v3588
    %v3590 = vmul.f32 %v3566, 1.442695
    %v3591 = vpow.pop %v3590
    %v3592 = vmul.f32 %v3567, 1.442695
    %v3593 = vpow.pop %v3592
    %v3594 = vmul.f32 %v3568, 1.442695
    %v3595 = vpow.pop %v3594
    %v3596 = vmul.f32 %v3569, 1.442695
    %v3597 = vpow.pop %v3596
    %v3598 = vmul.f32 %v3570, 1.442695
    %v3599 = vpow.pop %v3598
    %v3600 = vmul.f32 %v3571, 1.442695
    %v3601 = vpow.pop %v3600
    %v3602 = vmul.f32 %v3572, 1.442695
    %v3603 = vpow.pop %v3602
    %v3604 = vmul.f32 %v3573, 1.442695
    %v3605 = vpow.pop %v3604
    %vm3606 = vcmp.ge.f32.partialorder %v3526, 0.0
    %vm3607 = vcmp.ge.f32.partialorder %v3527, 0.0
    %vm3608 = vcmp.ge.f32.partialorder %v3528, 0.0
    %vm3609 = vcmp.ge.f32.partialorder %v3529, 0.0
    %vm3610 = vcmp.ge.f32.partialorder %v3530, 0.0
    %vm3611 = vcmp.ge.f32.partialorder %v3531, 0.0
    %vm3612 = vcmp.ge.f32.partialorder %v3532, 0.0
    %vm3613 = vcmp.ge.f32.partialorder %v3533, 0.0
    %vm3614 = vcmp.ge.f32.partialorder %v3534, 0.0
    %vm3615 = vcmp.ge.f32.partialorder %v3535, 0.0
    %vm3616 = vcmp.ge.f32.partialorder %v3536, 0.0
    %vm3617 = vcmp.ge.f32.partialorder %v3537, 0.0
    %vm3618 = vcmp.ge.f32.partialorder %v3538, 0.0
    %vm3619 = vcmp.ge.f32.partialorder %v3539, 0.0
    %vm3620 = vcmp.ge.f32.partialorder %v3540, 0.0
    %vm3621 = vcmp.ge.f32.partialorder %v3541, 0.0
    %v3622 = vsel %vm3606, 1.0, %v3575
    %v3623 = vsel %vm3607, 1.0, %v3577
    %v3624 = vsel %vm3608, 1.0, %v3579
    %v3625 = vsel %vm3609, 1.0, %v3581
    %v3626 = vsel %vm3610, 1.0, %v3583
    %v3627 = vsel %vm3611, 1.0, %v3585
    %v3628 = vsel %vm3612, 1.0, %v3587
    %v3629 = vsel %vm3613, 1.0, %v3589
    %v3630 = vsel %vm3614, 1.0, %v3591
    %v3631 = vsel %vm3615, 1.0, %v3593
    %v3632 = vsel %vm3616, 1.0, %v3595
    %v3633 = vsel %vm3617, 1.0, %v3597
    %v3634 = vsel %vm3618, 1.0, %v3599
    %v3635 = vsel %vm3619, 1.0, %v3601
    %v3636 = vsel %vm3620, 1.0, %v3603
    %v3637 = vsel %vm3621, 1.0, %v3605
    %v3638 = vadd.f32 %v3575, 1.0
    %v3639 = vadd.f32 %v3577, 1.0
    %v3640 = vadd.f32 %v3579, 1.0
    %v3641 = vadd.f32 %v3581, 1.0
    %v3642 = vadd.f32 %v3583, 1.0
    %v3643 = vadd.f32 %v3585, 1.0
    %v3644 = vadd.f32 %v3587, 1.0
    %v3645 = vadd.f32 %v3589, 1.0
    %v3646 = vadd.f32 %v3591, 1.0
    %v3647 = vadd.f32 %v3593, 1.0
    %v3648 = vadd.f32 %v3595, 1.0
    %v3649 = vadd.f32 %v3597, 1.0
    %v3650 = vadd.f32 %v3599, 1.0
    %v3651 = vadd.f32 %v3601, 1.0
    %v3652 = vadd.f32 %v3603, 1.0
    %v3653 = vadd.f32 %v3605, 1.0
    %v3654 = vrcp.pop %v3638
    %v3655 = vmul.f32 %v3622, %v3654
    %v3656 = vrcp.pop %v3639
    %v3657 = vmul.f32 %v3623, %v3656
    %v3658 = vrcp.pop %v3640
    %v3659 = vmul.f32 %v3624, %v3658
    %v3660 = vrcp.pop %v3641
    %v3661 = vmul.f32 %v3625, %v3660
    %v3662 = vrcp.pop %v3642
    %v3663 = vmul.f32 %v3626, %v3662
    %v3664 = vrcp.pop %v3643
    %v3665 = vmul.f32 %v3627, %v3664
    %v3666 = vrcp.pop %v3644
    %v3667 = vmul.f32 %v3628, %v3666
    %v3668 = vrcp.pop %v3645
    %v3669 = vmul.f32 %v3629, %v3668
    %v3670 = vrcp.pop %v3646
    %v3671 = vmul.f32 %v3630, %v3670
    %v3672 = vrcp.pop %v3647
    %v3673 = vmul.f32 %v3631, %v3672
    %v3674 = vrcp.pop %v3648
    %v3675 = vmul.f32 %v3632, %v3674
    %v3676 = vrcp.pop %v3649
    %v3677 = vmul.f32 %v3633, %v3676
    %v3678 = vrcp.pop %v3650
    %v3679 = vmul.f32 %v3634, %v3678
    %v3680 = vrcp.pop %v3651
    %v3681 = vmul.f32 %v3635, %v3680
    %v3682 = vrcp.pop %v3652
    %v3683 = vmul.f32 %v3636, %v3682
    %v3684 = vrcp.pop %v3653
    %v3685 = vmul.f32 %v3637, %v3684
    %v3686 = vlaneseq
    %v3687 = vshrl.u32 %v3686, 7
    %v3688 = vsub.s32 0, %v3687
    %v3689 = vrot.slane %v3655, %v3688
    %v3690 = vlaneseq
    %v3691 = vshrl.u32 %v3690, 7
    %v3692 = vsub.s32 0, %v3691
    %v3693 = vrot.slane %v3657, %v3692
    %v3694 = vlaneseq
    %v3695 = vshrl.u32 %v3694, 7
    %v3696 = vsub.s32 0, %v3695
    %v3697 = vrot.slane %v3659, %v3696
    %v3698 = vlaneseq
    %v3699 = vshrl.u32 %v3698, 7
    %v3700 = vsub.s32 0, %v3699
    %v3701 = vrot.slane %v3661, %v3700
    %v3702 = vlaneseq
    %v3703 = vshrl.u32 %v3702, 7
    %v3704 = vsub.s32 0, %v3703
    %v3705 = vrot.slane %v3663, %v3704
    %v3706 = vlaneseq
    %v3707 = vshrl.u32 %v3706, 7
    %v3708 = vsub.s32 0, %v3707
    %v3709 = vrot.slane %v3665, %v3708
    %v3710 = vlaneseq
    %v3711 = vshrl.u32 %v3710, 7
    %v3712 = vsub.s32 0, %v3711
    %v3713 = vrot.slane %v3667, %v3712
    %v3714 = vlaneseq
    %v3715 = vshrl.u32 %v3714, 7
    %v3716 = vsub.s32 0, %v3715
    %v3717 = vrot.slane %v3669, %v3716
    %v3718 = vlaneseq
    %v3719 = vshrl.u32 %v3718, 7
    %v3720 = vsub.s32 0, %v3719
    %v3721 = vrot.slane %v3671, %v3720
    %v3722 = vlaneseq
    %v3723 = vshrl.u32 %v3722, 7
    %v3724 = vsub.s32 0, %v3723
    %v3725 = vrot.slane %v3673, %v3724
    %v3726 = vlaneseq
    %v3727 = vshrl.u32 %v3726, 7
    %v3728 = vsub.s32 0, %v3727
    %v3729 = vrot.slane %v3675, %v3728
    %v3730 = vlaneseq
    %v3731 = vshrl.u32 %v3730, 7
    %v3732 = vsub.s32 0, %v3731
    %v3733 = vrot.slane %v3677, %v3732
    %v3734 = vlaneseq
    %v3735 = vshrl.u32 %v3734, 7
    %v3736 = vsub.s32 0, %v3735
    %v3737 = vrot.slane %v3679, %v3736
    %v3738 = vlaneseq
    %v3739 = vshrl.u32 %v3738, 7
    %v3740 = vsub.s32 0, %v3739
    %v3741 = vrot.slane %v3681, %v3740
    %v3742 = vlaneseq
    %v3743 = vshrl.u32 %v3742, 7
    %v3744 = vsub.s32 0, %v3743
    %v3745 = vrot.slane %v3683, %v3744
    %v3746 = vmul.f32 %v3689, %v246
    %v3747 = vmul.f32 %v3689, %v251
    %v3748 = vmul.f32 %v3689, %v256
    %v3749 = vmul.f32 %v3689, %v261
    %v3750 = vmul.f32 %v3693, %v246
    %v3751 = vmul.f32 %v3693, %v251
    %v3752 = vmul.f32 %v3693, %v256
    %v3753 = vmul.f32 %v3693, %v261
    %v3754 = vmul.f32 %v3697, %v246
    %v3755 = vmul.f32 %v3697, %v251
    %v3756 = vmul.f32 %v3697, %v256
    %v3757 = vmul.f32 %v3697, %v261
    %v3758 = vmul.f32 %v3701, %v246
    %v3759 = vmul.f32 %v3701, %v251
    %v3760 = vmul.f32 %v3701, %v256
    %v3761 = vmul.f32 %v3701, %v261
    %v3762 = vmul.f32 %v3705, %v246
    %v3763 = vmul.f32 %v3705, %v251
    %v3764 = vmul.f32 %v3705, %v256
    %v3765 = vmul.f32 %v3705, %v261
    %v3766 = vmul.f32 %v3709, %v246
    %v3767 = vmul.f32 %v3709, %v251
    %v3768 = vmul.f32 %v3709, %v256
    %v3769 = vmul.f32 %v3709, %v261
    %v3770 = vmul.f32 %v3713, %v246
    %v3771 = vmul.f32 %v3713, %v251
    %v3772 = vmul.f32 %v3713, %v256
    %v3773 = vmul.f32 %v3713, %v261
    %v3774 = vmul.f32 %v3717, %v246
    %v3775 = vmul.f32 %v3717, %v251
    %v3776 = vmul.f32 %v3717, %v256
    %v3777 = vmul.f32 %v3717, %v261
    %v3778 = vmul.f32 %v3721, %v246
    %v3779 = vmul.f32 %v3721, %v251
    %v3780 = vmul.f32 %v3721, %v256
    %v3781 = vmul.f32 %v3721, %v261
    %v3782 = vmul.f32 %v3725, %v246
    %v3783 = vmul.f32 %v3725, %v251
    %v3784 = vmul.f32 %v3725, %v256
    %v3785 = vmul.f32 %v3725, %v261
    %v3786 = vmul.f32 %v3729, %v246
    %v3787 = vmul.f32 %v3729, %v251
    %v3788 = vmul.f32 %v3729, %v256
    %v3789 = vmul.f32 %v3729, %v261
    %v3790 = vmul.f32 %v3733, %v246
    %v3791 = vmul.f32 %v3733, %v251
    %v3792 = vmul.f32 %v3733, %v256
    %v3793 = vmul.f32 %v3733, %v261
    %v3794 = vmul.f32 %v3737, %v246
    %v3795 = vmul.f32 %v3737, %v251
    %v3796 = vmul.f32 %v3737, %v256
    %v3797 = vmul.f32 %v3737, %v261
    %v3798 = vmul.f32 %v3741, %v246
    %v3799 = vmul.f32 %v3741, %v251
    %v3800 = vmul.f32 %v3741, %v256
    %v3801 = vmul.f32 %v3741, %v261
    %v3802 = vmul.f32 %v3745, %v246
    %v3803 = vmul.f32 %v3745, %v251
    %v3804 = vmul.f32 %v3745, %v256
    %v3805 = vmul.f32 %v3745, %v261
    %v3806 = vlaneseq
    %v3807 = vshrl.u32 %v3806, 7
    %v3808 = vsub.s32 0, %v3807
    %v3809 = vrot.slane %v3685, %v3808
    %v3810 = vmul.f32 %v3689, %v333
    %v3811 = vmul.f32 %v3689, %v337
    %v3812 = vmul.f32 %v3689, %v341
    %v3813 = vmul.f32 %v3689, %v345
    %v3814 = vmul.f32 %v3693, %v333
    %v3815 = vmul.f32 %v3693, %v337
    %v3816 = vmul.f32 %v3693, %v341
    %v3817 = vmul.f32 %v3693, %v345
    %v3818 = vmul.f32 %v3697, %v333
    %v3819 = vmul.f32 %v3697, %v337
    %v3820 = vmul.f32 %v3697, %v341
    %v3821 = vmul.f32 %v3697, %v345
    %v3822 = vmul.f32 %v3701, %v333
    %v3823 = vmul.f32 %v3701, %v337
    %v3824 = vmul.f32 %v3701, %v341
    %v3825 = vmul.f32 %v3701, %v345
    %v3826 = vmul.f32 %v3705, %v333
    %v3827 = vmul.f32 %v3705, %v337
    %v3828 = vmul.f32 %v3705, %v341
    %v3829 = vmul.f32 %v3705, %v345
    %v3830 = vmul.f32 %v3709, %v333
    %v3831 = vmul.f32 %v3709, %v337
    %v3832 = vmul.f32 %v3709, %v341
    %v3833 = vmul.f32 %v3709, %v345
    %v3834 = vmul.f32 %v3713, %v333
    %v3835 = vmul.f32 %v3713, %v337
    %v3836 = vmul.f32 %v3713, %v341
    %v3837 = vmul.f32 %v3713, %v345
    %v3838 = vmul.f32 %v3717, %v333
    %v3839 = vmul.f32 %v3717, %v337
    %v3840 = vmul.f32 %v3717, %v341
    %v3841 = vmul.f32 %v3717, %v345
    %v3842 = vmul.f32 %v3721, %v333
    %v3843 = vmul.f32 %v3721, %v337
    %v3844 = vmul.f32 %v3721, %v341
    %v3845 = vmul.f32 %v3721, %v345
    %v3846 = vmul.f32 %v3725, %v333
    %v3847 = vmul.f32 %v3725, %v337
    %v3848 = vmul.f32 %v3725, %v341
    %v3849 = vmul.f32 %v3725, %v345
    %v3850 = vmul.f32 %v3729, %v333
    %v3851 = vmul.f32 %v3729, %v337
    %v3852 = vmul.f32 %v3729, %v341
    %v3853 = vmul.f32 %v3729, %v345
    %v3854 = vmul.f32 %v3733, %v333
    %v3855 = vmul.f32 %v3733, %v337
    %v3856 = vmul.f32 %v3733, %v341
    %v3857 = vmul.f32 %v3733, %v345
    %v3858 = vmul.f32 %v3737, %v333
    %v3859 = vmul.f32 %v3737, %v337
    %v3860 = vmul.f32 %v3737, %v341
    %v3861 = vmul.f32 %v3737, %v345
    %v3862 = vmul.f32 %v3741, %v333
    %v3863 = vmul.f32 %v3741, %v337
    %v3864 = vmul.f32 %v3741, %v341
    %v3865 = vmul.f32 %v3741, %v345
    %v3866 = vmul.f32 %v3745, %v333
    %v3867 = vmul.f32 %v3745, %v337
    %v3868 = vmul.f32 %v3745, %v341
    %v3869 = vmul.f32 %v3745, %v345
    %v3870 = vmul.f32 %v3809, %v333
    %v3871 = vmul.f32 %v3809, %v337
    %v3872 = vmul.f32 %v3809, %v341
    %v3873 = vmul.f32 %v3809, %v345
    %v3874 = vadd.f32 %v263, %v3810
    %v3875 = vadd.f32 %v264, %v3811
    %v3876 = vadd.f32 %v265, %v3812
    %v3877 = vadd.f32 %v266, %v3813
    %v3878 = vadd.f32 %v3746, %v3814
    %v3879 = vadd.f32 %v3747, %v3815
    %v3880 = vadd.f32 %v3748, %v3816
    %v3881 = vadd.f32 %v3749, %v3817
    %v3882 = vadd.f32 %v3750, %v3818
    %v3883 = vadd.f32 %v3751, %v3819
    %v3884 = vadd.f32 %v3752, %v3820
    %v3885 = vadd.f32 %v3753, %v3821
    %v3886 = vadd.f32 %v3754, %v3822
    %v3887 = vadd.f32 %v3755, %v3823
    %v3888 = vadd.f32 %v3756, %v3824
    %v3889 = vadd.f32 %v3757, %v3825
    %v3890 = vadd.f32 %v3758, %v3826
    %v3891 = vadd.f32 %v3759, %v3827
    %v3892 = vadd.f32 %v3760, %v3828
    %v3893 = vadd.f32 %v3761, %v3829
    %v3894 = vadd.f32 %v3762, %v3830
    %v3895 = vadd.f32 %v3763, %v3831
    %v3896 = vadd.f32 %v3764, %v3832
    %v3897 = vadd.f32 %v3765, %v3833
    %v3898 = vadd.f32 %v3766, %v3834
    %v3899 = vadd.f32 %v3767, %v3835
    %v3900 = vadd.f32 %v3768, %v3836
    %v3901 = vadd.f32 %v3769, %v3837
    %v3902 = vadd.f32 %v3770, %v3838
    %v3903 = vadd.f32 %v3771, %v3839
    %v3904 = vadd.f32 %v3772, %v3840
    %v3905 = vadd.f32 %v3773, %v3841
    %v3906 = vadd.f32 %v3774, %v3842
    %v3907 = vadd.f32 %v3775, %v3843
    %v3908 = vadd.f32 %v3776, %v3844
    %v3909 = vadd.f32 %v3777, %v3845
    %v3910 = vadd.f32 %v3778, %v3846
    %v3911 = vadd.f32 %v3779, %v3847
    %v3912 = vadd.f32 %v3780, %v3848
    %v3913 = vadd.f32 %v3781, %v3849
    %v3914 = vadd.f32 %v3782, %v3850
    %v3915 = vadd.f32 %v3783, %v3851
    %v3916 = vadd.f32 %v3784, %v3852
    %v3917 = vadd.f32 %v3785, %v3853
    %v3918 = vadd.f32 %v3786, %v3854
    %v3919 = vadd.f32 %v3787, %v3855
    %v3920 = vadd.f32 %v3788, %v3856
    %v3921 = vadd.f32 %v3789, %v3857
    %v3922 = vadd.f32 %v3790, %v3858
    %v3923 = vadd.f32 %v3791, %v3859
    %v3924 = vadd.f32 %v3792, %v3860
    %v3925 = vadd.f32 %v3793, %v3861
    %v3926 = vadd.f32 %v3794, %v3862
    %v3927 = vadd.f32 %v3795, %v3863
    %v3928 = vadd.f32 %v3796, %v3864
    %v3929 = vadd.f32 %v3797, %v3865
    %v3930 = vadd.f32 %v3798, %v3866
    %v3931 = vadd.f32 %v3799, %v3867
    %v3932 = vadd.f32 %v3800, %v3868
    %v3933 = vadd.f32 %v3801, %v3869
    %v3934 = vadd.f32 %v3802, %v3870
    %v3935 = vadd.f32 %v3803, %v3871
    %v3936 = vadd.f32 %v3804, %v3872
    %v3937 = vadd.f32 %v3805, %v3873
    %v3938 = vmul.f32 %v3693, %v477
    %v3939 = vmul.f32 %v3693, %v481
    %v3940 = vmul.f32 %v3693, %v485
    %v3941 = vmul.f32 %v3693, %v489
    %v3942 = vmul.f32 %v3697, %v477
    %v3943 = vmul.f32 %v3697, %v481
    %v3944 = vmul.f32 %v3697, %v485
    %v3945 = vmul.f32 %v3697, %v489
    %v3946 = vmul.f32 %v3701, %v477
    %v3947 = vmul.f32 %v3701, %v481
    %v3948 = vmul.f32 %v3701, %v485
    %v3949 = vmul.f32 %v3701, %v489
    %v3950 = vmul.f32 %v3705, %v477
    %v3951 = vmul.f32 %v3705, %v481
    %v3952 = vmul.f32 %v3705, %v485
    %v3953 = vmul.f32 %v3705, %v489
    %v3954 = vmul.f32 %v3709, %v477
    %v3955 = vmul.f32 %v3709, %v481
    %v3956 = vmul.f32 %v3709, %v485
    %v3957 = vmul.f32 %v3709, %v489
    %v3958 = vmul.f32 %v3713, %v477
    %v3959 = vmul.f32 %v3713, %v481
    %v3960 = vmul.f32 %v3713, %v485
    %v3961 = vmul.f32 %v3713, %v489
    %v3962 = vmul.f32 %v3717, %v477
    %v3963 = vmul.f32 %v3717, %v481
    %v3964 = vmul.f32 %v3717, %v485
    %v3965 = vmul.f32 %v3717, %v489
    %v3966 = vmul.f32 %v3721, %v477
    %v3967 = vmul.f32 %v3721, %v481
    %v3968 = vmul.f32 %v3721, %v485
    %v3969 = vmul.f32 %v3721, %v489
    %v3970 = vmul.f32 %v3725, %v477
    %v3971 = vmul.f32 %v3725, %v481
    %v3972 = vmul.f32 %v3725, %v485
    %v3973 = vmul.f32 %v3725, %v489
    %v3974 = vmul.f32 %v3729, %v477
    %v3975 = vmul.f32 %v3729, %v481
    %v3976 = vmul.f32 %v3729, %v485
    %v3977 = vmul.f32 %v3729, %v489
    %v3978 = vmul.f32 %v3733, %v477
    %v3979 = vmul.f32 %v3733, %v481
    %v3980 = vmul.f32 %v3733, %v485
    %v3981 = vmul.f32 %v3733, %v489
    %v3982 = vmul.f32 %v3737, %v477
    %v3983 = vmul.f32 %v3737, %v481
    %v3984 = vmul.f32 %v3737, %v485
    %v3985 = vmul.f32 %v3737, %v489
    %v3986 = vmul.f32 %v3741, %v477
    %v3987 = vmul.f32 %v3741, %v481
    %v3988 = vmul.f32 %v3741, %v485
    %v3989 = vmul.f32 %v3741, %v489
    %v3990 = vmul.f32 %v3745, %v477
    %v3991 = vmul.f32 %v3745, %v481
    %v3992 = vmul.f32 %v3745, %v485
    %v3993 = vmul.f32 %v3745, %v489
    %v3994 = vmul.f32 %v3809, %v477
    %v3995 = vmul.f32 %v3809, %v481
    %v3996 = vmul.f32 %v3809, %v485
    %v3997 = vmul.f32 %v3809, %v489
    %v3998 = vadd.f32 %v3874, %v3938
    %v3999 = vadd.f32 %v3875, %v3939
    %v4000 = vadd.f32 %v3876, %v3940
    %v4001 = vadd.f32 %v3877, %v3941
    %v4002 = vadd.f32 %v3878, %v3942
    %v4003 = vadd.f32 %v3879, %v3943
    %v4004 = vadd.f32 %v3880, %v3944
    %v4005 = vadd.f32 %v3881, %v3945
    %v4006 = vadd.f32 %v3882, %v3946
    %v4007 = vadd.f32 %v3883, %v3947
    %v4008 = vadd.f32 %v3884, %v3948
    %v4009 = vadd.f32 %v3885, %v3949
    %v4010 = vadd.f32 %v3886, %v3950
    %v4011 = vadd.f32 %v3887, %v3951
    %v4012 = vadd.f32 %v3888, %v3952
    %v4013 = vadd.f32 %v3889, %v3953
    %v4014 = vadd.f32 %v3890, %v3954
    %v4015 = vadd.f32 %v3891, %v3955
    %v4016 = vadd.f32 %v3892, %v3956
    %v4017 = vadd.f32 %v3893, %v3957
    %v4018 = vadd.f32 %v3894, %v3958
    %v4019 = vadd.f32 %v3895, %v3959
    %v4020 = vadd.f32 %v3896, %v3960
    %v4021 = vadd.f32 %v3897, %v3961
    %v4022 = vadd.f32 %v3898, %v3962
    %v4023 = vadd.f32 %v3899, %v3963
    %v4024 = vadd.f32 %v3900, %v3964
    %v4025 = vadd.f32 %v3901, %v3965
    %v4026 = vadd.f32 %v3902, %v3966
    %v4027 = vadd.f32 %v3903, %v3967
    %v4028 = vadd.f32 %v3904, %v3968
    %v4029 = vadd.f32 %v3905, %v3969
    %v4030 = vadd.f32 %v3906, %v3970
    %v4031 = vadd.f32 %v3907, %v3971
    %v4032 = vadd.f32 %v3908, %v3972
    %v4033 = vadd.f32 %v3909, %v3973
    %v4034 = vadd.f32 %v3910, %v3974
    %v4035 = vadd.f32 %v3911, %v3975
    %v4036 = vadd.f32 %v3912, %v3976
    %v4037 = vadd.f32 %v3913, %v3977
    %v4038 = vadd.f32 %v3914, %v3978
    %v4039 = vadd.f32 %v3915, %v3979
    %v4040 = vadd.f32 %v3916, %v3980
    %v4041 = vadd.f32 %v3917, %v3981
    %v4042 = vadd.f32 %v3918, %v3982
    %v4043 = vadd.f32 %v3919, %v3983
    %v4044 = vadd.f32 %v3920, %v3984
    %v4045 = vadd.f32 %v3921, %v3985
    %v4046 = vadd.f32 %v3922, %v3986
    %v4047 = vadd.f32 %v3923, %v3987
    %v4048 = vadd.f32 %v3924, %v3988
    %v4049 = vadd.f32 %v3925, %v3989
    %v4050 = vadd.f32 %v3926, %v3990
    %v4051 = vadd.f32 %v3927, %v3991
    %v4052 = vadd.f32 %v3928, %v3992
    %v4053 = vadd.f32 %v3929, %v3993
    %v4054 = vadd.f32 %v3930, %v3994
    %v4055 = vadd.f32 %v3931, %v3995
    %v4056 = vadd.f32 %v3932, %v3996
    %v4057 = vadd.f32 %v3933, %v3997
    %v4058 = vadd.f32 %v3934, %v551
    %v4059 = vadd.f32 %v3935, %v552
    %v4060 = vadd.f32 %v3936, %v553
    %v4061 = vadd.f32 %v3937, %v554
    %v4062 = vadd.f32 %v3998, %v622
    %v4063 = vadd.f32 %v3999, %v627
    %v4064 = vadd.f32 %v4000, %v632
    %v4065 = vadd.f32 %v4001, %v637
    %v4066 = vadd.f32 %v4002, %v622
    %v4067 = vadd.f32 %v4003, %v627
    %v4068 = vadd.f32 %v4004, %v632
    %v4069 = vadd.f32 %v4005, %v637
    %v4070 = vadd.f32 %v4006, %v622
    %v4071 = vadd.f32 %v4007, %v627
    %v4072 = vadd.f32 %v4008, %v632
    %v4073 = vadd.f32 %v4009, %v637
    %v4074 = vadd.f32 %v4010, %v622
    %v4075 = vadd.f32 %v4011, %v627
    %v4076 = vadd.f32 %v4012, %v632
    %v4077 = vadd.f32 %v4013, %v637
    %v4078 = vadd.f32 %v4014, %v622
    %v4079 = vadd.f32 %v4015, %v627
    %v4080 = vadd.f32 %v4016, %v632
    %v4081 = vadd.f32 %v4017, %v637
    %v4082 = vadd.f32 %v4018, %v622
    %v4083 = vadd.f32 %v4019, %v627
    %v4084 = vadd.f32 %v4020, %v632
    %v4085 = vadd.f32 %v4021, %v637
    %v4086 = vadd.f32 %v4022, %v622
    %v4087 = vadd.f32 %v4023, %v627
    %v4088 = vadd.f32 %v4024, %v632
    %v4089 = vadd.f32 %v4025, %v637
    %v4090 = vadd.f32 %v4026, %v622
    %v4091 = vadd.f32 %v4027, %v627
    %v4092 = vadd.f32 %v4028, %v632
    %v4093 = vadd.f32 %v4029, %v637
    %v4094 = vadd.f32 %v4030, %v622
    %v4095 = vadd.f32 %v4031, %v627
    %v4096 = vadd.f32 %v4032, %v632
    %v4097 = vadd.f32 %v4033, %v637
    %v4098 = vadd.f32 %v4034, %v622
    %v4099 = vadd.f32 %v4035, %v627
    %v4100 = vadd.f32 %v4036, %v632
    %v4101 = vadd.f32 %v4037, %v637
    %v4102 = vadd.f32 %v4038, %v622
    %v4103 = vadd.f32 %v4039, %v627
    %v4104 = vadd.f32 %v4040, %v632
    %v4105 = vadd.f32 %v4041, %v637
    %v4106 = vadd.f32 %v4042, %v622
    %v4107 = vadd.f32 %v4043, %v627
    %v4108 = vadd.f32 %v4044, %v632
    %v4109 = vadd.f32 %v4045, %v637
    %v4110 = vadd.f32 %v4046, %v622
    %v4111 = vadd.f32 %v4047, %v627
    %v4112 = vadd.f32 %v4048, %v632
    %v4113 = vadd.f32 %v4049, %v637
    %v4114 = vadd.f32 %v4050, %v622
    %v4115 = vadd.f32 %v4051, %v627
    %v4116 = vadd.f32 %v4052, %v632
    %v4117 = vadd.f32 %v4053, %v637
    %v4118 = vadd.f32 %v4054, %v622
    %v4119 = vadd.f32 %v4055, %v627
    %v4120 = vadd.f32 %v4056, %v632
    %v4121 = vadd.f32 %v4057, %v637
    %v4122 = vadd.f32 %v4058, %v622
    %v4123 = vadd.f32 %v4059, %v627
    %v4124 = vadd.f32 %v4060, %v632
    %v4125 = vadd.f32 %v4061, %v637
    %v4126 = vmul.f32 %v4062, 0.1
    %v4127 = vmul.f32 %v4063, 0.1
    %v4128 = vmul.f32 %v4064, 0.1
    %v4129 = vmul.f32 %v4065, 0.1
    %v4130 = vmul.f32 %v4066, 0.1
    %v4131 = vmul.f32 %v4067, 0.1
    %v4132 = vmul.f32 %v4068, 0.1
    %v4133 = vmul.f32 %v4069, 0.1
    %v4134 = vmul.f32 %v4070, 0.1
    %v4135 = vmul.f32 %v4071, 0.1
    %v4136 = vmul.f32 %v4072, 0.1
    %v4137 = vmul.f32 %v4073, 0.1
    %v4138 = vmul.f32 %v4074, 0.1
    %v4139 = vmul.f32 %v4075, 0.1
    %v4140 = vmul.f32 %v4076, 0.1
    %v4141 = vmul.f32 %v4077, 0.1
    %v4142 = vmul.f32 %v4078, 0.1
    %v4143 = vmul.f32 %v4079, 0.1
    %v4144 = vmul.f32 %v4080, 0.1
    %v4145 = vmul.f32 %v4081, 0.1
    %v4146 = vmul.f32 %v4082, 0.1
    %v4147 = vmul.f32 %v4083, 0.1
    %v4148 = vmul.f32 %v4084, 0.1
    %v4149 = vmul.f32 %v4085, 0.1
    %v4150 = vmul.f32 %v4086, 0.1
    %v4151 = vmul.f32 %v4087, 0.1
    %v4152 = vmul.f32 %v4088, 0.1
    %v4153 = vmul.f32 %v4089, 0.1
    %v4154 = vmul.f32 %v4090, 0.1
    %v4155 = vmul.f32 %v4091, 0.1
    %v4156 = vmul.f32 %v4092, 0.1
    %v4157 = vmul.f32 %v4093, 0.1
    %v4158 = vmul.f32 %v4094, 0.1
    %v4159 = vmul.f32 %v4095, 0.1
    %v4160 = vmul.f32 %v4096, 0.1
    %v4161 = vmul.f32 %v4097, 0.1
    %v4162 = vmul.f32 %v4098, 0.1
    %v4163 = vmul.f32 %v4099, 0.1
    %v4164 = vmul.f32 %v4100, 0.1
    %v4165 = vmul.f32 %v4101, 0.1
    %v4166 = vmul.f32 %v4102, 0.1
    %v4167 = vmul.f32 %v4103, 0.1
    %v4168 = vmul.f32 %v4104, 0.1
    %v4169 = vmul.f32 %v4105, 0.1
    %v4170 = vmul.f32 %v4106, 0.1
    %v4171 = vmul.f32 %v4107, 0.1
    %v4172 = vmul.f32 %v4108, 0.1
    %v4173 = vmul.f32 %v4109, 0.1
    %v4174 = vmul.f32 %v4110, 0.1
    %v4175 = vmul.f32 %v4111, 0.1
    %v4176 = vmul.f32 %v4112, 0.1
    %v4177 = vmul.f32 %v4113, 0.1
    %v4178 = vmul.f32 %v4114, 0.1
    %v4179 = vmul.f32 %v4115, 0.1
    %v4180 = vmul.f32 %v4116, 0.1
    %v4181 = vmul.f32 %v4117, 0.1
    %v4182 = vmul.f32 %v4118, 0.1
    %v4183 = vmul.f32 %v4119, 0.1
    %v4184 = vmul.f32 %v4120, 0.1
    %v4185 = vmul.f32 %v4121, 0.1
    %v4186 = vmul.f32 %v4122, 0.1
    %v4187 = vmul.f32 %v4123, 0.1
    %v4188 = vmul.f32 %v4124, 0.1
    %v4189 = vmul.f32 %v4125, 0.1
    %v4190 = vmax.f32 %v4062, %v4126
    %v4191 = vmax.f32 %v4063, %v4127
    %v4192 = vmax.f32 %v4064, %v4128
    %v4193 = vmax.f32 %v4065, %v4129
    %v4194 = vmax.f32 %v4066, %v4130
    %v4195 = vmax.f32 %v4067, %v4131
    %v4196 = vmax.f32 %v4068, %v4132
    %v4197 = vmax.f32 %v4069, %v4133
    %v4198 = vmax.f32 %v4070, %v4134
    %v4199 = vmax.f32 %v4071, %v4135
    %v4200 = vmax.f32 %v4072, %v4136
    %v4201 = vmax.f32 %v4073, %v4137
    %v4202 = vmax.f32 %v4074, %v4138
    %v4203 = vmax.f32 %v4075, %v4139
    %v4204 = vmax.f32 %v4076, %v4140
    %v4205 = vmax.f32 %v4077, %v4141
    %v4206 = vmax.f32 %v4078, %v4142
    %v4207 = vmax.f32 %v4079, %v4143
    %v4208 = vmax.f32 %v4080, %v4144
    %v4209 = vmax.f32 %v4081, %v4145
    %v4210 = vmax.f32 %v4082, %v4146
    %v4211 = vmax.f32 %v4083, %v4147
    %v4212 = vmax.f32 %v4084, %v4148
    %v4213 = vmax.f32 %v4085, %v4149
    %v4214 = vmax.f32 %v4086, %v4150
    %v4215 = vmax.f32 %v4087, %v4151
    %v4216 = vmax.f32 %v4088, %v4152
    %v4217 = vmax.f32 %v4089, %v4153
    %v4218 = vmax.f32 %v4090, %v4154
    %v4219 = vmax.f32 %v4091, %v4155
    %v4220 = vmax.f32 %v4092, %v4156
    %v4221 = vmax.f32 %v4093, %v4157
    %v4222 = vmax.f32 %v4094, %v4158
    %v4223 = vmax.f32 %v4095, %v4159
    %v4224 = vmax.f32 %v4096, %v4160
    %v4225 = vmax.f32 %v4097, %v4161
    %v4226 = vmax.f32 %v4098, %v4162
    %v4227 = vmax.f32 %v4099, %v4163
    %v4228 = vmax.f32 %v4100, %v4164
    %v4229 = vmax.f32 %v4101, %v4165
    %v4230 = vmax.f32 %v4102, %v4166
    %v4231 = vmax.f32 %v4103, %v4167
    %v4232 = vmax.f32 %v4104, %v4168
    %v4233 = vmax.f32 %v4105, %v4169
    %v4234 = vmax.f32 %v4106, %v4170
    %v4235 = vmax.f32 %v4107, %v4171
    %v4236 = vmax.f32 %v4108, %v4172
    %v4237 = vmax.f32 %v4109, %v4173
    %v4238 = vmax.f32 %v4110, %v4174
    %v4239 = vmax.f32 %v4111, %v4175
    %v4240 = vmax.f32 %v4112, %v4176
    %v4241 = vmax.f32 %v4113, %v4177
    %v4242 = vmax.f32 %v4114, %v4178
    %v4243 = vmax.f32 %v4115, %v4179
    %v4244 = vmax.f32 %v4116, %v4180
    %v4245 = vmax.f32 %v4117, %v4181
    %v4246 = vmax.f32 %v4118, %v4182
    %v4247 = vmax.f32 %v4119, %v4183
    %v4248 = vmax.f32 %v4120, %v4184
    %v4249 = vmax.f32 %v4121, %v4185
    %v4250 = vmax.f32 %v4122, %v4186
    %v4251 = vmax.f32 %v4123, %v4187
    %v4252 = vmax.f32 %v4124, %v4188
    %v4253 = vmax.f32 %v4125, %v4189
    %v4254 = vmax.f32 %v4190, %v4194
    %v4255 = vmax.f32 %v4191, %v4195
    %v4256 = vmax.f32 %v4192, %v4196
    %v4257 = vmax.f32 %v4193, %v4197
    %v4258 = vmax.f32 %v4198, %v4202
    %v4259 = vmax.f32 %v4199, %v4203
    %v4260 = vmax.f32 %v4200, %v4204
    %v4261 = vmax.f32 %v4201, %v4205
    %v4262 = vmax.f32 %v4206, %v4210
    %v4263 = vmax.f32 %v4207, %v4211
    %v4264 = vmax.f32 %v4208, %v4212
    %v4265 = vmax.f32 %v4209, %v4213
    %v4266 = vmax.f32 %v4214, %v4218
    %v4267 = vmax.f32 %v4215, %v4219
    %v4268 = vmax.f32 %v4216, %v4220
    %v4269 = vmax.f32 %v4217, %v4221
    %v4270 = vmax.f32 %v4222, %v4226
    %v4271 = vmax.f32 %v4223, %v4227
    %v4272 = vmax.f32 %v4224, %v4228
    %v4273 = vmax.f32 %v4225, %v4229
    %v4274 = vmax.f32 %v4230, %v4234
    %v4275 = vmax.f32 %v4231, %v4235
    %v4276 = vmax.f32 %v4232, %v4236
    %v4277 = vmax.f32 %v4233, %v4237
    %v4278 = vmax.f32 %v4238, %v4242
    %v4279 = vmax.f32 %v4239, %v4243
    %v4280 = vmax.f32 %v4240, %v4244
    %v4281 = vmax.f32 %v4241, %v4245
    %v4282 = vmax.f32 %v4246, %v4250
    %v4283 = vmax.f32 %v4247, %v4251
    %v4284 = vmax.f32 %v4248, %v4252
    %v4285 = vmax.f32 %v4249, %v4253
    %v4286 = vpack.c.bf16 %v4255, %v4254
    %v4287 = vpack.c.bf16 %v4257, %v4256
    %v4288 = vpack.c.bf16 %v4259, %v4258
    %v4289 = vpack.c.bf16 %v4261, %v4260
    %v4290 = vpack.c.bf16 %v4263, %v4262
    %v4291 = vpack.c.bf16 %v4265, %v4264
    %v4292 = vpack.c.bf16 %v4267, %v4266
    %v4293 = vpack.c.bf16 %v4269, %v4268
    %v4294 = vpack.c.bf16 %v4271, %v4270
    %v4295 = vpack.c.bf16 %v4273, %v4272
    %v4296 = vpack.c.bf16 %v4275, %v4274
    %v4297 = vpack.c.bf16 %v4277, %v4276
    %v4298 = vpack.c.bf16 %v4279, %v4278
    %v4299 = vpack.c.bf16 %v4281, %v4280
    %v4300 = vpack.c.bf16 %v4283, %v4282
    %v4301 = vpack.c.bf16 %v4285, %v4284
    %4302 = vmatprep.subr.bf16.mxu0 0
    %4303 = vmatpush1.bf16.msra.mxu0 %v871
    %4304 = vmatprep.subr.bf16.mxu0 0
    %4305 = vmatpush1.bf16.msra.mxu0 %v871
    %4306 = vmatprep.subr.bf16.mxu0 0
    %4307 = vmatpush1.bf16.msra.mxu0 %v4286
    %4308 = vmatprep.subr.bf16.mxu0 0
    %4309 = vmatpush1.bf16.msra.mxu0 %v4287
    %4310 = vmatprep.subr.bf16.mxu0 0
    %4311 = vmatpush1.bf16.msra.mxu0 %v4288
    %4312 = vmatprep.subr.bf16.mxu0 0
    %4313 = vmatpush1.bf16.msra.mxu0 %v4289
    %4314 = vmatprep.subr.bf16.mxu0 0
    %4315 = vmatpush1.bf16.msra.mxu0 0
    %4316 = vmatprep.subr.bf16.mxu0 0
    %4317 = vmatpush1.bf16.msra.mxu0 0
    %4318 = vmatprep.subr.bf16.mxu0 0
    %4319 = vmatpush1.bf16.msra.mxu0 0
    %4320 = vmatprep.subr.bf16.mxu0 0
    %4321 = vmatpush1.bf16.msra.mxu0 0
    %4322 = vmatprep.subr.bf16.mxu0 0
    %4323 = vmatpush1.bf16.msra.mxu0 0
    %4324 = vmatprep.subr.bf16.mxu0 0
    %4325 = vmatpush1.bf16.msra.mxu0 0
    %4326 = vmatprep.subr.bf16.mxu0 0
    %4327 = vmatpush1.bf16.msra.mxu0 0
    %4328 = vmatprep.subr.bf16.mxu0 0
    %4329 = vmatpush1.bf16.msra.mxu0 0
    %4330 = vmatprep.subr.bf16.mxu0 0
    %4331 = vmatpush1.bf16.msra.mxu0 0
    %4332 = vmatprep.subr.bf16.mxu0 0
    %4333 = vmatpush1.bf16.msra.mxu0 0
    %4334 = vmatprep.mubr.bf16.mxu0 0
    %4335 = vmatmul.mubr.bf16.gmra.mrb[0].mxu0 %v920
    %v4336 = vpop.f32.mrb[0].mxu0
    %v4337 = vadd.f32 %v891, %v4336
    %v4338 = vpop.f32.mrb[0].mxu0
    %v4339 = vpop.f32.mrb[0].mxu0
    %v4340 = vadd.f32 %v896, %v4339
    %v4341 = vpop.f32.mrb[0].mxu0
    %4342 = vmatprep.mubr.bf16.mxu0 0
    %4343 = vmatmul.mubr.bf16.gmra.mrb[0].mxu0 %v923
    %v4344 = vpop.f32.mrb[0].mxu0
    %v4345 = vadd.f32 %v901, %v4344
    %v4346 = vpop.f32.mrb[0].mxu0
    %v4347 = vpop.f32.mrb[0].mxu0
    %v4348 = vadd.f32 %v906, %v4347
    %v4349 = vpop.f32.mrb[0].mxu0
    %4350 = vdwg.mxu0
    %4351 = vmatprep.subr.bf16.mxu0 0
    %4352 = vmatpush1.bf16.msra.mxu0 %v4286
    %4353 = vmatprep.subr.bf16.mxu0 0
    %4354 = vmatpush1.bf16.msra.mxu0 %v4287
    %4355 = vmatprep.subr.bf16.mxu0 0
    %4356 = vmatpush1.bf16.msra.mxu0 %v4288
    %4357 = vmatprep.subr.bf16.mxu0 0
    %4358 = vmatpush1.bf16.msra.mxu0 %v4289
    %4359 = vmatprep.subr.bf16.mxu0 0
    %4360 = vmatpush1.bf16.msra.mxu0 %v4290
    %4361 = vmatprep.subr.bf16.mxu0 0
    %4362 = vmatpush1.bf16.msra.mxu0 %v4291
    %4363 = vmatprep.subr.bf16.mxu0 0
    %4364 = vmatpush1.bf16.msra.mxu0 0
    %4365 = vmatprep.subr.bf16.mxu0 0
    %4366 = vmatpush1.bf16.msra.mxu0 0
    %4367 = vmatprep.subr.bf16.mxu0 0
    %4368 = vmatpush1.bf16.msra.mxu0 0
    %4369 = vmatprep.subr.bf16.mxu0 0
    %4370 = vmatpush1.bf16.msra.mxu0 0
    %4371 = vmatprep.subr.bf16.mxu0 0
    %4372 = vmatpush1.bf16.msra.mxu0 0
    %4373 = vmatprep.subr.bf16.mxu0 0
    %4374 = vmatpush1.bf16.msra.mxu0 0
    %4375 = vmatprep.subr.bf16.mxu0 0
    %4376 = vmatpush1.bf16.msra.mxu0 0
    %4377 = vmatprep.subr.bf16.mxu0 0
    %4378 = vmatpush1.bf16.msra.mxu0 0
    %4379 = vmatprep.subr.bf16.mxu0 0
    %4380 = vmatpush1.bf16.msra.mxu0 0
    %4381 = vmatprep.subr.bf16.mxu0 0
    %4382 = vmatpush1.bf16.msra.mxu0 0
    %4383 = vmatprep.mubr.bf16.mxu0 0
    %4384 = vmatmul.mubr.bf16.gmra.mrb[0].mxu0 %v920
    %v4385 = vpop.f32.mrb[0].mxu0
    %v4386 = vadd.f32 %v891, %v4385
    %v4387 = vpop.f32.mrb[0].mxu0
    %v4388 = vpop.f32.mrb[0].mxu0
    %v4389 = vadd.f32 %v896, %v4388
    %v4390 = vpop.f32.mrb[0].mxu0
    %4391 = vmatprep.mubr.bf16.mxu0 0
    %4392 = vmatmul.mubr.bf16.gmra.mrb[0].mxu0 %v923
    %v4393 = vpop.f32.mrb[0].mxu0
    %v4394 = vadd.f32 %v901, %v4393
    %v4395 = vpop.f32.mrb[0].mxu0
    %v4396 = vpop.f32.mrb[0].mxu0
    %v4397 = vadd.f32 %v906, %v4396
    %v4398 = vpop.f32.mrb[0].mxu0
    %4399 = vdwg.mxu0
    %4400 = vmatprep.subr.bf16.mxu0 0
    %4401 = vmatpush1.bf16.msra.mxu0 %v4288
    %4402 = vmatprep.subr.bf16.mxu0 0
    %4403 = vmatpush1.bf16.msra.mxu0 %v4289
    %4404 = vmatprep.subr.bf16.mxu0 0
    %4405 = vmatpush1.bf16.msra.mxu0 %v4290
    %4406 = vmatprep.subr.bf16.mxu0 0
    %4407 = vmatpush1.bf16.msra.mxu0 %v4291
    %4408 = vmatprep.subr.bf16.mxu0 0
    %4409 = vmatpush1.bf16.msra.mxu0 %v4292
    %4410 = vmatprep.subr.bf16.mxu0 0
    %4411 = vmatpush1.bf16.msra.mxu0 %v4293
    %4412 = vmatprep.subr.bf16.mxu0 0
    %4413 = vmatpush1.bf16.msra.mxu0 0
    %4414 = vmatprep.subr.bf16.mxu0 0
    %4415 = vmatpush1.bf16.msra.mxu0 0
    %4416 = vmatprep.subr.bf16.mxu0 0
    %4417 = vmatpush1.bf16.msra.mxu0 0
    %4418 = vmatprep.subr.bf16.mxu0 0
    %4419 = vmatpush1.bf16.msra.mxu0 0
    %4420 = vmatprep.subr.bf16.mxu0 0
    %4421 = vmatpush1.bf16.msra.mxu0 0
    %4422 = vmatprep.subr.bf16.mxu0 0
    %4423 = vmatpush1.bf16.msra.mxu0 0
    %4424 = vmatprep.subr.bf16.mxu0 0
    %4425 = vmatpush1.bf16.msra.mxu0 0
    %4426 = vmatprep.subr.bf16.mxu0 0
    %4427 = vmatpush1.bf16.msra.mxu0 0
    %4428 = vmatprep.subr.bf16.mxu0 0
    %4429 = vmatpush1.bf16.msra.mxu0 0
    %4430 = vmatprep.subr.bf16.mxu0 0
    %4431 = vmatpush1.bf16.msra.mxu0 0
    %4432 = vmatprep.mubr.bf16.mxu0 0
    %4433 = vmatmul.mubr.bf16.gmra.mrb[0].mxu0 %v920
    %v4434 = vpop.f32.mrb[0].mxu0
    %v4435 = vadd.f32 %v891, %v4434
    %v4436 = vpop.f32.mrb[0].mxu0
    %v4437 = vpop.f32.mrb[0].mxu0
    %v4438 = vadd.f32 %v896, %v4437
    %v4439 = vpop.f32.mrb[0].mxu0
    %4440 = vmatprep.mubr.bf16.mxu0 0
    %4441 = vmatmul.mubr.bf16.gmra.mrb[0].mxu0 %v923
    %v4442 = vpop.f32.mrb[0].mxu0
    %v4443 = vadd.f32 %v901, %v4442
    %v4444 = vpop.f32.mrb[0].mxu0
    %v4445 = vpop.f32.mrb[0].mxu0
    %v4446 = vadd.f32 %v906, %v4445
    %v4447 = vpop.f32.mrb[0].mxu0
    %4448 = vdwg.mxu0
    %4449 = vmatprep.subr.bf16.mxu0 0
    %4450 = vmatpush1.bf16.msra.mxu0 %v4290
    %4451 = vmatprep.subr.bf16.mxu0 0
    %4452 = vmatpush1.bf16.msra.mxu0 %v4291
    %4453 = vmatprep.subr.bf16.mxu0 0
    %4454 = vmatpush1.bf16.msra.mxu0 %v4292
    %4455 = vmatprep.subr.bf16.mxu0 0
    %4456 = vmatpush1.bf16.msra.mxu0 %v4293
    %4457 = vmatprep.subr.bf16.mxu0 0
    %4458 = vmatpush1.bf16.msra.mxu0 %v4294
    %4459 = vmatprep.subr.bf16.mxu0 0
    %4460 = vmatpush1.bf16.msra.mxu0 %v4295
    %4461 = vmatprep.subr.bf16.mxu0 0
    %4462 = vmatpush1.bf16.msra.mxu0 0
    %4463 = vmatprep.subr.bf16.mxu0 0
    %4464 = vmatpush1.bf16.msra.mxu0 0
    %4465 = vmatprep.subr.bf16.mxu0 0
    %4466 = vmatpush1.bf16.msra.mxu0 0
    %4467 = vmatprep.subr.bf16.mxu0 0
    %4468 = vmatpush1.bf16.msra.mxu0 0
    %4469 = vmatprep.subr.bf16.mxu0 0
    %4470 = vmatpush1.bf16.msra.mxu0 0
    %4471 = vmatprep.subr.bf16.mxu0 0
    %4472 = vmatpush1.bf16.msra.mxu0 0
    %4473 = vmatprep.subr.bf16.mxu0 0
    %4474 = vmatpush1.bf16.msra.mxu0 0
    %4475 = vmatprep.subr.bf16.mxu0 0
    %4476 = vmatpush1.bf16.msra.mxu0 0
    %4477 = vmatprep.subr.bf16.mxu0 0
    %4478 = vmatpush1.bf16.msra.mxu0 0
    %4479 = vmatprep.subr.bf16.mxu0 0
    %4480 = vmatpush1.bf16.msra.mxu0 0
    %4481 = vmatprep.mubr.bf16.mxu0 0
    %4482 = vmatmul.mubr.bf16.gmra.mrb[0].mxu0 %v920
    %v4483 = vpop.f32.mrb[0].mxu0
    %v4484 = vadd.f32 %v891, %v4483
    %v4485 = vpop.f32.mrb[0].mxu0
    %v4486 = vpop.f32.mrb[0].mxu0
    %v4487 = vadd.f32 %v896, %v4486
    %v4488 = vpop.f32.mrb[0].mxu0
    %4489 = vmatprep.mubr.bf16.mxu0 0
    %4490 = vmatmul.mubr.bf16.gmra.mrb[0].mxu0 %v923
    %v4491 = vpop.f32.mrb[0].mxu0
    %v4492 = vadd.f32 %v901, %v4491
    %v4493 = vpop.f32.mrb[0].mxu0
    %v4494 = vpop.f32.mrb[0].mxu0
    %v4495 = vadd.f32 %v906, %v4494
    %v4496 = vpop.f32.mrb[0].mxu0
    %4497 = vdwg.mxu0
    %4498 = vmatprep.subr.bf16.mxu0 0
    %4499 = vmatpush1.bf16.msra.mxu0 %v4292
    %4500 = vmatprep.subr.bf16.mxu0 0
    %4501 = vmatpush1.bf16.msra.mxu0 %v4293
    %4502 = vmatprep.subr.bf16.mxu0 0
    %4503 = vmatpush1.bf16.msra.mxu0 %v4294
    %4504 = vmatprep.subr.bf16.mxu0 0
    %4505 = vmatpush1.bf16.msra.mxu0 %v4295
    %4506 = vmatprep.subr.bf16.mxu0 0
    %4507 = vmatpush1.bf16.msra.mxu0 %v4296
    %4508 = vmatprep.subr.bf16.mxu0 0
    %4509 = vmatpush1.bf16.msra.mxu0 %v4297
    %4510 = vmatprep.subr.bf16.mxu0 0
    %4511 = vmatpush1.bf16.msra.mxu0 0
    %4512 = vmatprep.subr.bf16.mxu0 0
    %4513 = vmatpush1.bf16.msra.mxu0 0
    %4514 = vmatprep.subr.bf16.mxu0 0
    %4515 = vmatpush1.bf16.msra.mxu0 0
    %4516 = vmatprep.subr.bf16.mxu0 0
    %4517 = vmatpush1.bf16.msra.mxu0 0
    %4518 = vmatprep.subr.bf16.mxu0 0
    %4519 = vmatpush1.bf16.msra.mxu0 0
    %4520 = vmatprep.subr.bf16.mxu0 0
    %4521 = vmatpush1.bf16.msra.mxu0 0
    %4522 = vmatprep.subr.bf16.mxu0 0
    %4523 = vmatpush1.bf16.msra.mxu0 0
    %4524 = vmatprep.subr.bf16.mxu0 0
    %4525 = vmatpush1.bf16.msra.mxu0 0
    %4526 = vmatprep.subr.bf16.mxu0 0
    %4527 = vmatpush1.bf16.msra.mxu0 0
    %4528 = vmatprep.subr.bf16.mxu0 0
    %4529 = vmatpush1.bf16.msra.mxu0 0
    %4530 = vmatprep.mubr.bf16.mxu0 0
    %4531 = vmatmul.mubr.bf16.gmra.mrb[0].mxu0 %v920
    %v4532 = vpop.f32.mrb[0].mxu0
    %v4533 = vadd.f32 %v891, %v4532
    %v4534 = vpop.f32.mrb[0].mxu0
    %v4535 = vpop.f32.mrb[0].mxu0
    %v4536 = vadd.f32 %v896, %v4535
    %v4537 = vpop.f32.mrb[0].mxu0
    %4538 = vmatprep.mubr.bf16.mxu0 0
    %4539 = vmatmul.mubr.bf16.gmra.mrb[0].mxu0 %v923
    %v4540 = vpop.f32.mrb[0].mxu0
    %v4541 = vadd.f32 %v901, %v4540
    %v4542 = vpop.f32.mrb[0].mxu0
    %v4543 = vpop.f32.mrb[0].mxu0
    %v4544 = vadd.f32 %v906, %v4543
    %v4545 = vpop.f32.mrb[0].mxu0
    %4546 = vdwg.mxu0
    %4547 = vmatprep.subr.bf16.mxu0 0
    %4548 = vmatpush1.bf16.msra.mxu0 %v4294
    %4549 = vmatprep.subr.bf16.mxu0 0
    %4550 = vmatpush1.bf16.msra.mxu0 %v4295
    %4551 = vmatprep.subr.bf16.mxu0 0
    %4552 = vmatpush1.bf16.msra.mxu0 %v4296
    %4553 = vmatprep.subr.bf16.mxu0 0
    %4554 = vmatpush1.bf16.msra.mxu0 %v4297
    %4555 = vmatprep.subr.bf16.mxu0 0
    %4556 = vmatpush1.bf16.msra.mxu0 %v4298
    %4557 = vmatprep.subr.bf16.mxu0 0
    %4558 = vmatpush1.bf16.msra.mxu0 %v4299
    %4559 = vmatprep.subr.bf16.mxu0 0
    %4560 = vmatpush1.bf16.msra.mxu0 0
    %4561 = vmatprep.subr.bf16.mxu0 0
    %4562 = vmatpush1.bf16.msra.mxu0 0
    %4563 = vmatprep.subr.bf16.mxu0 0
    %4564 = vmatpush1.bf16.msra.mxu0 0
    %4565 = vmatprep.subr.bf16.mxu0 0
    %4566 = vmatpush1.bf16.msra.mxu0 0
    %4567 = vmatprep.subr.bf16.mxu0 0
    %4568 = vmatpush1.bf16.msra.mxu0 0
    %4569 = vmatprep.subr.bf16.mxu0 0
    %4570 = vmatpush1.bf16.msra.mxu0 0
    %4571 = vmatprep.subr.bf16.mxu0 0
    %4572 = vmatpush1.bf16.msra.mxu0 0
    %4573 = vmatprep.subr.bf16.mxu0 0
    %4574 = vmatpush1.bf16.msra.mxu0 0
    %4575 = vmatprep.subr.bf16.mxu0 0
    %4576 = vmatpush1.bf16.msra.mxu0 0
    %4577 = vmatprep.subr.bf16.mxu0 0
    %4578 = vmatpush1.bf16.msra.mxu0 0
    %4579 = vmatprep.mubr.bf16.mxu0 0
    %4580 = vmatmul.mubr.bf16.gmra.mrb[0].mxu0 %v920
    %v4581 = vpop.f32.mrb[0].mxu0
    %v4582 = vadd.f32 %v891, %v4581
    %v4583 = vpop.f32.mrb[0].mxu0
    %v4584 = vpop.f32.mrb[0].mxu0
    %v4585 = vadd.f32 %v896, %v4584
    %v4586 = vpop.f32.mrb[0].mxu0
    %4587 = vmatprep.mubr.bf16.mxu0 0
    %4588 = vmatmul.mubr.bf16.gmra.mrb[0].mxu0 %v923
    %v4589 = vpop.f32.mrb[0].mxu0
    %v4590 = vadd.f32 %v901, %v4589
    %v4591 = vpop.f32.mrb[0].mxu0
    %v4592 = vpop.f32.mrb[0].mxu0
    %v4593 = vadd.f32 %v906, %v4592
    %v4594 = vpop.f32.mrb[0].mxu0
    %4595 = vdwg.mxu0
    %4596 = vmatprep.subr.bf16.mxu0 0
    %4597 = vmatpush1.bf16.msra.mxu0 %v4296
    %4598 = vmatprep.subr.bf16.mxu0 0
    %4599 = vmatpush1.bf16.msra.mxu0 %v4297
    %4600 = vmatprep.subr.bf16.mxu0 0
    %4601 = vmatpush1.bf16.msra.mxu0 %v4298
    %4602 = vmatprep.subr.bf16.mxu0 0
    %4603 = vmatpush1.bf16.msra.mxu0 %v4299
    %4604 = vmatprep.subr.bf16.mxu0 0
    %4605 = vmatpush1.bf16.msra.mxu0 %v4300
    %4606 = vmatprep.subr.bf16.mxu0 0
    %4607 = vmatpush1.bf16.msra.mxu0 %v4301
    %4608 = vmatprep.subr.bf16.mxu0 0
    %4609 = vmatpush1.bf16.msra.mxu0 0
    %4610 = vmatprep.subr.bf16.mxu0 0
    %4611 = vmatpush1.bf16.msra.mxu0 0
    %4612 = vmatprep.subr.bf16.mxu0 0
    %4613 = vmatpush1.bf16.msra.mxu0 0
    %4614 = vmatprep.subr.bf16.mxu0 0
    %4615 = vmatpush1.bf16.msra.mxu0 0
    %4616 = vmatprep.subr.bf16.mxu0 0
    %4617 = vmatpush1.bf16.msra.mxu0 0
    %4618 = vmatprep.subr.bf16.mxu0 0
    %4619 = vmatpush1.bf16.msra.mxu0 0
    %4620 = vmatprep.subr.bf16.mxu0 0
    %4621 = vmatpush1.bf16.msra.mxu0 0
    %4622 = vmatprep.subr.bf16.mxu0 0
    %4623 = vmatpush1.bf16.msra.mxu0 0
    %4624 = vmatprep.subr.bf16.mxu0 0
    %4625 = vmatpush1.bf16.msra.mxu0 0
    %4626 = vmatprep.subr.bf16.mxu0 0
    %4627 = vmatpush1.bf16.msra.mxu0 0
    %4628 = vmatprep.mubr.bf16.mxu0 0
    %4629 = vmatmul.mubr.bf16.gmra.mrb[0].mxu0 %v920
    %v4630 = vpop.f32.mrb[0].mxu0
    %v4631 = vadd.f32 %v891, %v4630
    %v4632 = vpop.f32.mrb[0].mxu0
    %v4633 = vpop.f32.mrb[0].mxu0
    %v4634 = vadd.f32 %v896, %v4633
    %v4635 = vpop.f32.mrb[0].mxu0
    %4636 = vmatprep.mubr.bf16.mxu0 0
    %4637 = vmatmul.mubr.bf16.gmra.mrb[0].mxu0 %v923
    %v4638 = vpop.f32.mrb[0].mxu0
    %v4639 = vadd.f32 %v901, %v4638
    %v4640 = vpop.f32.mrb[0].mxu0
    %v4641 = vpop.f32.mrb[0].mxu0
    %v4642 = vadd.f32 %v906, %v4641
    %v4643 = vpop.f32.mrb[0].mxu0
    %4644 = vdwg.mxu0
    %4645 = vmatprep.subr.bf16.mxu0 0
    %4646 = vmatpush1.bf16.msra.mxu0 %v4298
    %4647 = vmatprep.subr.bf16.mxu0 0
    %4648 = vmatpush1.bf16.msra.mxu0 %v4299
    %4649 = vmatprep.subr.bf16.mxu0 0
    %4650 = vmatpush1.bf16.msra.mxu0 %v4300
    %4651 = vmatprep.subr.bf16.mxu0 0
    %4652 = vmatpush1.bf16.msra.mxu0 %v4301
    %4653 = vmatprep.subr.bf16.mxu0 0
    %4654 = vmatpush1.bf16.msra.mxu0 %v871
    %4655 = vmatprep.subr.bf16.mxu0 0
    %4656 = vmatpush1.bf16.msra.mxu0 %v871
    %4657 = vmatprep.subr.bf16.mxu0 0
    %4658 = vmatpush1.bf16.msra.mxu0 0
    %4659 = vmatprep.subr.bf16.mxu0 0
    %4660 = vmatpush1.bf16.msra.mxu0 0
    %4661 = vmatprep.subr.bf16.mxu0 0
    %4662 = vmatpush1.bf16.msra.mxu0 0
    %4663 = vmatprep.subr.bf16.mxu0 0
    %4664 = vmatpush1.bf16.msra.mxu0 0
    %4665 = vmatprep.subr.bf16.mxu0 0
    %4666 = vmatpush1.bf16.msra.mxu0 0
    %4667 = vmatprep.subr.bf16.mxu0 0
    %4668 = vmatpush1.bf16.msra.mxu0 0
    %4669 = vmatprep.subr.bf16.mxu0 0
    %4670 = vmatpush1.bf16.msra.mxu0 0
    %4671 = vmatprep.subr.bf16.mxu0 0
    %4672 = vmatpush1.bf16.msra.mxu0 0
    %4673 = vmatprep.subr.bf16.mxu0 0
    %4674 = vmatpush1.bf16.msra.mxu0 0
    %4675 = vmatprep.subr.bf16.mxu0 0
    %4676 = vmatpush1.bf16.msra.mxu0 0
    %4677 = vmatprep.mubr.bf16.mxu0 0
    %4678 = vmatmul.mubr.bf16.gmra.mrb[0].mxu0 %v920
    %v4679 = vpop.f32.mrb[0].mxu0
    %v4680 = vadd.f32 %v891, %v4679
    %v4681 = vpop.f32.mrb[0].mxu0
    %v4682 = vpop.f32.mrb[0].mxu0
    %v4683 = vadd.f32 %v896, %v4682
    %v4684 = vpop.f32.mrb[0].mxu0
    %4685 = vmatprep.mubr.bf16.mxu0 0
    %4686 = vmatmul.mubr.bf16.gmra.mrb[0].mxu0 %v923
    %v4687 = vpop.f32.mrb[0].mxu0
    %v4688 = vadd.f32 %v901, %v4687
    %v4689 = vpop.f32.mrb[0].mxu0
    %v4690 = vpop.f32.mrb[0].mxu0
    %v4691 = vadd.f32 %v906, %v4690
    %v4692 = vpop.f32.mrb[0].mxu0
    %4693 = vdwg.mxu0
    %v4694 = vmul.f32 %v4337, 0.1
    %v4695 = vmul.f32 %v4340, 0.1
    %v4696 = vmul.f32 %v4345, 0.1
    %v4697 = vmul.f32 %v4348, 0.1
    %v4698 = vmul.f32 %v4386, 0.1
    %v4699 = vmul.f32 %v4389, 0.1
    %v4700 = vmul.f32 %v4394, 0.1
    %v4701 = vmul.f32 %v4397, 0.1
    %v4702 = vmul.f32 %v4435, 0.1
    %v4703 = vmul.f32 %v4438, 0.1
    %v4704 = vmul.f32 %v4443, 0.1
    %v4705 = vmul.f32 %v4446, 0.1
    %v4706 = vmul.f32 %v4484, 0.1
    %v4707 = vmul.f32 %v4487, 0.1
    %v4708 = vmul.f32 %v4492, 0.1
    %v4709 = vmul.f32 %v4495, 0.1
    %v4710 = vmul.f32 %v4533, 0.1
    %v4711 = vmul.f32 %v4536, 0.1
    %v4712 = vmul.f32 %v4541, 0.1
    %v4713 = vmul.f32 %v4544, 0.1
    %v4714 = vmul.f32 %v4582, 0.1
    %v4715 = vmul.f32 %v4585, 0.1
    %v4716 = vmul.f32 %v4590, 0.1
    %v4717 = vmul.f32 %v4593, 0.1
    %v4718 = vmul.f32 %v4631, 0.1
    %v4719 = vmul.f32 %v4634, 0.1
    %v4720 = vmul.f32 %v4639, 0.1
    %v4721 = vmul.f32 %v4642, 0.1
    %v4722 = vmul.f32 %v4680, 0.1
    %v4723 = vmul.f32 %v4683, 0.1
    %v4724 = vmul.f32 %v4688, 0.1
    %v4725 = vmul.f32 %v4691, 0.1
    %v4726 = vmax.f32 %v4337, %v4694
    %v4727 = vmax.f32 %v4340, %v4695
    %v4728 = vmax.f32 %v4345, %v4696
    %v4729 = vmax.f32 %v4348, %v4697
    %v4730 = vmax.f32 %v4386, %v4698
    %v4731 = vmax.f32 %v4389, %v4699
    %v4732 = vmax.f32 %v4394, %v4700
    %v4733 = vmax.f32 %v4397, %v4701
    %v4734 = vmax.f32 %v4435, %v4702
    %v4735 = vmax.f32 %v4438, %v4703
    %v4736 = vmax.f32 %v4443, %v4704
    %v4737 = vmax.f32 %v4446, %v4705
    %v4738 = vmax.f32 %v4484, %v4706
    %v4739 = vmax.f32 %v4487, %v4707
    %v4740 = vmax.f32 %v4492, %v4708
    %v4741 = vmax.f32 %v4495, %v4709
    %v4742 = vmax.f32 %v4533, %v4710
    %v4743 = vmax.f32 %v4536, %v4711
    %v4744 = vmax.f32 %v4541, %v4712
    %v4745 = vmax.f32 %v4544, %v4713
    %v4746 = vmax.f32 %v4582, %v4714
    %v4747 = vmax.f32 %v4585, %v4715
    %v4748 = vmax.f32 %v4590, %v4716
    %v4749 = vmax.f32 %v4593, %v4717
    %v4750 = vmax.f32 %v4631, %v4718
    %v4751 = vmax.f32 %v4634, %v4719
    %v4752 = vmax.f32 %v4639, %v4720
    %v4753 = vmax.f32 %v4642, %v4721
    %v4754 = vmax.f32 %v4680, %v4722
    %v4755 = vmax.f32 %v4683, %v4723
    %v4756 = vmax.f32 %v4688, %v4724
    %v4757 = vmax.f32 %v4691, %v4725
    %v4758 = vmax.f32 %v4726, %v4730
    %v4759 = vmax.f32 %v4727, %v4731
    %v4760 = vmax.f32 %v4728, %v4732
    %v4761 = vmax.f32 %v4729, %v4733
    %v4762 = vmax.f32 %v4734, %v4738
    %v4763 = vmax.f32 %v4735, %v4739
    %v4764 = vmax.f32 %v4736, %v4740
    %v4765 = vmax.f32 %v4737, %v4741
    %v4766 = vmax.f32 %v4742, %v4746
    %v4767 = vmax.f32 %v4743, %v4747
    %v4768 = vmax.f32 %v4744, %v4748
    %v4769 = vmax.f32 %v4745, %v4749
    %v4770 = vmax.f32 %v4750, %v4754
    %v4771 = vmax.f32 %v4751, %v4755
    %v4772 = vmax.f32 %v4752, %v4756
    %v4773 = vmax.f32 %v4753, %v4757
    %v4774 = vpack.c.bf16 %v4759, %v4758
    %v4775 = vpack.c.bf16 %v4761, %v4760
    %v4776 = vpack.c.bf16 %v4763, %v4762
    %v4777 = vpack.c.bf16 %v4765, %v4764
    %v4778 = vpack.c.bf16 %v4767, %v4766
    %v4779 = vpack.c.bf16 %v4769, %v4768
    %v4780 = vpack.c.bf16 %v4771, %v4770
    %v4781 = vpack.c.bf16 %v4773, %v4772
    %4782 = vmatprep.subr.bf16.mxu0 0
    %4783 = vmatpush1.bf16.msra.mxu0 %v871
    %4784 = vmatprep.subr.bf16.mxu0 0
    %4785 = vmatpush1.bf16.msra.mxu0 %v871
    %4786 = vmatprep.subr.bf16.mxu0 0
    %4787 = vmatpush1.bf16.msra.mxu0 %v4774
    %4788 = vmatprep.subr.bf16.mxu0 0
    %4789 = vmatpush1.bf16.msra.mxu0 %v4775
    %4790 = vmatprep.subr.bf16.mxu0 0
    %4791 = vmatpush1.bf16.msra.mxu0 %v4776
    %4792 = vmatprep.subr.bf16.mxu0 0
    %4793 = vmatpush1.bf16.msra.mxu0 %v4777
    %4794 = vmatprep.subr.bf16.mxu0 0
    %4795 = vmatpush1.bf16.msra.mxu0 0
    %4796 = vmatprep.subr.bf16.mxu0 0
    %4797 = vmatpush1.bf16.msra.mxu0 0
    %4798 = vmatprep.subr.bf16.mxu0 0
    %4799 = vmatpush1.bf16.msra.mxu0 0
    %4800 = vmatprep.subr.bf16.mxu0 0
    %4801 = vmatpush1.bf16.msra.mxu0 0
    %4802 = vmatprep.subr.bf16.mxu0 0
    %4803 = vmatpush1.bf16.msra.mxu0 0
    %4804 = vmatprep.subr.bf16.mxu0 0
    %4805 = vmatpush1.bf16.msra.mxu0 0
    %4806 = vmatprep.subr.bf16.mxu0 0
    %4807 = vmatpush1.bf16.msra.mxu0 0
    %4808 = vmatprep.subr.bf16.mxu0 0
    %4809 = vmatpush1.bf16.msra.mxu0 0
    %4810 = vmatprep.subr.bf16.mxu0 0
    %4811 = vmatpush1.bf16.msra.mxu0 0
    %4812 = vmatprep.subr.bf16.mxu0 0
    %4813 = vmatpush1.bf16.msra.mxu0 0
    %4814 = vmatprep.mubr.bf16.mxu0 0
    %4815 = vmatmul.mubr.bf16.gmra.mrb[0].mxu0 %v1444
    %v4816 = vpop.f32.mrb[0].mxu0
    %v4817 = vadd.f32 %v1416, %v4816
    %v4818 = vpop.f32.mrb[0].mxu0
    %v4819 = vpop.f32.mrb[0].mxu0
    %v4820 = vadd.f32 %v1421, %v4819
    %v4821 = vpop.f32.mrb[0].mxu0
    %4822 = vmatprep.mubr.bf16.mxu0 0
    %4823 = vmatmul.mubr.bf16.gmra.mrb[0].mxu0 %v1447
    %v4824 = vpop.f32.mrb[0].mxu0
    %v4825 = vadd.f32 %v1426, %v4824
    %v4826 = vpop.f32.mrb[0].mxu0
    %v4827 = vpop.f32.mrb[0].mxu0
    %v4828 = vadd.f32 %v1431, %v4827
    %v4829 = vpop.f32.mrb[0].mxu0
    %4830 = vdwg.mxu0
    %4831 = vmatprep.subr.bf16.mxu0 0
    %4832 = vmatpush1.bf16.msra.mxu0 %v4774
    %4833 = vmatprep.subr.bf16.mxu0 0
    %4834 = vmatpush1.bf16.msra.mxu0 %v4775
    %4835 = vmatprep.subr.bf16.mxu0 0
    %4836 = vmatpush1.bf16.msra.mxu0 %v4776
    %4837 = vmatprep.subr.bf16.mxu0 0
    %4838 = vmatpush1.bf16.msra.mxu0 %v4777
    %4839 = vmatprep.subr.bf16.mxu0 0
    %4840 = vmatpush1.bf16.msra.mxu0 %v4778
    %4841 = vmatprep.subr.bf16.mxu0 0
    %4842 = vmatpush1.bf16.msra.mxu0 %v4779
    %4843 = vmatprep.subr.bf16.mxu0 0
    %4844 = vmatpush1.bf16.msra.mxu0 0
    %4845 = vmatprep.subr.bf16.mxu0 0
    %4846 = vmatpush1.bf16.msra.mxu0 0
    %4847 = vmatprep.subr.bf16.mxu0 0
    %4848 = vmatpush1.bf16.msra.mxu0 0
    %4849 = vmatprep.subr.bf16.mxu0 0
    %4850 = vmatpush1.bf16.msra.mxu0 0
    %4851 = vmatprep.subr.bf16.mxu0 0
    %4852 = vmatpush1.bf16.msra.mxu0 0
    %4853 = vmatprep.subr.bf16.mxu0 0
    %4854 = vmatpush1.bf16.msra.mxu0 0
    %4855 = vmatprep.subr.bf16.mxu0 0
    %4856 = vmatpush1.bf16.msra.mxu0 0
    %4857 = vmatprep.subr.bf16.mxu0 0
    %4858 = vmatpush1.bf16.msra.mxu0 0
    %4859 = vmatprep.subr.bf16.mxu0 0
    %4860 = vmatpush1.bf16.msra.mxu0 0
    %4861 = vmatprep.subr.bf16.mxu0 0
    %4862 = vmatpush1.bf16.msra.mxu0 0
    %4863 = vmatprep.mubr.bf16.mxu0 0
    %4864 = vmatmul.mubr.bf16.gmra.mrb[0].mxu0 %v1444
    %v4865 = vpop.f32.mrb[0].mxu0
    %v4866 = vadd.f32 %v1416, %v4865
    %v4867 = vpop.f32.mrb[0].mxu0
    %v4868 = vpop.f32.mrb[0].mxu0
    %v4869 = vadd.f32 %v1421, %v4868
    %v4870 = vpop.f32.mrb[0].mxu0
    %4871 = vmatprep.mubr.bf16.mxu0 0
    %4872 = vmatmul.mubr.bf16.gmra.mrb[0].mxu0 %v1447
    %v4873 = vpop.f32.mrb[0].mxu0
    %v4874 = vadd.f32 %v1426, %v4873
    %v4875 = vpop.f32.mrb[0].mxu0
    %v4876 = vpop.f32.mrb[0].mxu0
    %v4877 = vadd.f32 %v1431, %v4876
    %v4878 = vpop.f32.mrb[0].mxu0
    %4879 = vdwg.mxu0
    %4880 = vmatprep.subr.bf16.mxu0 0
    %4881 = vmatpush1.bf16.msra.mxu0 %v4776
    %4882 = vmatprep.subr.bf16.mxu0 0
    %4883 = vmatpush1.bf16.msra.mxu0 %v4777
    %4884 = vmatprep.subr.bf16.mxu0 0
    %4885 = vmatpush1.bf16.msra.mxu0 %v4778
    %4886 = vmatprep.subr.bf16.mxu0 0
    %4887 = vmatpush1.bf16.msra.mxu0 %v4779
    %4888 = vmatprep.subr.bf16.mxu0 0
    %4889 = vmatpush1.bf16.msra.mxu0 %v4780
    %4890 = vmatprep.subr.bf16.mxu0 0
    %4891 = vmatpush1.bf16.msra.mxu0 %v4781
    %4892 = vmatprep.subr.bf16.mxu0 0
    %4893 = vmatpush1.bf16.msra.mxu0 0
    %4894 = vmatprep.subr.bf16.mxu0 0
    %4895 = vmatpush1.bf16.msra.mxu0 0
    %4896 = vmatprep.subr.bf16.mxu0 0
    %4897 = vmatpush1.bf16.msra.mxu0 0
    %4898 = vmatprep.subr.bf16.mxu0 0
    %4899 = vmatpush1.bf16.msra.mxu0 0
    %4900 = vmatprep.subr.bf16.mxu0 0
    %4901 = vmatpush1.bf16.msra.mxu0 0
    %4902 = vmatprep.subr.bf16.mxu0 0
    %4903 = vmatpush1.bf16.msra.mxu0 0
    %4904 = vmatprep.subr.bf16.mxu0 0
    %4905 = vmatpush1.bf16.msra.mxu0 0
    %4906 = vmatprep.subr.bf16.mxu0 0
    %4907 = vmatpush1.bf16.msra.mxu0 0
    %4908 = vmatprep.subr.bf16.mxu0 0
    %4909 = vmatpush1.bf16.msra.mxu0 0
    %4910 = vmatprep.subr.bf16.mxu0 0
    %4911 = vmatpush1.bf16.msra.mxu0 0
    %4912 = vmatprep.mubr.bf16.mxu0 0
    %4913 = vmatmul.mubr.bf16.gmra.mrb[0].mxu0 %v1444
    %v4914 = vpop.f32.mrb[0].mxu0
    %v4915 = vadd.f32 %v1416, %v4914
    %v4916 = vpop.f32.mrb[0].mxu0
    %v4917 = vpop.f32.mrb[0].mxu0
    %v4918 = vadd.f32 %v1421, %v4917
    %v4919 = vpop.f32.mrb[0].mxu0
    %4920 = vmatprep.mubr.bf16.mxu0 0
    %4921 = vmatmul.mubr.bf16.gmra.mrb[0].mxu0 %v1447
    %v4922 = vpop.f32.mrb[0].mxu0
    %v4923 = vadd.f32 %v1426, %v4922
    %v4924 = vpop.f32.mrb[0].mxu0
    %v4925 = vpop.f32.mrb[0].mxu0
    %v4926 = vadd.f32 %v1431, %v4925
    %v4927 = vpop.f32.mrb[0].mxu0
    %4928 = vdwg.mxu0
    %4929 = vmatprep.subr.bf16.mxu0 0
    %4930 = vmatpush1.bf16.msra.mxu0 %v4778
    %4931 = vmatprep.subr.bf16.mxu0 0
    %4932 = vmatpush1.bf16.msra.mxu0 %v4779
    %4933 = vmatprep.subr.bf16.mxu0 0
    %4934 = vmatpush1.bf16.msra.mxu0 %v4780
    %4935 = vmatprep.subr.bf16.mxu0 0
    %4936 = vmatpush1.bf16.msra.mxu0 %v4781
    %4937 = vmatprep.subr.bf16.mxu0 0
    %4938 = vmatpush1.bf16.msra.mxu0 %v871
    %4939 = vmatprep.subr.bf16.mxu0 0
    %4940 = vmatpush1.bf16.msra.mxu0 %v871
    %4941 = vmatprep.subr.bf16.mxu0 0
    %4942 = vmatpush1.bf16.msra.mxu0 0
    %4943 = vmatprep.subr.bf16.mxu0 0
    %4944 = vmatpush1.bf16.msra.mxu0 0
    %4945 = vmatprep.subr.bf16.mxu0 0
    %4946 = vmatpush1.bf16.msra.mxu0 0
    %4947 = vmatprep.subr.bf16.mxu0 0
    %4948 = vmatpush1.bf16.msra.mxu0 0
    %4949 = vmatprep.subr.bf16.mxu0 0
    %4950 = vmatpush1.bf16.msra.mxu0 0
    %4951 = vmatprep.subr.bf16.mxu0 0
    %4952 = vmatpush1.bf16.msra.mxu0 0
    %4953 = vmatprep.subr.bf16.mxu0 0
    %4954 = vmatpush1.bf16.msra.mxu0 0
    %4955 = vmatprep.subr.bf16.mxu0 0
    %4956 = vmatpush1.bf16.msra.mxu0 0
    %4957 = vmatprep.subr.bf16.mxu0 0
    %4958 = vmatpush1.bf16.msra.mxu0 0
    %4959 = vmatprep.subr.bf16.mxu0 0
    %4960 = vmatpush1.bf16.msra.mxu0 0
    %4961 = vmatprep.mubr.bf16.mxu0 0
    %4962 = vmatmul.mubr.bf16.gmra.mrb[0].mxu0 %v1444
    %v4963 = vpop.f32.mrb[0].mxu0
    %v4964 = vadd.f32 %v1416, %v4963
    %v4965 = vpop.f32.mrb[0].mxu0
    %v4966 = vpop.f32.mrb[0].mxu0
    %v4967 = vadd.f32 %v1421, %v4966
    %v4968 = vpop.f32.mrb[0].mxu0
    %4969 = vmatprep.mubr.bf16.mxu0 0
    %4970 = vmatmul.mubr.bf16.gmra.mrb[0].mxu0 %v1447
    %v4971 = vpop.f32.mrb[0].mxu0
    %v4972 = vadd.f32 %v1426, %v4971
    %v4973 = vpop.f32.mrb[0].mxu0
    %v4974 = vpop.f32.mrb[0].mxu0
    %v4975 = vadd.f32 %v1431, %v4974
    %v4976 = vpop.f32.mrb[0].mxu0
    %4977 = vdwg.mxu0
    %v4978 = vmul.f32 %v4817, 0.1
    %v4979 = vmul.f32 %v4820, 0.1
    %v4980 = vmul.f32 %v4825, 0.1
    %v4981 = vmul.f32 %v4828, 0.1
    %v4982 = vmul.f32 %v4866, 0.1
    %v4983 = vmul.f32 %v4869, 0.1
    %v4984 = vmul.f32 %v4874, 0.1
    %v4985 = vmul.f32 %v4877, 0.1
    %v4986 = vmul.f32 %v4915, 0.1
    %v4987 = vmul.f32 %v4918, 0.1
    %v4988 = vmul.f32 %v4923, 0.1
    %v4989 = vmul.f32 %v4926, 0.1
    %v4990 = vmul.f32 %v4964, 0.1
    %v4991 = vmul.f32 %v4967, 0.1
    %v4992 = vmul.f32 %v4972, 0.1
    %v4993 = vmul.f32 %v4975, 0.1
    %v4994 = vmax.f32 %v4817, %v4978
    %v4995 = vmax.f32 %v4820, %v4979
    %v4996 = vmax.f32 %v4825, %v4980
    %v4997 = vmax.f32 %v4828, %v4981
    %v4998 = vmax.f32 %v4866, %v4982
    %v4999 = vmax.f32 %v4869, %v4983
    %v5000 = vmax.f32 %v4874, %v4984
    %v5001 = vmax.f32 %v4877, %v4985
    %v5002 = vmax.f32 %v4915, %v4986
    %v5003 = vmax.f32 %v4918, %v4987
    %v5004 = vmax.f32 %v4923, %v4988
    %v5005 = vmax.f32 %v4926, %v4989
    %v5006 = vmax.f32 %v4964, %v4990
    %v5007 = vmax.f32 %v4967, %v4991
    %v5008 = vmax.f32 %v4972, %v4992
    %v5009 = vmax.f32 %v4975, %v4993
    %v5010 = vpack.c.bf16 %v4995, %v4994
    %v5011 = vpack.c.bf16 %v4997, %v4996
    %v5012 = vpack.c.bf16 %v4999, %v4998
    %v5013 = vpack.c.bf16 %v5001, %v5000
    %v5014 = vpack.c.bf16 %v5003, %v5002
    %v5015 = vpack.c.bf16 %v5005, %v5004
    %v5016 = vpack.c.bf16 %v5007, %v5006
    %v5017 = vpack.c.bf16 %v5009, %v5008
    %5018 = vmatprep.subr.bf16.mxu0 0
    %5019 = vmatpush1.bf16.msra.mxu0 %v5010
    %5020 = vmatprep.subr.bf16.mxu0 0
    %5021 = vmatpush1.bf16.msra.mxu0 %v5011
    %5022 = vmatprep.subr.bf16.mxu0 0
    %5023 = vmatpush1.bf16.msra.mxu0 0
    %5024 = vmatprep.subr.bf16.mxu0 0
    %5025 = vmatpush1.bf16.msra.mxu0 0
    %5026 = vmatprep.subr.bf16.mxu0 0
    %5027 = vmatpush1.bf16.msra.mxu0 0
    %5028 = vmatprep.subr.bf16.mxu0 0
    %5029 = vmatpush1.bf16.msra.mxu0 0
    %5030 = vmatprep.subr.bf16.mxu0 0
    %5031 = vmatpush1.bf16.msra.mxu0 0
    %5032 = vmatprep.subr.bf16.mxu0 0
    %5033 = vmatpush1.bf16.msra.mxu0 0
    %5034 = vmatprep.subr.bf16.mxu0 0
    %5035 = vmatpush1.bf16.msra.mxu0 0
    %5036 = vmatprep.subr.bf16.mxu0 0
    %5037 = vmatpush1.bf16.msra.mxu0 0
    %5038 = vmatprep.subr.bf16.mxu0 0
    %5039 = vmatpush1.bf16.msra.mxu0 0
    %5040 = vmatprep.subr.bf16.mxu0 0
    %5041 = vmatpush1.bf16.msra.mxu0 0
    %5042 = vmatprep.subr.bf16.mxu0 0
    %5043 = vmatpush1.bf16.msra.mxu0 0
    %5044 = vmatprep.subr.bf16.mxu0 0
    %5045 = vmatpush1.bf16.msra.mxu0 0
    %5046 = vmatprep.subr.bf16.mxu0 0
    %5047 = vmatpush1.bf16.msra.mxu0 0
    %5048 = vmatprep.subr.bf16.mxu0 0
    %5049 = vmatpush1.bf16.msra.mxu0 0
    %5050 = vmatprep.mubr.bf16.mxu0 0
    %5051 = vmatmul.mubr.bf16.gmra.mrb[0].mxu0 %v1729
    %v5052 = vpop.f32.mrb[0].mxu0
    %v5053 = vadd.f32 %v1700, %v5052
    %v5054 = vpop.f32.mrb[0].mxu0
    %v5055 = vpop.f32.mrb[0].mxu0
    %v5056 = vadd.f32 %v1705, %v5055
    %v5057 = vpop.f32.mrb[0].mxu0
    %5058 = vmatprep.mubr.bf16.mxu0 0
    %5059 = vmatmul.mubr.bf16.gmra.mrb[0].mxu0 %v1732
    %v5060 = vpop.f32.mrb[0].mxu0
    %v5061 = vadd.f32 %v1710, %v5060
    %v5062 = vpop.f32.mrb[0].mxu0
    %v5063 = vpop.f32.mrb[0].mxu0
    %v5064 = vadd.f32 %v1715, %v5063
    %v5065 = vpop.f32.mrb[0].mxu0
    %5066 = vdwg.mxu0
    %5067 = vmatprep.subr.bf16.mxu0 0
    %5068 = vmatpush1.bf16.msra.mxu0 %v5012
    %5069 = vmatprep.subr.bf16.mxu0 0
    %5070 = vmatpush1.bf16.msra.mxu0 %v5013
    %5071 = vmatprep.subr.bf16.mxu0 0
    %5072 = vmatpush1.bf16.msra.mxu0 0
    %5073 = vmatprep.subr.bf16.mxu0 0
    %5074 = vmatpush1.bf16.msra.mxu0 0
    %5075 = vmatprep.subr.bf16.mxu0 0
    %5076 = vmatpush1.bf16.msra.mxu0 0
    %5077 = vmatprep.subr.bf16.mxu0 0
    %5078 = vmatpush1.bf16.msra.mxu0 0
    %5079 = vmatprep.subr.bf16.mxu0 0
    %5080 = vmatpush1.bf16.msra.mxu0 0
    %5081 = vmatprep.subr.bf16.mxu0 0
    %5082 = vmatpush1.bf16.msra.mxu0 0
    %5083 = vmatprep.subr.bf16.mxu0 0
    %5084 = vmatpush1.bf16.msra.mxu0 0
    %5085 = vmatprep.subr.bf16.mxu0 0
    %5086 = vmatpush1.bf16.msra.mxu0 0
    %5087 = vmatprep.subr.bf16.mxu0 0
    %5088 = vmatpush1.bf16.msra.mxu0 0
    %5089 = vmatprep.subr.bf16.mxu0 0
    %5090 = vmatpush1.bf16.msra.mxu0 0
    %5091 = vmatprep.subr.bf16.mxu0 0
    %5092 = vmatpush1.bf16.msra.mxu0 0
    %5093 = vmatprep.subr.bf16.mxu0 0
    %5094 = vmatpush1.bf16.msra.mxu0 0
    %5095 = vmatprep.subr.bf16.mxu0 0
    %5096 = vmatpush1.bf16.msra.mxu0 0
    %5097 = vmatprep.subr.bf16.mxu0 0
    %5098 = vmatpush1.bf16.msra.mxu0 0
    %5099 = vmatprep.mubr.bf16.mxu0 0
    %5100 = vmatmul.mubr.bf16.gmra.mrb[0].mxu0 %v1729
    %v5101 = vpop.f32.mrb[0].mxu0
    %v5102 = vadd.f32 %v1700, %v5101
    %v5103 = vpop.f32.mrb[0].mxu0
    %v5104 = vpop.f32.mrb[0].mxu0
    %v5105 = vadd.f32 %v1705, %v5104
    %v5106 = vpop.f32.mrb[0].mxu0
    %5107 = vmatprep.mubr.bf16.mxu0 0
    %5108 = vmatmul.mubr.bf16.gmra.mrb[0].mxu0 %v1732
    %v5109 = vpop.f32.mrb[0].mxu0
    %v5110 = vadd.f32 %v1710, %v5109
    %v5111 = vpop.f32.mrb[0].mxu0
    %v5112 = vpop.f32.mrb[0].mxu0
    %v5113 = vadd.f32 %v1715, %v5112
    %v5114 = vpop.f32.mrb[0].mxu0
    %5115 = vdwg.mxu0
    %5116 = vmatprep.subr.bf16.mxu0 0
    %5117 = vmatpush1.bf16.msra.mxu0 %v5014
    %5118 = vmatprep.subr.bf16.mxu0 0
    %5119 = vmatpush1.bf16.msra.mxu0 %v5015
    %5120 = vmatprep.subr.bf16.mxu0 0
    %5121 = vmatpush1.bf16.msra.mxu0 0
    %5122 = vmatprep.subr.bf16.mxu0 0
    %5123 = vmatpush1.bf16.msra.mxu0 0
    %5124 = vmatprep.subr.bf16.mxu0 0
    %5125 = vmatpush1.bf16.msra.mxu0 0
    %5126 = vmatprep.subr.bf16.mxu0 0
    %5127 = vmatpush1.bf16.msra.mxu0 0
    %5128 = vmatprep.subr.bf16.mxu0 0
    %5129 = vmatpush1.bf16.msra.mxu0 0
    %5130 = vmatprep.subr.bf16.mxu0 0
    %5131 = vmatpush1.bf16.msra.mxu0 0
    %5132 = vmatprep.subr.bf16.mxu0 0
    %5133 = vmatpush1.bf16.msra.mxu0 0
    %5134 = vmatprep.subr.bf16.mxu0 0
    %5135 = vmatpush1.bf16.msra.mxu0 0
    %5136 = vmatprep.subr.bf16.mxu0 0
    %5137 = vmatpush1.bf16.msra.mxu0 0
    %5138 = vmatprep.subr.bf16.mxu0 0
    %5139 = vmatpush1.bf16.msra.mxu0 0
    %5140 = vmatprep.subr.bf16.mxu0 0
    %5141 = vmatpush1.bf16.msra.mxu0 0
    %5142 = vmatprep.subr.bf16.mxu0 0
    %5143 = vmatpush1.bf16.msra.mxu0 0
    %5144 = vmatprep.subr.bf16.mxu0 0
    %5145 = vmatpush1.bf16.msra.mxu0 0
    %5146 = vmatprep.subr.bf16.mxu0 0
    %5147 = vmatpush1.bf16.msra.mxu0 0
    %5148 = vmatprep.mubr.bf16.mxu0 0
    %5149 = vmatmul.mubr.bf16.gmra.mrb[0].mxu0 %v1729
    %v5150 = vpop.f32.mrb[0].mxu0
    %v5151 = vadd.f32 %v1700, %v5150
    %v5152 = vpop.f32.mrb[0].mxu0
    %v5153 = vpop.f32.mrb[0].mxu0
    %v5154 = vadd.f32 %v1705, %v5153
    %v5155 = vpop.f32.mrb[0].mxu0
    %5156 = vmatprep.mubr.bf16.mxu0 0
    %5157 = vmatmul.mubr.bf16.gmra.mrb[0].mxu0 %v1732
    %v5158 = vpop.f32.mrb[0].mxu0
    %v5159 = vadd.f32 %v1710, %v5158
    %v5160 = vpop.f32.mrb[0].mxu0
    %v5161 = vpop.f32.mrb[0].mxu0
    %v5162 = vadd.f32 %v1715, %v5161
    %v5163 = vpop.f32.mrb[0].mxu0
    %5164 = vdwg.mxu0
    %5165 = vmatprep.subr.bf16.mxu0 0
    %5166 = vmatpush1.bf16.msra.mxu0 %v5016
    %5167 = vmatprep.subr.bf16.mxu0 0
    %5168 = vmatpush1.bf16.msra.mxu0 %v5017
    %5169 = vmatprep.subr.bf16.mxu0 0
    %5170 = vmatpush1.bf16.msra.mxu0 0
    %5171 = vmatprep.subr.bf16.mxu0 0
    %5172 = vmatpush1.bf16.msra.mxu0 0
    %5173 = vmatprep.subr.bf16.mxu0 0
    %5174 = vmatpush1.bf16.msra.mxu0 0
    %5175 = vmatprep.subr.bf16.mxu0 0
    %5176 = vmatpush1.bf16.msra.mxu0 0
    %5177 = vmatprep.subr.bf16.mxu0 0
    %5178 = vmatpush1.bf16.msra.mxu0 0
    %5179 = vmatprep.subr.bf16.mxu0 0
    %5180 = vmatpush1.bf16.msra.mxu0 0
    %5181 = vmatprep.subr.bf16.mxu0 0
    %5182 = vmatpush1.bf16.msra.mxu0 0
    %5183 = vmatprep.subr.bf16.mxu0 0
    %5184 = vmatpush1.bf16.msra.mxu0 0
    %5185 = vmatprep.subr.bf16.mxu0 0
    %5186 = vmatpush1.bf16.msra.mxu0 0
    %5187 = vmatprep.subr.bf16.mxu0 0
    %5188 = vmatpush1.bf16.msra.mxu0 0
    %5189 = vmatprep.subr.bf16.mxu0 0
    %5190 = vmatpush1.bf16.msra.mxu0 0
    %5191 = vmatprep.subr.bf16.mxu0 0
    %5192 = vmatpush1.bf16.msra.mxu0 0
    %5193 = vmatprep.subr.bf16.mxu0 0
    %5194 = vmatpush1.bf16.msra.mxu0 0
    %5195 = vmatprep.subr.bf16.mxu0 0
    %5196 = vmatpush1.bf16.msra.mxu0 0
    %5197 = vmatprep.mubr.bf16.mxu0 0
    %5198 = vmatmul.mubr.bf16.gmra.mrb[0].mxu0 %v1729
    %v5199 = vpop.f32.mrb[0].mxu0
    %v5200 = vadd.f32 %v1700, %v5199
    %v5201 = vpop.f32.mrb[0].mxu0
    %v5202 = vpop.f32.mrb[0].mxu0
    %v5203 = vadd.f32 %v1705, %v5202
    %v5204 = vpop.f32.mrb[0].mxu0
    %5205 = vmatprep.mubr.bf16.mxu0 0
    %5206 = vmatmul.mubr.bf16.gmra.mrb[0].mxu0 %v1732
    %v5207 = vpop.f32.mrb[0].mxu0
    %v5208 = vadd.f32 %v1710, %v5207
    %v5209 = vpop.f32.mrb[0].mxu0
    %v5210 = vpop.f32.mrb[0].mxu0
    %v5211 = vadd.f32 %v1715, %v5210
    %v5212 = vpop.f32.mrb[0].mxu0
    %5213 = vdwg.mxu0
    %5214 = vmatprep.subr.bf16.mxu0 0
    %5215 = vmatpush1.bf16.msra.mxu0 %v5012
    %5216 = vmatprep.subr.bf16.mxu0 0
    %5217 = vmatpush1.bf16.msra.mxu0 %v5013
    %5218 = vmatprep.subr.bf16.mxu0 0
    %5219 = vmatpush1.bf16.msra.mxu0 %v5010
    %5220 = vmatprep.subr.bf16.mxu0 0
    %5221 = vmatpush1.bf16.msra.mxu0 %v5011
    %5222 = vmatprep.subr.bf16.mxu0 0
    %5223 = vmatpush1.bf16.msra.mxu0 0
    %5224 = vmatprep.subr.bf16.mxu0 0
    %5225 = vmatpush1.bf16.msra.mxu0 0
    %5226 = vmatprep.subr.bf16.mxu0 0
    %5227 = vmatpush1.bf16.msra.mxu0 0
    %5228 = vmatprep.subr.bf16.mxu0 0
    %5229 = vmatpush1.bf16.msra.mxu0 0
    %5230 = vmatprep.subr.bf16.mxu0 0
    %5231 = vmatpush1.bf16.msra.mxu0 0
    %5232 = vmatprep.subr.bf16.mxu0 0
    %5233 = vmatpush1.bf16.msra.mxu0 0
    %5234 = vmatprep.subr.bf16.mxu0 0
    %5235 = vmatpush1.bf16.msra.mxu0 0
    %5236 = vmatprep.subr.bf16.mxu0 0
    %5237 = vmatpush1.bf16.msra.mxu0 0
    %5238 = vmatprep.subr.bf16.mxu0 0
    %5239 = vmatpush1.bf16.msra.mxu0 0
    %5240 = vmatprep.subr.bf16.mxu0 0
    %5241 = vmatpush1.bf16.msra.mxu0 0
    %5242 = vmatprep.subr.bf16.mxu0 0
    %5243 = vmatpush1.bf16.msra.mxu0 0
    %5244 = vmatprep.subr.bf16.mxu0 0
    %5245 = vmatpush1.bf16.msra.mxu0 0
    %5246 = vmatprep.mubr.bf16.mxu0 0
    %5247 = vmatmul.mubr.bf16.gmra.mrb[0].mxu0 %v1942
    %v5248 = vpop.f32.mrb[0].mxu0
    %v5249 = vadd.f32 %v1700, %v5248
    %v5250 = vpop.f32.mrb[0].mxu0
    %v5251 = vpop.f32.mrb[0].mxu0
    %v5252 = vadd.f32 %v1705, %v5251
    %v5253 = vpop.f32.mrb[0].mxu0
    %5254 = vmatprep.mubr.bf16.mxu0 0
    %5255 = vmatmul.mubr.bf16.gmra.mrb[0].mxu0 %v1945
    %v5256 = vpop.f32.mrb[0].mxu0
    %v5257 = vadd.f32 %v1710, %v5256
    %v5258 = vpop.f32.mrb[0].mxu0
    %v5259 = vpop.f32.mrb[0].mxu0
    %v5260 = vadd.f32 %v1715, %v5259
    %v5261 = vpop.f32.mrb[0].mxu0
    %5262 = vdwg.mxu0
    %5263 = vmatprep.subr.bf16.mxu0 0
    %5264 = vmatpush1.bf16.msra.mxu0 %v5014
    %5265 = vmatprep.subr.bf16.mxu0 0
    %5266 = vmatpush1.bf16.msra.mxu0 %v5015
    %5267 = vmatprep.subr.bf16.mxu0 0
    %5268 = vmatpush1.bf16.msra.mxu0 %v5012
    %5269 = vmatprep.subr.bf16.mxu0 0
    %5270 = vmatpush1.bf16.msra.mxu0 %v5013
    %5271 = vmatprep.subr.bf16.mxu0 0
    %5272 = vmatpush1.bf16.msra.mxu0 0
    %5273 = vmatprep.subr.bf16.mxu0 0
    %5274 = vmatpush1.bf16.msra.mxu0 0
    %5275 = vmatprep.subr.bf16.mxu0 0
    %5276 = vmatpush1.bf16.msra.mxu0 0
    %5277 = vmatprep.subr.bf16.mxu0 0
    %5278 = vmatpush1.bf16.msra.mxu0 0
    %5279 = vmatprep.subr.bf16.mxu0 0
    %5280 = vmatpush1.bf16.msra.mxu0 0
    %5281 = vmatprep.subr.bf16.mxu0 0
    %5282 = vmatpush1.bf16.msra.mxu0 0
    %5283 = vmatprep.subr.bf16.mxu0 0
    %5284 = vmatpush1.bf16.msra.mxu0 0
    %5285 = vmatprep.subr.bf16.mxu0 0
    %5286 = vmatpush1.bf16.msra.mxu0 0
    %5287 = vmatprep.subr.bf16.mxu0 0
    %5288 = vmatpush1.bf16.msra.mxu0 0
    %5289 = vmatprep.subr.bf16.mxu0 0
    %5290 = vmatpush1.bf16.msra.mxu0 0
    %5291 = vmatprep.subr.bf16.mxu0 0
    %5292 = vmatpush1.bf16.msra.mxu0 0
    %5293 = vmatprep.subr.bf16.mxu0 0
    %5294 = vmatpush1.bf16.msra.mxu0 0
    %5295 = vmatprep.mubr.bf16.mxu0 0
    %5296 = vmatmul.mubr.bf16.gmra.mrb[0].mxu0 %v1942
    %v5297 = vpop.f32.mrb[0].mxu0
    %v5298 = vadd.f32 %v1700, %v5297
    %v5299 = vpop.f32.mrb[0].mxu0
    %v5300 = vpop.f32.mrb[0].mxu0
    %v5301 = vadd.f32 %v1705, %v5300
    %v5302 = vpop.f32.mrb[0].mxu0
    %5303 = vmatprep.mubr.bf16.mxu0 0
    %5304 = vmatmul.mubr.bf16.gmra.mrb[0].mxu0 %v1945
    %v5305 = vpop.f32.mrb[0].mxu0
    %v5306 = vadd.f32 %v1710, %v5305
    %v5307 = vpop.f32.mrb[0].mxu0
    %v5308 = vpop.f32.mrb[0].mxu0
    %v5309 = vadd.f32 %v1715, %v5308
    %v5310 = vpop.f32.mrb[0].mxu0
    %5311 = vdwg.mxu0
    %5312 = vmatprep.subr.bf16.mxu0 0
    %5313 = vmatpush1.bf16.msra.mxu0 %v5016
    %5314 = vmatprep.subr.bf16.mxu0 0
    %5315 = vmatpush1.bf16.msra.mxu0 %v5017
    %5316 = vmatprep.subr.bf16.mxu0 0
    %5317 = vmatpush1.bf16.msra.mxu0 %v5014
    %5318 = vmatprep.subr.bf16.mxu0 0
    %5319 = vmatpush1.bf16.msra.mxu0 %v5015
    %5320 = vmatprep.subr.bf16.mxu0 0
    %5321 = vmatpush1.bf16.msra.mxu0 0
    %5322 = vmatprep.subr.bf16.mxu0 0
    %5323 = vmatpush1.bf16.msra.mxu0 0
    %5324 = vmatprep.subr.bf16.mxu0 0
    %5325 = vmatpush1.bf16.msra.mxu0 0
    %5326 = vmatprep.subr.bf16.mxu0 0
    %5327 = vmatpush1.bf16.msra.mxu0 0
    %5328 = vmatprep.subr.bf16.mxu0 0
    %5329 = vmatpush1.bf16.msra.mxu0 0
    %5330 = vmatprep.subr.bf16.mxu0 0
    %5331 = vmatpush1.bf16.msra.mxu0 0
    %5332 = vmatprep.subr.bf16.mxu0 0
    %5333 = vmatpush1.bf16.msra.mxu0 0
    %5334 = vmatprep.subr.bf16.mxu0 0
    %5335 = vmatpush1.bf16.msra.mxu0 0
    %5336 = vmatprep.subr.bf16.mxu0 0
    %5337 = vmatpush1.bf16.msra.mxu0 0
    %5338 = vmatprep.subr.bf16.mxu0 0
    %5339 = vmatpush1.bf16.msra.mxu0 0
    %5340 = vmatprep.subr.bf16.mxu0 0
    %5341 = vmatpush1.bf16.msra.mxu0 0
    %5342 = vmatprep.subr.bf16.mxu0 0
    %5343 = vmatpush1.bf16.msra.mxu0 0
    %5344 = vmatprep.mubr.bf16.mxu0 0
    %5345 = vmatmul.mubr.bf16.gmra.mrb[0].mxu0 %v1942
    %v5346 = vpop.f32.mrb[0].mxu0
    %v5347 = vadd.f32 %v1700, %v5346
    %v5348 = vpop.f32.mrb[0].mxu0
    %v5349 = vpop.f32.mrb[0].mxu0
    %v5350 = vadd.f32 %v1705, %v5349
    %v5351 = vpop.f32.mrb[0].mxu0
    %5352 = vmatprep.mubr.bf16.mxu0 0
    %5353 = vmatmul.mubr.bf16.gmra.mrb[0].mxu0 %v1945
    %v5354 = vpop.f32.mrb[0].mxu0
    %v5355 = vadd.f32 %v1710, %v5354
    %v5356 = vpop.f32.mrb[0].mxu0
    %v5357 = vpop.f32.mrb[0].mxu0
    %v5358 = vadd.f32 %v1715, %v5357
    %v5359 = vpop.f32.mrb[0].mxu0
    %5360 = vdwg.mxu0
    %5361 = vmatprep.subr.bf16.mxu0 0
    %5362 = vmatpush1.bf16.msra.mxu0 %v871
    %5363 = vmatprep.subr.bf16.mxu0 0
    %5364 = vmatpush1.bf16.msra.mxu0 %v871
    %5365 = vmatprep.subr.bf16.mxu0 0
    %5366 = vmatpush1.bf16.msra.mxu0 %v5016
    %5367 = vmatprep.subr.bf16.mxu0 0
    %5368 = vmatpush1.bf16.msra.mxu0 %v5017
    %5369 = vmatprep.subr.bf16.mxu0 0
    %5370 = vmatpush1.bf16.msra.mxu0 0
    %5371 = vmatprep.subr.bf16.mxu0 0
    %5372 = vmatpush1.bf16.msra.mxu0 0
    %5373 = vmatprep.subr.bf16.mxu0 0
    %5374 = vmatpush1.bf16.msra.mxu0 0
    %5375 = vmatprep.subr.bf16.mxu0 0
    %5376 = vmatpush1.bf16.msra.mxu0 0
    %5377 = vmatprep.subr.bf16.mxu0 0
    %5378 = vmatpush1.bf16.msra.mxu0 0
    %5379 = vmatprep.subr.bf16.mxu0 0
    %5380 = vmatpush1.bf16.msra.mxu0 0
    %5381 = vmatprep.subr.bf16.mxu0 0
    %5382 = vmatpush1.bf16.msra.mxu0 0
    %5383 = vmatprep.subr.bf16.mxu0 0
    %5384 = vmatpush1.bf16.msra.mxu0 0
    %5385 = vmatprep.subr.bf16.mxu0 0
    %5386 = vmatpush1.bf16.msra.mxu0 0
    %5387 = vmatprep.subr.bf16.mxu0 0
    %5388 = vmatpush1.bf16.msra.mxu0 0
    %5389 = vmatprep.subr.bf16.mxu0 0
    %5390 = vmatpush1.bf16.msra.mxu0 0
    %5391 = vmatprep.subr.bf16.mxu0 0
    %5392 = vmatpush1.bf16.msra.mxu0 0
    %5393 = vmatprep.mubr.bf16.mxu0 0
    %5394 = vmatmul.mubr.bf16.gmra.mrb[0].mxu0 %v1942
    %v5395 = vpop.f32.mrb[0].mxu0
    %v5396 = vadd.f32 %v1700, %v5395
    %v5397 = vpop.f32.mrb[0].mxu0
    %v5398 = vpop.f32.mrb[0].mxu0
    %v5399 = vadd.f32 %v1705, %v5398
    %v5400 = vpop.f32.mrb[0].mxu0
    %5401 = vmatprep.mubr.bf16.mxu0 0
    %5402 = vmatmul.mubr.bf16.gmra.mrb[0].mxu0 %v1945
    %v5403 = vpop.f32.mrb[0].mxu0
    %v5404 = vadd.f32 %v1710, %v5403
    %v5405 = vpop.f32.mrb[0].mxu0
    %v5406 = vpop.f32.mrb[0].mxu0
    %v5407 = vadd.f32 %v1715, %v5406
    %v5408 = vpop.f32.mrb[0].mxu0
    %5409 = vdwg.mxu0
    %v5410 = vpack.c.bf16 %v5056, %v5053
    %v5411 = vpack.c.bf16 %v5064, %v5061
    %v5412 = vpack.c.bf16 %v5252, %v5249
    %v5413 = vpack.c.bf16 %v5260, %v5257
    %v5414 = vpack.c.bf16 %v5105, %v5102
    %v5415 = vpack.c.bf16 %v5113, %v5110
    %v5416 = vpack.c.bf16 %v5301, %v5298
    %v5417 = vpack.c.bf16 %v5309, %v5306
    %v5418 = vpack.c.bf16 %v5154, %v5151
    %v5419 = vpack.c.bf16 %v5162, %v5159
    %v5420 = vpack.c.bf16 %v5350, %v5347
    %v5421 = vpack.c.bf16 %v5358, %v5355
    %v5422 = vpack.c.bf16 %v5203, %v5200
    %v5423 = vpack.c.bf16 %v5211, %v5208
    %v5424 = vpack.c.bf16 %v5399, %v5396
    %v5425 = vpack.c.bf16 %v5407, %v5404
    %5426 = vmatprep.subr.bf16.mxu0 0
    %5427 = vmatpush1.bf16.msra.mxu0 %v5410
    %5428 = vmatprep.subr.bf16.mxu0 0
    %5429 = vmatpush1.bf16.msra.mxu0 %v5411
    %5430 = vmatprep.subr.bf16.mxu0 0
    %5431 = vmatpush1.bf16.msra.mxu0 0
    %5432 = vmatprep.subr.bf16.mxu0 0
    %5433 = vmatpush1.bf16.msra.mxu0 0
    %5434 = vmatprep.subr.bf16.mxu0 0
    %5435 = vmatpush1.bf16.msra.mxu0 0
    %5436 = vmatprep.subr.bf16.mxu0 0
    %5437 = vmatpush1.bf16.msra.mxu0 0
    %5438 = vmatprep.subr.bf16.mxu0 0
    %5439 = vmatpush1.bf16.msra.mxu0 0
    %5440 = vmatprep.subr.bf16.mxu0 0
    %5441 = vmatpush1.bf16.msra.mxu0 0
    %5442 = vmatprep.subr.bf16.mxu0 0
    %5443 = vmatpush1.bf16.msra.mxu0 0
    %5444 = vmatprep.subr.bf16.mxu0 0
    %5445 = vmatpush1.bf16.msra.mxu0 0
    %5446 = vmatprep.subr.bf16.mxu0 0
    %5447 = vmatpush1.bf16.msra.mxu0 0
    %5448 = vmatprep.subr.bf16.mxu0 0
    %5449 = vmatpush1.bf16.msra.mxu0 0
    %5450 = vmatprep.subr.bf16.mxu0 0
    %5451 = vmatpush1.bf16.msra.mxu0 0
    %5452 = vmatprep.subr.bf16.mxu0 0
    %5453 = vmatpush1.bf16.msra.mxu0 0
    %5454 = vmatprep.subr.bf16.mxu0 0
    %5455 = vmatpush1.bf16.msra.mxu0 0
    %5456 = vmatprep.subr.bf16.mxu0 0
    %5457 = vmatpush1.bf16.msra.mxu0 0
    %5458 = vmatprep.mubr.bf16.mxu0 0
    %5459 = vmatmul.mubr.bf16.gmra.mrb[0].mxu0 %v2202
    %v5460 = vpop.f32.mrb[0].mxu0
    %v5461 = vadd.f32 %v2174, %v5460
    %v5462 = vpop.f32.mrb[0].mxu0
    %v5463 = vpop.f32.mrb[0].mxu0
    %v5464 = vadd.f32 %v2179, %v5463
    %v5465 = vpop.f32.mrb[0].mxu0
    %5466 = vmatprep.mubr.bf16.mxu0 0
    %5467 = vmatmul.mubr.bf16.gmra.mrb[0].mxu0 %v2205
    %v5468 = vpop.f32.mrb[0].mxu0
    %v5469 = vadd.f32 %v2184, %v5468
    %v5470 = vpop.f32.mrb[0].mxu0
    %v5471 = vpop.f32.mrb[0].mxu0
    %v5472 = vadd.f32 %v2189, %v5471
    %v5473 = vpop.f32.mrb[0].mxu0
    %5474 = vdwg.mxu0
    %5475 = vmatprep.subr.bf16.mxu0 0
    %5476 = vmatpush1.bf16.msra.mxu0 %v5412
    %5477 = vmatprep.subr.bf16.mxu0 0
    %5478 = vmatpush1.bf16.msra.mxu0 %v5413
    %5479 = vmatprep.subr.bf16.mxu0 0
    %5480 = vmatpush1.bf16.msra.mxu0 0
    %5481 = vmatprep.subr.bf16.mxu0 0
    %5482 = vmatpush1.bf16.msra.mxu0 0
    %5483 = vmatprep.subr.bf16.mxu0 0
    %5484 = vmatpush1.bf16.msra.mxu0 0
    %5485 = vmatprep.subr.bf16.mxu0 0
    %5486 = vmatpush1.bf16.msra.mxu0 0
    %5487 = vmatprep.subr.bf16.mxu0 0
    %5488 = vmatpush1.bf16.msra.mxu0 0
    %5489 = vmatprep.subr.bf16.mxu0 0
    %5490 = vmatpush1.bf16.msra.mxu0 0
    %5491 = vmatprep.subr.bf16.mxu0 0
    %5492 = vmatpush1.bf16.msra.mxu0 0
    %5493 = vmatprep.subr.bf16.mxu0 0
    %5494 = vmatpush1.bf16.msra.mxu0 0
    %5495 = vmatprep.subr.bf16.mxu0 0
    %5496 = vmatpush1.bf16.msra.mxu0 0
    %5497 = vmatprep.subr.bf16.mxu0 0
    %5498 = vmatpush1.bf16.msra.mxu0 0
    %5499 = vmatprep.subr.bf16.mxu0 0
    %5500 = vmatpush1.bf16.msra.mxu0 0
    %5501 = vmatprep.subr.bf16.mxu0 0
    %5502 = vmatpush1.bf16.msra.mxu0 0
    %5503 = vmatprep.subr.bf16.mxu0 0
    %5504 = vmatpush1.bf16.msra.mxu0 0
    %5505 = vmatprep.subr.bf16.mxu0 0
    %5506 = vmatpush1.bf16.msra.mxu0 0
    %5507 = vmatprep.mubr.bf16.mxu0 0
    %5508 = vmatmul.mubr.bf16.gmra.mrb[0].mxu0 %v2202
    %v5509 = vpop.f32.mrb[0].mxu0
    %v5510 = vadd.f32 %v2174, %v5509
    %v5511 = vpop.f32.mrb[0].mxu0
    %v5512 = vpop.f32.mrb[0].mxu0
    %v5513 = vadd.f32 %v2179, %v5512
    %v5514 = vpop.f32.mrb[0].mxu0
    %5515 = vmatprep.mubr.bf16.mxu0 0
    %5516 = vmatmul.mubr.bf16.gmra.mrb[0].mxu0 %v2205
    %v5517 = vpop.f32.mrb[0].mxu0
    %v5518 = vadd.f32 %v2184, %v5517
    %v5519 = vpop.f32.mrb[0].mxu0
    %v5520 = vpop.f32.mrb[0].mxu0
    %v5521 = vadd.f32 %v2189, %v5520
    %v5522 = vpop.f32.mrb[0].mxu0
    %5523 = vdwg.mxu0
    %5524 = vmatprep.subr.bf16.mxu0 0
    %5525 = vmatpush1.bf16.msra.mxu0 %v5414
    %5526 = vmatprep.subr.bf16.mxu0 0
    %5527 = vmatpush1.bf16.msra.mxu0 %v5415
    %5528 = vmatprep.subr.bf16.mxu0 0
    %5529 = vmatpush1.bf16.msra.mxu0 0
    %5530 = vmatprep.subr.bf16.mxu0 0
    %5531 = vmatpush1.bf16.msra.mxu0 0
    %5532 = vmatprep.subr.bf16.mxu0 0
    %5533 = vmatpush1.bf16.msra.mxu0 0
    %5534 = vmatprep.subr.bf16.mxu0 0
    %5535 = vmatpush1.bf16.msra.mxu0 0
    %5536 = vmatprep.subr.bf16.mxu0 0
    %5537 = vmatpush1.bf16.msra.mxu0 0
    %5538 = vmatprep.subr.bf16.mxu0 0
    %5539 = vmatpush1.bf16.msra.mxu0 0
    %5540 = vmatprep.subr.bf16.mxu0 0
    %5541 = vmatpush1.bf16.msra.mxu0 0
    %5542 = vmatprep.subr.bf16.mxu0 0
    %5543 = vmatpush1.bf16.msra.mxu0 0
    %5544 = vmatprep.subr.bf16.mxu0 0
    %5545 = vmatpush1.bf16.msra.mxu0 0
    %5546 = vmatprep.subr.bf16.mxu0 0
    %5547 = vmatpush1.bf16.msra.mxu0 0
    %5548 = vmatprep.subr.bf16.mxu0 0
    %5549 = vmatpush1.bf16.msra.mxu0 0
    %5550 = vmatprep.subr.bf16.mxu0 0
    %5551 = vmatpush1.bf16.msra.mxu0 0
    %5552 = vmatprep.subr.bf16.mxu0 0
    %5553 = vmatpush1.bf16.msra.mxu0 0
    %5554 = vmatprep.subr.bf16.mxu0 0
    %5555 = vmatpush1.bf16.msra.mxu0 0
    %5556 = vmatprep.mubr.bf16.mxu0 0
    %5557 = vmatmul.mubr.bf16.gmra.mrb[0].mxu0 %v2202
    %v5558 = vpop.f32.mrb[0].mxu0
    %v5559 = vadd.f32 %v2174, %v5558
    %v5560 = vpop.f32.mrb[0].mxu0
    %v5561 = vpop.f32.mrb[0].mxu0
    %v5562 = vadd.f32 %v2179, %v5561
    %v5563 = vpop.f32.mrb[0].mxu0
    %5564 = vmatprep.mubr.bf16.mxu0 0
    %5565 = vmatmul.mubr.bf16.gmra.mrb[0].mxu0 %v2205
    %v5566 = vpop.f32.mrb[0].mxu0
    %v5567 = vadd.f32 %v2184, %v5566
    %v5568 = vpop.f32.mrb[0].mxu0
    %v5569 = vpop.f32.mrb[0].mxu0
    %v5570 = vadd.f32 %v2189, %v5569
    %v5571 = vpop.f32.mrb[0].mxu0
    %5572 = vdwg.mxu0
    %5573 = vmatprep.subr.bf16.mxu0 0
    %5574 = vmatpush1.bf16.msra.mxu0 %v5416
    %5575 = vmatprep.subr.bf16.mxu0 0
    %5576 = vmatpush1.bf16.msra.mxu0 %v5417
    %5577 = vmatprep.subr.bf16.mxu0 0
    %5578 = vmatpush1.bf16.msra.mxu0 0
    %5579 = vmatprep.subr.bf16.mxu0 0
    %5580 = vmatpush1.bf16.msra.mxu0 0
    %5581 = vmatprep.subr.bf16.mxu0 0
    %5582 = vmatpush1.bf16.msra.mxu0 0
    %5583 = vmatprep.subr.bf16.mxu0 0
    %5584 = vmatpush1.bf16.msra.mxu0 0
    %5585 = vmatprep.subr.bf16.mxu0 0
    %5586 = vmatpush1.bf16.msra.mxu0 0
    %5587 = vmatprep.subr.bf16.mxu0 0
    %5588 = vmatpush1.bf16.msra.mxu0 0
    %5589 = vmatprep.subr.bf16.mxu0 0
    %5590 = vmatpush1.bf16.msra.mxu0 0
    %5591 = vmatprep.subr.bf16.mxu0 0
    %5592 = vmatpush1.bf16.msra.mxu0 0
    %5593 = vmatprep.subr.bf16.mxu0 0
    %5594 = vmatpush1.bf16.msra.mxu0 0
    %5595 = vmatprep.subr.bf16.mxu0 0
    %5596 = vmatpush1.bf16.msra.mxu0 0
    %5597 = vmatprep.subr.bf16.mxu0 0
    %5598 = vmatpush1.bf16.msra.mxu0 0
    %5599 = vmatprep.subr.bf16.mxu0 0
    %5600 = vmatpush1.bf16.msra.mxu0 0
    %5601 = vmatprep.subr.bf16.mxu0 0
    %5602 = vmatpush1.bf16.msra.mxu0 0
    %5603 = vmatprep.subr.bf16.mxu0 0
    %5604 = vmatpush1.bf16.msra.mxu0 0
    %5605 = vmatprep.mubr.bf16.mxu0 0
    %5606 = vmatmul.mubr.bf16.gmra.mrb[0].mxu0 %v2202
    %v5607 = vpop.f32.mrb[0].mxu0
    %v5608 = vadd.f32 %v2174, %v5607
    %v5609 = vpop.f32.mrb[0].mxu0
    %v5610 = vpop.f32.mrb[0].mxu0
    %v5611 = vadd.f32 %v2179, %v5610
    %v5612 = vpop.f32.mrb[0].mxu0
    %5613 = vmatprep.mubr.bf16.mxu0 0
    %5614 = vmatmul.mubr.bf16.gmra.mrb[0].mxu0 %v2205
    %v5615 = vpop.f32.mrb[0].mxu0
    %v5616 = vadd.f32 %v2184, %v5615
    %v5617 = vpop.f32.mrb[0].mxu0
    %v5618 = vpop.f32.mrb[0].mxu0
    %v5619 = vadd.f32 %v2189, %v5618
    %v5620 = vpop.f32.mrb[0].mxu0
    %5621 = vdwg.mxu0
    %5622 = vmatprep.subr.bf16.mxu0 0
    %5623 = vmatpush1.bf16.msra.mxu0 %v5418
    %5624 = vmatprep.subr.bf16.mxu0 0
    %5625 = vmatpush1.bf16.msra.mxu0 %v5419
    %5626 = vmatprep.subr.bf16.mxu0 0
    %5627 = vmatpush1.bf16.msra.mxu0 0
    %5628 = vmatprep.subr.bf16.mxu0 0
    %5629 = vmatpush1.bf16.msra.mxu0 0
    %5630 = vmatprep.subr.bf16.mxu0 0
    %5631 = vmatpush1.bf16.msra.mxu0 0
    %5632 = vmatprep.subr.bf16.mxu0 0
    %5633 = vmatpush1.bf16.msra.mxu0 0
    %5634 = vmatprep.subr.bf16.mxu0 0
    %5635 = vmatpush1.bf16.msra.mxu0 0
    %5636 = vmatprep.subr.bf16.mxu0 0
    %5637 = vmatpush1.bf16.msra.mxu0 0
    %5638 = vmatprep.subr.bf16.mxu0 0
    %5639 = vmatpush1.bf16.msra.mxu0 0
    %5640 = vmatprep.subr.bf16.mxu0 0
    %5641 = vmatpush1.bf16.msra.mxu0 0
    %5642 = vmatprep.subr.bf16.mxu0 0
    %5643 = vmatpush1.bf16.msra.mxu0 0
    %5644 = vmatprep.subr.bf16.mxu0 0
    %5645 = vmatpush1.bf16.msra.mxu0 0
    %5646 = vmatprep.subr.bf16.mxu0 0
    %5647 = vmatpush1.bf16.msra.mxu0 0
    %5648 = vmatprep.subr.bf16.mxu0 0
    %5649 = vmatpush1.bf16.msra.mxu0 0
    %5650 = vmatprep.subr.bf16.mxu0 0
    %5651 = vmatpush1.bf16.msra.mxu0 0
    %5652 = vmatprep.subr.bf16.mxu0 0
    %5653 = vmatpush1.bf16.msra.mxu0 0
    %5654 = vmatprep.mubr.bf16.mxu0 0
    %5655 = vmatmul.mubr.bf16.gmra.mrb[0].mxu0 %v2202
    %v5656 = vpop.f32.mrb[0].mxu0
    %v5657 = vadd.f32 %v2174, %v5656
    %v5658 = vpop.f32.mrb[0].mxu0
    %v5659 = vpop.f32.mrb[0].mxu0
    %v5660 = vadd.f32 %v2179, %v5659
    %v5661 = vpop.f32.mrb[0].mxu0
    %5662 = vmatprep.mubr.bf16.mxu0 0
    %5663 = vmatmul.mubr.bf16.gmra.mrb[0].mxu0 %v2205
    %v5664 = vpop.f32.mrb[0].mxu0
    %v5665 = vadd.f32 %v2184, %v5664
    %v5666 = vpop.f32.mrb[0].mxu0
    %v5667 = vpop.f32.mrb[0].mxu0
    %v5668 = vadd.f32 %v2189, %v5667
    %v5669 = vpop.f32.mrb[0].mxu0
    %5670 = vdwg.mxu0
    %5671 = vmatprep.subr.bf16.mxu0 0
    %5672 = vmatpush1.bf16.msra.mxu0 %v5420
    %5673 = vmatprep.subr.bf16.mxu0 0
    %5674 = vmatpush1.bf16.msra.mxu0 %v5421
    %5675 = vmatprep.subr.bf16.mxu0 0
    %5676 = vmatpush1.bf16.msra.mxu0 0
    %5677 = vmatprep.subr.bf16.mxu0 0
    %5678 = vmatpush1.bf16.msra.mxu0 0
    %5679 = vmatprep.subr.bf16.mxu0 0
    %5680 = vmatpush1.bf16.msra.mxu0 0
    %5681 = vmatprep.subr.bf16.mxu0 0
    %5682 = vmatpush1.bf16.msra.mxu0 0
    %5683 = vmatprep.subr.bf16.mxu0 0
    %5684 = vmatpush1.bf16.msra.mxu0 0
    %5685 = vmatprep.subr.bf16.mxu0 0
    %5686 = vmatpush1.bf16.msra.mxu0 0
    %5687 = vmatprep.subr.bf16.mxu0 0
    %5688 = vmatpush1.bf16.msra.mxu0 0
    %5689 = vmatprep.subr.bf16.mxu0 0
    %5690 = vmatpush1.bf16.msra.mxu0 0
    %5691 = vmatprep.subr.bf16.mxu0 0
    %5692 = vmatpush1.bf16.msra.mxu0 0
    %5693 = vmatprep.subr.bf16.mxu0 0
    %5694 = vmatpush1.bf16.msra.mxu0 0
    %5695 = vmatprep.subr.bf16.mxu0 0
    %5696 = vmatpush1.bf16.msra.mxu0 0
    %5697 = vmatprep.subr.bf16.mxu0 0
    %5698 = vmatpush1.bf16.msra.mxu0 0
    %5699 = vmatprep.subr.bf16.mxu0 0
    %5700 = vmatpush1.bf16.msra.mxu0 0
    %5701 = vmatprep.subr.bf16.mxu0 0
    %5702 = vmatpush1.bf16.msra.mxu0 0
    %5703 = vmatprep.mubr.bf16.mxu0 0
    %5704 = vmatmul.mubr.bf16.gmra.mrb[0].mxu0 %v2202
    %v5705 = vpop.f32.mrb[0].mxu0
    %v5706 = vadd.f32 %v2174, %v5705
    %v5707 = vpop.f32.mrb[0].mxu0
    %v5708 = vpop.f32.mrb[0].mxu0
    %v5709 = vadd.f32 %v2179, %v5708
    %v5710 = vpop.f32.mrb[0].mxu0
    %5711 = vmatprep.mubr.bf16.mxu0 0
    %5712 = vmatmul.mubr.bf16.gmra.mrb[0].mxu0 %v2205
    %v5713 = vpop.f32.mrb[0].mxu0
    %v5714 = vadd.f32 %v2184, %v5713
    %v5715 = vpop.f32.mrb[0].mxu0
    %v5716 = vpop.f32.mrb[0].mxu0
    %v5717 = vadd.f32 %v2189, %v5716
    %v5718 = vpop.f32.mrb[0].mxu0
    %5719 = vdwg.mxu0
    %5720 = vmatprep.subr.bf16.mxu0 0
    %5721 = vmatpush1.bf16.msra.mxu0 %v5422
    %5722 = vmatprep.subr.bf16.mxu0 0
    %5723 = vmatpush1.bf16.msra.mxu0 %v5423
    %5724 = vmatprep.subr.bf16.mxu0 0
    %5725 = vmatpush1.bf16.msra.mxu0 0
    %5726 = vmatprep.subr.bf16.mxu0 0
    %5727 = vmatpush1.bf16.msra.mxu0 0
    %5728 = vmatprep.subr.bf16.mxu0 0
    %5729 = vmatpush1.bf16.msra.mxu0 0
    %5730 = vmatprep.subr.bf16.mxu0 0
    %5731 = vmatpush1.bf16.msra.mxu0 0
    %5732 = vmatprep.subr.bf16.mxu0 0
    %5733 = vmatpush1.bf16.msra.mxu0 0
    %5734 = vmatprep.subr.bf16.mxu0 0
    %5735 = vmatpush1.bf16.msra.mxu0 0
    %5736 = vmatprep.subr.bf16.mxu0 0
    %5737 = vmatpush1.bf16.msra.mxu0 0
    %5738 = vmatprep.subr.bf16.mxu0 0
    %5739 = vmatpush1.bf16.msra.mxu0 0
    %5740 = vmatprep.subr.bf16.mxu0 0
    %5741 = vmatpush1.bf16.msra.mxu0 0
    %5742 = vmatprep.subr.bf16.mxu0 0
    %5743 = vmatpush1.bf16.msra.mxu0 0
    %5744 = vmatprep.subr.bf16.mxu0 0
    %5745 = vmatpush1.bf16.msra.mxu0 0
    %5746 = vmatprep.subr.bf16.mxu0 0
    %5747 = vmatpush1.bf16.msra.mxu0 0
    %5748 = vmatprep.subr.bf16.mxu0 0
    %5749 = vmatpush1.bf16.msra.mxu0 0
    %5750 = vmatprep.subr.bf16.mxu0 0
    %5751 = vmatpush1.bf16.msra.mxu0 0
    %5752 = vmatprep.mubr.bf16.mxu0 0
    %5753 = vmatmul.mubr.bf16.gmra.mrb[0].mxu0 %v2202
    %v5754 = vpop.f32.mrb[0].mxu0
    %v5755 = vadd.f32 %v2174, %v5754
    %v5756 = vpop.f32.mrb[0].mxu0
    %v5757 = vpop.f32.mrb[0].mxu0
    %v5758 = vadd.f32 %v2179, %v5757
    %v5759 = vpop.f32.mrb[0].mxu0
    %5760 = vmatprep.mubr.bf16.mxu0 0
    %5761 = vmatmul.mubr.bf16.gmra.mrb[0].mxu0 %v2205
    %v5762 = vpop.f32.mrb[0].mxu0
    %v5763 = vadd.f32 %v2184, %v5762
    %v5764 = vpop.f32.mrb[0].mxu0
    %v5765 = vpop.f32.mrb[0].mxu0
    %v5766 = vadd.f32 %v2189, %v5765
    %v5767 = vpop.f32.mrb[0].mxu0
    %5768 = vdwg.mxu0
    %5769 = vmatprep.subr.bf16.mxu0 0
    %5770 = vmatpush1.bf16.msra.mxu0 %v5424
    %5771 = vmatprep.subr.bf16.mxu0 0
    %5772 = vmatpush1.bf16.msra.mxu0 %v5425
    %5773 = vmatprep.subr.bf16.mxu0 0
    %5774 = vmatpush1.bf16.msra.mxu0 0
    %5775 = vmatprep.subr.bf16.mxu0 0
    %5776 = vmatpush1.bf16.msra.mxu0 0
    %5777 = vmatprep.subr.bf16.mxu0 0
    %5778 = vmatpush1.bf16.msra.mxu0 0
    %5779 = vmatprep.subr.bf16.mxu0 0
    %5780 = vmatpush1.bf16.msra.mxu0 0
    %5781 = vmatprep.subr.bf16.mxu0 0
    %5782 = vmatpush1.bf16.msra.mxu0 0
    %5783 = vmatprep.subr.bf16.mxu0 0
    %5784 = vmatpush1.bf16.msra.mxu0 0
    %5785 = vmatprep.subr.bf16.mxu0 0
    %5786 = vmatpush1.bf16.msra.mxu0 0
    %5787 = vmatprep.subr.bf16.mxu0 0
    %5788 = vmatpush1.bf16.msra.mxu0 0
    %5789 = vmatprep.subr.bf16.mxu0 0
    %5790 = vmatpush1.bf16.msra.mxu0 0
    %5791 = vmatprep.subr.bf16.mxu0 0
    %5792 = vmatpush1.bf16.msra.mxu0 0
    %5793 = vmatprep.subr.bf16.mxu0 0
    %5794 = vmatpush1.bf16.msra.mxu0 0
    %5795 = vmatprep.subr.bf16.mxu0 0
    %5796 = vmatpush1.bf16.msra.mxu0 0
    %5797 = vmatprep.subr.bf16.mxu0 0
    %5798 = vmatpush1.bf16.msra.mxu0 0
    %5799 = vmatprep.subr.bf16.mxu0 0
    %5800 = vmatpush1.bf16.msra.mxu0 0
    %5801 = vmatprep.mubr.bf16.mxu0 0
    %5802 = vmatmul.mubr.bf16.gmra.mrb[0].mxu0 %v2202
    %v5803 = vpop.f32.mrb[0].mxu0
    %v5804 = vadd.f32 %v2174, %v5803
    %v5805 = vpop.f32.mrb[0].mxu0
    %v5806 = vpop.f32.mrb[0].mxu0
    %v5807 = vadd.f32 %v2179, %v5806
    %v5808 = vpop.f32.mrb[0].mxu0
    %5809 = vmatprep.mubr.bf16.mxu0 0
    %5810 = vmatmul.mubr.bf16.gmra.mrb[0].mxu0 %v2205
    %v5811 = vpop.f32.mrb[0].mxu0
    %v5812 = vadd.f32 %v2184, %v5811
    %v5813 = vpop.f32.mrb[0].mxu0
    %v5814 = vpop.f32.mrb[0].mxu0
    %v5815 = vadd.f32 %v2189, %v5814
    %v5816 = vpop.f32.mrb[0].mxu0
    %5817 = vdwg.mxu0
    %5818 = vmatprep.subr.bf16.mxu0 0
    %5819 = vmatpush1.bf16.msra.mxu0 %v5412
    %5820 = vmatprep.subr.bf16.mxu0 0
    %5821 = vmatpush1.bf16.msra.mxu0 %v5413
    %5822 = vmatprep.subr.bf16.mxu0 0
    %5823 = vmatpush1.bf16.msra.mxu0 %v5410
    %5824 = vmatprep.subr.bf16.mxu0 0
    %5825 = vmatpush1.bf16.msra.mxu0 %v5411
    %5826 = vmatprep.subr.bf16.mxu0 0
    %5827 = vmatpush1.bf16.msra.mxu0 0
    %5828 = vmatprep.subr.bf16.mxu0 0
    %5829 = vmatpush1.bf16.msra.mxu0 0
    %5830 = vmatprep.subr.bf16.mxu0 0
    %5831 = vmatpush1.bf16.msra.mxu0 0
    %5832 = vmatprep.subr.bf16.mxu0 0
    %5833 = vmatpush1.bf16.msra.mxu0 0
    %5834 = vmatprep.subr.bf16.mxu0 0
    %5835 = vmatpush1.bf16.msra.mxu0 0
    %5836 = vmatprep.subr.bf16.mxu0 0
    %5837 = vmatpush1.bf16.msra.mxu0 0
    %5838 = vmatprep.subr.bf16.mxu0 0
    %5839 = vmatpush1.bf16.msra.mxu0 0
    %5840 = vmatprep.subr.bf16.mxu0 0
    %5841 = vmatpush1.bf16.msra.mxu0 0
    %5842 = vmatprep.subr.bf16.mxu0 0
    %5843 = vmatpush1.bf16.msra.mxu0 0
    %5844 = vmatprep.subr.bf16.mxu0 0
    %5845 = vmatpush1.bf16.msra.mxu0 0
    %5846 = vmatprep.subr.bf16.mxu0 0
    %5847 = vmatpush1.bf16.msra.mxu0 0
    %5848 = vmatprep.subr.bf16.mxu0 0
    %5849 = vmatpush1.bf16.msra.mxu0 0
    %5850 = vmatprep.mubr.bf16.mxu0 0
    %5851 = vmatmul.mubr.bf16.gmra.mrb[0].mxu0 %v2610
    %v5852 = vpop.f32.mrb[0].mxu0
    %v5853 = vadd.f32 %v2174, %v5852
    %v5854 = vpop.f32.mrb[0].mxu0
    %v5855 = vpop.f32.mrb[0].mxu0
    %v5856 = vadd.f32 %v2179, %v5855
    %v5857 = vpop.f32.mrb[0].mxu0
    %5858 = vmatprep.mubr.bf16.mxu0 0
    %5859 = vmatmul.mubr.bf16.gmra.mrb[0].mxu0 %v2613
    %v5860 = vpop.f32.mrb[0].mxu0
    %v5861 = vadd.f32 %v2184, %v5860
    %v5862 = vpop.f32.mrb[0].mxu0
    %v5863 = vpop.f32.mrb[0].mxu0
    %v5864 = vadd.f32 %v2189, %v5863
    %v5865 = vpop.f32.mrb[0].mxu0
    %5866 = vdwg.mxu0
    %5867 = vmatprep.subr.bf16.mxu0 0
    %5868 = vmatpush1.bf16.msra.mxu0 %v5414
    %5869 = vmatprep.subr.bf16.mxu0 0
    %5870 = vmatpush1.bf16.msra.mxu0 %v5415
    %5871 = vmatprep.subr.bf16.mxu0 0
    %5872 = vmatpush1.bf16.msra.mxu0 %v5412
    %5873 = vmatprep.subr.bf16.mxu0 0
    %5874 = vmatpush1.bf16.msra.mxu0 %v5413
    %5875 = vmatprep.subr.bf16.mxu0 0
    %5876 = vmatpush1.bf16.msra.mxu0 0
    %5877 = vmatprep.subr.bf16.mxu0 0
    %5878 = vmatpush1.bf16.msra.mxu0 0
    %5879 = vmatprep.subr.bf16.mxu0 0
    %5880 = vmatpush1.bf16.msra.mxu0 0
    %5881 = vmatprep.subr.bf16.mxu0 0
    %5882 = vmatpush1.bf16.msra.mxu0 0
    %5883 = vmatprep.subr.bf16.mxu0 0
    %5884 = vmatpush1.bf16.msra.mxu0 0
    %5885 = vmatprep.subr.bf16.mxu0 0
    %5886 = vmatpush1.bf16.msra.mxu0 0
    %5887 = vmatprep.subr.bf16.mxu0 0
    %5888 = vmatpush1.bf16.msra.mxu0 0
    %5889 = vmatprep.subr.bf16.mxu0 0
    %5890 = vmatpush1.bf16.msra.mxu0 0
    %5891 = vmatprep.subr.bf16.mxu0 0
    %5892 = vmatpush1.bf16.msra.mxu0 0
    %5893 = vmatprep.subr.bf16.mxu0 0
    %5894 = vmatpush1.bf16.msra.mxu0 0
    %5895 = vmatprep.subr.bf16.mxu0 0
    %5896 = vmatpush1.bf16.msra.mxu0 0
    %5897 = vmatprep.subr.bf16.mxu0 0
    %5898 = vmatpush1.bf16.msra.mxu0 0
    %5899 = vmatprep.mubr.bf16.mxu0 0
    %5900 = vmatmul.mubr.bf16.gmra.mrb[0].mxu0 %v2610
    %v5901 = vpop.f32.mrb[0].mxu0
    %v5902 = vadd.f32 %v2174, %v5901
    %v5903 = vpop.f32.mrb[0].mxu0
    %v5904 = vpop.f32.mrb[0].mxu0
    %v5905 = vadd.f32 %v2179, %v5904
    %v5906 = vpop.f32.mrb[0].mxu0
    %5907 = vmatprep.mubr.bf16.mxu0 0
    %5908 = vmatmul.mubr.bf16.gmra.mrb[0].mxu0 %v2613
    %v5909 = vpop.f32.mrb[0].mxu0
    %v5910 = vadd.f32 %v2184, %v5909
    %v5911 = vpop.f32.mrb[0].mxu0
    %v5912 = vpop.f32.mrb[0].mxu0
    %v5913 = vadd.f32 %v2189, %v5912
    %v5914 = vpop.f32.mrb[0].mxu0
    %5915 = vdwg.mxu0
    %5916 = vmatprep.subr.bf16.mxu0 0
    %5917 = vmatpush1.bf16.msra.mxu0 %v5416
    %5918 = vmatprep.subr.bf16.mxu0 0
    %5919 = vmatpush1.bf16.msra.mxu0 %v5417
    %5920 = vmatprep.subr.bf16.mxu0 0
    %5921 = vmatpush1.bf16.msra.mxu0 %v5414
    %5922 = vmatprep.subr.bf16.mxu0 0
    %5923 = vmatpush1.bf16.msra.mxu0 %v5415
    %5924 = vmatprep.subr.bf16.mxu0 0
    %5925 = vmatpush1.bf16.msra.mxu0 0
    %5926 = vmatprep.subr.bf16.mxu0 0
    %5927 = vmatpush1.bf16.msra.mxu0 0
    %5928 = vmatprep.subr.bf16.mxu0 0
    %5929 = vmatpush1.bf16.msra.mxu0 0
    %5930 = vmatprep.subr.bf16.mxu0 0
    %5931 = vmatpush1.bf16.msra.mxu0 0
    %5932 = vmatprep.subr.bf16.mxu0 0
    %5933 = vmatpush1.bf16.msra.mxu0 0
    %5934 = vmatprep.subr.bf16.mxu0 0
    %5935 = vmatpush1.bf16.msra.mxu0 0
    %5936 = vmatprep.subr.bf16.mxu0 0
    %5937 = vmatpush1.bf16.msra.mxu0 0
    %5938 = vmatprep.subr.bf16.mxu0 0
    %5939 = vmatpush1.bf16.msra.mxu0 0
    %5940 = vmatprep.subr.bf16.mxu0 0
    %5941 = vmatpush1.bf16.msra.mxu0 0
    %5942 = vmatprep.subr.bf16.mxu0 0
    %5943 = vmatpush1.bf16.msra.mxu0 0
    %5944 = vmatprep.subr.bf16.mxu0 0
    %5945 = vmatpush1.bf16.msra.mxu0 0
    %5946 = vmatprep.subr.bf16.mxu0 0
    %5947 = vmatpush1.bf16.msra.mxu0 0
    %5948 = vmatprep.mubr.bf16.mxu0 0
    %5949 = vmatmul.mubr.bf16.gmra.mrb[0].mxu0 %v2610
    %v5950 = vpop.f32.mrb[0].mxu0
    %v5951 = vadd.f32 %v2174, %v5950
    %v5952 = vpop.f32.mrb[0].mxu0
    %v5953 = vpop.f32.mrb[0].mxu0
    %v5954 = vadd.f32 %v2179, %v5953
    %v5955 = vpop.f32.mrb[0].mxu0
    %5956 = vmatprep.mubr.bf16.mxu0 0
    %5957 = vmatmul.mubr.bf16.gmra.mrb[0].mxu0 %v2613
    %v5958 = vpop.f32.mrb[0].mxu0
    %v5959 = vadd.f32 %v2184, %v5958
    %v5960 = vpop.f32.mrb[0].mxu0
    %v5961 = vpop.f32.mrb[0].mxu0
    %v5962 = vadd.f32 %v2189, %v5961
    %v5963 = vpop.f32.mrb[0].mxu0
    %5964 = vdwg.mxu0
    %5965 = vmatprep.subr.bf16.mxu0 0
    %5966 = vmatpush1.bf16.msra.mxu0 %v5418
    %5967 = vmatprep.subr.bf16.mxu0 0
    %5968 = vmatpush1.bf16.msra.mxu0 %v5419
    %5969 = vmatprep.subr.bf16.mxu0 0
    %5970 = vmatpush1.bf16.msra.mxu0 %v5416
    %5971 = vmatprep.subr.bf16.mxu0 0
    %5972 = vmatpush1.bf16.msra.mxu0 %v5417
    %5973 = vmatprep.subr.bf16.mxu0 0
    %5974 = vmatpush1.bf16.msra.mxu0 0
    %5975 = vmatprep.subr.bf16.mxu0 0
    %5976 = vmatpush1.bf16.msra.mxu0 0
    %5977 = vmatprep.subr.bf16.mxu0 0
    %5978 = vmatpush1.bf16.msra.mxu0 0
    %5979 = vmatprep.subr.bf16.mxu0 0
    %5980 = vmatpush1.bf16.msra.mxu0 0
    %5981 = vmatprep.subr.bf16.mxu0 0
    %5982 = vmatpush1.bf16.msra.mxu0 0
    %5983 = vmatprep.subr.bf16.mxu0 0
    %5984 = vmatpush1.bf16.msra.mxu0 0
    %5985 = vmatprep.subr.bf16.mxu0 0
    %5986 = vmatpush1.bf16.msra.mxu0 0
    %5987 = vmatprep.subr.bf16.mxu0 0
    %5988 = vmatpush1.bf16.msra.mxu0 0
    %5989 = vmatprep.subr.bf16.mxu0 0
    %5990 = vmatpush1.bf16.msra.mxu0 0
    %5991 = vmatprep.subr.bf16.mxu0 0
    %5992 = vmatpush1.bf16.msra.mxu0 0
    %5993 = vmatprep.subr.bf16.mxu0 0
    %5994 = vmatpush1.bf16.msra.mxu0 0
    %5995 = vmatprep.subr.bf16.mxu0 0
    %5996 = vmatpush1.bf16.msra.mxu0 0
    %5997 = vmatprep.mubr.bf16.mxu0 0
    %5998 = vmatmul.mubr.bf16.gmra.mrb[0].mxu0 %v2610
    %v5999 = vpop.f32.mrb[0].mxu0
    %v6000 = vadd.f32 %v2174, %v5999
    %v6001 = vpop.f32.mrb[0].mxu0
    %v6002 = vpop.f32.mrb[0].mxu0
    %v6003 = vadd.f32 %v2179, %v6002
    %v6004 = vpop.f32.mrb[0].mxu0
    %6005 = vmatprep.mubr.bf16.mxu0 0
    %6006 = vmatmul.mubr.bf16.gmra.mrb[0].mxu0 %v2613
    %v6007 = vpop.f32.mrb[0].mxu0
    %v6008 = vadd.f32 %v2184, %v6007
    %v6009 = vpop.f32.mrb[0].mxu0
    %v6010 = vpop.f32.mrb[0].mxu0
    %v6011 = vadd.f32 %v2189, %v6010
    %v6012 = vpop.f32.mrb[0].mxu0
    %6013 = vdwg.mxu0
    %6014 = vmatprep.subr.bf16.mxu0 0
    %6015 = vmatpush1.bf16.msra.mxu0 %v5420
    %6016 = vmatprep.subr.bf16.mxu0 0
    %6017 = vmatpush1.bf16.msra.mxu0 %v5421
    %6018 = vmatprep.subr.bf16.mxu0 0
    %6019 = vmatpush1.bf16.msra.mxu0 %v5418
    %6020 = vmatprep.subr.bf16.mxu0 0
    %6021 = vmatpush1.bf16.msra.mxu0 %v5419
    %6022 = vmatprep.subr.bf16.mxu0 0
    %6023 = vmatpush1.bf16.msra.mxu0 0
    %6024 = vmatprep.subr.bf16.mxu0 0
    %6025 = vmatpush1.bf16.msra.mxu0 0
    %6026 = vmatprep.subr.bf16.mxu0 0
    %6027 = vmatpush1.bf16.msra.mxu0 0
    %6028 = vmatprep.subr.bf16.mxu0 0
    %6029 = vmatpush1.bf16.msra.mxu0 0
    %6030 = vmatprep.subr.bf16.mxu0 0
    %6031 = vmatpush1.bf16.msra.mxu0 0
    %6032 = vmatprep.subr.bf16.mxu0 0
    %6033 = vmatpush1.bf16.msra.mxu0 0
    %6034 = vmatprep.subr.bf16.mxu0 0
    %6035 = vmatpush1.bf16.msra.mxu0 0
    %6036 = vmatprep.subr.bf16.mxu0 0
    %6037 = vmatpush1.bf16.msra.mxu0 0
    %6038 = vmatprep.subr.bf16.mxu0 0
    %6039 = vmatpush1.bf16.msra.mxu0 0
    %6040 = vmatprep.subr.bf16.mxu0 0
    %6041 = vmatpush1.bf16.msra.mxu0 0
    %6042 = vmatprep.subr.bf16.mxu0 0
    %6043 = vmatpush1.bf16.msra.mxu0 0
    %6044 = vmatprep.subr.bf16.mxu0 0
    %6045 = vmatpush1.bf16.msra.mxu0 0
    %6046 = vmatprep.mubr.bf16.mxu0 0
    %6047 = vmatmul.mubr.bf16.gmra.mrb[0].mxu0 %v2610
    %v6048 = vpop.f32.mrb[0].mxu0
    %v6049 = vadd.f32 %v2174, %v6048
    %v6050 = vpop.f32.mrb[0].mxu0
    %v6051 = vpop.f32.mrb[0].mxu0
    %v6052 = vadd.f32 %v2179, %v6051
    %v6053 = vpop.f32.mrb[0].mxu0
    %6054 = vmatprep.mubr.bf16.mxu0 0
    %6055 = vmatmul.mubr.bf16.gmra.mrb[0].mxu0 %v2613
    %v6056 = vpop.f32.mrb[0].mxu0
    %v6057 = vadd.f32 %v2184, %v6056
    %v6058 = vpop.f32.mrb[0].mxu0
    %v6059 = vpop.f32.mrb[0].mxu0
    %v6060 = vadd.f32 %v2189, %v6059
    %v6061 = vpop.f32.mrb[0].mxu0
    %6062 = vdwg.mxu0
    %6063 = vmatprep.subr.bf16.mxu0 0
    %6064 = vmatpush1.bf16.msra.mxu0 %v5422
    %6065 = vmatprep.subr.bf16.mxu0 0
    %6066 = vmatpush1.bf16.msra.mxu0 %v5423
    %6067 = vmatprep.subr.bf16.mxu0 0
    %6068 = vmatpush1.bf16.msra.mxu0 %v5420
    %6069 = vmatprep.subr.bf16.mxu0 0
    %6070 = vmatpush1.bf16.msra.mxu0 %v5421
    %6071 = vmatprep.subr.bf16.mxu0 0
    %6072 = vmatpush1.bf16.msra.mxu0 0
    %6073 = vmatprep.subr.bf16.mxu0 0
    %6074 = vmatpush1.bf16.msra.mxu0 0
    %6075 = vmatprep.subr.bf16.mxu0 0
    %6076 = vmatpush1.bf16.msra.mxu0 0
    %6077 = vmatprep.subr.bf16.mxu0 0
    %6078 = vmatpush1.bf16.msra.mxu0 0
    %6079 = vmatprep.subr.bf16.mxu0 0
    %6080 = vmatpush1.bf16.msra.mxu0 0
    %6081 = vmatprep.subr.bf16.mxu0 0
    %6082 = vmatpush1.bf16.msra.mxu0 0
    %6083 = vmatprep.subr.bf16.mxu0 0
    %6084 = vmatpush1.bf16.msra.mxu0 0
    %6085 = vmatprep.subr.bf16.mxu0 0
    %6086 = vmatpush1.bf16.msra.mxu0 0
    %6087 = vmatprep.subr.bf16.mxu0 0
    %6088 = vmatpush1.bf16.msra.mxu0 0
    %6089 = vmatprep.subr.bf16.mxu0 0
    %6090 = vmatpush1.bf16.msra.mxu0 0
    %6091 = vmatprep.subr.bf16.mxu0 0
    %6092 = vmatpush1.bf16.msra.mxu0 0
    %6093 = vmatprep.subr.bf16.mxu0 0
    %6094 = vmatpush1.bf16.msra.mxu0 0
    %6095 = vmatprep.mubr.bf16.mxu0 0
    %6096 = vmatmul.mubr.bf16.gmra.mrb[0].mxu0 %v2610
    %v6097 = vpop.f32.mrb[0].mxu0
    %v6098 = vadd.f32 %v2174, %v6097
    %v6099 = vpop.f32.mrb[0].mxu0
    %v6100 = vpop.f32.mrb[0].mxu0
    %v6101 = vadd.f32 %v2179, %v6100
    %v6102 = vpop.f32.mrb[0].mxu0
    %6103 = vmatprep.mubr.bf16.mxu0 0
    %6104 = vmatmul.mubr.bf16.gmra.mrb[0].mxu0 %v2613
    %v6105 = vpop.f32.mrb[0].mxu0
    %v6106 = vadd.f32 %v2184, %v6105
    %v6107 = vpop.f32.mrb[0].mxu0
    %v6108 = vpop.f32.mrb[0].mxu0
    %v6109 = vadd.f32 %v2189, %v6108
    %v6110 = vpop.f32.mrb[0].mxu0
    %6111 = vdwg.mxu0
    %6112 = vmatprep.subr.bf16.mxu0 0
    %6113 = vmatpush1.bf16.msra.mxu0 %v5424
    %6114 = vmatprep.subr.bf16.mxu0 0
    %6115 = vmatpush1.bf16.msra.mxu0 %v5425
    %6116 = vmatprep.subr.bf16.mxu0 0
    %6117 = vmatpush1.bf16.msra.mxu0 %v5422
    %6118 = vmatprep.subr.bf16.mxu0 0
    %6119 = vmatpush1.bf16.msra.mxu0 %v5423
    %6120 = vmatprep.subr.bf16.mxu0 0
    %6121 = vmatpush1.bf16.msra.mxu0 0
    %6122 = vmatprep.subr.bf16.mxu0 0
    %6123 = vmatpush1.bf16.msra.mxu0 0
    %6124 = vmatprep.subr.bf16.mxu0 0
    %6125 = vmatpush1.bf16.msra.mxu0 0
    %6126 = vmatprep.subr.bf16.mxu0 0
    %6127 = vmatpush1.bf16.msra.mxu0 0
    %6128 = vmatprep.subr.bf16.mxu0 0
    %6129 = vmatpush1.bf16.msra.mxu0 0
    %6130 = vmatprep.subr.bf16.mxu0 0
    %6131 = vmatpush1.bf16.msra.mxu0 0
    %6132 = vmatprep.subr.bf16.mxu0 0
    %6133 = vmatpush1.bf16.msra.mxu0 0
    %6134 = vmatprep.subr.bf16.mxu0 0
    %6135 = vmatpush1.bf16.msra.mxu0 0
    %6136 = vmatprep.subr.bf16.mxu0 0
    %6137 = vmatpush1.bf16.msra.mxu0 0
    %6138 = vmatprep.subr.bf16.mxu0 0
    %6139 = vmatpush1.bf16.msra.mxu0 0
    %6140 = vmatprep.subr.bf16.mxu0 0
    %6141 = vmatpush1.bf16.msra.mxu0 0
    %6142 = vmatprep.subr.bf16.mxu0 0
    %6143 = vmatpush1.bf16.msra.mxu0 0
    %6144 = vmatprep.mubr.bf16.mxu0 0
    %6145 = vmatmul.mubr.bf16.gmra.mrb[0].mxu0 %v2610
    %v6146 = vpop.f32.mrb[0].mxu0
    %v6147 = vadd.f32 %v2174, %v6146
    %v6148 = vpop.f32.mrb[0].mxu0
    %v6149 = vpop.f32.mrb[0].mxu0
    %v6150 = vadd.f32 %v2179, %v6149
    %v6151 = vpop.f32.mrb[0].mxu0
    %6152 = vmatprep.mubr.bf16.mxu0 0
    %6153 = vmatmul.mubr.bf16.gmra.mrb[0].mxu0 %v2613
    %v6154 = vpop.f32.mrb[0].mxu0
    %v6155 = vadd.f32 %v2184, %v6154
    %v6156 = vpop.f32.mrb[0].mxu0
    %v6157 = vpop.f32.mrb[0].mxu0
    %v6158 = vadd.f32 %v2189, %v6157
    %v6159 = vpop.f32.mrb[0].mxu0
    %6160 = vdwg.mxu0
    %6161 = vmatprep.subr.bf16.mxu0 0
    %6162 = vmatpush1.bf16.msra.mxu0 %v871
    %6163 = vmatprep.subr.bf16.mxu0 0
    %6164 = vmatpush1.bf16.msra.mxu0 %v871
    %6165 = vmatprep.subr.bf16.mxu0 0
    %6166 = vmatpush1.bf16.msra.mxu0 %v5424
    %6167 = vmatprep.subr.bf16.mxu0 0
    %6168 = vmatpush1.bf16.msra.mxu0 %v5425
    %6169 = vmatprep.subr.bf16.mxu0 0
    %6170 = vmatpush1.bf16.msra.mxu0 0
    %6171 = vmatprep.subr.bf16.mxu0 0
    %6172 = vmatpush1.bf16.msra.mxu0 0
    %6173 = vmatprep.subr.bf16.mxu0 0
    %6174 = vmatpush1.bf16.msra.mxu0 0
    %6175 = vmatprep.subr.bf16.mxu0 0
    %6176 = vmatpush1.bf16.msra.mxu0 0
    %6177 = vmatprep.subr.bf16.mxu0 0
    %6178 = vmatpush1.bf16.msra.mxu0 0
    %6179 = vmatprep.subr.bf16.mxu0 0
    %6180 = vmatpush1.bf16.msra.mxu0 0
    %6181 = vmatprep.subr.bf16.mxu0 0
    %6182 = vmatpush1.bf16.msra.mxu0 0
    %6183 = vmatprep.subr.bf16.mxu0 0
    %6184 = vmatpush1.bf16.msra.mxu0 0
    %6185 = vmatprep.subr.bf16.mxu0 0
    %6186 = vmatpush1.bf16.msra.mxu0 0
    %6187 = vmatprep.subr.bf16.mxu0 0
    %6188 = vmatpush1.bf16.msra.mxu0 0
    %6189 = vmatprep.subr.bf16.mxu0 0
    %6190 = vmatpush1.bf16.msra.mxu0 0
    %6191 = vmatprep.subr.bf16.mxu0 0
    %6192 = vmatpush1.bf16.msra.mxu0 0
    %6193 = vmatprep.mubr.bf16.mxu0 0
    %6194 = vmatmul.mubr.bf16.gmra.mrb[0].mxu0 %v2610
    %v6195 = vpop.f32.mrb[0].mxu0
    %v6196 = vadd.f32 %v2174, %v6195
    %v6197 = vpop.f32.mrb[0].mxu0
    %v6198 = vpop.f32.mrb[0].mxu0
    %v6199 = vadd.f32 %v2179, %v6198
    %v6200 = vpop.f32.mrb[0].mxu0
    %6201 = vmatprep.mubr.bf16.mxu0 0
    %6202 = vmatmul.mubr.bf16.gmra.mrb[0].mxu0 %v2613
    %v6203 = vpop.f32.mrb[0].mxu0
    %v6204 = vadd.f32 %v2184, %v6203
    %v6205 = vpop.f32.mrb[0].mxu0
    %v6206 = vpop.f32.mrb[0].mxu0
    %v6207 = vadd.f32 %v2189, %v6206
    %v6208 = vpop.f32.mrb[0].mxu0
    %6209 = vdwg.mxu0
    %v6210 = vmul.f32 %v5461, %v3031
    %v6211 = vmul.f32 %v5464, %v3035
    %v6212 = vmul.f32 %v5469, %v3039
    %v6213 = vmul.f32 %v5472, %v3043
    %v6214 = vmul.f32 %v5853, %v3047
    %v6215 = vmul.f32 %v5856, %v3051
    %v6216 = vmul.f32 %v5861, %v3055
    %v6217 = vmul.f32 %v5864, %v3059
    %v6218 = vmul.f32 %v5461, %v3015
    %v6219 = vmul.f32 %v5464, %v3019
    %v6220 = vmul.f32 %v5469, %v3023
    %v6221 = vmul.f32 %v5472, %v3027
    %v6222 = vmul.f32 %v5853, %v3031
    %v6223 = vmul.f32 %v5856, %v3035
    %v6224 = vmul.f32 %v5861, %v3039
    %v6225 = vmul.f32 %v5864, %v3043
    %v6226 = vmul.f32 %v5510, %v3047
    %v6227 = vmul.f32 %v5513, %v3051
    %v6228 = vmul.f32 %v5518, %v3055
    %v6229 = vmul.f32 %v5521, %v3059
    %v6230 = vmul.f32 %v5853, %v3015
    %v6231 = vmul.f32 %v5856, %v3019
    %v6232 = vmul.f32 %v5861, %v3023
    %v6233 = vmul.f32 %v5864, %v3027
    %v6234 = vmul.f32 %v5510, %v3031
    %v6235 = vmul.f32 %v5513, %v3035
    %v6236 = vmul.f32 %v5518, %v3039
    %v6237 = vmul.f32 %v5521, %v3043
    %v6238 = vmul.f32 %v5902, %v3047
    %v6239 = vmul.f32 %v5905, %v3051
    %v6240 = vmul.f32 %v5910, %v3055
    %v6241 = vmul.f32 %v5913, %v3059
    %v6242 = vmul.f32 %v5510, %v3015
    %v6243 = vmul.f32 %v5513, %v3019
    %v6244 = vmul.f32 %v5518, %v3023
    %v6245 = vmul.f32 %v5521, %v3027
    %v6246 = vmul.f32 %v5902, %v3031
    %v6247 = vmul.f32 %v5905, %v3035
    %v6248 = vmul.f32 %v5910, %v3039
    %v6249 = vmul.f32 %v5913, %v3043
    %v6250 = vmul.f32 %v5559, %v3047
    %v6251 = vmul.f32 %v5562, %v3051
    %v6252 = vmul.f32 %v5567, %v3055
    %v6253 = vmul.f32 %v5570, %v3059
    %v6254 = vmul.f32 %v5902, %v3015
    %v6255 = vmul.f32 %v5905, %v3019
    %v6256 = vmul.f32 %v5910, %v3023
    %v6257 = vmul.f32 %v5913, %v3027
    %v6258 = vmul.f32 %v5559, %v3031
    %v6259 = vmul.f32 %v5562, %v3035
    %v6260 = vmul.f32 %v5567, %v3039
    %v6261 = vmul.f32 %v5570, %v3043
    %v6262 = vmul.f32 %v5951, %v3047
    %v6263 = vmul.f32 %v5954, %v3051
    %v6264 = vmul.f32 %v5959, %v3055
    %v6265 = vmul.f32 %v5962, %v3059
    %v6266 = vmul.f32 %v5559, %v3015
    %v6267 = vmul.f32 %v5562, %v3019
    %v6268 = vmul.f32 %v5567, %v3023
    %v6269 = vmul.f32 %v5570, %v3027
    %v6270 = vmul.f32 %v5951, %v3031
    %v6271 = vmul.f32 %v5954, %v3035
    %v6272 = vmul.f32 %v5959, %v3039
    %v6273 = vmul.f32 %v5962, %v3043
    %v6274 = vmul.f32 %v5608, %v3047
    %v6275 = vmul.f32 %v5611, %v3051
    %v6276 = vmul.f32 %v5616, %v3055
    %v6277 = vmul.f32 %v5619, %v3059
    %v6278 = vmul.f32 %v5951, %v3015
    %v6279 = vmul.f32 %v5954, %v3019
    %v6280 = vmul.f32 %v5959, %v3023
    %v6281 = vmul.f32 %v5962, %v3027
    %v6282 = vmul.f32 %v5608, %v3031
    %v6283 = vmul.f32 %v5611, %v3035
    %v6284 = vmul.f32 %v5616, %v3039
    %v6285 = vmul.f32 %v5619, %v3043
    %v6286 = vmul.f32 %v6000, %v3047
    %v6287 = vmul.f32 %v6003, %v3051
    %v6288 = vmul.f32 %v6008, %v3055
    %v6289 = vmul.f32 %v6011, %v3059
    %v6290 = vmul.f32 %v5608, %v3015
    %v6291 = vmul.f32 %v5611, %v3019
    %v6292 = vmul.f32 %v5616, %v3023
    %v6293 = vmul.f32 %v5619, %v3027
    %v6294 = vmul.f32 %v6000, %v3031
    %v6295 = vmul.f32 %v6003, %v3035
    %v6296 = vmul.f32 %v6008, %v3039
    %v6297 = vmul.f32 %v6011, %v3043
    %v6298 = vmul.f32 %v5657, %v3047
    %v6299 = vmul.f32 %v5660, %v3051
    %v6300 = vmul.f32 %v5665, %v3055
    %v6301 = vmul.f32 %v5668, %v3059
    %v6302 = vmul.f32 %v6000, %v3015
    %v6303 = vmul.f32 %v6003, %v3019
    %v6304 = vmul.f32 %v6008, %v3023
    %v6305 = vmul.f32 %v6011, %v3027
    %v6306 = vmul.f32 %v5657, %v3031
    %v6307 = vmul.f32 %v5660, %v3035
    %v6308 = vmul.f32 %v5665, %v3039
    %v6309 = vmul.f32 %v5668, %v3043
    %v6310 = vmul.f32 %v6049, %v3047
    %v6311 = vmul.f32 %v6052, %v3051
    %v6312 = vmul.f32 %v6057, %v3055
    %v6313 = vmul.f32 %v6060, %v3059
    %v6314 = vmul.f32 %v5657, %v3015
    %v6315 = vmul.f32 %v5660, %v3019
    %v6316 = vmul.f32 %v5665, %v3023
    %v6317 = vmul.f32 %v5668, %v3027
    %v6318 = vmul.f32 %v6049, %v3031
    %v6319 = vmul.f32 %v6052, %v3035
    %v6320 = vmul.f32 %v6057, %v3039
    %v6321 = vmul.f32 %v6060, %v3043
    %v6322 = vmul.f32 %v5706, %v3047
    %v6323 = vmul.f32 %v5709, %v3051
    %v6324 = vmul.f32 %v5714, %v3055
    %v6325 = vmul.f32 %v5717, %v3059
    %v6326 = vmul.f32 %v6049, %v3015
    %v6327 = vmul.f32 %v6052, %v3019
    %v6328 = vmul.f32 %v6057, %v3023
    %v6329 = vmul.f32 %v6060, %v3027
    %v6330 = vmul.f32 %v5706, %v3031
    %v6331 = vmul.f32 %v5709, %v3035
    %v6332 = vmul.f32 %v5714, %v3039
    %v6333 = vmul.f32 %v5717, %v3043
    %v6334 = vmul.f32 %v6098, %v3047
    %v6335 = vmul.f32 %v6101, %v3051
    %v6336 = vmul.f32 %v6106, %v3055
    %v6337 = vmul.f32 %v6109, %v3059
    %v6338 = vmul.f32 %v5706, %v3015
    %v6339 = vmul.f32 %v5709, %v3019
    %v6340 = vmul.f32 %v5714, %v3023
    %v6341 = vmul.f32 %v5717, %v3027
    %v6342 = vmul.f32 %v6098, %v3031
    %v6343 = vmul.f32 %v6101, %v3035
    %v6344 = vmul.f32 %v6106, %v3039
    %v6345 = vmul.f32 %v6109, %v3043
    %v6346 = vmul.f32 %v5755, %v3047
    %v6347 = vmul.f32 %v5758, %v3051
    %v6348 = vmul.f32 %v5763, %v3055
    %v6349 = vmul.f32 %v5766, %v3059
    %v6350 = vmul.f32 %v6098, %v3015
    %v6351 = vmul.f32 %v6101, %v3019
    %v6352 = vmul.f32 %v6106, %v3023
    %v6353 = vmul.f32 %v6109, %v3027
    %v6354 = vmul.f32 %v5755, %v3031
    %v6355 = vmul.f32 %v5758, %v3035
    %v6356 = vmul.f32 %v5763, %v3039
    %v6357 = vmul.f32 %v5766, %v3043
    %v6358 = vmul.f32 %v6147, %v3047
    %v6359 = vmul.f32 %v6150, %v3051
    %v6360 = vmul.f32 %v6155, %v3055
    %v6361 = vmul.f32 %v6158, %v3059
    %v6362 = vmul.f32 %v5755, %v3015
    %v6363 = vmul.f32 %v5758, %v3019
    %v6364 = vmul.f32 %v5763, %v3023
    %v6365 = vmul.f32 %v5766, %v3027
    %v6366 = vmul.f32 %v6147, %v3031
    %v6367 = vmul.f32 %v6150, %v3035
    %v6368 = vmul.f32 %v6155, %v3039
    %v6369 = vmul.f32 %v6158, %v3043
    %v6370 = vmul.f32 %v5804, %v3047
    %v6371 = vmul.f32 %v5807, %v3051
    %v6372 = vmul.f32 %v5812, %v3055
    %v6373 = vmul.f32 %v5815, %v3059
    %v6374 = vmul.f32 %v6147, %v3015
    %v6375 = vmul.f32 %v6150, %v3019
    %v6376 = vmul.f32 %v6155, %v3023
    %v6377 = vmul.f32 %v6158, %v3027
    %v6378 = vmul.f32 %v5804, %v3031
    %v6379 = vmul.f32 %v5807, %v3035
    %v6380 = vmul.f32 %v5812, %v3039
    %v6381 = vmul.f32 %v5815, %v3043
    %v6382 = vmul.f32 %v6196, %v3047
    %v6383 = vmul.f32 %v6199, %v3051
    %v6384 = vmul.f32 %v6204, %v3055
    %v6385 = vmul.f32 %v6207, %v3059
    %v6386 = vmul.f32 %v5804, %v3015
    %v6387 = vmul.f32 %v5807, %v3019
    %v6388 = vmul.f32 %v5812, %v3023
    %v6389 = vmul.f32 %v5815, %v3027
    %v6390 = vmul.f32 %v6196, %v3031
    %v6391 = vmul.f32 %v6199, %v3035
    %v6392 = vmul.f32 %v6204, %v3039
    %v6393 = vmul.f32 %v6207, %v3043
    %v6394 = vadd.f32 %v3254, %v6210
    %v6395 = vadd.f32 %v6394, %v6211
    %v6396 = vadd.f32 %v6395, %v6212
    %v6397 = vadd.f32 %v6396, %v6213
    %v6398 = vadd.f32 %v6397, %v6214
    %v6399 = vadd.f32 %v6398, %v6215
    %v6400 = vadd.f32 %v6399, %v6216
    %v6401 = vadd.f32 %v6400, %v6217
    %v6402 = vrot.slane %v6401, 4
    %v6403 = vadd.f32 %v6401, %v6402
    %v6404 = vrot.slane %v6403, 2
    %v6405 = vadd.f32 %v6403, %v6404
    %v6406 = vrot.slane %v6405, 1
    %v6407 = vadd.f32 %v6405, %v6406
    %v6408 = vadd.f32 %v6218, %v6219
    %v6409 = vadd.f32 %v6408, %v6220
    %v6410 = vadd.f32 %v6409, %v6221
    %v6411 = vadd.f32 %v6410, %v6222
    %v6412 = vadd.f32 %v6411, %v6223
    %v6413 = vadd.f32 %v6412, %v6224
    %v6414 = vadd.f32 %v6413, %v6225
    %v6415 = vadd.f32 %v6414, %v6226
    %v6416 = vadd.f32 %v6415, %v6227
    %v6417 = vadd.f32 %v6416, %v6228
    %v6418 = vadd.f32 %v6417, %v6229
    %v6419 = vrot.slane %v6418, 4
    %v6420 = vadd.f32 %v6418, %v6419
    %v6421 = vrot.slane %v6420, 2
    %v6422 = vadd.f32 %v6420, %v6421
    %v6423 = vrot.slane %v6422, 1
    %v6424 = vadd.f32 %v6422, %v6423
    %v6425 = vadd.f32 %v6230, %v6231
    %v6426 = vadd.f32 %v6425, %v6232
    %v6427 = vadd.f32 %v6426, %v6233
    %v6428 = vadd.f32 %v6427, %v6234
    %v6429 = vadd.f32 %v6428, %v6235
    %v6430 = vadd.f32 %v6429, %v6236
    %v6431 = vadd.f32 %v6430, %v6237
    %v6432 = vadd.f32 %v6431, %v6238
    %v6433 = vadd.f32 %v6432, %v6239
    %v6434 = vadd.f32 %v6433, %v6240
    %v6435 = vadd.f32 %v6434, %v6241
    %v6436 = vrot.slane %v6435, 4
    %v6437 = vadd.f32 %v6435, %v6436
    %v6438 = vrot.slane %v6437, 2
    %v6439 = vadd.f32 %v6437, %v6438
    %v6440 = vrot.slane %v6439, 1
    %v6441 = vadd.f32 %v6439, %v6440
    %v6442 = vadd.f32 %v6242, %v6243
    %v6443 = vadd.f32 %v6442, %v6244
    %v6444 = vadd.f32 %v6443, %v6245
    %v6445 = vadd.f32 %v6444, %v6246
    %v6446 = vadd.f32 %v6445, %v6247
    %v6447 = vadd.f32 %v6446, %v6248
    %v6448 = vadd.f32 %v6447, %v6249
    %v6449 = vadd.f32 %v6448, %v6250
    %v6450 = vadd.f32 %v6449, %v6251
    %v6451 = vadd.f32 %v6450, %v6252
    %v6452 = vadd.f32 %v6451, %v6253
    %v6453 = vrot.slane %v6452, 4
    %v6454 = vadd.f32 %v6452, %v6453
    %v6455 = vrot.slane %v6454, 2
    %v6456 = vadd.f32 %v6454, %v6455
    %v6457 = vrot.slane %v6456, 1
    %v6458 = vadd.f32 %v6456, %v6457
    %v6459 = vadd.f32 %v6254, %v6255
    %v6460 = vadd.f32 %v6459, %v6256
    %v6461 = vadd.f32 %v6460, %v6257
    %v6462 = vadd.f32 %v6461, %v6258
    %v6463 = vadd.f32 %v6462, %v6259
    %v6464 = vadd.f32 %v6463, %v6260
    %v6465 = vadd.f32 %v6464, %v6261
    %v6466 = vadd.f32 %v6465, %v6262
    %v6467 = vadd.f32 %v6466, %v6263
    %v6468 = vadd.f32 %v6467, %v6264
    %v6469 = vadd.f32 %v6468, %v6265
    %v6470 = vrot.slane %v6469, 4
    %v6471 = vadd.f32 %v6469, %v6470
    %v6472 = vrot.slane %v6471, 2
    %v6473 = vadd.f32 %v6471, %v6472
    %v6474 = vrot.slane %v6473, 1
    %v6475 = vadd.f32 %v6473, %v6474
    %v6476 = vadd.f32 %v6266, %v6267
    %v6477 = vadd.f32 %v6476, %v6268
    %v6478 = vadd.f32 %v6477, %v6269
    %v6479 = vadd.f32 %v6478, %v6270
    %v6480 = vadd.f32 %v6479, %v6271
    %v6481 = vadd.f32 %v6480, %v6272
    %v6482 = vadd.f32 %v6481, %v6273
    %v6483 = vadd.f32 %v6482, %v6274
    %v6484 = vadd.f32 %v6483, %v6275
    %v6485 = vadd.f32 %v6484, %v6276
    %v6486 = vadd.f32 %v6485, %v6277
    %v6487 = vrot.slane %v6486, 4
    %v6488 = vadd.f32 %v6486, %v6487
    %v6489 = vrot.slane %v6488, 2
    %v6490 = vadd.f32 %v6488, %v6489
    %v6491 = vrot.slane %v6490, 1
    %v6492 = vadd.f32 %v6490, %v6491
    %v6493 = vadd.f32 %v6278, %v6279
    %v6494 = vadd.f32 %v6493, %v6280
    %v6495 = vadd.f32 %v6494, %v6281
    %v6496 = vadd.f32 %v6495, %v6282
    %v6497 = vadd.f32 %v6496, %v6283
    %v6498 = vadd.f32 %v6497, %v6284
    %v6499 = vadd.f32 %v6498, %v6285
    %v6500 = vadd.f32 %v6499, %v6286
    %v6501 = vadd.f32 %v6500, %v6287
    %v6502 = vadd.f32 %v6501, %v6288
    %v6503 = vadd.f32 %v6502, %v6289
    %v6504 = vrot.slane %v6503, 4
    %v6505 = vadd.f32 %v6503, %v6504
    %v6506 = vrot.slane %v6505, 2
    %v6507 = vadd.f32 %v6505, %v6506
    %v6508 = vrot.slane %v6507, 1
    %v6509 = vadd.f32 %v6507, %v6508
    %v6510 = vadd.f32 %v6290, %v6291
    %v6511 = vadd.f32 %v6510, %v6292
    %v6512 = vadd.f32 %v6511, %v6293
    %v6513 = vadd.f32 %v6512, %v6294
    %v6514 = vadd.f32 %v6513, %v6295
    %v6515 = vadd.f32 %v6514, %v6296
    %v6516 = vadd.f32 %v6515, %v6297
    %v6517 = vadd.f32 %v6516, %v6298
    %v6518 = vadd.f32 %v6517, %v6299
    %v6519 = vadd.f32 %v6518, %v6300
    %v6520 = vadd.f32 %v6519, %v6301
    %v6521 = vrot.slane %v6520, 4
    %v6522 = vadd.f32 %v6520, %v6521
    %v6523 = vrot.slane %v6522, 2
    %v6524 = vadd.f32 %v6522, %v6523
    %v6525 = vrot.slane %v6524, 1
    %v6526 = vadd.f32 %v6524, %v6525
    %v6527 = vadd.f32 %v6302, %v6303
    %v6528 = vadd.f32 %v6527, %v6304
    %v6529 = vadd.f32 %v6528, %v6305
    %v6530 = vadd.f32 %v6529, %v6306
    %v6531 = vadd.f32 %v6530, %v6307
    %v6532 = vadd.f32 %v6531, %v6308
    %v6533 = vadd.f32 %v6532, %v6309
    %v6534 = vadd.f32 %v6533, %v6310
    %v6535 = vadd.f32 %v6534, %v6311
    %v6536 = vadd.f32 %v6535, %v6312
    %v6537 = vadd.f32 %v6536, %v6313
    %v6538 = vrot.slane %v6537, 4
    %v6539 = vadd.f32 %v6537, %v6538
    %v6540 = vrot.slane %v6539, 2
    %v6541 = vadd.f32 %v6539, %v6540
    %v6542 = vrot.slane %v6541, 1
    %v6543 = vadd.f32 %v6541, %v6542
    %v6544 = vadd.f32 %v6314, %v6315
    %v6545 = vadd.f32 %v6544, %v6316
    %v6546 = vadd.f32 %v6545, %v6317
    %v6547 = vadd.f32 %v6546, %v6318
    %v6548 = vadd.f32 %v6547, %v6319
    %v6549 = vadd.f32 %v6548, %v6320
    %v6550 = vadd.f32 %v6549, %v6321
    %v6551 = vadd.f32 %v6550, %v6322
    %v6552 = vadd.f32 %v6551, %v6323
    %v6553 = vadd.f32 %v6552, %v6324
    %v6554 = vadd.f32 %v6553, %v6325
    %v6555 = vrot.slane %v6554, 4
    %v6556 = vadd.f32 %v6554, %v6555
    %v6557 = vrot.slane %v6556, 2
    %v6558 = vadd.f32 %v6556, %v6557
    %v6559 = vrot.slane %v6558, 1
    %v6560 = vadd.f32 %v6558, %v6559
    %v6561 = vadd.f32 %v6326, %v6327
    %v6562 = vadd.f32 %v6561, %v6328
    %v6563 = vadd.f32 %v6562, %v6329
    %v6564 = vadd.f32 %v6563, %v6330
    %v6565 = vadd.f32 %v6564, %v6331
    %v6566 = vadd.f32 %v6565, %v6332
    %v6567 = vadd.f32 %v6566, %v6333
    %v6568 = vadd.f32 %v6567, %v6334
    %v6569 = vadd.f32 %v6568, %v6335
    %v6570 = vadd.f32 %v6569, %v6336
    %v6571 = vadd.f32 %v6570, %v6337
    %v6572 = vrot.slane %v6571, 4
    %v6573 = vadd.f32 %v6571, %v6572
    %v6574 = vrot.slane %v6573, 2
    %v6575 = vadd.f32 %v6573, %v6574
    %v6576 = vrot.slane %v6575, 1
    %v6577 = vadd.f32 %v6575, %v6576
    %v6578 = vadd.f32 %v6338, %v6339
    %v6579 = vadd.f32 %v6578, %v6340
    %v6580 = vadd.f32 %v6579, %v6341
    %v6581 = vadd.f32 %v6580, %v6342
    %v6582 = vadd.f32 %v6581, %v6343
    %v6583 = vadd.f32 %v6582, %v6344
    %v6584 = vadd.f32 %v6583, %v6345
    %v6585 = vadd.f32 %v6584, %v6346
    %v6586 = vadd.f32 %v6585, %v6347
    %v6587 = vadd.f32 %v6586, %v6348
    %v6588 = vadd.f32 %v6587, %v6349
    %v6589 = vrot.slane %v6588, 4
    %v6590 = vadd.f32 %v6588, %v6589
    %v6591 = vrot.slane %v6590, 2
    %v6592 = vadd.f32 %v6590, %v6591
    %v6593 = vrot.slane %v6592, 1
    %v6594 = vadd.f32 %v6592, %v6593
    %v6595 = vadd.f32 %v6350, %v6351
    %v6596 = vadd.f32 %v6595, %v6352
    %v6597 = vadd.f32 %v6596, %v6353
    %v6598 = vadd.f32 %v6597, %v6354
    %v6599 = vadd.f32 %v6598, %v6355
    %v6600 = vadd.f32 %v6599, %v6356
    %v6601 = vadd.f32 %v6600, %v6357
    %v6602 = vadd.f32 %v6601, %v6358
    %v6603 = vadd.f32 %v6602, %v6359
    %v6604 = vadd.f32 %v6603, %v6360
    %v6605 = vadd.f32 %v6604, %v6361
    %v6606 = vrot.slane %v6605, 4
    %v6607 = vadd.f32 %v6605, %v6606
    %v6608 = vrot.slane %v6607, 2
    %v6609 = vadd.f32 %v6607, %v6608
    %v6610 = vrot.slane %v6609, 1
    %v6611 = vadd.f32 %v6609, %v6610
    %v6612 = vadd.f32 %v6362, %v6363
    %v6613 = vadd.f32 %v6612, %v6364
    %v6614 = vadd.f32 %v6613, %v6365
    %v6615 = vadd.f32 %v6614, %v6366
    %v6616 = vadd.f32 %v6615, %v6367
    %v6617 = vadd.f32 %v6616, %v6368
    %v6618 = vadd.f32 %v6617, %v6369
    %v6619 = vadd.f32 %v6618, %v6370
    %v6620 = vadd.f32 %v6619, %v6371
    %v6621 = vadd.f32 %v6620, %v6372
    %v6622 = vadd.f32 %v6621, %v6373
    %v6623 = vrot.slane %v6622, 4
    %v6624 = vadd.f32 %v6622, %v6623
    %v6625 = vrot.slane %v6624, 2
    %v6626 = vadd.f32 %v6624, %v6625
    %v6627 = vrot.slane %v6626, 1
    %v6628 = vadd.f32 %v6626, %v6627
    %v6629 = vadd.f32 %v6374, %v6375
    %v6630 = vadd.f32 %v6629, %v6376
    %v6631 = vadd.f32 %v6630, %v6377
    %v6632 = vadd.f32 %v6631, %v6378
    %v6633 = vadd.f32 %v6632, %v6379
    %v6634 = vadd.f32 %v6633, %v6380
    %v6635 = vadd.f32 %v6634, %v6381
    %v6636 = vadd.f32 %v6635, %v6382
    %v6637 = vadd.f32 %v6636, %v6383
    %v6638 = vadd.f32 %v6637, %v6384
    %v6639 = vadd.f32 %v6638, %v6385
    %v6640 = vrot.slane %v6639, 4
    %v6641 = vadd.f32 %v6639, %v6640
    %v6642 = vrot.slane %v6641, 2
    %v6643 = vadd.f32 %v6641, %v6642
    %v6644 = vrot.slane %v6643, 1
    %v6645 = vadd.f32 %v6643, %v6644
    %v6646 = vadd.f32 %v6386, %v6387
    %v6647 = vadd.f32 %v6646, %v6388
    %v6648 = vadd.f32 %v6647, %v6389
    %v6649 = vadd.f32 %v6648, %v6390
    %v6650 = vadd.f32 %v6649, %v6391
    %v6651 = vadd.f32 %v6650, %v6392
    %v6652 = vadd.f32 %v6651, %v6393
    %v6653 = vadd.f32 %v6652, %v3248
    %v6654 = vadd.f32 %v6653, %v3249
    %v6655 = vadd.f32 %v6654, %v3250
    %v6656 = vadd.f32 %v6655, %v3251
    %v6657 = vrot.slane %v6656, 4
    %v6658 = vadd.f32 %v6656, %v6657
    %v6659 = vrot.slane %v6658, 2
    %v6660 = vadd.f32 %v6658, %v6659
    %v6661 = vrot.slane %v6660, 1
    %v6662 = vadd.f32 %v6660, %v6661
    %v6663 = vadd.f32 %v6407, %v3525
    %v6664 = vadd.f32 %v6424, %v3525
    %v6665 = vadd.f32 %v6441, %v3525
    %v6666 = vadd.f32 %v6458, %v3525
    %v6667 = vadd.f32 %v6475, %v3525
    %v6668 = vadd.f32 %v6492, %v3525
    %v6669 = vadd.f32 %v6509, %v3525
    %v6670 = vadd.f32 %v6526, %v3525
    %v6671 = vadd.f32 %v6543, %v3525
    %v6672 = vadd.f32 %v6560, %v3525
    %v6673 = vadd.f32 %v6577, %v3525
    %v6674 = vadd.f32 %v6594, %v3525
    %v6675 = vadd.f32 %v6611, %v3525
    %v6676 = vadd.f32 %v6628, %v3525
    %v6677 = vadd.f32 %v6645, %v3525
    %v6678 = vadd.f32 %v6662, %v3525
    %v6679 = vand.u32 2147483647, %v6663
    %v6680 = vand.u32 2147483647, %v6664
    %v6681 = vand.u32 2147483647, %v6665
    %v6682 = vand.u32 2147483647, %v6666
    %v6683 = vand.u32 2147483647, %v6667
    %v6684 = vand.u32 2147483647, %v6668
    %v6685 = vand.u32 2147483647, %v6669
    %v6686 = vand.u32 2147483647, %v6670
    %v6687 = vand.u32 2147483647, %v6671
    %v6688 = vand.u32 2147483647, %v6672
    %v6689 = vand.u32 2147483647, %v6673
    %v6690 = vand.u32 2147483647, %v6674
    %v6691 = vand.u32 2147483647, %v6675
    %v6692 = vand.u32 2147483647, %v6676
    %v6693 = vand.u32 2147483647, %v6677
    %v6694 = vand.u32 2147483647, %v6678
    %v6695 = vsub.f32 0.0, %v6679
    %v6696 = vsub.f32 0.0, %v6680
    %v6697 = vsub.f32 0.0, %v6681
    %v6698 = vsub.f32 0.0, %v6682
    %v6699 = vsub.f32 0.0, %v6683
    %v6700 = vsub.f32 0.0, %v6684
    %v6701 = vsub.f32 0.0, %v6685
    %v6702 = vsub.f32 0.0, %v6686
    %v6703 = vsub.f32 0.0, %v6687
    %v6704 = vsub.f32 0.0, %v6688
    %v6705 = vsub.f32 0.0, %v6689
    %v6706 = vsub.f32 0.0, %v6690
    %v6707 = vsub.f32 0.0, %v6691
    %v6708 = vsub.f32 0.0, %v6692
    %v6709 = vsub.f32 0.0, %v6693
    %v6710 = vsub.f32 0.0, %v6694
    %v6711 = vmul.f32 %v6695, 1.442695
    %v6712 = vpow.pop %v6711
    %v6713 = vmul.f32 %v6696, 1.442695
    %v6714 = vpow.pop %v6713
    %v6715 = vmul.f32 %v6697, 1.442695
    %v6716 = vpow.pop %v6715
    %v6717 = vmul.f32 %v6698, 1.442695
    %v6718 = vpow.pop %v6717
    %v6719 = vmul.f32 %v6699, 1.442695
    %v6720 = vpow.pop %v6719
    %v6721 = vmul.f32 %v6700, 1.442695
    %v6722 = vpow.pop %v6721
    %v6723 = vmul.f32 %v6701, 1.442695
    %v6724 = vpow.pop %v6723
    %v6725 = vmul.f32 %v6702, 1.442695
    %v6726 = vpow.pop %v6725
    %v6727 = vmul.f32 %v6703, 1.442695
    %v6728 = vpow.pop %v6727
    %v6729 = vmul.f32 %v6704, 1.442695
    %v6730 = vpow.pop %v6729
    %v6731 = vmul.f32 %v6705, 1.442695
    %v6732 = vpow.pop %v6731
    %v6733 = vmul.f32 %v6706, 1.442695
    %v6734 = vpow.pop %v6733
    %v6735 = vmul.f32 %v6707, 1.442695
    %v6736 = vpow.pop %v6735
    %v6737 = vmul.f32 %v6708, 1.442695
    %v6738 = vpow.pop %v6737
    %v6739 = vmul.f32 %v6709, 1.442695
    %v6740 = vpow.pop %v6739
    %v6741 = vmul.f32 %v6710, 1.442695
    %v6742 = vpow.pop %v6741
    %vm6743 = vcmp.ge.f32.partialorder %v6663, 0.0
    %vm6744 = vcmp.ge.f32.partialorder %v6664, 0.0
    %vm6745 = vcmp.ge.f32.partialorder %v6665, 0.0
    %vm6746 = vcmp.ge.f32.partialorder %v6666, 0.0
    %vm6747 = vcmp.ge.f32.partialorder %v6667, 0.0
    %vm6748 = vcmp.ge.f32.partialorder %v6668, 0.0
    %vm6749 = vcmp.ge.f32.partialorder %v6669, 0.0
    %vm6750 = vcmp.ge.f32.partialorder %v6670, 0.0
    %vm6751 = vcmp.ge.f32.partialorder %v6671, 0.0
    %vm6752 = vcmp.ge.f32.partialorder %v6672, 0.0
    %vm6753 = vcmp.ge.f32.partialorder %v6673, 0.0
    %vm6754 = vcmp.ge.f32.partialorder %v6674, 0.0
    %vm6755 = vcmp.ge.f32.partialorder %v6675, 0.0
    %vm6756 = vcmp.ge.f32.partialorder %v6676, 0.0
    %vm6757 = vcmp.ge.f32.partialorder %v6677, 0.0
    %vm6758 = vcmp.ge.f32.partialorder %v6678, 0.0
    %v6759 = vsel %vm6743, 1.0, %v6712
    %v6760 = vsel %vm6744, 1.0, %v6714
    %v6761 = vsel %vm6745, 1.0, %v6716
    %v6762 = vsel %vm6746, 1.0, %v6718
    %v6763 = vsel %vm6747, 1.0, %v6720
    %v6764 = vsel %vm6748, 1.0, %v6722
    %v6765 = vsel %vm6749, 1.0, %v6724
    %v6766 = vsel %vm6750, 1.0, %v6726
    %v6767 = vsel %vm6751, 1.0, %v6728
    %v6768 = vsel %vm6752, 1.0, %v6730
    %v6769 = vsel %vm6753, 1.0, %v6732
    %v6770 = vsel %vm6754, 1.0, %v6734
    %v6771 = vsel %vm6755, 1.0, %v6736
    %v6772 = vsel %vm6756, 1.0, %v6738
    %v6773 = vsel %vm6757, 1.0, %v6740
    %v6774 = vsel %vm6758, 1.0, %v6742
    %v6775 = vadd.f32 %v6712, 1.0
    %v6776 = vadd.f32 %v6714, 1.0
    %v6777 = vadd.f32 %v6716, 1.0
    %v6778 = vadd.f32 %v6718, 1.0
    %v6779 = vadd.f32 %v6720, 1.0
    %v6780 = vadd.f32 %v6722, 1.0
    %v6781 = vadd.f32 %v6724, 1.0
    %v6782 = vadd.f32 %v6726, 1.0
    %v6783 = vadd.f32 %v6728, 1.0
    %v6784 = vadd.f32 %v6730, 1.0
    %v6785 = vadd.f32 %v6732, 1.0
    %v6786 = vadd.f32 %v6734, 1.0
    %v6787 = vadd.f32 %v6736, 1.0
    %v6788 = vadd.f32 %v6738, 1.0
    %v6789 = vadd.f32 %v6740, 1.0
    %v6790 = vadd.f32 %v6742, 1.0
    %v6791 = vrcp.pop %v6775
    %v6792 = vmul.f32 %v6759, %v6791
    %v6793 = vrcp.pop %v6776
    %v6794 = vmul.f32 %v6760, %v6793
    %v6795 = vrcp.pop %v6777
    %v6796 = vmul.f32 %v6761, %v6795
    %v6797 = vrcp.pop %v6778
    %v6798 = vmul.f32 %v6762, %v6797
    %v6799 = vrcp.pop %v6779
    %v6800 = vmul.f32 %v6763, %v6799
    %v6801 = vrcp.pop %v6780
    %v6802 = vmul.f32 %v6764, %v6801
    %v6803 = vrcp.pop %v6781
    %v6804 = vmul.f32 %v6765, %v6803
    %v6805 = vrcp.pop %v6782
    %v6806 = vmul.f32 %v6766, %v6805
    %v6807 = vrcp.pop %v6783
    %v6808 = vmul.f32 %v6767, %v6807
    %v6809 = vrcp.pop %v6784
    %v6810 = vmul.f32 %v6768, %v6809
    %v6811 = vrcp.pop %v6785
    %v6812 = vmul.f32 %v6769, %v6811
    %v6813 = vrcp.pop %v6786
    %v6814 = vmul.f32 %v6770, %v6813
    %v6815 = vrcp.pop %v6787
    %v6816 = vmul.f32 %v6771, %v6815
    %v6817 = vrcp.pop %v6788
    %v6818 = vmul.f32 %v6772, %v6817
    %v6819 = vrcp.pop %v6789
    %v6820 = vmul.f32 %v6773, %v6819
    %v6821 = vrcp.pop %v6790
    %v6822 = vmul.f32 %v6774, %v6821
    %vm6839 = vcmask 1041409
    %v6840 = vsel %vm6839, %v6794, %v6792
    %vm6841 = vcmask 1042434
    %v6842 = vsel %vm6841, %v6796, %v6840
    %vm6843 = vcmask 1043459
    %v6844 = vsel %vm6843, %v6798, %v6842
    %vm6845 = vcmask 1044484
    %v6846 = vsel %vm6845, %v6800, %v6844
    %vm6847 = vcmask 1045509
    %v6848 = vsel %vm6847, %v6802, %v6846
    %vm6849 = vcmask 1046534
    %v6850 = vsel %vm6849, %v6804, %v6848
    %vm6851 = vcmask 1047559
    %v6852 = vsel %vm6851, %v6806, %v6850
    %v6853 = vsel %vm6839, %v6810, %v6808
    %v6854 = vsel %vm6841, %v6812, %v6853
    %v6855 = vsel %vm6843, %v6814, %v6854
    %v6856 = vsel %vm6845, %v6816, %v6855
    %v6857 = vsel %vm6847, %v6818, %v6856
    %v6858 = vsel %vm6849, %v6820, %v6857
    %v6859 = vsel %vm6851, %v6822, %v6858
    %6862 = vst [vmem:[#allocation3] sm:$0xff] %v6852
    %6863 = vst [vmem:[#allocation3 + $0x8] sm:$0xff] %v6859
    // Predicated region
    $region62: #{tpu_custom_call.1} parent=1 // pred_check
      _
    $region63: #{tpu_custom_call.1} parent=1 // pred_check_branch
      %6865 = sbr.rel (0) target = $region65
    $region64: #{tpu_custom_call.1} parent=1 // pred_region
      %s6867 = ssub.s32 256, 256
      %6868 = vsyncadd [#allocation4], %s6867
      %s6869 = sshll.u32 [#allocation3], 4
      %s6870 = int_to_ptr.vmem [resolvable:$true] %s6869
      %6875 = dma.vmem_to_hbm [thread:$0]  %s6870, 256, %s15, [#allocation4], 128, 128, 8
    $region65: #{tpu_custom_call.1} parent=1 // pred_fallthru
      _
    // Predicated region
    $region66: #{tpu_custom_call.1} parent=1 // pred_check
      _
    $region67: #{tpu_custom_call.1} parent=1 // pred_check_branch
      %6877 = sbr.rel (0) target = $region69
    $region68: #{tpu_custom_call.1} parent=1 // pred_region
      %6878 = dma.done [#allocation4], 256
    $region69: #{tpu_custom_call.1} parent=1 // pred_fallthru
      _
    %6879 = vsyncpa [#allocation4], 1

</llo_original>
